<compile_context>
chip_gen: v6e
topology: v6e:2x2x1
jax: 0.10.0
libtpu: 0.0.40
codegen_flags: <defaults>
</compile_context>

<pallas_src>
import functools

import jax
import jax.numpy as jnp
from jax.experimental import pallas as pl
from jax.experimental.pallas import tpu as pltpu

HIDDEN = 32       # hidden_size
C1 = 16           # conv1 output channels (= output_channel // 2)
C2 = 32           # conv2 output channels (= output_channel)
K1 = 32           # conv1 im2col contraction: 9 taps * 3 channels = 27 -> pad to 32
BN_EPS = 1e-5


def _round_up(x, m):
    return (x + m - 1) // m * m


# ------------------------------ fused kernel ------------------------------- #

def _backbones_kernel(
    xv_ref, wm_ref, bm_ref,          # vector branch (f32)
    xp_ref, w1_ref, p1_ref,          # conv1: im2col patches (bf16), weight (bf16), [bias;gamma;beta]
    w2_ref, p2_ref,                  # conv2: (9, C1, C2) bf16, [bias;gamma;beta]
    wt_ref, bt_ref,                  # tail Linear: (HP2*WP2, C2, hidden) bf16, bias f32
    o_ref,                           # (NB, 2*hidden) f32: [vector | image]
    x1p_ref,                         # f32 scratch: zero-haloed conv1 output, flat rows
    *, n_true, H, W, NB,
):
    f32 = jnp.float32
    bf16 = jnp.bfloat16
    c1 = w1_ref.shape[1]
    c2 = w2_ref.shape[2]
    HP1, WP1 = H // 2, W // 2
    HP2, WP2 = HP1 // 2, WP1 // 2
    RW = WP1 + 2                     # padded row width of the conv2 input

    # batch-validity mask built in-kernel (no DMA for a handful of floats)
    bmask = (jax.lax.broadcasted_iota(jnp.int32, (NB, 1), 0) < n_true).astype(f32)

    # ---------------- vector branch: Linear + ReLU --------------------------
    h_vec = jnp.dot(xv_ref[...], wm_ref[...], preferred_element_type=f32)
    h_vec = jnp.maximum(h_vec + bm_ref[...], 0.0)                 # (NB, hidden)

    # -------- zero ONLY the halo of the conv2 input scratch ------------------
    # (interior is written exactly once by conv block 1 below; no double write)
    zdt = x1p_ref.dtype
    # top padded row + left halo of interior row 1 (contiguous flat rows)
    x1p_ref[pl.ds(0, RW + 1)] = jnp.zeros((RW + 1, NB, c1), zdt)
    # right halo of row r + left halo of row r+1 are adjacent flat rows
    for r in range(1, HP1):
        x1p_ref[pl.ds(r * RW + RW - 1, 2)] = jnp.zeros((2, NB, c1), zdt)
    # right halo of the last interior row + bottom padded row + slack rows
    tail0 = HP1 * RW + RW - 1
    x1p_ref[pl.ds(tail0, x1p_ref.shape[0] - tail0)] = jnp.zeros(
        (x1p_ref.shape[0] - tail0, NB, c1), zdt)

    # -------- conv block 1: one K-stacked MXU matmul (wrapper-side im2col) ---
    y = jnp.dot(xp_ref[...], w1_ref[...], preferred_element_type=f32)  # (H*W*NB, C1)
    p1 = p1_ref[...]
    y = y + p1[0:1]
    # 2x2 stride-2 max pool: rows are (h, w, batch)-ordered, so every reshape
    # below only splits/merges major axes (pure vreg re-indexing).
    y = y.reshape(HP1, 2, W * NB, c1)
    y = jnp.maximum(y[:, 0], y[:, 1])                             # pool along H
    y = y.reshape(HP1 * WP1, 2, NB, c1)
    y = jnp.maximum(y[:, 0], y[:, 1])                             # pool along W
    y = jnp.maximum(y, 0.0)                                       # ReLU
    # BatchNorm2d (training-mode stats over the real batch rows), stats in f32
    inv1 = 1.0 / float(n_true * HP1 * WP1)
    ym = (y * bmask.reshape(1, NB, 1)).reshape(HP1 * WP1 * NB, c1)
    mean1 = jnp.sum(ym, axis=0, keepdims=True) * inv1
    var1 = jnp.sum(ym * ym, axis=0, keepdims=True) * inv1 - mean1 * mean1
    y = (y - mean1) * jax.lax.rsqrt(var1 + BN_EPS) * p1[1:2] + p1[2:3]

    # stage conv1 output into the scratch interior (contiguous-row stores)
    y = y.reshape(HP1, WP1, NB, c1).astype(zdt)
    for r in range(HP1):
        x1p_ref[pl.ds((r + 1) * RW + 1, WP1)] = y[r]

    # -------- conv block 2: 9 accumulated dots over contiguous-row taps ------
    acc = None
    for k in range(9):
        kh, kw = divmod(k, 3)
        # zero-copy tap view: contiguous leading-dim slice of the flat scratch;
        # the 2 extra (garbage) columns per row are dropped after pooling.
        tap = x1p_ref[pl.ds(kh * RW + kw, HP1 * RW)]
        tap = tap.reshape(HP1 * RW * NB, c1).astype(bf16)
        d = jnp.dot(tap, w2_ref[k], preferred_element_type=f32)
        acc = d if acc is None else acc + d
    p2 = p2_ref[...]
    y2 = acc + p2[0:1]                                            # (HP1*RW*NB, C2)
    # 2x2 stride-2 max pool, then drop the garbage columns jj >= WP1
    y2 = y2.reshape(HP2, 2, RW * NB, c2)
    y2 = jnp.maximum(y2[:, 0], y2[:, 1])                          # pool along H
    y2 = y2.reshape(HP2 * (RW // 2), 2, NB, c2)
    y2 = jnp.maximum(y2[:, 0], y2[:, 1])                          # pool along W
    y2 = y2.reshape(HP2, RW // 2, NB, c2)[:, :WP2]                # (HP2, WP2, NB, C2)
    y2 = jnp.maximum(y2, 0.0)                                     # ReLU
    # BatchNorm2d #2
    inv2 = 1.0 / float(n_true * HP2 * WP2)
    ym2 = (y2 * bmask.reshape(1, 1, NB, 1)).reshape(HP2 * WP2 * NB, c2)
    mean2 = jnp.sum(ym2, axis=0, keepdims=True) * inv2
    var2 = jnp.sum(ym2 * ym2, axis=0, keepdims=True) * inv2 - mean2 * mean2
    y2 = (y2 - mean2) * jax.lax.rsqrt(var2 + BN_EPS) * p2[1:2] + p2[2:3]

    # -------- cnn tail Linear (weights pre-permuted to (i, j, c) order) ------
    xt = y2.astype(bf16).reshape(HP2 * WP2, NB, c2)
    acc = None
    for ij in range(HP2 * WP2):
        d = jnp.dot(xt[ij], wt_ref[ij], preferred_element_type=f32)
        acc = d if acc is None else acc + d
    h_img = acc + bt_ref[...]                                     # (NB, hidden)

    # lane-dense output slab: [vector | image]
    o_ref[...] = jnp.concatenate([h_vec, h_img], axis=-1)


# ------------------------------- parameters -------------------------------- #

def init_params(key, vec_dim, img_hw, hidden=HIDDEN):
    """Parameters in native PyTorch layouts (a real state_dict drops in 1:1)."""
    ks = jax.random.split(key, 7)
    f32 = jnp.float32
    after_conv = C2 * (img_hw // 4) ** 2
    return {
        "mlp_w": 0.1 * jax.random.normal(ks[0], (hidden, vec_dim), f32),    # Linear.weight
        "mlp_b": 0.1 * jax.random.normal(ks[1], (hidden,), f32),
        "conv1_w": 0.1 * jax.random.normal(ks[2], (C1, 3, 3, 3), f32),      # Conv2d.weight (OIHW)
        "conv1_b": 0.1 * jax.random.normal(ks[3], (C1,), f32),
        "bn1_g": jnp.ones((C1,), f32),
        "bn1_b": jnp.zeros((C1,), f32),
        "conv2_w": 0.1 * jax.random.normal(ks[4], (C2, C1, 3, 3), f32),
        "conv2_b": 0.1 * jax.random.normal(ks[5], (C2,), f32),
        "bn2_g": jnp.ones((C2,), f32),
        "bn2_b": jnp.zeros((C2,), f32),
        "tail_w": 0.1 * jax.random.normal(ks[6], (hidden, after_conv), f32),  # Linear.weight
        "tail_b": jnp.zeros((hidden,), f32),
    }


def pack_params(params, img_hw):
    """One-time re-layout of the PyTorch parameters for the fused kernel.

    * conv1 weight -> (32, 16) bf16: (kh, kw, cin) K-stacked (matches the
      wrapper-side im2col), zero padded 27 -> 32.
    * conv2 weight -> (9, 16, 32) bf16: 3x3 tap leading, (cin, cout) per tap.
    * bias / BN gamma / beta stacked into one (3, C) f32 array per block.
    * tail Linear -> (hp2*wp2, 32, hidden) bf16: rows permuted from the NCHW
      flatten order (c, i, j) to the kernel's (i, j, c) order.
    Zero runtime cost: done once, outside the forward pass.
    """
    f32, bf16 = jnp.float32, jnp.bfloat16
    hidden = params["mlp_w"].shape[0]
    hp2 = wp2 = img_hw // 4

    def stack_bn(bias, gamma, beta):
        return jnp.stack([bias, gamma, beta]).astype(f32)          # (3, C)

    w1 = jnp.transpose(params["conv1_w"].astype(f32), (2, 3, 1, 0)).reshape(27, C1)
    w1 = jnp.pad(w1, ((0, K1 - 27), (0, 0))).astype(bf16)          # (32, 16)

    w2 = jnp.transpose(params["conv2_w"].astype(f32), (2, 3, 1, 0)).reshape(9, C1, C2)

    wt = params["tail_w"].astype(f32).reshape(hidden, C2, hp2, wp2)
    wt = jnp.transpose(wt, (2, 3, 1, 0)).reshape(hp2 * wp2, C2, hidden)

    return {
        "mlp_w": jnp.transpose(params["mlp_w"].astype(f32)),       # (vec_dim, hidden)
        "mlp_b": params["mlp_b"].reshape(1, -1).astype(f32),
        "conv1_w": w1,
        "bn1": stack_bn(params["conv1_b"], params["bn1_g"], params["bn1_b"]),
        "conv2_w": w2.astype(bf16),
        "bn2": stack_bn(params["conv2_b"], params["bn2_g"], params["bn2_b"]),
        "tail_w": wt.astype(bf16),
        "tail_b": params["tail_b"].reshape(1, -1).astype(f32),
    }


# ------------------------------- forward pass ------------------------------ #

@jax.jit
def backbones_forward(packed, x_vec, x_img_nchw):
    n = x_vec.shape[0]
    _, cin, H, W = x_img_nchw.shape
    assert cin == 3 and H == W and H % 4 == 0, "image state must be (N, 3, S, S), S % 4 == 0"
    hidden = packed["mlp_w"].shape[1]
    NB = _round_up(max(n, 8), 8)          # batch padded to the sublane size

    # vector input, batch padded to the sublane size
    xv = jnp.pad(x_vec.astype(jnp.float32), ((0, NB - n), (0, 0)))

    # conv1 im2col in the wrapper (pure layout, no arithmetic): compact
    # (H*W*NB, 27->32) bf16 patches instead of a 128-lane padded image.
    xi = jnp.transpose(x_img_nchw.astype(jnp.float32), (2, 3, 0, 1))     # (H, W, N, 3)
    xi = jnp.pad(xi, ((1, 1), (1, 1), (0, NB - n), (0, 0)))              # (H+2, W+2, NB, 3)
    patches = jnp.concatenate(
        [xi[kh:kh + H, kw:kw + W] for kh in range(3) for kw in range(3)], axis=-1)
    patches = patches.reshape(H * W * NB, 9 * cin)
    patches = jnp.pad(patches, ((0, 0), (0, K1 - 9 * cin))).astype(jnp.bfloat16)

    HP1, WP1 = H // 2, W // 2
    RW = WP1 + 2
    rows = (HP1 + 2) * RW + 2        # +2 slack rows keep the kh=2 tap slices in bounds

    args = (
        xv, packed["mlp_w"], packed["mlp_b"],
        patches, packed["conv1_w"], packed["bn1"],
        packed["conv2_w"], packed["bn2"],
        packed["tail_w"], packed["tail_b"],
    )

    kernel = functools.partial(_backbones_kernel, n_true=n, H=H, W=W, NB=NB)
    out = pl.pallas_call(
        kernel,
        out_shape=jax.ShapeDtypeStruct((NB, 2 * hidden), jnp.float32),
        in_specs=[pl.BlockSpec(memory_space=pltpu.MemorySpace.VMEM)] * len(args),
        out_specs=pl.BlockSpec(memory_space=pltpu.MemorySpace.VMEM),
        scratch_shapes=[pltpu.VMEM((rows, NB, C1), jnp.float32)],
    )(*args)

    # branch outputs already concatenated in state_space order: [vector, image]
    return out[:n]


# ------------------------ pure-JAX reference (check) ----------------------- #

def _reference_forward(params, x_vec, x_img_nchw):
    """Independent XLA reference with PyTorch semantics (training-mode BN)."""
    h_vec = jnp.maximum(x_vec @ params["mlp_w"].T + params["mlp_b"], 0.0)

    def block(x, w_oihw, b, g, beta):
        y = jax.lax.conv_general_dilated(
            x, w_oihw, window_strides=(1, 1), padding="SAME",
            dimension_numbers=("NCHW", "OIHW", "NCHW")) + b.reshape(1, -1, 1, 1)
        y = jax.lax.reduce_window(y, -jnp.inf, jax.lax.max,
                                  (1, 1, 2, 2), (1, 1, 2, 2), "VALID")
        y = jnp.maximum(y, 0.0)
        mean = jnp.mean(y, axis=(0, 2, 3), keepdims=True)
        var = jnp.mean((y - mean) ** 2, axis=(0, 2, 3), keepdims=True)
        return (y - mean) * jax.lax.rsqrt(var + BN_EPS) * g.reshape(1, -1, 1, 1) \
            + beta.reshape(1, -1, 1, 1)

    z = block(x_img_nchw, params["conv1_w"], params["conv1_b"],
              params["bn1_g"], params["bn1_b"])
    z = block(z, params["conv2_w"], params["conv2_b"],
              params["bn2_g"], params["bn2_b"])
    flat = z.reshape(z.shape[0], -1)                  # NCHW flatten (== .view())
    h_img = flat @ params["tail_w"].T + params["tail_b"]
    return jnp.concatenate([h_vec, h_img], axis=-1)


if __name__ == "__main__":
    key = jax.random.PRNGKey(0)
    k_params, k_vec, k_img = jax.random.split(key, 3)

    batch, vec_dim, img_hw = 2, 8, 16
    params = init_params(k_params, vec_dim, img_hw, HIDDEN)
    packed = pack_params(params, img_hw)

    x_vec = jax.random.normal(k_vec, (batch, vec_dim), jnp.float32)
    x_img = jax.random.normal(k_img, (batch, 3, img_hw, img_hw), jnp.float32)

    out = jax.block_until_ready(backbones_forward(packed, x_vec, x_img))
    assert out.shape == (batch, 2 * HIDDEN), out.shape
    assert bool(jnp.all(jnp.isfinite(out)))

    # Numerical check against an independent pure-JAX f32 reference.  The kernel
    # runs the MXU with bf16 operands (f32 accumulation / f32 BN stats), so the
    # check is relative rather than a tight absolute tolerance.
    ref = _reference_forward(params, x_vec, x_img)
    abs_err = float(jnp.max(jnp.abs(out - ref)))
    rel_err = float(jnp.linalg.norm(out - ref) / (jnp.linalg.norm(ref) + 1e-12))
    assert rel_err < 2e-2 and abs_err < 0.2, (abs_err, rel_err)

    print("KERNEL_OK")
</pallas_src>

<mosaic_0001>
module attributes {stable_mosaic.version = 11 : i64} {
  func.func @_backbones_kernel(%arg0: memref<8x8xf32, #tpu.memory_space<vmem>>, %arg1: memref<8x32xf32, #tpu.memory_space<vmem>>, %arg2: memref<1x32xf32, #tpu.memory_space<vmem>>, %arg3: memref<2048x32xbf16, #tpu.memory_space<vmem>>, %arg4: memref<32x16xbf16, #tpu.memory_space<vmem>>, %arg5: memref<3x16xf32, #tpu.memory_space<vmem>>, %arg6: memref<9x16x32xbf16, #tpu.memory_space<vmem>>, %arg7: memref<3x32xf32, #tpu.memory_space<vmem>>, %arg8: memref<16x32x32xbf16, #tpu.memory_space<vmem>>, %arg9: memref<1x32xf32, #tpu.memory_space<vmem>>, %arg10: memref<8x64xf32, #tpu.memory_space<vmem>>, %arg11: memref<102x8x16xf32, #tpu.memory_space<vmem>>) attributes {dimension_semantics = [], scalar_prefetch = 0 : i64, scratch_operands = 1 : i64, tpu.core_type = #tpu.core_type<tc>} {
    %0 = tpu.iota {dimensions = array<i32: 0>} : vector<8x1xi32>
    %c2_i32 = arith.constant 2 : i32
    %1 = vector.broadcast %c2_i32 : i32 to vector<8x1xi32>
    %2 = arith.cmpi slt, %0, %1 : vector<8x1xi32>
    %3 = arith.extui %2 : vector<8x1xi1> to vector<8x1xi32>
    %4 = arith.sitofp %3 : vector<8x1xi32> to vector<8x1xf32>
    %c0 = arith.constant 0 : index
    %c0_0 = arith.constant 0 : index
    %5 = vector.load %arg0[%c0, %c0_0] : memref<8x8xf32, #tpu.memory_space<vmem>>, vector<8x8xf32>
    %c0_1 = arith.constant 0 : index
    %c0_2 = arith.constant 0 : index
    %6 = vector.load %arg1[%c0_1, %c0_2] : memref<8x32xf32, #tpu.memory_space<vmem>>, vector<8x32xf32>
    %cst = arith.constant dense<0.000000e+00> : vector<8x32xf32>
    %7 = tpu.matmul %5, %6, %cst {dimension_numbers = #tpu.dot_dimension_numbers<[1], [0], [0], [1], [0, 0, 1, 1], [], []>} : vector<8x8xf32>, vector<8x32xf32>, vector<8x32xf32> -> vector<8x32xf32>
    %c0_3 = arith.constant 0 : index
    %c0_4 = arith.constant 0 : index
    %8 = vector.load %arg2[%c0_3, %c0_4] : memref<1x32xf32, #tpu.memory_space<vmem>>, vector<1x32xf32>
    %9 = vector.broadcast %8 : vector<1x32xf32> to vector<8x32xf32>
    %10 = arith.addf %7, %9 : vector<8x32xf32>
    %cst_5 = arith.constant 0.000000e+00 : f32
    %11 = vector.broadcast %cst_5 : f32 to vector<8x32xf32>
    %12 = arith.maximumf %10, %11 : vector<8x32xf32>
    %cst_6 = arith.constant 0.000000e+00 : f32
    %13 = vector.broadcast %cst_6 : f32 to vector<11x8x16xf32>
    %c0_7 = arith.constant 0 : index
    %c0_8 = arith.constant 0 : index
    %c0_9 = arith.constant 0 : index
    %14 = vector.load %arg11[%c0_7, %c0_8, %c0_9] : memref<102x8x16xf32, #tpu.memory_space<vmem>>, vector<11x8x16xf32>
    tpu.vector_store %arg11[%c0_7, %c0_8, %c0_9], %13 {strides = array<i32>} : memref<102x8x16xf32, #tpu.memory_space<vmem>>, vector<11x8x16xf32>,
    %cst_10 = arith.constant 0.000000e+00 : f32
    %15 = vector.broadcast %cst_10 : f32 to vector<2x8x16xf32>
    %c19 = arith.constant 19 : index
    %c0_11 = arith.constant 0 : index
    %c0_12 = arith.constant 0 : index
    %16 = vector.load %arg11[%c19, %c0_11, %c0_12] : memref<102x8x16xf32, #tpu.memory_space<vmem>>, vector<2x8x16xf32>
    tpu.vector_store %arg11[%c19, %c0_11, %c0_12], %15 {strides = array<i32>} : memref<102x8x16xf32, #tpu.memory_space<vmem>>, vector<2x8x16xf32>,
    %cst_13 = arith.constant 0.000000e+00 : f32
    %17 = vector.broadcast %cst_13 : f32 to vector<2x8x16xf32>
    %c29 = arith.constant 29 : index
    %c0_14 = arith.constant 0 : index
    %c0_15 = arith.constant 0 : index
    %18 = vector.load %arg11[%c29, %c0_14, %c0_15] : memref<102x8x16xf32, #tpu.memory_space<vmem>>, vector<2x8x16xf32>
    tpu.vector_store %arg11[%c29, %c0_14, %c0_15], %17 {strides = array<i32>} : memref<102x8x16xf32, #tpu.memory_space<vmem>>, vector<2x8x16xf32>,
    %cst_16 = arith.constant 0.000000e+00 : f32
    %19 = vector.broadcast %cst_16 : f32 to vector<2x8x16xf32>
    %c39 = arith.constant 39 : index
    %c0_17 = arith.constant 0 : index
    %c0_18 = arith.constant 0 : index
    %20 = vector.load %arg11[%c39, %c0_17, %c0_18] : memref<102x8x16xf32, #tpu.memory_space<vmem>>, vector<2x8x16xf32>
    tpu.vector_store %arg11[%c39, %c0_17, %c0_18], %19 {strides = array<i32>} : memref<102x8x16xf32, #tpu.memory_space<vmem>>, vector<2x8x16xf32>,
    %cst_19 = arith.constant 0.000000e+00 : f32
    %21 = vector.broadcast %cst_19 : f32 to vector<2x8x16xf32>
    %c49 = arith.constant 49 : index
    %c0_20 = arith.constant 0 : index
    %c0_21 = arith.constant 0 : index
    %22 = vector.load %arg11[%c49, %c0_20, %c0_21] : memref<102x8x16xf32, #tpu.memory_space<vmem>>, vector<2x8x16xf32>
    tpu.vector_store %arg11[%c49, %c0_20, %c0_21], %21 {strides = array<i32>} : memref<102x8x16xf32, #tpu.memory_space<vmem>>, vector<2x8x16xf32>,
    %cst_22 = arith.constant 0.000000e+00 : f32
    %23 = vector.broadcast %cst_22 : f32 to vector<2x8x16xf32>
    %c59 = arith.constant 59 : index
    %c0_23 = arith.constant 0 : index
    %c0_24 = arith.constant 0 : index
    %24 = vector.load %arg11[%c59, %c0_23, %c0_24] : memref<102x8x16xf32, #tpu.memory_space<vmem>>, vector<2x8x16xf32>
    tpu.vector_store %arg11[%c59, %c0_23, %c0_24], %23 {strides = array<i32>} : memref<102x8x16xf32, #tpu.memory_space<vmem>>, vector<2x8x16xf32>,
    %cst_25 = arith.constant 0.000000e+00 : f32
    %25 = vector.broadcast %cst_25 : f32 to vector<2x8x16xf32>
    %c69 = arith.constant 69 : index
    %c0_26 = arith.constant 0 : index
    %c0_27 = arith.constant 0 : index
    %26 = vector.load %arg11[%c69, %c0_26, %c0_27] : memref<102x8x16xf32, #tpu.memory_space<vmem>>, vector<2x8x16xf32>
    tpu.vector_store %arg11[%c69, %c0_26, %c0_27], %25 {strides = array<i32>} : memref<102x8x16xf32, #tpu.memory_space<vmem>>, vector<2x8x16xf32>,
    %cst_28 = arith.constant 0.000000e+00 : f32
    %27 = vector.broadcast %cst_28 : f32 to vector<2x8x16xf32>
    %c79 = arith.constant 79 : index
    %c0_29 = arith.constant 0 : index
    %c0_30 = arith.constant 0 : index
    %28 = vector.load %arg11[%c79, %c0_29, %c0_30] : memref<102x8x16xf32, #tpu.memory_space<vmem>>, vector<2x8x16xf32>
    tpu.vector_store %arg11[%c79, %c0_29, %c0_30], %27 {strides = array<i32>} : memref<102x8x16xf32, #tpu.memory_space<vmem>>, vector<2x8x16xf32>,
    %cst_31 = arith.constant 0.000000e+00 : f32
    %29 = vector.broadcast %cst_31 : f32 to vector<13x8x16xf32>
    %c89 = arith.constant 89 : index
    %c0_32 = arith.constant 0 : index
    %c0_33 = arith.constant 0 : index
    %30 = vector.load %arg11[%c89, %c0_32, %c0_33] : memref<102x8x16xf32, #tpu.memory_space<vmem>>, vector<13x8x16xf32>
    tpu.vector_store %arg11[%c89, %c0_32, %c0_33], %29 {strides = array<i32>} : memref<102x8x16xf32, #tpu.memory_space<vmem>>, vector<13x8x16xf32>,
    %c0_34 = arith.constant 0 : index
    %c0_35 = arith.constant 0 : index
    %31 = vector.load %arg3[%c0_34, %c0_35] : memref<2048x32xbf16, #tpu.memory_space<vmem>>, vector<2048x32xbf16>
    %c0_36 = arith.constant 0 : index
    %c0_37 = arith.constant 0 : index
    %32 = vector.load %arg4[%c0_36, %c0_37] : memref<32x16xbf16, #tpu.memory_space<vmem>>, vector<32x16xbf16>
    %cst_38 = arith.constant dense<0.000000e+00> : vector<2048x16xf32>
    %33 = tpu.matmul %31, %32, %cst_38 {dimension_numbers = #tpu.dot_dimension_numbers<[1], [0], [0], [1], [0, 0, 1, 1], [], []>} : vector<2048x32xbf16>, vector<32x16xbf16>, vector<2048x16xf32> -> vector<2048x16xf32>
    %c0_39 = arith.constant 0 : index
    %c0_40 = arith.constant 0 : index
    %34 = vector.load %arg5[%c0_39, %c0_40] : memref<3x16xf32, #tpu.memory_space<vmem>>, vector<3x16xf32>
    %35 = vector.extract_strided_slice %34 {offsets = [0, 0], sizes = [1, 16], strides = [1, 1]} : vector<3x16xf32> to vector<1x16xf32>
    %36 = vector.broadcast %35 : vector<1x16xf32> to vector<2048x16xf32>
    %37 = arith.addf %33, %36 : vector<2048x16xf32>
    %38 = vector.shape_cast %37 : vector<2048x16xf32> to vector<8x2x128x16xf32>
    %39 = vector.extract_strided_slice %38 {offsets = [0, 0, 0, 0], sizes = [8, 1, 128, 16], strides = [1, 1, 1, 1]} : vector<8x2x128x16xf32> to vector<8x1x128x16xf32>
    %40 = vector.shape_cast %39 : vector<8x1x128x16xf32> to vector<8x128x16xf32>
    %41 = vector.extract_strided_slice %38 {offsets = [0, 1, 0, 0], sizes = [8, 1, 128, 16], strides = [1, 1, 1, 1]} : vector<8x2x128x16xf32> to vector<8x1x128x16xf32>
    %42 = vector.shape_cast %41 : vector<8x1x128x16xf32> to vector<8x128x16xf32>
    %43 = arith.maximumf %40, %42 : vector<8x128x16xf32>
    %44 = vector.shape_cast %43 : vector<8x128x16xf32> to vector<64x2x8x16xf32>
    %45 = vector.extract_strided_slice %44 {offsets = [0, 0, 0, 0], sizes = [64, 1, 8, 16], strides = [1, 1, 1, 1]} : vector<64x2x8x16xf32> to vector<64x1x8x16xf32>
    %46 = vector.shape_cast %45 : vector<64x1x8x16xf32> to vector<64x8x16xf32>
    %47 = vector.extract_strided_slice %44 {offsets = [0, 1, 0, 0], sizes = [64, 1, 8, 16], strides = [1, 1, 1, 1]} : vector<64x2x8x16xf32> to vector<64x1x8x16xf32>
    %48 = vector.shape_cast %47 : vector<64x1x8x16xf32> to vector<64x8x16xf32>
    %49 = arith.maximumf %46, %48 : vector<64x8x16xf32>
    %cst_41 = arith.constant 0.000000e+00 : f32
    %50 = vector.broadcast %cst_41 : f32 to vector<64x8x16xf32>
    %51 = arith.maximumf %49, %50 : vector<64x8x16xf32>
    %52 = vector.shape_cast %4 : vector<8x1xf32> to vector<1x8x1xf32>
    %53 = vector.broadcast %52 : vector<1x8x1xf32> to vector<64x8x16xf32>
    %54 = arith.mulf %51, %53 : vector<64x8x16xf32>
    %55 = vector.shape_cast %54 : vector<64x8x16xf32> to vector<512x16xf32>
    %cst_42 = arith.constant dense<0.000000e+00> : vector<16xf32>
    %56 = vector.multi_reduction <add>, %55, %cst_42 [0] : vector<512x16xf32> to vector<16xf32>
    %57 = vector.shape_cast %56 : vector<16xf32> to vector<1x16xf32>
    %cst_43 = arith.constant 7.812500e-03 : f32
    %58 = vector.broadcast %cst_43 : f32 to vector<1x16xf32>
    %59 = arith.mulf %57, %58 : vector<1x16xf32>
    %60 = arith.mulf %55, %55 : vector<512x16xf32>
    %cst_44 = arith.constant dense<0.000000e+00> : vector<16xf32>
    %61 = vector.multi_reduction <add>, %60, %cst_44 [0] : vector<512x16xf32> to vector<16xf32>
    %62 = vector.shape_cast %61 : vector<16xf32> to vector<1x16xf32>
    %cst_45 = arith.constant 7.812500e-03 : f32
    %63 = vector.broadcast %cst_45 : f32 to vector<1x16xf32>
    %64 = arith.mulf %62, %63 : vector<1x16xf32>
    %65 = arith.mulf %59, %59 : vector<1x16xf32>
    %66 = arith.subf %64, %65 : vector<1x16xf32>
    %67 = vector.shape_cast %59 : vector<1x16xf32> to vector<1x1x16xf32>
    %68 = vector.broadcast %67 : vector<1x1x16xf32> to vector<64x8x16xf32>
    %69 = arith.subf %51, %68 : vector<64x8x16xf32>
    %cst_46 = arith.constant 9.99999974E-6 : f32
    %70 = vector.broadcast %cst_46 : f32 to vector<1x16xf32>
    %71 = arith.addf %66, %70 : vector<1x16xf32>
    %72 = math.rsqrt %71 : vector<1x16xf32>
    %73 = vector.shape_cast %72 : vector<1x16xf32> to vector<1x1x16xf32>
    %74 = vector.broadcast %73 : vector<1x1x16xf32> to vector<64x8x16xf32>
    %75 = arith.mulf %69, %74 : vector<64x8x16xf32>
    %76 = vector.extract_strided_slice %34 {offsets = [1, 0], sizes = [1, 16], strides = [1, 1]} : vector<3x16xf32> to vector<1x16xf32>
    %77 = vector.shape_cast %76 : vector<1x16xf32> to vector<1x1x16xf32>
    %78 = vector.broadcast %77 : vector<1x1x16xf32> to vector<64x8x16xf32>
    %79 = arith.mulf %75, %78 : vector<64x8x16xf32>
    %80 = vector.extract_strided_slice %34 {offsets = [2, 0], sizes = [1, 16], strides = [1, 1]} : vector<3x16xf32> to vector<1x16xf32>
    %81 = vector.shape_cast %80 : vector<1x16xf32> to vector<1x1x16xf32>
    %82 = vector.broadcast %81 : vector<1x1x16xf32> to vector<64x8x16xf32>
    %83 = arith.addf %79, %82 : vector<64x8x16xf32>
    %84 = vector.shape_cast %83 : vector<64x8x16xf32> to vector<8x8x8x16xf32>
    %85 = vector.extract_strided_slice %84 {offsets = [0, 0, 0, 0], sizes = [1, 8, 8, 16], strides = [1, 1, 1, 1]} : vector<8x8x8x16xf32> to vector<1x8x8x16xf32>
    %86 = vector.shape_cast %85 : vector<1x8x8x16xf32> to vector<8x8x16xf32>
    %c11 = arith.constant 11 : index
    %c0_47 = arith.constant 0 : index
    %c0_48 = arith.constant 0 : index
    %87 = vector.load %arg11[%c11, %c0_47, %c0_48] : memref<102x8x16xf32, #tpu.memory_space<vmem>>, vector<8x8x16xf32>
    tpu.vector_store %arg11[%c11, %c0_47, %c0_48], %86 {strides = array<i32>} : memref<102x8x16xf32, #tpu.memory_space<vmem>>, vector<8x8x16xf32>,
    %88 = vector.extract_strided_slice %84 {offsets = [1, 0, 0, 0], sizes = [1, 8, 8, 16], strides = [1, 1, 1, 1]} : vector<8x8x8x16xf32> to vector<1x8x8x16xf32>
    %89 = vector.shape_cast %88 : vector<1x8x8x16xf32> to vector<8x8x16xf32>
    %c21 = arith.constant 21 : index
    %c0_49 = arith.constant 0 : index
    %c0_50 = arith.constant 0 : index
    %90 = vector.load %arg11[%c21, %c0_49, %c0_50] : memref<102x8x16xf32, #tpu.memory_space<vmem>>, vector<8x8x16xf32>
    tpu.vector_store %arg11[%c21, %c0_49, %c0_50], %89 {strides = array<i32>} : memref<102x8x16xf32, #tpu.memory_space<vmem>>, vector<8x8x16xf32>,
    %91 = vector.extract_strided_slice %84 {offsets = [2, 0, 0, 0], sizes = [1, 8, 8, 16], strides = [1, 1, 1, 1]} : vector<8x8x8x16xf32> to vector<1x8x8x16xf32>
    %92 = vector.shape_cast %91 : vector<1x8x8x16xf32> to vector<8x8x16xf32>
    %c31 = arith.constant 31 : index
    %c0_51 = arith.constant 0 : index
    %c0_52 = arith.constant 0 : index
    %93 = vector.load %arg11[%c31, %c0_51, %c0_52] : memref<102x8x16xf32, #tpu.memory_space<vmem>>, vector<8x8x16xf32>
    tpu.vector_store %arg11[%c31, %c0_51, %c0_52], %92 {strides = array<i32>} : memref<102x8x16xf32, #tpu.memory_space<vmem>>, vector<8x8x16xf32>,
    %94 = vector.extract_strided_slice %84 {offsets = [3, 0, 0, 0], sizes = [1, 8, 8, 16], strides = [1, 1, 1, 1]} : vector<8x8x8x16xf32> to vector<1x8x8x16xf32>
    %95 = vector.shape_cast %94 : vector<1x8x8x16xf32> to vector<8x8x16xf32>
    %c41 = arith.constant 41 : index
    %c0_53 = arith.constant 0 : index
    %c0_54 = arith.constant 0 : index
    %96 = vector.load %arg11[%c41, %c0_53, %c0_54] : memref<102x8x16xf32, #tpu.memory_space<vmem>>, vector<8x8x16xf32>
    tpu.vector_store %arg11[%c41, %c0_53, %c0_54], %95 {strides = array<i32>} : memref<102x8x16xf32, #tpu.memory_space<vmem>>, vector<8x8x16xf32>,
    %97 = vector.extract_strided_slice %84 {offsets = [4, 0, 0, 0], sizes = [1, 8, 8, 16], strides = [1, 1, 1, 1]} : vector<8x8x8x16xf32> to vector<1x8x8x16xf32>
    %98 = vector.shape_cast %97 : vector<1x8x8x16xf32> to vector<8x8x16xf32>
    %c51 = arith.constant 51 : index
    %c0_55 = arith.constant 0 : index
    %c0_56 = arith.constant 0 : index
    %99 = vector.load %arg11[%c51, %c0_55, %c0_56] : memref<102x8x16xf32, #tpu.memory_space<vmem>>, vector<8x8x16xf32>
    tpu.vector_store %arg11[%c51, %c0_55, %c0_56], %98 {strides = array<i32>} : memref<102x8x16xf32, #tpu.memory_space<vmem>>, vector<8x8x16xf32>,
    %100 = vector.extract_strided_slice %84 {offsets = [5, 0, 0, 0], sizes = [1, 8, 8, 16], strides = [1, 1, 1, 1]} : vector<8x8x8x16xf32> to vector<1x8x8x16xf32>
    %101 = vector.shape_cast %100 : vector<1x8x8x16xf32> to vector<8x8x16xf32>
    %c61 = arith.constant 61 : index
    %c0_57 = arith.constant 0 : index
    %c0_58 = arith.constant 0 : index
    %102 = vector.load %arg11[%c61, %c0_57, %c0_58] : memref<102x8x16xf32, #tpu.memory_space<vmem>>, vector<8x8x16xf32>
    tpu.vector_store %arg11[%c61, %c0_57, %c0_58], %101 {strides = array<i32>} : memref<102x8x16xf32, #tpu.memory_space<vmem>>, vector<8x8x16xf32>,
    %103 = vector.extract_strided_slice %84 {offsets = [6, 0, 0, 0], sizes = [1, 8, 8, 16], strides = [1, 1, 1, 1]} : vector<8x8x8x16xf32> to vector<1x8x8x16xf32>
    %104 = vector.shape_cast %103 : vector<1x8x8x16xf32> to vector<8x8x16xf32>
    %c71 = arith.constant 71 : index
    %c0_59 = arith.constant 0 : index
    %c0_60 = arith.constant 0 : index
    %105 = vector.load %arg11[%c71, %c0_59, %c0_60] : memref<102x8x16xf32, #tpu.memory_space<vmem>>, vector<8x8x16xf32>
    tpu.vector_store %arg11[%c71, %c0_59, %c0_60], %104 {strides = array<i32>} : memref<102x8x16xf32, #tpu.memory_space<vmem>>, vector<8x8x16xf32>,
    %106 = vector.extract_strided_slice %84 {offsets = [7, 0, 0, 0], sizes = [1, 8, 8, 16], strides = [1, 1, 1, 1]} : vector<8x8x8x16xf32> to vector<1x8x8x16xf32>
    %107 = vector.shape_cast %106 : vector<1x8x8x16xf32> to vector<8x8x16xf32>
    %c81 = arith.constant 81 : index
    %c0_61 = arith.constant 0 : index
    %c0_62 = arith.constant 0 : index
    %108 = vector.load %arg11[%c81, %c0_61, %c0_62] : memref<102x8x16xf32, #tpu.memory_space<vmem>>, vector<8x8x16xf32>
    tpu.vector_store %arg11[%c81, %c0_61, %c0_62], %107 {strides = array<i32>} : memref<102x8x16xf32, #tpu.memory_space<vmem>>, vector<8x8x16xf32>,
    %c0_63 = arith.constant 0 : index
    %c0_64 = arith.constant 0 : index
    %c0_65 = arith.constant 0 : index
    %109 = vector.load %arg11[%c0_63, %c0_64, %c0_65] : memref<102x8x16xf32, #tpu.memory_space<vmem>>, vector<80x8x16xf32>
    %110 = vector.shape_cast %109 : vector<80x8x16xf32> to vector<640x16xf32>
    %111 = arith.truncf %110 : vector<640x16xf32> to vector<640x16xbf16>
    %c0_66 = arith.constant 0 : index
    %c0_67 = arith.constant 0 : index
    %c0_68 = arith.constant 0 : index
    %112 = vector.load %arg6[%c0_66, %c0_67, %c0_68] : memref<9x16x32xbf16, #tpu.memory_space<vmem>>, vector<1x16x32xbf16>
    %113 = vector.shape_cast %112 : vector<1x16x32xbf16> to vector<16x32xbf16>
    %cst_69 = arith.constant dense<0.000000e+00> : vector<640x32xf32>
    %114 = tpu.matmul %111, %113, %cst_69 {dimension_numbers = #tpu.dot_dimension_numbers<[1], [0], [0], [1], [0, 0, 1, 1], [], []>} : vector<640x16xbf16>, vector<16x32xbf16>, vector<640x32xf32> -> vector<640x32xf32>
    %c1 = arith.constant 1 : index
    %c0_70 = arith.constant 0 : index
    %c0_71 = arith.constant 0 : index
    %115 = vector.load %arg11[%c1, %c0_70, %c0_71] : memref<102x8x16xf32, #tpu.memory_space<vmem>>, vector<80x8x16xf32>
    %116 = vector.shape_cast %115 : vector<80x8x16xf32> to vector<640x16xf32>
    %117 = arith.truncf %116 : vector<640x16xf32> to vector<640x16xbf16>
    %c1_72 = arith.constant 1 : index
    %c0_73 = arith.constant 0 : index
    %c0_74 = arith.constant 0 : index
    %118 = vector.load %arg6[%c1_72, %c0_73, %c0_74] : memref<9x16x32xbf16, #tpu.memory_space<vmem>>, vector<1x16x32xbf16>
    %119 = vector.shape_cast %118 : vector<1x16x32xbf16> to vector<16x32xbf16>
    %cst_75 = arith.constant dense<0.000000e+00> : vector<640x32xf32>
    %120 = tpu.matmul %117, %119, %cst_75 {dimension_numbers = #tpu.dot_dimension_numbers<[1], [0], [0], [1], [0, 0, 1, 1], [], []>} : vector<640x16xbf16>, vector<16x32xbf16>, vector<640x32xf32> -> vector<640x32xf32>
    %121 = arith.addf %114, %120 : vector<640x32xf32>
    %c2 = arith.constant 2 : index
    %c0_76 = arith.constant 0 : index
    %c0_77 = arith.constant 0 : index
    %122 = vector.load %arg11[%c2, %c0_76, %c0_77] : memref<102x8x16xf32, #tpu.memory_space<vmem>>, vector<80x8x16xf32>
    %123 = vector.shape_cast %122 : vector<80x8x16xf32> to vector<640x16xf32>
    %124 = arith.truncf %123 : vector<640x16xf32> to vector<640x16xbf16>
    %c2_78 = arith.constant 2 : index
    %c0_79 = arith.constant 0 : index
    %c0_80 = arith.constant 0 : index
    %125 = vector.load %arg6[%c2_78, %c0_79, %c0_80] : memref<9x16x32xbf16, #tpu.memory_space<vmem>>, vector<1x16x32xbf16>
    %126 = vector.shape_cast %125 : vector<1x16x32xbf16> to vector<16x32xbf16>
    %cst_81 = arith.constant dense<0.000000e+00> : vector<640x32xf32>
    %127 = tpu.matmul %124, %126, %cst_81 {dimension_numbers = #tpu.dot_dimension_numbers<[1], [0], [0], [1], [0, 0, 1, 1], [], []>} : vector<640x16xbf16>, vector<16x32xbf16>, vector<640x32xf32> -> vector<640x32xf32>
    %128 = arith.addf %121, %127 : vector<640x32xf32>
    %c10 = arith.constant 10 : index
    %c0_82 = arith.constant 0 : index
    %c0_83 = arith.constant 0 : index
    %129 = vector.load %arg11[%c10, %c0_82, %c0_83] : memref<102x8x16xf32, #tpu.memory_space<vmem>>, vector<80x8x16xf32>
    %130 = vector.shape_cast %129 : vector<80x8x16xf32> to vector<640x16xf32>
    %131 = arith.truncf %130 : vector<640x16xf32> to vector<640x16xbf16>
    %c3 = arith.constant 3 : index
    %c0_84 = arith.constant 0 : index
    %c0_85 = arith.constant 0 : index
    %132 = vector.load %arg6[%c3, %c0_84, %c0_85] : memref<9x16x32xbf16, #tpu.memory_space<vmem>>, vector<1x16x32xbf16>
    %133 = vector.shape_cast %132 : vector<1x16x32xbf16> to vector<16x32xbf16>
    %cst_86 = arith.constant dense<0.000000e+00> : vector<640x32xf32>
    %134 = tpu.matmul %131, %133, %cst_86 {dimension_numbers = #tpu.dot_dimension_numbers<[1], [0], [0], [1], [0, 0, 1, 1], [], []>} : vector<640x16xbf16>, vector<16x32xbf16>, vector<640x32xf32> -> vector<640x32xf32>
    %135 = arith.addf %128, %134 : vector<640x32xf32>
    %c11_87 = arith.constant 11 : index
    %c0_88 = arith.constant 0 : index
    %c0_89 = arith.constant 0 : index
    %136 = vector.load %arg11[%c11_87, %c0_88, %c0_89] : memref<102x8x16xf32, #tpu.memory_space<vmem>>, vector<80x8x16xf32>
    %137 = vector.shape_cast %136 : vector<80x8x16xf32> to vector<640x16xf32>
    %138 = arith.truncf %137 : vector<640x16xf32> to vector<640x16xbf16>
    %c4 = arith.constant 4 : index
    %c0_90 = arith.constant 0 : index
    %c0_91 = arith.constant 0 : index
    %139 = vector.load %arg6[%c4, %c0_90, %c0_91] : memref<9x16x32xbf16, #tpu.memory_space<vmem>>, vector<1x16x32xbf16>
    %140 = vector.shape_cast %139 : vector<1x16x32xbf16> to vector<16x32xbf16>
    %cst_92 = arith.constant dense<0.000000e+00> : vector<640x32xf32>
    %141 = tpu.matmul %138, %140, %cst_92 {dimension_numbers = #tpu.dot_dimension_numbers<[1], [0], [0], [1], [0, 0, 1, 1], [], []>} : vector<640x16xbf16>, vector<16x32xbf16>, vector<640x32xf32> -> vector<640x32xf32>
    %142 = arith.addf %135, %141 : vector<640x32xf32>
    %c12 = arith.constant 12 : index
    %c0_93 = arith.constant 0 : index
    %c0_94 = arith.constant 0 : index
    %143 = vector.load %arg11[%c12, %c0_93, %c0_94] : memref<102x8x16xf32, #tpu.memory_space<vmem>>, vector<80x8x16xf32>
    %144 = vector.shape_cast %143 : vector<80x8x16xf32> to vector<640x16xf32>
    %145 = arith.truncf %144 : vector<640x16xf32> to vector<640x16xbf16>
    %c5 = arith.constant 5 : index
    %c0_95 = arith.constant 0 : index
    %c0_96 = arith.constant 0 : index
    %146 = vector.load %arg6[%c5, %c0_95, %c0_96] : memref<9x16x32xbf16, #tpu.memory_space<vmem>>, vector<1x16x32xbf16>
    %147 = vector.shape_cast %146 : vector<1x16x32xbf16> to vector<16x32xbf16>
    %cst_97 = arith.constant dense<0.000000e+00> : vector<640x32xf32>
    %148 = tpu.matmul %145, %147, %cst_97 {dimension_numbers = #tpu.dot_dimension_numbers<[1], [0], [0], [1], [0, 0, 1, 1], [], []>} : vector<640x16xbf16>, vector<16x32xbf16>, vector<640x32xf32> -> vector<640x32xf32>
    %149 = arith.addf %142, %148 : vector<640x32xf32>
    %c20 = arith.constant 20 : index
    %c0_98 = arith.constant 0 : index
    %c0_99 = arith.constant 0 : index
    %150 = vector.load %arg11[%c20, %c0_98, %c0_99] : memref<102x8x16xf32, #tpu.memory_space<vmem>>, vector<80x8x16xf32>
    %151 = vector.shape_cast %150 : vector<80x8x16xf32> to vector<640x16xf32>
    %152 = arith.truncf %151 : vector<640x16xf32> to vector<640x16xbf16>
    %c6 = arith.constant 6 : index
    %c0_100 = arith.constant 0 : index
    %c0_101 = arith.constant 0 : index
    %153 = vector.load %arg6[%c6, %c0_100, %c0_101] : memref<9x16x32xbf16, #tpu.memory_space<vmem>>, vector<1x16x32xbf16>
    %154 = vector.shape_cast %153 : vector<1x16x32xbf16> to vector<16x32xbf16>
    %cst_102 = arith.constant dense<0.000000e+00> : vector<640x32xf32>
    %155 = tpu.matmul %152, %154, %cst_102 {dimension_numbers = #tpu.dot_dimension_numbers<[1], [0], [0], [1], [0, 0, 1, 1], [], []>} : vector<640x16xbf16>, vector<16x32xbf16>, vector<640x32xf32> -> vector<640x32xf32>
    %156 = arith.addf %149, %155 : vector<640x32xf32>
    %c21_103 = arith.constant 21 : index
    %c0_104 = arith.constant 0 : index
    %c0_105 = arith.constant 0 : index
    %157 = vector.load %arg11[%c21_103, %c0_104, %c0_105] : memref<102x8x16xf32, #tpu.memory_space<vmem>>, vector<80x8x16xf32>
    %158 = vector.shape_cast %157 : vector<80x8x16xf32> to vector<640x16xf32>
    %159 = arith.truncf %158 : vector<640x16xf32> to vector<640x16xbf16>
    %c7 = arith.constant 7 : index
    %c0_106 = arith.constant 0 : index
    %c0_107 = arith.constant 0 : index
    %160 = vector.load %arg6[%c7, %c0_106, %c0_107] : memref<9x16x32xbf16, #tpu.memory_space<vmem>>, vector<1x16x32xbf16>
    %161 = vector.shape_cast %160 : vector<1x16x32xbf16> to vector<16x32xbf16>
    %cst_108 = arith.constant dense<0.000000e+00> : vector<640x32xf32>
    %162 = tpu.matmul %159, %161, %cst_108 {dimension_numbers = #tpu.dot_dimension_numbers<[1], [0], [0], [1], [0, 0, 1, 1], [], []>} : vector<640x16xbf16>, vector<16x32xbf16>, vector<640x32xf32> -> vector<640x32xf32>
    %163 = arith.addf %156, %162 : vector<640x32xf32>
    %c22 = arith.constant 22 : index
    %c0_109 = arith.constant 0 : index
    %c0_110 = arith.constant 0 : index
    %164 = vector.load %arg11[%c22, %c0_109, %c0_110] : memref<102x8x16xf32, #tpu.memory_space<vmem>>, vector<80x8x16xf32>
    %165 = vector.shape_cast %164 : vector<80x8x16xf32> to vector<640x16xf32>
    %166 = arith.truncf %165 : vector<640x16xf32> to vector<640x16xbf16>
    %c8 = arith.constant 8 : index
    %c0_111 = arith.constant 0 : index
    %c0_112 = arith.constant 0 : index
    %167 = vector.load %arg6[%c8, %c0_111, %c0_112] : memref<9x16x32xbf16, #tpu.memory_space<vmem>>, vector<1x16x32xbf16>
    %168 = vector.shape_cast %167 : vector<1x16x32xbf16> to vector<16x32xbf16>
    %cst_113 = arith.constant dense<0.000000e+00> : vector<640x32xf32>
    %169 = tpu.matmul %166, %168, %cst_113 {dimension_numbers = #tpu.dot_dimension_numbers<[1], [0], [0], [1], [0, 0, 1, 1], [], []>} : vector<640x16xbf16>, vector<16x32xbf16>, vector<640x32xf32> -> vector<640x32xf32>
    %170 = arith.addf %163, %169 : vector<640x32xf32>
    %c0_114 = arith.constant 0 : index
    %c0_115 = arith.constant 0 : index
    %171 = vector.load %arg7[%c0_114, %c0_115] : memref<3x32xf32, #tpu.memory_space<vmem>>, vector<3x32xf32>
    %172 = vector.extract_strided_slice %171 {offsets = [0, 0], sizes = [1, 32], strides = [1, 1]} : vector<3x32xf32> to vector<1x32xf32>
    %173 = vector.broadcast %172 : vector<1x32xf32> to vector<640x32xf32>
    %174 = arith.addf %170, %173 : vector<640x32xf32>
    %175 = vector.shape_cast %174 : vector<640x32xf32> to vector<4x2x80x32xf32>
    %176 = vector.extract_strided_slice %175 {offsets = [0, 0, 0, 0], sizes = [4, 1, 80, 32], strides = [1, 1, 1, 1]} : vector<4x2x80x32xf32> to vector<4x1x80x32xf32>
    %177 = vector.shape_cast %176 : vector<4x1x80x32xf32> to vector<4x80x32xf32>
    %178 = vector.extract_strided_slice %175 {offsets = [0, 1, 0, 0], sizes = [4, 1, 80, 32], strides = [1, 1, 1, 1]} : vector<4x2x80x32xf32> to vector<4x1x80x32xf32>
    %179 = vector.shape_cast %178 : vector<4x1x80x32xf32> to vector<4x80x32xf32>
    %180 = arith.maximumf %177, %179 : vector<4x80x32xf32>
    %181 = vector.shape_cast %180 : vector<4x80x32xf32> to vector<20x2x8x32xf32>
    %182 = vector.extract_strided_slice %181 {offsets = [0, 0, 0, 0], sizes = [20, 1, 8, 32], strides = [1, 1, 1, 1]} : vector<20x2x8x32xf32> to vector<20x1x8x32xf32>
    %183 = vector.shape_cast %182 : vector<20x1x8x32xf32> to vector<20x8x32xf32>
    %184 = vector.extract_strided_slice %181 {offsets = [0, 1, 0, 0], sizes = [20, 1, 8, 32], strides = [1, 1, 1, 1]} : vector<20x2x8x32xf32> to vector<20x1x8x32xf32>
    %185 = vector.shape_cast %184 : vector<20x1x8x32xf32> to vector<20x8x32xf32>
    %186 = arith.maximumf %183, %185 : vector<20x8x32xf32>
    %187 = vector.shape_cast %186 : vector<20x8x32xf32> to vector<4x5x8x32xf32>
    %188 = vector.extract_strided_slice %187 {offsets = [0, 0, 0, 0], sizes = [4, 4, 8, 32], strides = [1, 1, 1, 1]} : vector<4x5x8x32xf32> to vector<4x4x8x32xf32>
    %cst_116 = arith.constant 0.000000e+00 : f32
    %189 = vector.broadcast %cst_116 : f32 to vector<4x4x8x32xf32>
    %190 = arith.maximumf %188, %189 : vector<4x4x8x32xf32>
    %191 = vector.shape_cast %4 : vector<8x1xf32> to vector<1x1x8x1xf32>
    %192 = vector.broadcast %191 : vector<1x1x8x1xf32> to vector<4x4x8x32xf32>
    %193 = arith.mulf %190, %192 : vector<4x4x8x32xf32>
    %194 = vector.shape_cast %193 : vector<4x4x8x32xf32> to vector<128x32xf32>
    %cst_117 = arith.constant dense<0.000000e+00> : vector<32xf32>
    %195 = vector.multi_reduction <add>, %194, %cst_117 [0] : vector<128x32xf32> to vector<32xf32>
    %196 = vector.shape_cast %195 : vector<32xf32> to vector<1x32xf32>
    %cst_118 = arith.constant 3.125000e-02 : f32
    %197 = vector.broadcast %cst_118 : f32 to vector<1x32xf32>
    %198 = arith.mulf %196, %197 : vector<1x32xf32>
    %199 = arith.mulf %194, %194 : vector<128x32xf32>
    %cst_119 = arith.constant dense<0.000000e+00> : vector<32xf32>
    %200 = vector.multi_reduction <add>, %199, %cst_119 [0] : vector<128x32xf32> to vector<32xf32>
    %201 = vector.shape_cast %200 : vector<32xf32> to vector<1x32xf32>
    %cst_120 = arith.constant 3.125000e-02 : f32
    %202 = vector.broadcast %cst_120 : f32 to vector<1x32xf32>
    %203 = arith.mulf %201, %202 : vector<1x32xf32>
    %204 = arith.mulf %198, %198 : vector<1x32xf32>
    %205 = arith.subf %203, %204 : vector<1x32xf32>
    %206 = vector.shape_cast %198 : vector<1x32xf32> to vector<1x1x1x32xf32>
    %207 = vector.broadcast %206 : vector<1x1x1x32xf32> to vector<4x4x8x32xf32>
    %208 = arith.subf %190, %207 : vector<4x4x8x32xf32>
    %cst_121 = arith.constant 9.99999974E-6 : f32
    %209 = vector.broadcast %cst_121 : f32 to vector<1x32xf32>
    %210 = arith.addf %205, %209 : vector<1x32xf32>
    %211 = math.rsqrt %210 : vector<1x32xf32>
    %212 = vector.shape_cast %211 : vector<1x32xf32> to vector<1x1x1x32xf32>
    %213 = vector.broadcast %212 : vector<1x1x1x32xf32> to vector<4x4x8x32xf32>
    %214 = arith.mulf %208, %213 : vector<4x4x8x32xf32>
    %215 = vector.extract_strided_slice %171 {offsets = [1, 0], sizes = [1, 32], strides = [1, 1]} : vector<3x32xf32> to vector<1x32xf32>
    %216 = vector.shape_cast %215 : vector<1x32xf32> to vector<1x1x1x32xf32>
    %217 = vector.broadcast %216 : vector<1x1x1x32xf32> to vector<4x4x8x32xf32>
    %218 = arith.mulf %214, %217 : vector<4x4x8x32xf32>
    %219 = vector.extract_strided_slice %171 {offsets = [2, 0], sizes = [1, 32], strides = [1, 1]} : vector<3x32xf32> to vector<1x32xf32>
    %220 = vector.shape_cast %219 : vector<1x32xf32> to vector<1x1x1x32xf32>
    %221 = vector.broadcast %220 : vector<1x1x1x32xf32> to vector<4x4x8x32xf32>
    %222 = arith.addf %218, %221 : vector<4x4x8x32xf32>
    %223 = arith.truncf %222 : vector<4x4x8x32xf32> to vector<4x4x8x32xbf16>
    %224 = vector.shape_cast %223 : vector<4x4x8x32xbf16> to vector<16x8x32xbf16>
    %225 = vector.extract_strided_slice %224 {offsets = [0, 0, 0], sizes = [1, 8, 32], strides = [1, 1, 1]} : vector<16x8x32xbf16> to vector<1x8x32xbf16>
    %226 = vector.shape_cast %225 : vector<1x8x32xbf16> to vector<8x32xbf16>
    %c0_122 = arith.constant 0 : index
    %c0_123 = arith.constant 0 : index
    %c0_124 = arith.constant 0 : index
    %227 = vector.load %arg8[%c0_122, %c0_123, %c0_124] : memref<16x32x32xbf16, #tpu.memory_space<vmem>>, vector<1x32x32xbf16>
    %228 = vector.shape_cast %227 : vector<1x32x32xbf16> to vector<32x32xbf16>
    %cst_125 = arith.constant dense<0.000000e+00> : vector<8x32xf32>
    %229 = tpu.matmul %226, %228, %cst_125 {dimension_numbers = #tpu.dot_dimension_numbers<[1], [0], [0], [1], [0, 0, 1, 1], [], []>} : vector<8x32xbf16>, vector<32x32xbf16>, vector<8x32xf32> -> vector<8x32xf32>
    %230 = vector.extract_strided_slice %224 {offsets = [1, 0, 0], sizes = [1, 8, 32], strides = [1, 1, 1]} : vector<16x8x32xbf16> to vector<1x8x32xbf16>
    %231 = vector.shape_cast %230 : vector<1x8x32xbf16> to vector<8x32xbf16>
    %c1_126 = arith.constant 1 : index
    %c0_127 = arith.constant 0 : index
    %c0_128 = arith.constant 0 : index
    %232 = vector.load %arg8[%c1_126, %c0_127, %c0_128] : memref<16x32x32xbf16, #tpu.memory_space<vmem>>, vector<1x32x32xbf16>
    %233 = vector.shape_cast %232 : vector<1x32x32xbf16> to vector<32x32xbf16>
    %cst_129 = arith.constant dense<0.000000e+00> : vector<8x32xf32>
    %234 = tpu.matmul %231, %233, %cst_129 {dimension_numbers = #tpu.dot_dimension_numbers<[1], [0], [0], [1], [0, 0, 1, 1], [], []>} : vector<8x32xbf16>, vector<32x32xbf16>, vector<8x32xf32> -> vector<8x32xf32>
    %235 = arith.addf %229, %234 : vector<8x32xf32>
    %236 = vector.extract_strided_slice %224 {offsets = [2, 0, 0], sizes = [1, 8, 32], strides = [1, 1, 1]} : vector<16x8x32xbf16> to vector<1x8x32xbf16>
    %237 = vector.shape_cast %236 : vector<1x8x32xbf16> to vector<8x32xbf16>
    %c2_130 = arith.constant 2 : index
    %c0_131 = arith.constant 0 : index
    %c0_132 = arith.constant 0 : index
    %238 = vector.load %arg8[%c2_130, %c0_131, %c0_132] : memref<16x32x32xbf16, #tpu.memory_space<vmem>>, vector<1x32x32xbf16>
    %239 = vector.shape_cast %238 : vector<1x32x32xbf16> to vector<32x32xbf16>
    %cst_133 = arith.constant dense<0.000000e+00> : vector<8x32xf32>
    %240 = tpu.matmul %237, %239, %cst_133 {dimension_numbers = #tpu.dot_dimension_numbers<[1], [0], [0], [1], [0, 0, 1, 1], [], []>} : vector<8x32xbf16>, vector<32x32xbf16>, vector<8x32xf32> -> vector<8x32xf32>
    %241 = arith.addf %235, %240 : vector<8x32xf32>
    %242 = vector.extract_strided_slice %224 {offsets = [3, 0, 0], sizes = [1, 8, 32], strides = [1, 1, 1]} : vector<16x8x32xbf16> to vector<1x8x32xbf16>
    %243 = vector.shape_cast %242 : vector<1x8x32xbf16> to vector<8x32xbf16>
    %c3_134 = arith.constant 3 : index
    %c0_135 = arith.constant 0 : index
    %c0_136 = arith.constant 0 : index
    %244 = vector.load %arg8[%c3_134, %c0_135, %c0_136] : memref<16x32x32xbf16, #tpu.memory_space<vmem>>, vector<1x32x32xbf16>
    %245 = vector.shape_cast %244 : vector<1x32x32xbf16> to vector<32x32xbf16>
    %cst_137 = arith.constant dense<0.000000e+00> : vector<8x32xf32>
    %246 = tpu.matmul %243, %245, %cst_137 {dimension_numbers = #tpu.dot_dimension_numbers<[1], [0], [0], [1], [0, 0, 1, 1], [], []>} : vector<8x32xbf16>, vector<32x32xbf16>, vector<8x32xf32> -> vector<8x32xf32>
    %247 = arith.addf %241, %246 : vector<8x32xf32>
    %248 = vector.extract_strided_slice %224 {offsets = [4, 0, 0], sizes = [1, 8, 32], strides = [1, 1, 1]} : vector<16x8x32xbf16> to vector<1x8x32xbf16>
    %249 = vector.shape_cast %248 : vector<1x8x32xbf16> to vector<8x32xbf16>
    %c4_138 = arith.constant 4 : index
    %c0_139 = arith.constant 0 : index
    %c0_140 = arith.constant 0 : index
    %250 = vector.load %arg8[%c4_138, %c0_139, %c0_140] : memref<16x32x32xbf16, #tpu.memory_space<vmem>>, vector<1x32x32xbf16>
    %251 = vector.shape_cast %250 : vector<1x32x32xbf16> to vector<32x32xbf16>
    %cst_141 = arith.constant dense<0.000000e+00> : vector<8x32xf32>
    %252 = tpu.matmul %249, %251, %cst_141 {dimension_numbers = #tpu.dot_dimension_numbers<[1], [0], [0], [1], [0, 0, 1, 1], [], []>} : vector<8x32xbf16>, vector<32x32xbf16>, vector<8x32xf32> -> vector<8x32xf32>
    %253 = arith.addf %247, %252 : vector<8x32xf32>
    %254 = vector.extract_strided_slice %224 {offsets = [5, 0, 0], sizes = [1, 8, 32], strides = [1, 1, 1]} : vector<16x8x32xbf16> to vector<1x8x32xbf16>
    %255 = vector.shape_cast %254 : vector<1x8x32xbf16> to vector<8x32xbf16>
    %c5_142 = arith.constant 5 : index
    %c0_143 = arith.constant 0 : index
    %c0_144 = arith.constant 0 : index
    %256 = vector.load %arg8[%c5_142, %c0_143, %c0_144] : memref<16x32x32xbf16, #tpu.memory_space<vmem>>, vector<1x32x32xbf16>
    %257 = vector.shape_cast %256 : vector<1x32x32xbf16> to vector<32x32xbf16>
    %cst_145 = arith.constant dense<0.000000e+00> : vector<8x32xf32>
    %258 = tpu.matmul %255, %257, %cst_145 {dimension_numbers = #tpu.dot_dimension_numbers<[1], [0], [0], [1], [0, 0, 1, 1], [], []>} : vector<8x32xbf16>, vector<32x32xbf16>, vector<8x32xf32> -> vector<8x32xf32>
    %259 = arith.addf %253, %258 : vector<8x32xf32>
    %260 = vector.extract_strided_slice %224 {offsets = [6, 0, 0], sizes = [1, 8, 32], strides = [1, 1, 1]} : vector<16x8x32xbf16> to vector<1x8x32xbf16>
    %261 = vector.shape_cast %260 : vector<1x8x32xbf16> to vector<8x32xbf16>
    %c6_146 = arith.constant 6 : index
    %c0_147 = arith.constant 0 : index
    %c0_148 = arith.constant 0 : index
    %262 = vector.load %arg8[%c6_146, %c0_147, %c0_148] : memref<16x32x32xbf16, #tpu.memory_space<vmem>>, vector<1x32x32xbf16>
    %263 = vector.shape_cast %262 : vector<1x32x32xbf16> to vector<32x32xbf16>
    %cst_149 = arith.constant dense<0.000000e+00> : vector<8x32xf32>
    %264 = tpu.matmul %261, %263, %cst_149 {dimension_numbers = #tpu.dot_dimension_numbers<[1], [0], [0], [1], [0, 0, 1, 1], [], []>} : vector<8x32xbf16>, vector<32x32xbf16>, vector<8x32xf32> -> vector<8x32xf32>
    %265 = arith.addf %259, %264 : vector<8x32xf32>
    %266 = vector.extract_strided_slice %224 {offsets = [7, 0, 0], sizes = [1, 8, 32], strides = [1, 1, 1]} : vector<16x8x32xbf16> to vector<1x8x32xbf16>
    %267 = vector.shape_cast %266 : vector<1x8x32xbf16> to vector<8x32xbf16>
    %c7_150 = arith.constant 7 : index
    %c0_151 = arith.constant 0 : index
    %c0_152 = arith.constant 0 : index
    %268 = vector.load %arg8[%c7_150, %c0_151, %c0_152] : memref<16x32x32xbf16, #tpu.memory_space<vmem>>, vector<1x32x32xbf16>
    %269 = vector.shape_cast %268 : vector<1x32x32xbf16> to vector<32x32xbf16>
    %cst_153 = arith.constant dense<0.000000e+00> : vector<8x32xf32>
    %270 = tpu.matmul %267, %269, %cst_153 {dimension_numbers = #tpu.dot_dimension_numbers<[1], [0], [0], [1], [0, 0, 1, 1], [], []>} : vector<8x32xbf16>, vector<32x32xbf16>, vector<8x32xf32> -> vector<8x32xf32>
    %271 = arith.addf %265, %270 : vector<8x32xf32>
    %272 = vector.extract_strided_slice %224 {offsets = [8, 0, 0], sizes = [1, 8, 32], strides = [1, 1, 1]} : vector<16x8x32xbf16> to vector<1x8x32xbf16>
    %273 = vector.shape_cast %272 : vector<1x8x32xbf16> to vector<8x32xbf16>
    %c8_154 = arith.constant 8 : index
    %c0_155 = arith.constant 0 : index
    %c0_156 = arith.constant 0 : index
    %274 = vector.load %arg8[%c8_154, %c0_155, %c0_156] : memref<16x32x32xbf16, #tpu.memory_space<vmem>>, vector<1x32x32xbf16>
    %275 = vector.shape_cast %274 : vector<1x32x32xbf16> to vector<32x32xbf16>
    %cst_157 = arith.constant dense<0.000000e+00> : vector<8x32xf32>
    %276 = tpu.matmul %273, %275, %cst_157 {dimension_numbers = #tpu.dot_dimension_numbers<[1], [0], [0], [1], [0, 0, 1, 1], [], []>} : vector<8x32xbf16>, vector<32x32xbf16>, vector<8x32xf32> -> vector<8x32xf32>
    %277 = arith.addf %271, %276 : vector<8x32xf32>
    %278 = vector.extract_strided_slice %224 {offsets = [9, 0, 0], sizes = [1, 8, 32], strides = [1, 1, 1]} : vector<16x8x32xbf16> to vector<1x8x32xbf16>
    %279 = vector.shape_cast %278 : vector<1x8x32xbf16> to vector<8x32xbf16>
    %c9 = arith.constant 9 : index
    %c0_158 = arith.constant 0 : index
    %c0_159 = arith.constant 0 : index
    %280 = vector.load %arg8[%c9, %c0_158, %c0_159] : memref<16x32x32xbf16, #tpu.memory_space<vmem>>, vector<1x32x32xbf16>
    %281 = vector.shape_cast %280 : vector<1x32x32xbf16> to vector<32x32xbf16>
    %cst_160 = arith.constant dense<0.000000e+00> : vector<8x32xf32>
    %282 = tpu.matmul %279, %281, %cst_160 {dimension_numbers = #tpu.dot_dimension_numbers<[1], [0], [0], [1], [0, 0, 1, 1], [], []>} : vector<8x32xbf16>, vector<32x32xbf16>, vector<8x32xf32> -> vector<8x32xf32>
    %283 = arith.addf %277, %282 : vector<8x32xf32>
    %284 = vector.extract_strided_slice %224 {offsets = [10, 0, 0], sizes = [1, 8, 32], strides = [1, 1, 1]} : vector<16x8x32xbf16> to vector<1x8x32xbf16>
    %285 = vector.shape_cast %284 : vector<1x8x32xbf16> to vector<8x32xbf16>
    %c10_161 = arith.constant 10 : index
    %c0_162 = arith.constant 0 : index
    %c0_163 = arith.constant 0 : index
    %286 = vector.load %arg8[%c10_161, %c0_162, %c0_163] : memref<16x32x32xbf16, #tpu.memory_space<vmem>>, vector<1x32x32xbf16>
    %287 = vector.shape_cast %286 : vector<1x32x32xbf16> to vector<32x32xbf16>
    %cst_164 = arith.constant dense<0.000000e+00> : vector<8x32xf32>
    %288 = tpu.matmul %285, %287, %cst_164 {dimension_numbers = #tpu.dot_dimension_numbers<[1], [0], [0], [1], [0, 0, 1, 1], [], []>} : vector<8x32xbf16>, vector<32x32xbf16>, vector<8x32xf32> -> vector<8x32xf32>
    %289 = arith.addf %283, %288 : vector<8x32xf32>
    %290 = vector.extract_strided_slice %224 {offsets = [11, 0, 0], sizes = [1, 8, 32], strides = [1, 1, 1]} : vector<16x8x32xbf16> to vector<1x8x32xbf16>
    %291 = vector.shape_cast %290 : vector<1x8x32xbf16> to vector<8x32xbf16>
    %c11_165 = arith.constant 11 : index
    %c0_166 = arith.constant 0 : index
    %c0_167 = arith.constant 0 : index
    %292 = vector.load %arg8[%c11_165, %c0_166, %c0_167] : memref<16x32x32xbf16, #tpu.memory_space<vmem>>, vector<1x32x32xbf16>
    %293 = vector.shape_cast %292 : vector<1x32x32xbf16> to vector<32x32xbf16>
    %cst_168 = arith.constant dense<0.000000e+00> : vector<8x32xf32>
    %294 = tpu.matmul %291, %293, %cst_168 {dimension_numbers = #tpu.dot_dimension_numbers<[1], [0], [0], [1], [0, 0, 1, 1], [], []>} : vector<8x32xbf16>, vector<32x32xbf16>, vector<8x32xf32> -> vector<8x32xf32>
    %295 = arith.addf %289, %294 : vector<8x32xf32>
    %296 = vector.extract_strided_slice %224 {offsets = [12, 0, 0], sizes = [1, 8, 32], strides = [1, 1, 1]} : vector<16x8x32xbf16> to vector<1x8x32xbf16>
    %297 = vector.shape_cast %296 : vector<1x8x32xbf16> to vector<8x32xbf16>
    %c12_169 = arith.constant 12 : index
    %c0_170 = arith.constant 0 : index
    %c0_171 = arith.constant 0 : index
    %298 = vector.load %arg8[%c12_169, %c0_170, %c0_171] : memref<16x32x32xbf16, #tpu.memory_space<vmem>>, vector<1x32x32xbf16>
    %299 = vector.shape_cast %298 : vector<1x32x32xbf16> to vector<32x32xbf16>
    %cst_172 = arith.constant dense<0.000000e+00> : vector<8x32xf32>
    %300 = tpu.matmul %297, %299, %cst_172 {dimension_numbers = #tpu.dot_dimension_numbers<[1], [0], [0], [1], [0, 0, 1, 1], [], []>} : vector<8x32xbf16>, vector<32x32xbf16>, vector<8x32xf32> -> vector<8x32xf32>
    %301 = arith.addf %295, %300 : vector<8x32xf32>
    %302 = vector.extract_strided_slice %224 {offsets = [13, 0, 0], sizes = [1, 8, 32], strides = [1, 1, 1]} : vector<16x8x32xbf16> to vector<1x8x32xbf16>
    %303 = vector.shape_cast %302 : vector<1x8x32xbf16> to vector<8x32xbf16>
    %c13 = arith.constant 13 : index
    %c0_173 = arith.constant 0 : index
    %c0_174 = arith.constant 0 : index
    %304 = vector.load %arg8[%c13, %c0_173, %c0_174] : memref<16x32x32xbf16, #tpu.memory_space<vmem>>, vector<1x32x32xbf16>
    %305 = vector.shape_cast %304 : vector<1x32x32xbf16> to vector<32x32xbf16>
    %cst_175 = arith.constant dense<0.000000e+00> : vector<8x32xf32>
    %306 = tpu.matmul %303, %305, %cst_175 {dimension_numbers = #tpu.dot_dimension_numbers<[1], [0], [0], [1], [0, 0, 1, 1], [], []>} : vector<8x32xbf16>, vector<32x32xbf16>, vector<8x32xf32> -> vector<8x32xf32>
    %307 = arith.addf %301, %306 : vector<8x32xf32>
    %308 = vector.extract_strided_slice %224 {offsets = [14, 0, 0], sizes = [1, 8, 32], strides = [1, 1, 1]} : vector<16x8x32xbf16> to vector<1x8x32xbf16>
    %309 = vector.shape_cast %308 : vector<1x8x32xbf16> to vector<8x32xbf16>
    %c14 = arith.constant 14 : index
    %c0_176 = arith.constant 0 : index
    %c0_177 = arith.constant 0 : index
    %310 = vector.load %arg8[%c14, %c0_176, %c0_177] : memref<16x32x32xbf16, #tpu.memory_space<vmem>>, vector<1x32x32xbf16>
    %311 = vector.shape_cast %310 : vector<1x32x32xbf16> to vector<32x32xbf16>
    %cst_178 = arith.constant dense<0.000000e+00> : vector<8x32xf32>
    %312 = tpu.matmul %309, %311, %cst_178 {dimension_numbers = #tpu.dot_dimension_numbers<[1], [0], [0], [1], [0, 0, 1, 1], [], []>} : vector<8x32xbf16>, vector<32x32xbf16>, vector<8x32xf32> -> vector<8x32xf32>
    %313 = arith.addf %307, %312 : vector<8x32xf32>
    %314 = vector.extract_strided_slice %224 {offsets = [15, 0, 0], sizes = [1, 8, 32], strides = [1, 1, 1]} : vector<16x8x32xbf16> to vector<1x8x32xbf16>
    %315 = vector.shape_cast %314 : vector<1x8x32xbf16> to vector<8x32xbf16>
    %c15 = arith.constant 15 : index
    %c0_179 = arith.constant 0 : index
    %c0_180 = arith.constant 0 : index
    %316 = vector.load %arg8[%c15, %c0_179, %c0_180] : memref<16x32x32xbf16, #tpu.memory_space<vmem>>, vector<1x32x32xbf16>
    %317 = vector.shape_cast %316 : vector<1x32x32xbf16> to vector<32x32xbf16>
    %cst_181 = arith.constant dense<0.000000e+00> : vector<8x32xf32>
    %318 = tpu.matmul %315, %317, %cst_181 {dimension_numbers = #tpu.dot_dimension_numbers<[1], [0], [0], [1], [0, 0, 1, 1], [], []>} : vector<8x32xbf16>, vector<32x32xbf16>, vector<8x32xf32> -> vector<8x32xf32>
    %319 = arith.addf %313, %318 : vector<8x32xf32>
    %c0_182 = arith.constant 0 : index
    %c0_183 = arith.constant 0 : index
    %320 = vector.load %arg9[%c0_182, %c0_183] : memref<1x32xf32, #tpu.memory_space<vmem>>, vector<1x32xf32>
    %321 = vector.broadcast %320 : vector<1x32xf32> to vector<8x32xf32>
    %322 = arith.addf %319, %321 : vector<8x32xf32>
    %323 = tpu.concatenate %12, %322 in 1 : vector<8x32xf32>, vector<8x32xf32> -> vector<8x64xf32>
    %c0_184 = arith.constant 0 : index
    %c0_185 = arith.constant 0 : index
    %324 = vector.load %arg10[%c0_184, %c0_185] : memref<8x64xf32, #tpu.memory_space<vmem>>, vector<8x64xf32>
    tpu.vector_store %arg10[%c0_184, %c0_185], %323 {strides = array<i32>} : memref<8x64xf32, #tpu.memory_space<vmem>>, vector<8x64xf32>,
    return
  }
}

</mosaic_0001>

<llo_original>
// kernel: backbones_forward.1
$region0: #{backbones_forward.1}
  #allocation0 [shape = 'u32[]', space=smem, size = 0x4, offset = 0x4, fixed_abs, tag = 'smem constant byte address 0x4 - core index']
  #allocation1 [shape = 'u32[144,128]{1,0:T(1,128)}', space=vmem, size = 0x12000, scoped, tag = 'internal scratch']
  #allocation2 [shape = 'f32[102,8,16]{2,1,0:T(8,128)}', space=vmem, size = 0x66000, scoped, tag = 'scratch operand']
  %s0 = inlined_call_operand.vmem [shape: f32[8,8], index: 0, kind: input, shape index: {}]
  %s1 = inlined_call_operand.vmem [shape: f32[8,32], index: 1, kind: input, shape index: {}]
  %s2 = inlined_call_operand.vmem [shape: f32[1,32], index: 2, kind: input, shape index: {}]
  %s3 = inlined_call_operand.vmem [shape: bf16[2048,32], index: 3, kind: input, shape index: {}]
  %s4 = inlined_call_operand.vmem [shape: bf16[32,16], index: 4, kind: input, shape index: {}]
  %s5 = inlined_call_operand.vmem [shape: f32[3,16], index: 5, kind: input, shape index: {}]
  %s6 = inlined_call_operand.vmem [shape: bf16[9,16,32], index: 6, kind: input, shape index: {}]
  %s7 = inlined_call_operand.vmem [shape: f32[3,32], index: 7, kind: input, shape index: {}]
  %s8 = inlined_call_operand.vmem [shape: bf16[16,32,32], index: 8, kind: input, shape index: {}]
  %s9 = inlined_call_operand.vmem [shape: f32[1,32], index: 9, kind: input, shape index: {}]
  %s10 = inlined_call_operand.vmem [shape: f32[8,64], index: 10, kind: output, shape index: {}]
  %s11 = sld [smem:[#allocation0]]
  $region50: #{backbones_forward.1} parent=0
    _
  %s13 = ssub.s32 1, %s11
  %s14 = scalar_select 0, %s13, %s11
  // Predicated region
  $region2: #{backbones_forward.1} parent=0 // pred_check
    _
  $region3: #{backbones_forward.1} parent=0 // pred_check_branch
    %16 = sbr.rel (0) target = $region5
  $region4: #{backbones_forward.1} parent=0 // pred_region
    _
  $region5: #{backbones_forward.1} parent=0 // pred_fallthru
    _
  // Predicated region
  $region6: #{backbones_forward.1} parent=0 // pred_check
    _
  $region7: #{backbones_forward.1} parent=0 // pred_check_branch
    %18 = sbr.rel (0) target = $region9
  $region8: #{backbones_forward.1} parent=0 // pred_region
    _
  $region9: #{backbones_forward.1} parent=0 // pred_fallthru
    _
  // Predicated region
  $region10: #{backbones_forward.1} parent=0 // pred_check
    _
  $region11: #{backbones_forward.1} parent=0 // pred_check_branch
    %20 = sbr.rel (0) target = $region13
  $region12: #{backbones_forward.1} parent=0 // pred_region
    _
  $region13: #{backbones_forward.1} parent=0 // pred_fallthru
    _
  // Predicated region
  $region14: #{backbones_forward.1} parent=0 // pred_check
    _
  $region15: #{backbones_forward.1} parent=0 // pred_check_branch
    %22 = sbr.rel (0) target = $region17
  $region16: #{backbones_forward.1} parent=0 // pred_region
    _
  $region17: #{backbones_forward.1} parent=0 // pred_fallthru
    _
  // Predicated region
  $region18: #{backbones_forward.1} parent=0 // pred_check
    _
  $region19: #{backbones_forward.1} parent=0 // pred_check_branch
    %24 = sbr.rel (0) target = $region21
  $region20: #{backbones_forward.1} parent=0 // pred_region
    _
  $region21: #{backbones_forward.1} parent=0 // pred_fallthru
    _
  // Predicated region
  $region22: #{backbones_forward.1} parent=0 // pred_check
    _
  $region23: #{backbones_forward.1} parent=0 // pred_check_branch
    %26 = sbr.rel (0) target = $region25
  $region24: #{backbones_forward.1} parent=0 // pred_region
    _
  $region25: #{backbones_forward.1} parent=0 // pred_fallthru
    _
  // Predicated region
  $region26: #{backbones_forward.1} parent=0 // pred_check
    _
  $region27: #{backbones_forward.1} parent=0 // pred_check_branch
    %28 = sbr.rel (0) target = $region29
  $region28: #{backbones_forward.1} parent=0 // pred_region
    _
  $region29: #{backbones_forward.1} parent=0 // pred_fallthru
    _
  // Predicated region
  $region30: #{backbones_forward.1} parent=0 // pred_check
    _
  $region31: #{backbones_forward.1} parent=0 // pred_check_branch
    %30 = sbr.rel (0) target = $region33
  $region32: #{backbones_forward.1} parent=0 // pred_region
    _
  $region33: #{backbones_forward.1} parent=0 // pred_fallthru
    _
  // Predicated region
  $region34: #{backbones_forward.1} parent=0 // pred_check
    _
  $region35: #{backbones_forward.1} parent=0 // pred_check_branch
    %32 = sbr.rel (0) target = $region37
  $region36: #{backbones_forward.1} parent=0 // pred_region
    _
  $region37: #{backbones_forward.1} parent=0 // pred_fallthru
    _
  // Predicated region
  $region38: #{backbones_forward.1} parent=0 // pred_check
    _
  $region39: #{backbones_forward.1} parent=0 // pred_check_branch
    %34 = sbr.rel (0) target = $region41
  $region40: #{backbones_forward.1} parent=0 // pred_region
    _
  $region41: #{backbones_forward.1} parent=0 // pred_fallthru
    _
  %v36 = vlaneseq
  %v37 = vshrl.u32 %v36, 7
  %vm38 = vcmp.lt.s32.totalorder %v37, 2
  %v39 = vsel %vm38, 1, 0
  %v40 = vcvt.s32.f32 %v39
  %v41 = vld [vmem:[%s0] sm:$0xff]
  %v42 = vld [vmem:[%s1] sm:$0xff]
  %v43 = vld [vmem:[%s2] sm:$0x1]
  %v45 = vlaneseq
  %v46 = vshrl.u32 %v45, 7
  %v47 = vsub.s32 0, %v46
  %v48 = vrot.slane %v43, %v47
  %vm50 = vcmask 64512
  %v52 = vsel %vm50, %v41, 0
  %54 = vmatprep.subr.mxu0 0.0
  %55 = vmatpush1.msra.mxu0 0.0
  %56 = vmatprep.subr.mxu0 0.0
  %57 = vmatpush1.msra.mxu0 0.0
  %58 = vmatprep.subr.mxu0 0.0
  %59 = vmatpush1.msra.mxu0 0.0
  %60 = vmatprep.subr.mxu0 0.0
  %61 = vmatpush1.msra.mxu0 0.0
  %62 = vmatprep.subr.mxu0 0.0
  %63 = vmatpush1.msra.mxu0 0.0
  %64 = vmatprep.subr.mxu0 0.0
  %65 = vmatpush1.msra.mxu0 0.0
  %66 = vmatprep.subr.mxu0 0.0
  %67 = vmatpush1.msra.mxu0 0.0
  %68 = vmatprep.subr.mxu0 0.0
  %69 = vmatpush1.msra.mxu0 0.0
  %70 = vmatprep.subr.mxu0 0.0
  %71 = vmatpush1.msra.mxu0 0.0
  %72 = vmatprep.subr.mxu0 0.0
  %73 = vmatpush1.msra.mxu0 0.0
  %74 = vmatprep.subr.mxu0 0.0
  %75 = vmatpush1.msra.mxu0 0.0
  %76 = vmatprep.subr.mxu0 0.0
  %77 = vmatpush1.msra.mxu0 0.0
  %78 = vmatprep.subr.mxu0 0.0
  %79 = vmatpush1.msra.mxu0 0.0
  %80 = vmatprep.subr.mxu0 0.0
  %81 = vmatpush1.msra.mxu0 0.0
  %82 = vmatprep.subr.mxu0 0.0
  %83 = vmatpush1.msra.mxu0 0.0
  %84 = vmatprep.subr.mxu0 0.0
  %85 = vmatpush1.msra.mxu0 %v42
  %86 = vmatprep.subr.mxu0 0.0
  %87 = vmatpush2.msra.mxu0 0.0
  %88 = vmatprep.subr.mxu0 0.0
  %89 = vmatpush2.msra.mxu0 0.0
  %90 = vmatprep.subr.mxu0 0.0
  %91 = vmatpush2.msra.mxu0 0.0
  %92 = vmatprep.subr.mxu0 0.0
  %93 = vmatpush2.msra.mxu0 0.0
  %94 = vmatprep.subr.mxu0 0.0
  %95 = vmatpush2.msra.mxu0 0.0
  %96 = vmatprep.subr.mxu0 0.0
  %97 = vmatpush2.msra.mxu0 0.0
  %98 = vmatprep.subr.mxu0 0.0
  %99 = vmatpush2.msra.mxu0 0.0
  %100 = vmatprep.subr.mxu0 0.0
  %101 = vmatpush2.msra.mxu0 0.0
  %102 = vmatprep.subr.mxu0 0.0
  %103 = vmatpush2.msra.mxu0 0.0
  %104 = vmatprep.subr.mxu0 0.0
  %105 = vmatpush2.msra.mxu0 0.0
  %106 = vmatprep.subr.mxu0 0.0
  %107 = vmatpush2.msra.mxu0 0.0
  %108 = vmatprep.subr.mxu0 0.0
  %109 = vmatpush2.msra.mxu0 0.0
  %110 = vmatprep.subr.mxu0 0.0
  %111 = vmatpush2.msra.mxu0 0.0
  %112 = vmatprep.subr.mxu0 0.0
  %113 = vmatpush2.msra.mxu0 0.0
  %114 = vmatprep.subr.mxu0 0.0
  %115 = vmatpush2.msra.mxu0 0.0
  %116 = vmatprep.subr.mxu0 0.0
  %117 = vmatpush2.msra.mxu0 0.0
  %118 = vmatprep.mubr.f32.mxu0 0.0
  %119 = vmatmul.mubr.f32.gmra.mxu0 %v52
  %v120 = vpop.f32.mrf.mxu0
  %v121 = vadd.f32 %v48, %v120
  %v122 = vpop.f32.mrf.mxu0
  %123 = vdwg.mxu0
  %v124 = vmax.f32 %v121, 0.0
  %vm125 = vcmask 130048
  %126 = vst.msk [vmem:[#allocation2] sm:$0xff] %vm125, 0.0
  %127 = vst.msk [vmem:[#allocation2 + $0x8] sm:$0xff] %vm125, 0.0
  %128 = vst.msk [vmem:[#allocation2 + $0x10] sm:$0xff] %vm125, 0.0
  %129 = vst.msk [vmem:[#allocation2 + $0x18] sm:$0xff] %vm125, 0.0
  %130 = vst.msk [vmem:[#allocation2 + $0x20] sm:$0xff] %vm125, 0.0
  %131 = vst.msk [vmem:[#allocation2 + $0x28] sm:$0xff] %vm125, 0.0
  %132 = vst.msk [vmem:[#allocation2 + $0x30] sm:$0xff] %vm125, 0.0
  %133 = vst.msk [vmem:[#allocation2 + $0x38] sm:$0xff] %vm125, 0.0
  %134 = vst.msk [vmem:[#allocation2 + $0x40] sm:$0xff] %vm125, 0.0
  %135 = vst.msk [vmem:[#allocation2 + $0x48] sm:$0xff] %vm125, 0.0
  %136 = vst.msk [vmem:[#allocation2 + $0x50] sm:$0xff] %vm125, 0.0
  %s137 = scalar_lea.vmem [#allocation2], 152
  %138 = vst.msk [vmem:[%s137] sm:$0xff] %vm125, 0.0
  %139 = vst.msk [vmem:[%s137 + $0x8] sm:$0xff] %vm125, 0.0
  %s140 = scalar_lea.vmem [#allocation2], 232
  %141 = vst.msk [vmem:[%s140] sm:$0xff] %vm125, 0.0
  %142 = vst.msk [vmem:[%s140 + $0x8] sm:$0xff] %vm125, 0.0
  %s143 = scalar_lea.vmem [#allocation2], 312
  %144 = vst.msk [vmem:[%s143] sm:$0xff] %vm125, 0.0
  %145 = vst.msk [vmem:[%s143 + $0x8] sm:$0xff] %vm125, 0.0
  %s146 = scalar_lea.vmem [#allocation2], 392
  %147 = vst.msk [vmem:[%s146] sm:$0xff] %vm125, 0.0
  %148 = vst.msk [vmem:[%s146 + $0x8] sm:$0xff] %vm125, 0.0
  %s149 = scalar_lea.vmem [#allocation2], 472
  %150 = vst.msk [vmem:[%s149] sm:$0xff] %vm125, 0.0
  %151 = vst.msk [vmem:[%s149 + $0x8] sm:$0xff] %vm125, 0.0
  %s152 = scalar_lea.vmem [#allocation2], 552
  %153 = vst.msk [vmem:[%s152] sm:$0xff] %vm125, 0.0
  %154 = vst.msk [vmem:[%s152 + $0x8] sm:$0xff] %vm125, 0.0
  %s155 = scalar_lea.vmem [#allocation2], 632
  %156 = vst.msk [vmem:[%s155] sm:$0xff] %vm125, 0.0
  %157 = vst.msk [vmem:[%s155 + $0x8] sm:$0xff] %vm125, 0.0
  %s158 = scalar_lea.vmem [#allocation2], 712
  %159 = vst.msk [vmem:[%s158] sm:$0xff] %vm125, 0.0
  %160 = vst.msk [vmem:[%s158 + $0x8] sm:$0xff] %vm125, 0.0
  %161 = vst.msk [vmem:[%s158 + $0x10] sm:$0xff] %vm125, 0.0
  %162 = vst.msk [vmem:[%s158 + $0x18] sm:$0xff] %vm125, 0.0
  %163 = vst.msk [vmem:[%s158 + $0x20] sm:$0xff] %vm125, 0.0
  %164 = vst.msk [vmem:[%s158 + $0x28] sm:$0xff] %vm125, 0.0
  %165 = vst.msk [vmem:[%s158 + $0x30] sm:$0xff] %vm125, 0.0
  %166 = vst.msk [vmem:[%s158 + $0x38] sm:$0xff] %vm125, 0.0
  %167 = vst.msk [vmem:[%s158 + $0x40] sm:$0xff] %vm125, 0.0
  %168 = vst.msk [vmem:[%s158 + $0x48] sm:$0xff] %vm125, 0.0
  %169 = vst.msk [vmem:[%s158 + $0x50] sm:$0xff] %vm125, 0.0
  %170 = vst.msk [vmem:[%s158 + $0x58] sm:$0xff] %vm125, 0.0
  %171 = vst.msk [vmem:[%s158 + $0x60] sm:$0xff] %vm125, 0.0
  %v172 = vld [vmem:[%s3] sm:$0xf]
  %v173 = vld [vmem:[%s3 + $0x4] sm:$0xf]
  %v174 = vld [vmem:[%s3 + $0x8] sm:$0xf]
  %v175 = vld [vmem:[%s3 + $0xc] sm:$0xf]
  %v176 = vld [vmem:[%s3 + $0x10] sm:$0xf]
  %v177 = vld [vmem:[%s3 + $0x14] sm:$0xf]
  %v178 = vld [vmem:[%s3 + $0x18] sm:$0xf]
  %v179 = vld [vmem:[%s3 + $0x1c] sm:$0xf]
  %v180 = vld [vmem:[%s3 + $0x20] sm:$0xf]
  %v181 = vld [vmem:[%s3 + $0x24] sm:$0xf]
  %v182 = vld [vmem:[%s3 + $0x28] sm:$0xf]
  %v183 = vld [vmem:[%s3 + $0x2c] sm:$0xf]
  %v184 = vld [vmem:[%s3 + $0x30] sm:$0xf]
  %v185 = vld [vmem:[%s3 + $0x34] sm:$0xf]
  %v186 = vld [vmem:[%s3 + $0x38] sm:$0xf]
  %v187 = vld [vmem:[%s3 + $0x3c] sm:$0xf]
  %v188 = vld [vmem:[%s3 + $0x40] sm:$0xf]
  %v189 = vld [vmem:[%s3 + $0x44] sm:$0xf]
  %v190 = vld [vmem:[%s3 + $0x48] sm:$0xf]
  %v191 = vld [vmem:[%s3 + $0x4c] sm:$0xf]
  %v192 = vld [vmem:[%s3 + $0x50] sm:$0xf]
  %v193 = vld [vmem:[%s3 + $0x54] sm:$0xf]
  %v194 = vld [vmem:[%s3 + $0x58] sm:$0xf]
  %v195 = vld [vmem:[%s3 + $0x5c] sm:$0xf]
  %v196 = vld [vmem:[%s3 + $0x60] sm:$0xf]
  %v197 = vld [vmem:[%s3 + $0x64] sm:$0xf]
  %v198 = vld [vmem:[%s3 + $0x68] sm:$0xf]
  %v199 = vld [vmem:[%s3 + $0x6c] sm:$0xf]
  %v200 = vld [vmem:[%s3 + $0x70] sm:$0xf]
  %v201 = vld [vmem:[%s3 + $0x74] sm:$0xf]
  %v202 = vld [vmem:[%s3 + $0x78] sm:$0xf]
  %v203 = vld [vmem:[%s3 + $0x7c] sm:$0xf]
  %v204 = vld [vmem:[%s3 + $0x80] sm:$0xf]
  %v205 = vld [vmem:[%s3 + $0x84] sm:$0xf]
  %v206 = vld [vmem:[%s3 + $0x88] sm:$0xf]
  %v207 = vld [vmem:[%s3 + $0x8c] sm:$0xf]
  %v208 = vld [vmem:[%s3 + $0x90] sm:$0xf]
  %v209 = vld [vmem:[%s3 + $0x94] sm:$0xf]
  %v210 = vld [vmem:[%s3 + $0x98] sm:$0xf]
  %v211 = vld [vmem:[%s3 + $0x9c] sm:$0xf]
  %v212 = vld [vmem:[%s3 + $0xa0] sm:$0xf]
  %v213 = vld [vmem:[%s3 + $0xa4] sm:$0xf]
  %v214 = vld [vmem:[%s3 + $0xa8] sm:$0xf]
  %v215 = vld [vmem:[%s3 + $0xac] sm:$0xf]
  %v216 = vld [vmem:[%s3 + $0xb0] sm:$0xf]
  %v217 = vld [vmem:[%s3 + $0xb4] sm:$0xf]
  %v218 = vld [vmem:[%s3 + $0xb8] sm:$0xf]
  %v219 = vld [vmem:[%s3 + $0xbc] sm:$0xf]
  %v220 = vld [vmem:[%s3 + $0xc0] sm:$0xf]
  %v221 = vld [vmem:[%s3 + $0xc4] sm:$0xf]
  %v222 = vld [vmem:[%s3 + $0xc8] sm:$0xf]
  %v223 = vld [vmem:[%s3 + $0xcc] sm:$0xf]
  %v224 = vld [vmem:[%s3 + $0xd0] sm:$0xf]
  %v225 = vld [vmem:[%s3 + $0xd4] sm:$0xf]
  %v226 = vld [vmem:[%s3 + $0xd8] sm:$0xf]
  %v227 = vld [vmem:[%s3 + $0xdc] sm:$0xf]
  %v228 = vld [vmem:[%s3 + $0xe0] sm:$0xf]
  %v229 = vld [vmem:[%s3 + $0xe4] sm:$0xf]
  %v230 = vld [vmem:[%s3 + $0xe8] sm:$0xf]
  %v231 = vld [vmem:[%s3 + $0xec] sm:$0xf]
  %v232 = vld [vmem:[%s3 + $0xf0] sm:$0xf]
  %v233 = vld [vmem:[%s3 + $0xf4] sm:$0xf]
  %v234 = vld [vmem:[%s3 + $0xf8] sm:$0xf]
  %v235 = vld [vmem:[%s3 + $0xfc] sm:$0xf]
  %v236 = vld [vmem:[%s3 + $0x100] sm:$0xf]
  %v237 = vld [vmem:[%s3 + $0x104] sm:$0xf]
  %v238 = vld [vmem:[%s3 + $0x108] sm:$0xf]
  %v239 = vld [vmem:[%s3 + $0x10c] sm:$0xf]
  %v240 = vld [vmem:[%s3 + $0x110] sm:$0xf]
  %v241 = vld [vmem:[%s3 + $0x114] sm:$0xf]
  %v242 = vld [vmem:[%s3 + $0x118] sm:$0xf]
  %v243 = vld [vmem:[%s3 + $0x11c] sm:$0xf]
  %v244 = vld [vmem:[%s3 + $0x120] sm:$0xf]
  %v245 = vld [vmem:[%s3 + $0x124] sm:$0xf]
  %v246 = vld [vmem:[%s3 + $0x128] sm:$0xf]
  %v247 = vld [vmem:[%s3 + $0x12c] sm:$0xf]
  %v248 = vld [vmem:[%s3 + $0x130] sm:$0xf]
  %v249 = vld [vmem:[%s3 + $0x134] sm:$0xf]
  %v250 = vld [vmem:[%s3 + $0x138] sm:$0xf]
  %v251 = vld [vmem:[%s3 + $0x13c] sm:$0xf]
  %v252 = vld [vmem:[%s3 + $0x140] sm:$0xf]
  %v253 = vld [vmem:[%s3 + $0x144] sm:$0xf]
  %v254 = vld [vmem:[%s3 + $0x148] sm:$0xf]
  %v255 = vld [vmem:[%s3 + $0x14c] sm:$0xf]
  %v256 = vld [vmem:[%s3 + $0x150] sm:$0xf]
  %v257 = vld [vmem:[%s3 + $0x154] sm:$0xf]
  %v258 = vld [vmem:[%s3 + $0x158] sm:$0xf]
  %v259 = vld [vmem:[%s3 + $0x15c] sm:$0xf]
  %v260 = vld [vmem:[%s3 + $0x160] sm:$0xf]
  %v261 = vld [vmem:[%s3 + $0x164] sm:$0xf]
  %v262 = vld [vmem:[%s3 + $0x168] sm:$0xf]
  %v263 = vld [vmem:[%s3 + $0x16c] sm:$0xf]
  %v264 = vld [vmem:[%s3 + $0x170] sm:$0xf]
  %v265 = vld [vmem:[%s3 + $0x174] sm:$0xf]
  %v266 = vld [vmem:[%s3 + $0x178] sm:$0xf]
  %v267 = vld [vmem:[%s3 + $0x17c] sm:$0xf]
  %v268 = vld [vmem:[%s3 + $0x180] sm:$0xf]
  %v269 = vld [vmem:[%s3 + $0x184] sm:$0xf]
  %v270 = vld [vmem:[%s3 + $0x188] sm:$0xf]
  %v271 = vld [vmem:[%s3 + $0x18c] sm:$0xf]
  %v272 = vld [vmem:[%s3 + $0x190] sm:$0xf]
  %v273 = vld [vmem:[%s3 + $0x194] sm:$0xf]
  %v274 = vld [vmem:[%s3 + $0x198] sm:$0xf]
  %v275 = vld [vmem:[%s3 + $0x19c] sm:$0xf]
  %v276 = vld [vmem:[%s3 + $0x1a0] sm:$0xf]
  %v277 = vld [vmem:[%s3 + $0x1a4] sm:$0xf]
  %v278 = vld [vmem:[%s3 + $0x1a8] sm:$0xf]
  %v279 = vld [vmem:[%s3 + $0x1ac] sm:$0xf]
  %v280 = vld [vmem:[%s3 + $0x1b0] sm:$0xf]
  %v281 = vld [vmem:[%s3 + $0x1b4] sm:$0xf]
  %v282 = vld [vmem:[%s3 + $0x1b8] sm:$0xf]
  %v283 = vld [vmem:[%s3 + $0x1bc] sm:$0xf]
  %v284 = vld [vmem:[%s3 + $0x1c0] sm:$0xf]
  %v285 = vld [vmem:[%s3 + $0x1c4] sm:$0xf]
  %v286 = vld [vmem:[%s3 + $0x1c8] sm:$0xf]
  %v287 = vld [vmem:[%s3 + $0x1cc] sm:$0xf]
  %v288 = vld [vmem:[%s3 + $0x1d0] sm:$0xf]
  %v289 = vld [vmem:[%s3 + $0x1d4] sm:$0xf]
  %v290 = vld [vmem:[%s3 + $0x1d8] sm:$0xf]
  %v291 = vld [vmem:[%s3 + $0x1dc] sm:$0xf]
  %v292 = vld [vmem:[%s3 + $0x1e0] sm:$0xf]
  %v293 = vld [vmem:[%s3 + $0x1e4] sm:$0xf]
  %v294 = vld [vmem:[%s3 + $0x1e8] sm:$0xf]
  %v295 = vld [vmem:[%s3 + $0x1ec] sm:$0xf]
  %v296 = vld [vmem:[%s3 + $0x1f0] sm:$0xf]
  %v297 = vld [vmem:[%s3 + $0x1f4] sm:$0xf]
  %v298 = vld [vmem:[%s3 + $0x1f8] sm:$0xf]
  %v299 = vld [vmem:[%s3 + $0x1fc] sm:$0xf]
  %v300 = vld [vmem:[%s3 + $0x200] sm:$0xf]
  %v301 = vld [vmem:[%s3 + $0x204] sm:$0xf]
  %v302 = vld [vmem:[%s3 + $0x208] sm:$0xf]
  %v303 = vld [vmem:[%s3 + $0x20c] sm:$0xf]
  %v304 = vld [vmem:[%s3 + $0x210] sm:$0xf]
  %v305 = vld [vmem:[%s3 + $0x214] sm:$0xf]
  %v306 = vld [vmem:[%s3 + $0x218] sm:$0xf]
  %v307 = vld [vmem:[%s3 + $0x21c] sm:$0xf]
  %v308 = vld [vmem:[%s3 + $0x220] sm:$0xf]
  %v309 = vld [vmem:[%s3 + $0x224] sm:$0xf]
  %v310 = vld [vmem:[%s3 + $0x228] sm:$0xf]
  %v311 = vld [vmem:[%s3 + $0x22c] sm:$0xf]
  %v312 = vld [vmem:[%s3 + $0x230] sm:$0xf]
  %v313 = vld [vmem:[%s3 + $0x234] sm:$0xf]
  %v314 = vld [vmem:[%s3 + $0x238] sm:$0xf]
  %v315 = vld [vmem:[%s3 + $0x23c] sm:$0xf]
  %v316 = vld [vmem:[%s3 + $0x240] sm:$0xf]
  %v317 = vld [vmem:[%s3 + $0x244] sm:$0xf]
  %v318 = vld [vmem:[%s3 + $0x248] sm:$0xf]
  %v319 = vld [vmem:[%s3 + $0x24c] sm:$0xf]
  %v320 = vld [vmem:[%s3 + $0x250] sm:$0xf]
  %v321 = vld [vmem:[%s3 + $0x254] sm:$0xf]
  %v322 = vld [vmem:[%s3 + $0x258] sm:$0xf]
  %v323 = vld [vmem:[%s3 + $0x25c] sm:$0xf]
  %v324 = vld [vmem:[%s3 + $0x260] sm:$0xf]
  %v325 = vld [vmem:[%s3 + $0x264] sm:$0xf]
  %v326 = vld [vmem:[%s3 + $0x268] sm:$0xf]
  %v327 = vld [vmem:[%s3 + $0x26c] sm:$0xf]
  %v328 = vld [vmem:[%s3 + $0x270] sm:$0xf]
  %v329 = vld [vmem:[%s3 + $0x274] sm:$0xf]
  %v330 = vld [vmem:[%s3 + $0x278] sm:$0xf]
  %v331 = vld [vmem:[%s3 + $0x27c] sm:$0xf]
  %v332 = vld [vmem:[%s3 + $0x280] sm:$0xf]
  %v333 = vld [vmem:[%s3 + $0x284] sm:$0xf]
  %v334 = vld [vmem:[%s3 + $0x288] sm:$0xf]
  %v335 = vld [vmem:[%s3 + $0x28c] sm:$0xf]
  %v336 = vld [vmem:[%s3 + $0x290] sm:$0xf]
  %v337 = vld [vmem:[%s3 + $0x294] sm:$0xf]
  %v338 = vld [vmem:[%s3 + $0x298] sm:$0xf]
  %v339 = vld [vmem:[%s3 + $0x29c] sm:$0xf]
  %v340 = vld [vmem:[%s3 + $0x2a0] sm:$0xf]
  %v341 = vld [vmem:[%s3 + $0x2a4] sm:$0xf]
  %v342 = vld [vmem:[%s3 + $0x2a8] sm:$0xf]
  %v343 = vld [vmem:[%s3 + $0x2ac] sm:$0xf]
  %v344 = vld [vmem:[%s3 + $0x2b0] sm:$0xf]
  %v345 = vld [vmem:[%s3 + $0x2b4] sm:$0xf]
  %v346 = vld [vmem:[%s3 + $0x2b8] sm:$0xf]
  %v347 = vld [vmem:[%s3 + $0x2bc] sm:$0xf]
  %v348 = vld [vmem:[%s3 + $0x2c0] sm:$0xf]
  %v349 = vld [vmem:[%s3 + $0x2c4] sm:$0xf]
  %v350 = vld [vmem:[%s3 + $0x2c8] sm:$0xf]
  %v351 = vld [vmem:[%s3 + $0x2cc] sm:$0xf]
  %v352 = vld [vmem:[%s3 + $0x2d0] sm:$0xf]
  %v353 = vld [vmem:[%s3 + $0x2d4] sm:$0xf]
  %v354 = vld [vmem:[%s3 + $0x2d8] sm:$0xf]
  %v355 = vld [vmem:[%s3 + $0x2dc] sm:$0xf]
  %v356 = vld [vmem:[%s3 + $0x2e0] sm:$0xf]
  %v357 = vld [vmem:[%s3 + $0x2e4] sm:$0xf]
  %v358 = vld [vmem:[%s3 + $0x2e8] sm:$0xf]
  %v359 = vld [vmem:[%s3 + $0x2ec] sm:$0xf]
  %v360 = vld [vmem:[%s3 + $0x2f0] sm:$0xf]
  %v361 = vld [vmem:[%s3 + $0x2f4] sm:$0xf]
  %v362 = vld [vmem:[%s3 + $0x2f8] sm:$0xf]
  %v363 = vld [vmem:[%s3 + $0x2fc] sm:$0xf]
  %v364 = vld [vmem:[%s3 + $0x300] sm:$0xf]
  %v365 = vld [vmem:[%s3 + $0x304] sm:$0xf]
  %v366 = vld [vmem:[%s3 + $0x308] sm:$0xf]
  %v367 = vld [vmem:[%s3 + $0x30c] sm:$0xf]
  %v368 = vld [vmem:[%s3 + $0x310] sm:$0xf]
  %v369 = vld [vmem:[%s3 + $0x314] sm:$0xf]
  %v370 = vld [vmem:[%s3 + $0x318] sm:$0xf]
  %v371 = vld [vmem:[%s3 + $0x31c] sm:$0xf]
  %v372 = vld [vmem:[%s3 + $0x320] sm:$0xf]
  %v373 = vld [vmem:[%s3 + $0x324] sm:$0xf]
  %v374 = vld [vmem:[%s3 + $0x328] sm:$0xf]
  %v375 = vld [vmem:[%s3 + $0x32c] sm:$0xf]
  %v376 = vld [vmem:[%s3 + $0x330] sm:$0xf]
  %v377 = vld [vmem:[%s3 + $0x334] sm:$0xf]
  %v378 = vld [vmem:[%s3 + $0x338] sm:$0xf]
  %v379 = vld [vmem:[%s3 + $0x33c] sm:$0xf]
  %v380 = vld [vmem:[%s3 + $0x340] sm:$0xf]
  %v381 = vld [vmem:[%s3 + $0x344] sm:$0xf]
  %v382 = vld [vmem:[%s3 + $0x348] sm:$0xf]
  %v383 = vld [vmem:[%s3 + $0x34c] sm:$0xf]
  %v384 = vld [vmem:[%s3 + $0x350] sm:$0xf]
  %v385 = vld [vmem:[%s3 + $0x354] sm:$0xf]
  %v386 = vld [vmem:[%s3 + $0x358] sm:$0xf]
  %v387 = vld [vmem:[%s3 + $0x35c] sm:$0xf]
  %v388 = vld [vmem:[%s3 + $0x360] sm:$0xf]
  %v389 = vld [vmem:[%s3 + $0x364] sm:$0xf]
  %v390 = vld [vmem:[%s3 + $0x368] sm:$0xf]
  %v391 = vld [vmem:[%s3 + $0x36c] sm:$0xf]
  %v392 = vld [vmem:[%s3 + $0x370] sm:$0xf]
  %v393 = vld [vmem:[%s3 + $0x374] sm:$0xf]
  %v394 = vld [vmem:[%s3 + $0x378] sm:$0xf]
  %v395 = vld [vmem:[%s3 + $0x37c] sm:$0xf]
  %v396 = vld [vmem:[%s3 + $0x380] sm:$0xf]
  %v397 = vld [vmem:[%s3 + $0x384] sm:$0xf]
  %v398 = vld [vmem:[%s3 + $0x388] sm:$0xf]
  %v399 = vld [vmem:[%s3 + $0x38c] sm:$0xf]
  %v400 = vld [vmem:[%s3 + $0x390] sm:$0xf]
  %v401 = vld [vmem:[%s3 + $0x394] sm:$0xf]
  %v402 = vld [vmem:[%s3 + $0x398] sm:$0xf]
  %v403 = vld [vmem:[%s3 + $0x39c] sm:$0xf]
  %v404 = vld [vmem:[%s3 + $0x3a0] sm:$0xf]
  %v405 = vld [vmem:[%s3 + $0x3a4] sm:$0xf]
  %v406 = vld [vmem:[%s3 + $0x3a8] sm:$0xf]
  %v407 = vld [vmem:[%s3 + $0x3ac] sm:$0xf]
  %v408 = vld [vmem:[%s3 + $0x3b0] sm:$0xf]
  %v409 = vld [vmem:[%s3 + $0x3b4] sm:$0xf]
  %v410 = vld [vmem:[%s3 + $0x3b8] sm:$0xf]
  %v411 = vld [vmem:[%s3 + $0x3bc] sm:$0xf]
  %v412 = vld [vmem:[%s3 + $0x3c0] sm:$0xf]
  %v413 = vld [vmem:[%s3 + $0x3c4] sm:$0xf]
  %v414 = vld [vmem:[%s3 + $0x3c8] sm:$0xf]
  %v415 = vld [vmem:[%s3 + $0x3cc] sm:$0xf]
  %v416 = vld [vmem:[%s3 + $0x3d0] sm:$0xf]
  %v417 = vld [vmem:[%s3 + $0x3d4] sm:$0xf]
  %v418 = vld [vmem:[%s3 + $0x3d8] sm:$0xf]
  %v419 = vld [vmem:[%s3 + $0x3dc] sm:$0xf]
  %v420 = vld [vmem:[%s3 + $0x3e0] sm:$0xf]
  %v421 = vld [vmem:[%s3 + $0x3e4] sm:$0xf]
  %v422 = vld [vmem:[%s3 + $0x3e8] sm:$0xf]
  %v423 = vld [vmem:[%s3 + $0x3ec] sm:$0xf]
  %v424 = vld [vmem:[%s3 + $0x3f0] sm:$0xf]
  %v425 = vld [vmem:[%s3 + $0x3f4] sm:$0xf]
  %v426 = vld [vmem:[%s3 + $0x3f8] sm:$0xf]
  %v427 = vld [vmem:[%s3 + $0x3fc] sm:$0xf]
  %v428 = vld [vmem:[%s4] sm:$0xf]
  %v429 = vld [vmem:[%s4 + $0x4] sm:$0xf]
  %v430 = vld [vmem:[%s4 + $0x8] sm:$0xf]
  %v431 = vld [vmem:[%s4 + $0xc] sm:$0xf]
  %v432 = vld [vmem:[%s5] sm:$0x7]
  %v433 = vlaneseq
  %v434 = vshrl.u32 %v433, 7
  %v435 = vsub.s32 0, %v434
  %v436 = vrot.slane %v432, %v435
  %v693 = vunpack.c.l.b16 %v172
  %v694 = vunpack.c.l.b16 %v173
  %v695 = vunpack.c.l.b16 %v174
  %v696 = vunpack.c.l.b16 %v175
  %v697 = vunpack.c.l.b16 %v176
  %v698 = vunpack.c.l.b16 %v177
  %v699 = vunpack.c.l.b16 %v178
  %v700 = vunpack.c.l.b16 %v179
  %v701 = vunpack.c.l.b16 %v180
  %v702 = vunpack.c.l.b16 %v181
  %v703 = vunpack.c.l.b16 %v182
  %v704 = vunpack.c.l.b16 %v183
  %v705 = vunpack.c.l.b16 %v184
  %v706 = vunpack.c.l.b16 %v185
  %v707 = vunpack.c.l.b16 %v186
  %v708 = vunpack.c.l.b16 %v187
  %v709 = vunpack.c.l.b16 %v188
  %v710 = vunpack.c.l.b16 %v189
  %v711 = vunpack.c.l.b16 %v190
  %v712 = vunpack.c.l.b16 %v191
  %v713 = vunpack.c.l.b16 %v192
  %v714 = vunpack.c.l.b16 %v193
  %v715 = vunpack.c.l.b16 %v194
  %v716 = vunpack.c.l.b16 %v195
  %v717 = vunpack.c.l.b16 %v196
  %v718 = vunpack.c.l.b16 %v197
  %v719 = vunpack.c.l.b16 %v198
  %v720 = vunpack.c.l.b16 %v199
  %v721 = vunpack.c.l.b16 %v200
  %v722 = vunpack.c.l.b16 %v201
  %v723 = vunpack.c.l.b16 %v202
  %v724 = vunpack.c.l.b16 %v203
  %v725 = vunpack.c.l.b16 %v204
  %v726 = vunpack.c.l.b16 %v205
  %v727 = vunpack.c.l.b16 %v206
  %v728 = vunpack.c.l.b16 %v207
  %v729 = vunpack.c.l.b16 %v208
  %v730 = vunpack.c.l.b16 %v209
  %v731 = vunpack.c.l.b16 %v210
  %v732 = vunpack.c.l.b16 %v211
  %v733 = vunpack.c.l.b16 %v212
  %v734 = vunpack.c.l.b16 %v213
  %v735 = vunpack.c.l.b16 %v214
  %v736 = vunpack.c.l.b16 %v215
  %v737 = vunpack.c.l.b16 %v216
  %v738 = vunpack.c.l.b16 %v217
  %v739 = vunpack.c.l.b16 %v218
  %v740 = vunpack.c.l.b16 %v219
  %v741 = vunpack.c.l.b16 %v220
  %v742 = vunpack.c.l.b16 %v221
  %v743 = vunpack.c.l.b16 %v222
  %v744 = vunpack.c.l.b16 %v223
  %v745 = vunpack.c.l.b16 %v224
  %v746 = vunpack.c.l.b16 %v225
  %v747 = vunpack.c.l.b16 %v226
  %v748 = vunpack.c.l.b16 %v227
  %v749 = vunpack.c.l.b16 %v228
  %v750 = vunpack.c.l.b16 %v229
  %v751 = vunpack.c.l.b16 %v230
  %v752 = vunpack.c.l.b16 %v231
  %v753 = vunpack.c.l.b16 %v232
  %v754 = vunpack.c.l.b16 %v233
  %v755 = vunpack.c.l.b16 %v234
  %v756 = vunpack.c.l.b16 %v235
  %v757 = vunpack.c.l.b16 %v236
  %v758 = vunpack.c.l.b16 %v237
  %v759 = vunpack.c.l.b16 %v238
  %v760 = vunpack.c.l.b16 %v239
  %v761 = vunpack.c.l.b16 %v240
  %v762 = vunpack.c.l.b16 %v241
  %v763 = vunpack.c.l.b16 %v242
  %v764 = vunpack.c.l.b16 %v243
  %v765 = vunpack.c.l.b16 %v244
  %v766 = vunpack.c.l.b16 %v245
  %v767 = vunpack.c.l.b16 %v246
  %v768 = vunpack.c.l.b16 %v247
  %v769 = vunpack.c.l.b16 %v248
  %v770 = vunpack.c.l.b16 %v249
  %v771 = vunpack.c.l.b16 %v250
  %v772 = vunpack.c.l.b16 %v251
  %v773 = vunpack.c.l.b16 %v252
  %v774 = vunpack.c.l.b16 %v253
  %v775 = vunpack.c.l.b16 %v254
  %v776 = vunpack.c.l.b16 %v255
  %v777 = vunpack.c.l.b16 %v256
  %v778 = vunpack.c.l.b16 %v257
  %v779 = vunpack.c.l.b16 %v258
  %v780 = vunpack.c.l.b16 %v259
  %v781 = vunpack.c.l.b16 %v260
  %v782 = vunpack.c.l.b16 %v261
  %v783 = vunpack.c.l.b16 %v262
  %v784 = vunpack.c.l.b16 %v263
  %v785 = vunpack.c.l.b16 %v264
  %v786 = vunpack.c.l.b16 %v265
  %v787 = vunpack.c.l.b16 %v266
  %v788 = vunpack.c.l.b16 %v267
  %v789 = vunpack.c.l.b16 %v268
  %v790 = vunpack.c.l.b16 %v269
  %v791 = vunpack.c.l.b16 %v270
  %v792 = vunpack.c.l.b16 %v271
  %v793 = vunpack.c.l.b16 %v272
  %v794 = vunpack.c.l.b16 %v273
  %v795 = vunpack.c.l.b16 %v274
  %v796 = vunpack.c.l.b16 %v275
  %v797 = vunpack.c.l.b16 %v276
  %v798 = vunpack.c.l.b16 %v277
  %v799 = vunpack.c.l.b16 %v278
  %v800 = vunpack.c.l.b16 %v279
  %v801 = vunpack.c.l.b16 %v280
  %v802 = vunpack.c.l.b16 %v281
  %v803 = vunpack.c.l.b16 %v282
  %v804 = vunpack.c.l.b16 %v283
  %v805 = vunpack.c.l.b16 %v284
  %v806 = vunpack.c.l.b16 %v285
  %v807 = vunpack.c.l.b16 %v286
  %v808 = vunpack.c.l.b16 %v287
  %v809 = vunpack.c.l.b16 %v288
  %v810 = vunpack.c.l.b16 %v289
  %v811 = vunpack.c.l.b16 %v290
  %v812 = vunpack.c.l.b16 %v291
  %v813 = vunpack.c.l.b16 %v292
  %v814 = vunpack.c.l.b16 %v293
  %v815 = vunpack.c.l.b16 %v294
  %v816 = vunpack.c.l.b16 %v295
  %v817 = vunpack.c.l.b16 %v296
  %v818 = vunpack.c.l.b16 %v297
  %v819 = vunpack.c.l.b16 %v298
  %v820 = vunpack.c.l.b16 %v299
  %v821 = vunpack.c.l.b16 %v300
  %v822 = vunpack.c.l.b16 %v301
  %v823 = vunpack.c.l.b16 %v302
  %v824 = vunpack.c.l.b16 %v303
  %v825 = vunpack.c.l.b16 %v304
  %v826 = vunpack.c.l.b16 %v305
  %v827 = vunpack.c.l.b16 %v306
  %v828 = vunpack.c.l.b16 %v307
  %v829 = vunpack.c.l.b16 %v308
  %v830 = vunpack.c.l.b16 %v309
  %v831 = vunpack.c.l.b16 %v310
  %v832 = vunpack.c.l.b16 %v311
  %v833 = vunpack.c.l.b16 %v312
  %v834 = vunpack.c.l.b16 %v313
  %v835 = vunpack.c.l.b16 %v314
  %v836 = vunpack.c.l.b16 %v315
  %v837 = vunpack.c.l.b16 %v316
  %v838 = vunpack.c.l.b16 %v317
  %v839 = vunpack.c.l.b16 %v318
  %v840 = vunpack.c.l.b16 %v319
  %v841 = vunpack.c.l.b16 %v320
  %v842 = vunpack.c.l.b16 %v321
  %v843 = vunpack.c.l.b16 %v322
  %v844 = vunpack.c.l.b16 %v323
  %v845 = vunpack.c.l.b16 %v324
  %v846 = vunpack.c.l.b16 %v325
  %v847 = vunpack.c.l.b16 %v326
  %v848 = vunpack.c.l.b16 %v327
  %v849 = vunpack.c.l.b16 %v328
  %v850 = vunpack.c.l.b16 %v329
  %v851 = vunpack.c.l.b16 %v330
  %v852 = vunpack.c.l.b16 %v331
  %v853 = vunpack.c.l.b16 %v332
  %v854 = vunpack.c.l.b16 %v333
  %v855 = vunpack.c.l.b16 %v334
  %v856 = vunpack.c.l.b16 %v335
  %v857 = vunpack.c.l.b16 %v336
  %v858 = vunpack.c.l.b16 %v337
  %v859 = vunpack.c.l.b16 %v338
  %v860 = vunpack.c.l.b16 %v339
  %v861 = vunpack.c.l.b16 %v340
  %v862 = vunpack.c.l.b16 %v341
  %v863 = vunpack.c.l.b16 %v342
  %v864 = vunpack.c.l.b16 %v343
  %v865 = vunpack.c.l.b16 %v344
  %v866 = vunpack.c.l.b16 %v345
  %v867 = vunpack.c.l.b16 %v346
  %v868 = vunpack.c.l.b16 %v347
  %v869 = vunpack.c.l.b16 %v348
  %v870 = vunpack.c.l.b16 %v349
  %v871 = vunpack.c.l.b16 %v350
  %v872 = vunpack.c.l.b16 %v351
  %v873 = vunpack.c.l.b16 %v352
  %v874 = vunpack.c.l.b16 %v353
  %v875 = vunpack.c.l.b16 %v354
  %v876 = vunpack.c.l.b16 %v355
  %v877 = vunpack.c.l.b16 %v356
  %v878 = vunpack.c.l.b16 %v357
  %v879 = vunpack.c.l.b16 %v358
  %v880 = vunpack.c.l.b16 %v359
  %v881 = vunpack.c.l.b16 %v360
  %v882 = vunpack.c.l.b16 %v361
  %v883 = vunpack.c.l.b16 %v362
  %v884 = vunpack.c.l.b16 %v363
  %v885 = vunpack.c.l.b16 %v364
  %v886 = vunpack.c.l.b16 %v365
  %v887 = vunpack.c.l.b16 %v366
  %v888 = vunpack.c.l.b16 %v367
  %v889 = vunpack.c.l.b16 %v368
  %v890 = vunpack.c.l.b16 %v369
  %v891 = vunpack.c.l.b16 %v370
  %v892 = vunpack.c.l.b16 %v371
  %v893 = vunpack.c.l.b16 %v372
  %v894 = vunpack.c.l.b16 %v373
  %v895 = vunpack.c.l.b16 %v374
  %v896 = vunpack.c.l.b16 %v375
  %v897 = vunpack.c.l.b16 %v376
  %v898 = vunpack.c.l.b16 %v377
  %v899 = vunpack.c.l.b16 %v378
  %v900 = vunpack.c.l.b16 %v379
  %v901 = vunpack.c.l.b16 %v380
  %v902 = vunpack.c.l.b16 %v381
  %v903 = vunpack.c.l.b16 %v382
  %v904 = vunpack.c.l.b16 %v383
  %v905 = vunpack.c.l.b16 %v384
  %v906 = vunpack.c.l.b16 %v385
  %v907 = vunpack.c.l.b16 %v386
  %v908 = vunpack.c.l.b16 %v387
  %v909 = vunpack.c.l.b16 %v388
  %v910 = vunpack.c.l.b16 %v389
  %v911 = vunpack.c.l.b16 %v390
  %v912 = vunpack.c.l.b16 %v391
  %v913 = vunpack.c.l.b16 %v392
  %v914 = vunpack.c.l.b16 %v393
  %v915 = vunpack.c.l.b16 %v394
  %v916 = vunpack.c.l.b16 %v395
  %v917 = vunpack.c.l.b16 %v396
  %v918 = vunpack.c.l.b16 %v397
  %v919 = vunpack.c.l.b16 %v398
  %v920 = vunpack.c.l.b16 %v399
  %v921 = vunpack.c.l.b16 %v400
  %v922 = vunpack.c.l.b16 %v401
  %v923 = vunpack.c.l.b16 %v402
  %v924 = vunpack.c.l.b16 %v403
  %v925 = vunpack.c.l.b16 %v404
  %v926 = vunpack.c.l.b16 %v405
  %v927 = vunpack.c.l.b16 %v406
  %v928 = vunpack.c.l.b16 %v407
  %v929 = vunpack.c.l.b16 %v408
  %v930 = vunpack.c.l.b16 %v409
  %v931 = vunpack.c.l.b16 %v410
  %v932 = vunpack.c.l.b16 %v411
  %v933 = vunpack.c.l.b16 %v412
  %v934 = vunpack.c.l.b16 %v413
  %v935 = vunpack.c.l.b16 %v414
  %v936 = vunpack.c.l.b16 %v415
  %v937 = vunpack.c.l.b16 %v416
  %v938 = vunpack.c.l.b16 %v417
  %v939 = vunpack.c.l.b16 %v418
  %v940 = vunpack.c.l.b16 %v419
  %v941 = vunpack.c.l.b16 %v420
  %v942 = vunpack.c.l.b16 %v421
  %v943 = vunpack.c.l.b16 %v422
  %v944 = vunpack.c.l.b16 %v423
  %v945 = vunpack.c.l.b16 %v424
  %v946 = vunpack.c.l.b16 %v425
  %v947 = vunpack.c.l.b16 %v426
  %v948 = vunpack.c.l.b16 %v427
  %v949 = vpack.c.b16 %v694, %v693
  %v950 = vpack.c.b16 %v696, %v695
  %v951 = vpack.c.b16 %v698, %v697
  %v952 = vpack.c.b16 %v700, %v699
  %v953 = vpack.c.b16 %v702, %v701
  %v954 = vpack.c.b16 %v704, %v703
  %v955 = vpack.c.b16 %v706, %v705
  %v956 = vpack.c.b16 %v708, %v707
  %v957 = vpack.c.b16 %v710, %v709
  %v958 = vpack.c.b16 %v712, %v711
  %v959 = vpack.c.b16 %v714, %v713
  %v960 = vpack.c.b16 %v716, %v715
  %v961 = vpack.c.b16 %v718, %v717
  %v962 = vpack.c.b16 %v720, %v719
  %v963 = vpack.c.b16 %v722, %v721
  %v964 = vpack.c.b16 %v724, %v723
  %v965 = vpack.c.b16 %v726, %v725
  %v966 = vpack.c.b16 %v728, %v727
  %v967 = vpack.c.b16 %v730, %v729
  %v968 = vpack.c.b16 %v732, %v731
  %v969 = vpack.c.b16 %v734, %v733
  %v970 = vpack.c.b16 %v736, %v735
  %v971 = vpack.c.b16 %v738, %v737
  %v972 = vpack.c.b16 %v740, %v739
  %v973 = vpack.c.b16 %v742, %v741
  %v974 = vpack.c.b16 %v744, %v743
  %v975 = vpack.c.b16 %v746, %v745
  %v976 = vpack.c.b16 %v748, %v747
  %v977 = vpack.c.b16 %v750, %v749
  %v978 = vpack.c.b16 %v752, %v751
  %v979 = vpack.c.b16 %v754, %v753
  %v980 = vpack.c.b16 %v756, %v755
  %v981 = vpack.c.b16 %v758, %v757
  %v982 = vpack.c.b16 %v760, %v759
  %v983 = vpack.c.b16 %v762, %v761
  %v984 = vpack.c.b16 %v764, %v763
  %v985 = vpack.c.b16 %v766, %v765
  %v986 = vpack.c.b16 %v768, %v767
  %v987 = vpack.c.b16 %v770, %v769
  %v988 = vpack.c.b16 %v772, %v771
  %v989 = vpack.c.b16 %v774, %v773
  %v990 = vpack.c.b16 %v776, %v775
  %v991 = vpack.c.b16 %v778, %v777
  %v992 = vpack.c.b16 %v780, %v779
  %v993 = vpack.c.b16 %v782, %v781
  %v994 = vpack.c.b16 %v784, %v783
  %v995 = vpack.c.b16 %v786, %v785
  %v996 = vpack.c.b16 %v788, %v787
  %v997 = vpack.c.b16 %v790, %v789
  %v998 = vpack.c.b16 %v792, %v791
  %v999 = vpack.c.b16 %v794, %v793
  %v1000 = vpack.c.b16 %v796, %v795
  %v1001 = vpack.c.b16 %v798, %v797
  %v1002 = vpack.c.b16 %v800, %v799
  %v1003 = vpack.c.b16 %v802, %v801
  %v1004 = vpack.c.b16 %v804, %v803
  %v1005 = vpack.c.b16 %v806, %v805
  %v1006 = vpack.c.b16 %v808, %v807
  %v1007 = vpack.c.b16 %v810, %v809
  %v1008 = vpack.c.b16 %v812, %v811
  %v1009 = vpack.c.b16 %v814, %v813
  %v1010 = vpack.c.b16 %v816, %v815
  %v1011 = vpack.c.b16 %v818, %v817
  %v1012 = vpack.c.b16 %v820, %v819
  %v1013 = vpack.c.b16 %v822, %v821
  %v1014 = vpack.c.b16 %v824, %v823
  %v1015 = vpack.c.b16 %v826, %v825
  %v1016 = vpack.c.b16 %v828, %v827
  %v1017 = vpack.c.b16 %v830, %v829
  %v1018 = vpack.c.b16 %v832, %v831
  %v1019 = vpack.c.b16 %v834, %v833
  %v1020 = vpack.c.b16 %v836, %v835
  %v1021 = vpack.c.b16 %v838, %v837
  %v1022 = vpack.c.b16 %v840, %v839
  %v1023 = vpack.c.b16 %v842, %v841
  %v1024 = vpack.c.b16 %v844, %v843
  %v1025 = vpack.c.b16 %v846, %v845
  %v1026 = vpack.c.b16 %v848, %v847
  %v1027 = vpack.c.b16 %v850, %v849
  %v1028 = vpack.c.b16 %v852, %v851
  %v1029 = vpack.c.b16 %v854, %v853
  %v1030 = vpack.c.b16 %v856, %v855
  %v1031 = vpack.c.b16 %v858, %v857
  %v1032 = vpack.c.b16 %v860, %v859
  %v1033 = vpack.c.b16 %v862, %v861
  %v1034 = vpack.c.b16 %v864, %v863
  %v1035 = vpack.c.b16 %v866, %v865
  %v1036 = vpack.c.b16 %v868, %v867
  %v1037 = vpack.c.b16 %v870, %v869
  %v1038 = vpack.c.b16 %v872, %v871
  %v1039 = vpack.c.b16 %v874, %v873
  %v1040 = vpack.c.b16 %v876, %v875
  %v1041 = vpack.c.b16 %v878, %v877
  %v1042 = vpack.c.b16 %v880, %v879
  %v1043 = vpack.c.b16 %v882, %v881
  %v1044 = vpack.c.b16 %v884, %v883
  %v1045 = vpack.c.b16 %v886, %v885
  %v1046 = vpack.c.b16 %v888, %v887
  %v1047 = vpack.c.b16 %v890, %v889
  %v1048 = vpack.c.b16 %v892, %v891
  %v1049 = vpack.c.b16 %v894, %v893
  %v1050 = vpack.c.b16 %v896, %v895
  %v1051 = vpack.c.b16 %v898, %v897
  %v1052 = vpack.c.b16 %v900, %v899
  %v1053 = vpack.c.b16 %v902, %v901
  %v1054 = vpack.c.b16 %v904, %v903
  %v1055 = vpack.c.b16 %v906, %v905
  %v1056 = vpack.c.b16 %v908, %v907
  %v1057 = vpack.c.b16 %v910, %v909
  %v1058 = vpack.c.b16 %v912, %v911
  %v1059 = vpack.c.b16 %v914, %v913
  %v1060 = vpack.c.b16 %v916, %v915
  %v1061 = vpack.c.b16 %v918, %v917
  %v1062 = vpack.c.b16 %v920, %v919
  %v1063 = vpack.c.b16 %v922, %v921
  %v1064 = vpack.c.b16 %v924, %v923
  %v1065 = vpack.c.b16 %v926, %v925
  %v1066 = vpack.c.b16 %v928, %v927
  %v1067 = vpack.c.b16 %v930, %v929
  %v1068 = vpack.c.b16 %v932, %v931
  %v1069 = vpack.c.b16 %v934, %v933
  %v1070 = vpack.c.b16 %v936, %v935
  %v1071 = vpack.c.b16 %v938, %v937
  %v1072 = vpack.c.b16 %v940, %v939
  %v1073 = vpack.c.b16 %v942, %v941
  %v1074 = vpack.c.b16 %v944, %v943
  %v1075 = vpack.c.b16 %v946, %v945
  %v1076 = vpack.c.b16 %v948, %v947
  %v1081 = vunpack.c.l.b16 %v428
  %v1082 = vunpack.c.l.b16 %v429
  %v1083 = vunpack.c.l.b16 %v430
  %v1084 = vunpack.c.l.b16 %v431
  %v1085 = vpack.c.b16 %v1082, %v1081
  %v1086 = vpack.c.b16 %v1084, %v1083
  %vm1089 = vcmask 261120
  %v1091 = vsel %vm1089, %v949, 0
  %v1094 = vsel %vm1089, %v950, 0
  %v1097 = vsel %vm1089, %v951, 0
  %v1100 = vsel %vm1089, %v952, 0
  %v1103 = vsel %vm1089, %v953, 0
  %v1106 = vsel %vm1089, %v954, 0
  %v1109 = vsel %vm1089, %v955, 0
  %v1112 = vsel %vm1089, %v956, 0
  %v1115 = vsel %vm1089, %v957, 0
  %v1118 = vsel %vm1089, %v958, 0
  %v1121 = vsel %vm1089, %v959, 0
  %v1124 = vsel %vm1089, %v960, 0
  %v1127 = vsel %vm1089, %v961, 0
  %v1130 = vsel %vm1089, %v962, 0
  %v1133 = vsel %vm1089, %v963, 0
  %v1136 = vsel %vm1089, %v964, 0
  %v1139 = vsel %vm1089, %v965, 0
  %v1142 = vsel %vm1089, %v966, 0
  %v1145 = vsel %vm1089, %v967, 0
  %v1148 = vsel %vm1089, %v968, 0
  %v1151 = vsel %vm1089, %v969, 0
  %v1154 = vsel %vm1089, %v970, 0
  %v1157 = vsel %vm1089, %v971, 0
  %v1160 = vsel %vm1089, %v972, 0
  %v1163 = vsel %vm1089, %v973, 0
  %v1166 = vsel %vm1089, %v974, 0
  %v1169 = vsel %vm1089, %v975, 0
  %v1172 = vsel %vm1089, %v976, 0
  %v1175 = vsel %vm1089, %v977, 0
  %v1178 = vsel %vm1089, %v978, 0
  %v1181 = vsel %vm1089, %v979, 0
  %v1184 = vsel %vm1089, %v980, 0
  %v1187 = vsel %vm1089, %v981, 0
  %v1190 = vsel %vm1089, %v982, 0
  %v1193 = vsel %vm1089, %v983, 0
  %v1196 = vsel %vm1089, %v984, 0
  %v1199 = vsel %vm1089, %v985, 0
  %v1202 = vsel %vm1089, %v986, 0
  %v1205 = vsel %vm1089, %v987, 0
  %v1208 = vsel %vm1089, %v988, 0
  %v1211 = vsel %vm1089, %v989, 0
  %v1214 = vsel %vm1089, %v990, 0
  %v1217 = vsel %vm1089, %v991, 0
  %v1220 = vsel %vm1089, %v992, 0
  %v1223 = vsel %vm1089, %v993, 0
  %v1226 = vsel %vm1089, %v994, 0
  %v1229 = vsel %vm1089, %v995, 0
  %v1232 = vsel %vm1089, %v996, 0
  %v1235 = vsel %vm1089, %v997, 0
  %v1238 = vsel %vm1089, %v998, 0
  %v1241 = vsel %vm1089, %v999, 0
  %v1244 = vsel %vm1089, %v1000, 0
  %v1247 = vsel %vm1089, %v1001, 0
  %v1250 = vsel %vm1089, %v1002, 0
  %v1253 = vsel %vm1089, %v1003, 0
  %v1256 = vsel %vm1089, %v1004, 0
  %v1259 = vsel %vm1089, %v1005, 0
  %v1262 = vsel %vm1089, %v1006, 0
  %v1265 = vsel %vm1089, %v1007, 0
  %v1268 = vsel %vm1089, %v1008, 0
  %v1271 = vsel %vm1089, %v1009, 0
  %v1274 = vsel %vm1089, %v1010, 0
  %v1277 = vsel %vm1089, %v1011, 0
  %v1280 = vsel %vm1089, %v1012, 0
  %v1283 = vsel %vm1089, %v1013, 0
  %v1286 = vsel %vm1089, %v1014, 0
  %v1289 = vsel %vm1089, %v1015, 0
  %v1292 = vsel %vm1089, %v1016, 0
  %v1295 = vsel %vm1089, %v1017, 0
  %v1298 = vsel %vm1089, %v1018, 0
  %v1301 = vsel %vm1089, %v1019, 0
  %v1304 = vsel %vm1089, %v1020, 0
  %v1307 = vsel %vm1089, %v1021, 0
  %v1310 = vsel %vm1089, %v1022, 0
  %v1313 = vsel %vm1089, %v1023, 0
  %v1316 = vsel %vm1089, %v1024, 0
  %v1319 = vsel %vm1089, %v1025, 0
  %v1322 = vsel %vm1089, %v1026, 0
  %v1325 = vsel %vm1089, %v1027, 0
  %v1328 = vsel %vm1089, %v1028, 0
  %v1331 = vsel %vm1089, %v1029, 0
  %v1334 = vsel %vm1089, %v1030, 0
  %v1337 = vsel %vm1089, %v1031, 0
  %v1340 = vsel %vm1089, %v1032, 0
  %v1343 = vsel %vm1089, %v1033, 0
  %v1346 = vsel %vm1089, %v1034, 0
  %v1349 = vsel %vm1089, %v1035, 0
  %v1352 = vsel %vm1089, %v1036, 0
  %v1355 = vsel %vm1089, %v1037, 0
  %v1358 = vsel %vm1089, %v1038, 0
  %v1361 = vsel %vm1089, %v1039, 0
  %v1364 = vsel %vm1089, %v1040, 0
  %v1367 = vsel %vm1089, %v1041, 0
  %v1370 = vsel %vm1089, %v1042, 0
  %v1373 = vsel %vm1089, %v1043, 0
  %v1376 = vsel %vm1089, %v1044, 0
  %v1379 = vsel %vm1089, %v1045, 0
  %v1382 = vsel %vm1089, %v1046, 0
  %v1385 = vsel %vm1089, %v1047, 0
  %v1388 = vsel %vm1089, %v1048, 0
  %v1391 = vsel %vm1089, %v1049, 0
  %v1394 = vsel %vm1089, %v1050, 0
  %v1397 = vsel %vm1089, %v1051, 0
  %v1400 = vsel %vm1089, %v1052, 0
  %v1403 = vsel %vm1089, %v1053, 0
  %v1406 = vsel %vm1089, %v1054, 0
  %v1409 = vsel %vm1089, %v1055, 0
  %v1412 = vsel %vm1089, %v1056, 0
  %v1415 = vsel %vm1089, %v1057, 0
  %v1418 = vsel %vm1089, %v1058, 0
  %v1421 = vsel %vm1089, %v1059, 0
  %v1424 = vsel %vm1089, %v1060, 0
  %v1427 = vsel %vm1089, %v1061, 0
  %v1430 = vsel %vm1089, %v1062, 0
  %v1433 = vsel %vm1089, %v1063, 0
  %v1436 = vsel %vm1089, %v1064, 0
  %v1439 = vsel %vm1089, %v1065, 0
  %v1442 = vsel %vm1089, %v1066, 0
  %v1445 = vsel %vm1089, %v1067, 0
  %v1448 = vsel %vm1089, %v1068, 0
  %v1451 = vsel %vm1089, %v1069, 0
  %v1454 = vsel %vm1089, %v1070, 0
  %v1457 = vsel %vm1089, %v1071, 0
  %v1460 = vsel %vm1089, %v1072, 0
  %v1463 = vsel %vm1089, %v1073, 0
  %v1466 = vsel %vm1089, %v1074, 0
  %v1469 = vsel %vm1089, %v1075, 0
  %v1472 = vsel %vm1089, %v1076, 0
  %1474 = vmatprep.subr.bf16.mxu0 0
  %1475 = vmatpush1.bf16.msra.mxu0 0
  %1476 = vmatprep.subr.bf16.mxu0 0
  %1477 = vmatpush1.bf16.msra.mxu0 0
  %1478 = vmatprep.subr.bf16.mxu0 0
  %1479 = vmatpush1.bf16.msra.mxu0 0
  %1480 = vmatprep.subr.bf16.mxu0 0
  %1481 = vmatpush1.bf16.msra.mxu0 0
  %1482 = vmatprep.subr.bf16.mxu0 0
  %1483 = vmatpush1.bf16.msra.mxu0 0
  %1484 = vmatprep.subr.bf16.mxu0 0
  %1485 = vmatpush1.bf16.msra.mxu0 0
  %1486 = vmatprep.subr.bf16.mxu0 0
  %1487 = vmatpush1.bf16.msra.mxu0 %v1086
  %1488 = vmatprep.subr.bf16.mxu0 0
  %1489 = vmatpush1.bf16.msra.mxu0 %v1085
  %1490 = vmatprep.subr.bf16.mxu0 0
  %1491 = vmatpush2.bf16.msra.mxu0 0
  %1492 = vmatprep.subr.bf16.mxu0 0
  %1493 = vmatpush2.bf16.msra.mxu0 0
  %1494 = vmatprep.subr.bf16.mxu0 0
  %1495 = vmatpush2.bf16.msra.mxu0 0
  %1496 = vmatprep.subr.bf16.mxu0 0
  %1497 = vmatpush2.bf16.msra.mxu0 0
  %1498 = vmatprep.subr.bf16.mxu0 0
  %1499 = vmatpush2.bf16.msra.mxu0 0
  %1500 = vmatprep.subr.bf16.mxu0 0
  %1501 = vmatpush2.bf16.msra.mxu0 0
  %1502 = vmatprep.subr.bf16.mxu0 0
  %1503 = vmatpush2.bf16.msra.mxu0 0
  %1504 = vmatprep.subr.bf16.mxu0 0
  %1505 = vmatpush2.bf16.msra.mxu0 0
  %1506 = vmatprep.mubr.bf16.mxu0 0
  %1507 = vmatmul.mubr.bf16.gmra.mxu0 %v1091
  %v1508 = vpop.f32.mrf.mxu0
  %v1509 = vadd.f32 %v436, %v1508
  %v1510 = vpop.f32.mrf.mxu0
  %v1511 = vpop.f32.mrf.mxu0
  %v1512 = vadd.f32 %v436, %v1511
  %v1513 = vpop.f32.mrf.mxu0
  %1514 = vmatprep.mubr.bf16.mxu0 0
  %1515 = vmatmul.mubr.bf16.gmra.mxu0 %v1094
  %v1516 = vpop.f32.mrf.mxu0
  %v1517 = vadd.f32 %v436, %v1516
  %v1518 = vpop.f32.mrf.mxu0
  %v1519 = vpop.f32.mrf.mxu0
  %v1520 = vadd.f32 %v436, %v1519
  %v1521 = vpop.f32.mrf.mxu0
  %1522 = vmatprep.mubr.bf16.mxu0 0
  %1523 = vmatmul.mubr.bf16.gmra.mxu0 %v1097
  %v1524 = vpop.f32.mrf.mxu0
  %v1525 = vadd.f32 %v436, %v1524
  %v1526 = vpop.f32.mrf.mxu0
  %v1527 = vpop.f32.mrf.mxu0
  %v1528 = vadd.f32 %v436, %v1527
  %v1529 = vpop.f32.mrf.mxu0
  %1530 = vmatprep.mubr.bf16.mxu0 0
  %1531 = vmatmul.mubr.bf16.gmra.mxu0 %v1100
  %v1532 = vpop.f32.mrf.mxu0
  %v1533 = vadd.f32 %v436, %v1532
  %v1534 = vpop.f32.mrf.mxu0
  %v1535 = vpop.f32.mrf.mxu0
  %v1536 = vadd.f32 %v436, %v1535
  %v1537 = vpop.f32.mrf.mxu0
  %1538 = vmatprep.mubr.bf16.mxu0 0
  %1539 = vmatmul.mubr.bf16.gmra.mxu0 %v1103
  %v1540 = vpop.f32.mrf.mxu0
  %v1541 = vadd.f32 %v436, %v1540
  %v1542 = vpop.f32.mrf.mxu0
  %v1543 = vpop.f32.mrf.mxu0
  %v1544 = vadd.f32 %v436, %v1543
  %v1545 = vpop.f32.mrf.mxu0
  %1546 = vmatprep.mubr.bf16.mxu0 0
  %1547 = vmatmul.mubr.bf16.gmra.mxu0 %v1106
  %v1548 = vpop.f32.mrf.mxu0
  %v1549 = vadd.f32 %v436, %v1548
  %v1550 = vpop.f32.mrf.mxu0
  %v1551 = vpop.f32.mrf.mxu0
  %v1552 = vadd.f32 %v436, %v1551
  %v1553 = vpop.f32.mrf.mxu0
  %1554 = vmatprep.mubr.bf16.mxu0 0
  %1555 = vmatmul.mubr.bf16.gmra.mxu0 %v1109
  %v1556 = vpop.f32.mrf.mxu0
  %v1557 = vadd.f32 %v436, %v1556
  %v1558 = vpop.f32.mrf.mxu0
  %v1559 = vpop.f32.mrf.mxu0
  %v1560 = vadd.f32 %v436, %v1559
  %v1561 = vpop.f32.mrf.mxu0
  %1562 = vmatprep.mubr.bf16.mxu0 0
  %1563 = vmatmul.mubr.bf16.gmra.mxu0 %v1112
  %v1564 = vpop.f32.mrf.mxu0
  %v1565 = vadd.f32 %v436, %v1564
  %v1566 = vpop.f32.mrf.mxu0
  %v1567 = vpop.f32.mrf.mxu0
  %v1568 = vadd.f32 %v436, %v1567
  %v1569 = vpop.f32.mrf.mxu0
  %1570 = vmatprep.mubr.bf16.mxu0 0
  %1571 = vmatmul.mubr.bf16.gmra.mxu0 %v1115
  %v1572 = vpop.f32.mrf.mxu0
  %v1573 = vadd.f32 %v436, %v1572
  %v1574 = vpop.f32.mrf.mxu0
  %v1575 = vpop.f32.mrf.mxu0
  %v1576 = vadd.f32 %v436, %v1575
  %v1577 = vpop.f32.mrf.mxu0
  %1578 = vmatprep.mubr.bf16.mxu0 0
  %1579 = vmatmul.mubr.bf16.gmra.mxu0 %v1118
  %v1580 = vpop.f32.mrf.mxu0
  %v1581 = vadd.f32 %v436, %v1580
  %v1582 = vpop.f32.mrf.mxu0
  %v1583 = vpop.f32.mrf.mxu0
  %v1584 = vadd.f32 %v436, %v1583
  %v1585 = vpop.f32.mrf.mxu0
  %1586 = vmatprep.mubr.bf16.mxu0 0
  %1587 = vmatmul.mubr.bf16.gmra.mxu0 %v1121
  %v1588 = vpop.f32.mrf.mxu0
  %v1589 = vadd.f32 %v436, %v1588
  %v1590 = vpop.f32.mrf.mxu0
  %v1591 = vpop.f32.mrf.mxu0
  %v1592 = vadd.f32 %v436, %v1591
  %v1593 = vpop.f32.mrf.mxu0
  %1594 = vmatprep.mubr.bf16.mxu0 0
  %1595 = vmatmul.mubr.bf16.gmra.mxu0 %v1124
  %v1596 = vpop.f32.mrf.mxu0
  %v1597 = vadd.f32 %v436, %v1596
  %v1598 = vpop.f32.mrf.mxu0
  %v1599 = vpop.f32.mrf.mxu0
  %v1600 = vadd.f32 %v436, %v1599
  %v1601 = vpop.f32.mrf.mxu0
  %1602 = vmatprep.mubr.bf16.mxu0 0
  %1603 = vmatmul.mubr.bf16.gmra.mxu0 %v1127
  %v1604 = vpop.f32.mrf.mxu0
  %v1605 = vadd.f32 %v436, %v1604
  %v1606 = vpop.f32.mrf.mxu0
  %v1607 = vpop.f32.mrf.mxu0
  %v1608 = vadd.f32 %v436, %v1607
  %v1609 = vpop.f32.mrf.mxu0
  %1610 = vmatprep.mubr.bf16.mxu0 0
  %1611 = vmatmul.mubr.bf16.gmra.mxu0 %v1130
  %v1612 = vpop.f32.mrf.mxu0
  %v1613 = vadd.f32 %v436, %v1612
  %v1614 = vpop.f32.mrf.mxu0
  %v1615 = vpop.f32.mrf.mxu0
  %v1616 = vadd.f32 %v436, %v1615
  %v1617 = vpop.f32.mrf.mxu0
  %1618 = vmatprep.mubr.bf16.mxu0 0
  %1619 = vmatmul.mubr.bf16.gmra.mxu0 %v1133
  %v1620 = vpop.f32.mrf.mxu0
  %v1621 = vadd.f32 %v436, %v1620
  %v1622 = vpop.f32.mrf.mxu0
  %v1623 = vpop.f32.mrf.mxu0
  %v1624 = vadd.f32 %v436, %v1623
  %v1625 = vpop.f32.mrf.mxu0
  %1626 = vmatprep.mubr.bf16.mxu0 0
  %1627 = vmatmul.mubr.bf16.gmra.mxu0 %v1136
  %v1628 = vpop.f32.mrf.mxu0
  %v1629 = vadd.f32 %v436, %v1628
  %v1630 = vpop.f32.mrf.mxu0
  %v1631 = vpop.f32.mrf.mxu0
  %v1632 = vadd.f32 %v436, %v1631
  %v1633 = vpop.f32.mrf.mxu0
  %1634 = vmatprep.mubr.bf16.mxu0 0
  %1635 = vmatmul.mubr.bf16.gmra.mxu0 %v1139
  %v1636 = vpop.f32.mrf.mxu0
  %v1637 = vadd.f32 %v436, %v1636
  %v1638 = vpop.f32.mrf.mxu0
  %v1639 = vpop.f32.mrf.mxu0
  %v1640 = vadd.f32 %v436, %v1639
  %v1641 = vpop.f32.mrf.mxu0
  %1642 = vmatprep.mubr.bf16.mxu0 0
  %1643 = vmatmul.mubr.bf16.gmra.mxu0 %v1142
  %v1644 = vpop.f32.mrf.mxu0
  %v1645 = vadd.f32 %v436, %v1644
  %v1646 = vpop.f32.mrf.mxu0
  %v1647 = vpop.f32.mrf.mxu0
  %v1648 = vadd.f32 %v436, %v1647
  %v1649 = vpop.f32.mrf.mxu0
  %1650 = vmatprep.mubr.bf16.mxu0 0
  %1651 = vmatmul.mubr.bf16.gmra.mxu0 %v1145
  %v1652 = vpop.f32.mrf.mxu0
  %v1653 = vadd.f32 %v436, %v1652
  %v1654 = vpop.f32.mrf.mxu0
  %v1655 = vpop.f32.mrf.mxu0
  %v1656 = vadd.f32 %v436, %v1655
  %v1657 = vpop.f32.mrf.mxu0
  %1658 = vmatprep.mubr.bf16.mxu0 0
  %1659 = vmatmul.mubr.bf16.gmra.mxu0 %v1148
  %v1660 = vpop.f32.mrf.mxu0
  %v1661 = vadd.f32 %v436, %v1660
  %v1662 = vpop.f32.mrf.mxu0
  %v1663 = vpop.f32.mrf.mxu0
  %v1664 = vadd.f32 %v436, %v1663
  %v1665 = vpop.f32.mrf.mxu0
  %1666 = vmatprep.mubr.bf16.mxu0 0
  %1667 = vmatmul.mubr.bf16.gmra.mxu0 %v1151
  %v1668 = vpop.f32.mrf.mxu0
  %v1669 = vadd.f32 %v436, %v1668
  %v1670 = vpop.f32.mrf.mxu0
  %v1671 = vpop.f32.mrf.mxu0
  %v1672 = vadd.f32 %v436, %v1671
  %v1673 = vpop.f32.mrf.mxu0
  %1674 = vmatprep.mubr.bf16.mxu0 0
  %1675 = vmatmul.mubr.bf16.gmra.mxu0 %v1154
  %v1676 = vpop.f32.mrf.mxu0
  %v1677 = vadd.f32 %v436, %v1676
  %v1678 = vpop.f32.mrf.mxu0
  %v1679 = vpop.f32.mrf.mxu0
  %v1680 = vadd.f32 %v436, %v1679
  %v1681 = vpop.f32.mrf.mxu0
  %1682 = vmatprep.mubr.bf16.mxu0 0
  %1683 = vmatmul.mubr.bf16.gmra.mxu0 %v1157
  %v1684 = vpop.f32.mrf.mxu0
  %v1685 = vadd.f32 %v436, %v1684
  %v1686 = vpop.f32.mrf.mxu0
  %v1687 = vpop.f32.mrf.mxu0
  %v1688 = vadd.f32 %v436, %v1687
  %v1689 = vpop.f32.mrf.mxu0
  %1690 = vmatprep.mubr.bf16.mxu0 0
  %1691 = vmatmul.mubr.bf16.gmra.mxu0 %v1160
  %v1692 = vpop.f32.mrf.mxu0
  %v1693 = vadd.f32 %v436, %v1692
  %v1694 = vpop.f32.mrf.mxu0
  %v1695 = vpop.f32.mrf.mxu0
  %v1696 = vadd.f32 %v436, %v1695
  %v1697 = vpop.f32.mrf.mxu0
  %1698 = vmatprep.mubr.bf16.mxu0 0
  %1699 = vmatmul.mubr.bf16.gmra.mxu0 %v1163
  %v1700 = vpop.f32.mrf.mxu0
  %v1701 = vadd.f32 %v436, %v1700
  %v1702 = vpop.f32.mrf.mxu0
  %v1703 = vpop.f32.mrf.mxu0
  %v1704 = vadd.f32 %v436, %v1703
  %v1705 = vpop.f32.mrf.mxu0
  %1706 = vmatprep.mubr.bf16.mxu0 0
  %1707 = vmatmul.mubr.bf16.gmra.mxu0 %v1166
  %v1708 = vpop.f32.mrf.mxu0
  %v1709 = vadd.f32 %v436, %v1708
  %v1710 = vpop.f32.mrf.mxu0
  %v1711 = vpop.f32.mrf.mxu0
  %v1712 = vadd.f32 %v436, %v1711
  %v1713 = vpop.f32.mrf.mxu0
  %1714 = vmatprep.mubr.bf16.mxu0 0
  %1715 = vmatmul.mubr.bf16.gmra.mxu0 %v1169
  %v1716 = vpop.f32.mrf.mxu0
  %v1717 = vadd.f32 %v436, %v1716
  %v1718 = vpop.f32.mrf.mxu0
  %v1719 = vpop.f32.mrf.mxu0
  %v1720 = vadd.f32 %v436, %v1719
  %v1721 = vpop.f32.mrf.mxu0
  %1722 = vmatprep.mubr.bf16.mxu0 0
  %1723 = vmatmul.mubr.bf16.gmra.mxu0 %v1172
  %v1724 = vpop.f32.mrf.mxu0
  %v1725 = vadd.f32 %v436, %v1724
  %v1726 = vpop.f32.mrf.mxu0
  %v1727 = vpop.f32.mrf.mxu0
  %v1728 = vadd.f32 %v436, %v1727
  %v1729 = vpop.f32.mrf.mxu0
  %1730 = vmatprep.mubr.bf16.mxu0 0
  %1731 = vmatmul.mubr.bf16.gmra.mxu0 %v1175
  %v1732 = vpop.f32.mrf.mxu0
  %v1733 = vadd.f32 %v436, %v1732
  %v1734 = vpop.f32.mrf.mxu0
  %v1735 = vpop.f32.mrf.mxu0
  %v1736 = vadd.f32 %v436, %v1735
  %v1737 = vpop.f32.mrf.mxu0
  %1738 = vmatprep.mubr.bf16.mxu0 0
  %1739 = vmatmul.mubr.bf16.gmra.mxu0 %v1178
  %v1740 = vpop.f32.mrf.mxu0
  %v1741 = vadd.f32 %v436, %v1740
  %v1742 = vpop.f32.mrf.mxu0
  %v1743 = vpop.f32.mrf.mxu0
  %v1744 = vadd.f32 %v436, %v1743
  %v1745 = vpop.f32.mrf.mxu0
  %1746 = vmatprep.mubr.bf16.mxu0 0
  %1747 = vmatmul.mubr.bf16.gmra.mxu0 %v1181
  %v1748 = vpop.f32.mrf.mxu0
  %v1749 = vadd.f32 %v436, %v1748
  %v1750 = vpop.f32.mrf.mxu0
  %v1751 = vpop.f32.mrf.mxu0
  %v1752 = vadd.f32 %v436, %v1751
  %v1753 = vpop.f32.mrf.mxu0
  %1754 = vmatprep.mubr.bf16.mxu0 0
  %1755 = vmatmul.mubr.bf16.gmra.mxu0 %v1184
  %v1756 = vpop.f32.mrf.mxu0
  %v1757 = vadd.f32 %v436, %v1756
  %v1758 = vpop.f32.mrf.mxu0
  %v1759 = vpop.f32.mrf.mxu0
  %v1760 = vadd.f32 %v436, %v1759
  %v1761 = vpop.f32.mrf.mxu0
  %1762 = vmatprep.mubr.bf16.mxu0 0
  %1763 = vmatmul.mubr.bf16.gmra.mxu0 %v1187
  %v1764 = vpop.f32.mrf.mxu0
  %v1765 = vadd.f32 %v436, %v1764
  %v1766 = vpop.f32.mrf.mxu0
  %v1767 = vpop.f32.mrf.mxu0
  %v1768 = vadd.f32 %v436, %v1767
  %v1769 = vpop.f32.mrf.mxu0
  %1770 = vmatprep.mubr.bf16.mxu0 0
  %1771 = vmatmul.mubr.bf16.gmra.mxu0 %v1190
  %v1772 = vpop.f32.mrf.mxu0
  %v1773 = vadd.f32 %v436, %v1772
  %v1774 = vpop.f32.mrf.mxu0
  %v1775 = vpop.f32.mrf.mxu0
  %v1776 = vadd.f32 %v436, %v1775
  %v1777 = vpop.f32.mrf.mxu0
  %1778 = vmatprep.mubr.bf16.mxu0 0
  %1779 = vmatmul.mubr.bf16.gmra.mxu0 %v1193
  %v1780 = vpop.f32.mrf.mxu0
  %v1781 = vadd.f32 %v436, %v1780
  %v1782 = vpop.f32.mrf.mxu0
  %v1783 = vpop.f32.mrf.mxu0
  %v1784 = vadd.f32 %v436, %v1783
  %v1785 = vpop.f32.mrf.mxu0
  %1786 = vmatprep.mubr.bf16.mxu0 0
  %1787 = vmatmul.mubr.bf16.gmra.mxu0 %v1196
  %v1788 = vpop.f32.mrf.mxu0
  %v1789 = vadd.f32 %v436, %v1788
  %v1790 = vpop.f32.mrf.mxu0
  %v1791 = vpop.f32.mrf.mxu0
  %v1792 = vadd.f32 %v436, %v1791
  %v1793 = vpop.f32.mrf.mxu0
  %1794 = vmatprep.mubr.bf16.mxu0 0
  %1795 = vmatmul.mubr.bf16.gmra.mxu0 %v1199
  %v1796 = vpop.f32.mrf.mxu0
  %v1797 = vadd.f32 %v436, %v1796
  %v1798 = vpop.f32.mrf.mxu0
  %v1799 = vpop.f32.mrf.mxu0
  %v1800 = vadd.f32 %v436, %v1799
  %v1801 = vpop.f32.mrf.mxu0
  %1802 = vmatprep.mubr.bf16.mxu0 0
  %1803 = vmatmul.mubr.bf16.gmra.mxu0 %v1202
  %v1804 = vpop.f32.mrf.mxu0
  %v1805 = vadd.f32 %v436, %v1804
  %v1806 = vpop.f32.mrf.mxu0
  %v1807 = vpop.f32.mrf.mxu0
  %v1808 = vadd.f32 %v436, %v1807
  %v1809 = vpop.f32.mrf.mxu0
  %1810 = vmatprep.mubr.bf16.mxu0 0
  %1811 = vmatmul.mubr.bf16.gmra.mxu0 %v1205
  %v1812 = vpop.f32.mrf.mxu0
  %v1813 = vadd.f32 %v436, %v1812
  %v1814 = vpop.f32.mrf.mxu0
  %v1815 = vpop.f32.mrf.mxu0
  %v1816 = vadd.f32 %v436, %v1815
  %v1817 = vpop.f32.mrf.mxu0
  %1818 = vmatprep.mubr.bf16.mxu0 0
  %1819 = vmatmul.mubr.bf16.gmra.mxu0 %v1208
  %v1820 = vpop.f32.mrf.mxu0
  %v1821 = vadd.f32 %v436, %v1820
  %v1822 = vpop.f32.mrf.mxu0
  %v1823 = vpop.f32.mrf.mxu0
  %v1824 = vadd.f32 %v436, %v1823
  %v1825 = vpop.f32.mrf.mxu0
  %1826 = vmatprep.mubr.bf16.mxu0 0
  %1827 = vmatmul.mubr.bf16.gmra.mxu0 %v1211
  %v1828 = vpop.f32.mrf.mxu0
  %v1829 = vadd.f32 %v436, %v1828
  %v1830 = vpop.f32.mrf.mxu0
  %v1831 = vpop.f32.mrf.mxu0
  %v1832 = vadd.f32 %v436, %v1831
  %v1833 = vpop.f32.mrf.mxu0
  %1834 = vmatprep.mubr.bf16.mxu0 0
  %1835 = vmatmul.mubr.bf16.gmra.mxu0 %v1214
  %v1836 = vpop.f32.mrf.mxu0
  %v1837 = vadd.f32 %v436, %v1836
  %v1838 = vpop.f32.mrf.mxu0
  %v1839 = vpop.f32.mrf.mxu0
  %v1840 = vadd.f32 %v436, %v1839
  %v1841 = vpop.f32.mrf.mxu0
  %1842 = vmatprep.mubr.bf16.mxu0 0
  %1843 = vmatmul.mubr.bf16.gmra.mxu0 %v1217
  %v1844 = vpop.f32.mrf.mxu0
  %v1845 = vadd.f32 %v436, %v1844
  %v1846 = vpop.f32.mrf.mxu0
  %v1847 = vpop.f32.mrf.mxu0
  %v1848 = vadd.f32 %v436, %v1847
  %v1849 = vpop.f32.mrf.mxu0
  %1850 = vmatprep.mubr.bf16.mxu0 0
  %1851 = vmatmul.mubr.bf16.gmra.mxu0 %v1220
  %v1852 = vpop.f32.mrf.mxu0
  %v1853 = vadd.f32 %v436, %v1852
  %v1854 = vpop.f32.mrf.mxu0
  %v1855 = vpop.f32.mrf.mxu0
  %v1856 = vadd.f32 %v436, %v1855
  %v1857 = vpop.f32.mrf.mxu0
  %1858 = vmatprep.mubr.bf16.mxu0 0
  %1859 = vmatmul.mubr.bf16.gmra.mxu0 %v1223
  %v1860 = vpop.f32.mrf.mxu0
  %v1861 = vadd.f32 %v436, %v1860
  %v1862 = vpop.f32.mrf.mxu0
  %v1863 = vpop.f32.mrf.mxu0
  %v1864 = vadd.f32 %v436, %v1863
  %v1865 = vpop.f32.mrf.mxu0
  %1866 = vmatprep.mubr.bf16.mxu0 0
  %1867 = vmatmul.mubr.bf16.gmra.mxu0 %v1226
  %v1868 = vpop.f32.mrf.mxu0
  %v1869 = vadd.f32 %v436, %v1868
  %v1870 = vpop.f32.mrf.mxu0
  %v1871 = vpop.f32.mrf.mxu0
  %v1872 = vadd.f32 %v436, %v1871
  %v1873 = vpop.f32.mrf.mxu0
  %1874 = vmatprep.mubr.bf16.mxu0 0
  %1875 = vmatmul.mubr.bf16.gmra.mxu0 %v1229
  %v1876 = vpop.f32.mrf.mxu0
  %v1877 = vadd.f32 %v436, %v1876
  %v1878 = vpop.f32.mrf.mxu0
  %v1879 = vpop.f32.mrf.mxu0
  %v1880 = vadd.f32 %v436, %v1879
  %v1881 = vpop.f32.mrf.mxu0
  %1882 = vmatprep.mubr.bf16.mxu0 0
  %1883 = vmatmul.mubr.bf16.gmra.mxu0 %v1232
  %v1884 = vpop.f32.mrf.mxu0
  %v1885 = vadd.f32 %v436, %v1884
  %v1886 = vpop.f32.mrf.mxu0
  %v1887 = vpop.f32.mrf.mxu0
  %v1888 = vadd.f32 %v436, %v1887
  %v1889 = vpop.f32.mrf.mxu0
  %1890 = vmatprep.mubr.bf16.mxu0 0
  %1891 = vmatmul.mubr.bf16.gmra.mxu0 %v1235
  %v1892 = vpop.f32.mrf.mxu0
  %v1893 = vadd.f32 %v436, %v1892
  %v1894 = vpop.f32.mrf.mxu0
  %v1895 = vpop.f32.mrf.mxu0
  %v1896 = vadd.f32 %v436, %v1895
  %v1897 = vpop.f32.mrf.mxu0
  %1898 = vmatprep.mubr.bf16.mxu0 0
  %1899 = vmatmul.mubr.bf16.gmra.mxu0 %v1238
  %v1900 = vpop.f32.mrf.mxu0
  %v1901 = vadd.f32 %v436, %v1900
  %v1902 = vpop.f32.mrf.mxu0
  %v1903 = vpop.f32.mrf.mxu0
  %v1904 = vadd.f32 %v436, %v1903
  %v1905 = vpop.f32.mrf.mxu0
  %1906 = vmatprep.mubr.bf16.mxu0 0
  %1907 = vmatmul.mubr.bf16.gmra.mxu0 %v1241
  %v1908 = vpop.f32.mrf.mxu0
  %v1909 = vadd.f32 %v436, %v1908
  %v1910 = vpop.f32.mrf.mxu0
  %v1911 = vpop.f32.mrf.mxu0
  %v1912 = vadd.f32 %v436, %v1911
  %v1913 = vpop.f32.mrf.mxu0
  %1914 = vmatprep.mubr.bf16.mxu0 0
  %1915 = vmatmul.mubr.bf16.gmra.mxu0 %v1244
  %v1916 = vpop.f32.mrf.mxu0
  %v1917 = vadd.f32 %v436, %v1916
  %v1918 = vpop.f32.mrf.mxu0
  %v1919 = vpop.f32.mrf.mxu0
  %v1920 = vadd.f32 %v436, %v1919
  %v1921 = vpop.f32.mrf.mxu0
  %1922 = vmatprep.mubr.bf16.mxu0 0
  %1923 = vmatmul.mubr.bf16.gmra.mxu0 %v1247
  %v1924 = vpop.f32.mrf.mxu0
  %v1925 = vadd.f32 %v436, %v1924
  %v1926 = vpop.f32.mrf.mxu0
  %v1927 = vpop.f32.mrf.mxu0
  %v1928 = vadd.f32 %v436, %v1927
  %v1929 = vpop.f32.mrf.mxu0
  %1930 = vmatprep.mubr.bf16.mxu0 0
  %1931 = vmatmul.mubr.bf16.gmra.mxu0 %v1250
  %v1932 = vpop.f32.mrf.mxu0
  %v1933 = vadd.f32 %v436, %v1932
  %v1934 = vpop.f32.mrf.mxu0
  %v1935 = vpop.f32.mrf.mxu0
  %v1936 = vadd.f32 %v436, %v1935
  %v1937 = vpop.f32.mrf.mxu0
  %1938 = vmatprep.mubr.bf16.mxu0 0
  %1939 = vmatmul.mubr.bf16.gmra.mxu0 %v1253
  %v1940 = vpop.f32.mrf.mxu0
  %v1941 = vadd.f32 %v436, %v1940
  %v1942 = vpop.f32.mrf.mxu0
  %v1943 = vpop.f32.mrf.mxu0
  %v1944 = vadd.f32 %v436, %v1943
  %v1945 = vpop.f32.mrf.mxu0
  %1946 = vmatprep.mubr.bf16.mxu0 0
  %1947 = vmatmul.mubr.bf16.gmra.mxu0 %v1256
  %v1948 = vpop.f32.mrf.mxu0
  %v1949 = vadd.f32 %v436, %v1948
  %v1950 = vpop.f32.mrf.mxu0
  %v1951 = vpop.f32.mrf.mxu0
  %v1952 = vadd.f32 %v436, %v1951
  %v1953 = vpop.f32.mrf.mxu0
  %1954 = vmatprep.mubr.bf16.mxu0 0
  %1955 = vmatmul.mubr.bf16.gmra.mxu0 %v1259
  %v1956 = vpop.f32.mrf.mxu0
  %v1957 = vadd.f32 %v436, %v1956
  %v1958 = vpop.f32.mrf.mxu0
  %v1959 = vpop.f32.mrf.mxu0
  %v1960 = vadd.f32 %v436, %v1959
  %v1961 = vpop.f32.mrf.mxu0
  %1962 = vmatprep.mubr.bf16.mxu0 0
  %1963 = vmatmul.mubr.bf16.gmra.mxu0 %v1262
  %v1964 = vpop.f32.mrf.mxu0
  %v1965 = vadd.f32 %v436, %v1964
  %v1966 = vpop.f32.mrf.mxu0
  %v1967 = vpop.f32.mrf.mxu0
  %v1968 = vadd.f32 %v436, %v1967
  %v1969 = vpop.f32.mrf.mxu0
  %1970 = vmatprep.mubr.bf16.mxu0 0
  %1971 = vmatmul.mubr.bf16.gmra.mxu0 %v1265
  %v1972 = vpop.f32.mrf.mxu0
  %v1973 = vadd.f32 %v436, %v1972
  %v1974 = vpop.f32.mrf.mxu0
  %v1975 = vpop.f32.mrf.mxu0
  %v1976 = vadd.f32 %v436, %v1975
  %v1977 = vpop.f32.mrf.mxu0
  %1978 = vmatprep.mubr.bf16.mxu0 0
  %1979 = vmatmul.mubr.bf16.gmra.mxu0 %v1268
  %v1980 = vpop.f32.mrf.mxu0
  %v1981 = vadd.f32 %v436, %v1980
  %v1982 = vpop.f32.mrf.mxu0
  %v1983 = vpop.f32.mrf.mxu0
  %v1984 = vadd.f32 %v436, %v1983
  %v1985 = vpop.f32.mrf.mxu0
  %1986 = vmatprep.mubr.bf16.mxu0 0
  %1987 = vmatmul.mubr.bf16.gmra.mxu0 %v1271
  %v1988 = vpop.f32.mrf.mxu0
  %v1989 = vadd.f32 %v436, %v1988
  %v1990 = vpop.f32.mrf.mxu0
  %v1991 = vpop.f32.mrf.mxu0
  %v1992 = vadd.f32 %v436, %v1991
  %v1993 = vpop.f32.mrf.mxu0
  %1994 = vmatprep.mubr.bf16.mxu0 0
  %1995 = vmatmul.mubr.bf16.gmra.mxu0 %v1274
  %v1996 = vpop.f32.mrf.mxu0
  %v1997 = vadd.f32 %v436, %v1996
  %v1998 = vpop.f32.mrf.mxu0
  %v1999 = vpop.f32.mrf.mxu0
  %v2000 = vadd.f32 %v436, %v1999
  %v2001 = vpop.f32.mrf.mxu0
  %2002 = vmatprep.mubr.bf16.mxu0 0
  %2003 = vmatmul.mubr.bf16.gmra.mxu0 %v1277
  %v2004 = vpop.f32.mrf.mxu0
  %v2005 = vadd.f32 %v436, %v2004
  %v2006 = vpop.f32.mrf.mxu0
  %v2007 = vpop.f32.mrf.mxu0
  %v2008 = vadd.f32 %v436, %v2007
  %v2009 = vpop.f32.mrf.mxu0
  %2010 = vmatprep.mubr.bf16.mxu0 0
  %2011 = vmatmul.mubr.bf16.gmra.mxu0 %v1280
  %v2012 = vpop.f32.mrf.mxu0
  %v2013 = vadd.f32 %v436, %v2012
  %v2014 = vpop.f32.mrf.mxu0
  %v2015 = vpop.f32.mrf.mxu0
  %v2016 = vadd.f32 %v436, %v2015
  %v2017 = vpop.f32.mrf.mxu0
  %2018 = vmatprep.mubr.bf16.mxu0 0
  %2019 = vmatmul.mubr.bf16.gmra.mxu0 %v1283
  %v2020 = vpop.f32.mrf.mxu0
  %v2021 = vadd.f32 %v436, %v2020
  %v2022 = vpop.f32.mrf.mxu0
  %v2023 = vpop.f32.mrf.mxu0
  %v2024 = vadd.f32 %v436, %v2023
  %v2025 = vpop.f32.mrf.mxu0
  %2026 = vmatprep.mubr.bf16.mxu0 0
  %2027 = vmatmul.mubr.bf16.gmra.mxu0 %v1286
  %v2028 = vpop.f32.mrf.mxu0
  %v2029 = vadd.f32 %v436, %v2028
  %v2030 = vpop.f32.mrf.mxu0
  %v2031 = vpop.f32.mrf.mxu0
  %v2032 = vadd.f32 %v436, %v2031
  %v2033 = vpop.f32.mrf.mxu0
  %2034 = vmatprep.mubr.bf16.mxu0 0
  %2035 = vmatmul.mubr.bf16.gmra.mxu0 %v1289
  %v2036 = vpop.f32.mrf.mxu0
  %v2037 = vadd.f32 %v436, %v2036
  %v2038 = vpop.f32.mrf.mxu0
  %v2039 = vpop.f32.mrf.mxu0
  %v2040 = vadd.f32 %v436, %v2039
  %v2041 = vpop.f32.mrf.mxu0
  %2042 = vmatprep.mubr.bf16.mxu0 0
  %2043 = vmatmul.mubr.bf16.gmra.mxu0 %v1292
  %v2044 = vpop.f32.mrf.mxu0
  %v2045 = vadd.f32 %v436, %v2044
  %v2046 = vpop.f32.mrf.mxu0
  %v2047 = vpop.f32.mrf.mxu0
  %v2048 = vadd.f32 %v436, %v2047
  %v2049 = vpop.f32.mrf.mxu0
  %2050 = vmatprep.mubr.bf16.mxu0 0
  %2051 = vmatmul.mubr.bf16.gmra.mxu0 %v1295
  %v2052 = vpop.f32.mrf.mxu0
  %v2053 = vadd.f32 %v436, %v2052
  %v2054 = vpop.f32.mrf.mxu0
  %v2055 = vpop.f32.mrf.mxu0
  %v2056 = vadd.f32 %v436, %v2055
  %v2057 = vpop.f32.mrf.mxu0
  %2058 = vmatprep.mubr.bf16.mxu0 0
  %2059 = vmatmul.mubr.bf16.gmra.mxu0 %v1298
  %v2060 = vpop.f32.mrf.mxu0
  %v2061 = vadd.f32 %v436, %v2060
  %v2062 = vpop.f32.mrf.mxu0
  %v2063 = vpop.f32.mrf.mxu0
  %v2064 = vadd.f32 %v436, %v2063
  %v2065 = vpop.f32.mrf.mxu0
  %2066 = vmatprep.mubr.bf16.mxu0 0
  %2067 = vmatmul.mubr.bf16.gmra.mxu0 %v1301
  %v2068 = vpop.f32.mrf.mxu0
  %v2069 = vadd.f32 %v436, %v2068
  %v2070 = vpop.f32.mrf.mxu0
  %v2071 = vpop.f32.mrf.mxu0
  %v2072 = vadd.f32 %v436, %v2071
  %v2073 = vpop.f32.mrf.mxu0
  %2074 = vmatprep.mubr.bf16.mxu0 0
  %2075 = vmatmul.mubr.bf16.gmra.mxu0 %v1304
  %v2076 = vpop.f32.mrf.mxu0
  %v2077 = vadd.f32 %v436, %v2076
  %v2078 = vpop.f32.mrf.mxu0
  %v2079 = vpop.f32.mrf.mxu0
  %v2080 = vadd.f32 %v436, %v2079
  %v2081 = vpop.f32.mrf.mxu0
  %2082 = vmatprep.mubr.bf16.mxu0 0
  %2083 = vmatmul.mubr.bf16.gmra.mxu0 %v1307
  %v2084 = vpop.f32.mrf.mxu0
  %v2085 = vadd.f32 %v436, %v2084
  %v2086 = vpop.f32.mrf.mxu0
  %v2087 = vpop.f32.mrf.mxu0
  %v2088 = vadd.f32 %v436, %v2087
  %v2089 = vpop.f32.mrf.mxu0
  %2090 = vmatprep.mubr.bf16.mxu0 0
  %2091 = vmatmul.mubr.bf16.gmra.mxu0 %v1310
  %v2092 = vpop.f32.mrf.mxu0
  %v2093 = vadd.f32 %v436, %v2092
  %v2094 = vpop.f32.mrf.mxu0
  %v2095 = vpop.f32.mrf.mxu0
  %v2096 = vadd.f32 %v436, %v2095
  %v2097 = vpop.f32.mrf.mxu0
  %2098 = vmatprep.mubr.bf16.mxu0 0
  %2099 = vmatmul.mubr.bf16.gmra.mxu0 %v1313
  %v2100 = vpop.f32.mrf.mxu0
  %v2101 = vadd.f32 %v436, %v2100
  %v2102 = vpop.f32.mrf.mxu0
  %v2103 = vpop.f32.mrf.mxu0
  %v2104 = vadd.f32 %v436, %v2103
  %v2105 = vpop.f32.mrf.mxu0
  %2106 = vmatprep.mubr.bf16.mxu0 0
  %2107 = vmatmul.mubr.bf16.gmra.mxu0 %v1316
  %v2108 = vpop.f32.mrf.mxu0
  %v2109 = vadd.f32 %v436, %v2108
  %v2110 = vpop.f32.mrf.mxu0
  %v2111 = vpop.f32.mrf.mxu0
  %v2112 = vadd.f32 %v436, %v2111
  %v2113 = vpop.f32.mrf.mxu0
  %2114 = vmatprep.mubr.bf16.mxu0 0
  %2115 = vmatmul.mubr.bf16.gmra.mxu0 %v1319
  %v2116 = vpop.f32.mrf.mxu0
  %v2117 = vadd.f32 %v436, %v2116
  %v2118 = vpop.f32.mrf.mxu0
  %v2119 = vpop.f32.mrf.mxu0
  %v2120 = vadd.f32 %v436, %v2119
  %v2121 = vpop.f32.mrf.mxu0
  %2122 = vmatprep.mubr.bf16.mxu0 0
  %2123 = vmatmul.mubr.bf16.gmra.mxu0 %v1322
  %v2124 = vpop.f32.mrf.mxu0
  %v2125 = vadd.f32 %v436, %v2124
  %v2126 = vpop.f32.mrf.mxu0
  %v2127 = vpop.f32.mrf.mxu0
  %v2128 = vadd.f32 %v436, %v2127
  %v2129 = vpop.f32.mrf.mxu0
  %2130 = vmatprep.mubr.bf16.mxu0 0
  %2131 = vmatmul.mubr.bf16.gmra.mxu0 %v1325
  %v2132 = vpop.f32.mrf.mxu0
  %v2133 = vadd.f32 %v436, %v2132
  %v2134 = vpop.f32.mrf.mxu0
  %v2135 = vpop.f32.mrf.mxu0
  %v2136 = vadd.f32 %v436, %v2135
  %v2137 = vpop.f32.mrf.mxu0
  %2138 = vmatprep.mubr.bf16.mxu0 0
  %2139 = vmatmul.mubr.bf16.gmra.mxu0 %v1328
  %v2140 = vpop.f32.mrf.mxu0
  %v2141 = vadd.f32 %v436, %v2140
  %v2142 = vpop.f32.mrf.mxu0
  %v2143 = vpop.f32.mrf.mxu0
  %v2144 = vadd.f32 %v436, %v2143
  %v2145 = vpop.f32.mrf.mxu0
  %2146 = vmatprep.mubr.bf16.mxu0 0
  %2147 = vmatmul.mubr.bf16.gmra.mxu0 %v1331
  %v2148 = vpop.f32.mrf.mxu0
  %v2149 = vadd.f32 %v436, %v2148
  %v2150 = vpop.f32.mrf.mxu0
  %v2151 = vpop.f32.mrf.mxu0
  %v2152 = vadd.f32 %v436, %v2151
  %v2153 = vpop.f32.mrf.mxu0
  %2154 = vmatprep.mubr.bf16.mxu0 0
  %2155 = vmatmul.mubr.bf16.gmra.mxu0 %v1334
  %v2156 = vpop.f32.mrf.mxu0
  %v2157 = vadd.f32 %v436, %v2156
  %v2158 = vpop.f32.mrf.mxu0
  %v2159 = vpop.f32.mrf.mxu0
  %v2160 = vadd.f32 %v436, %v2159
  %v2161 = vpop.f32.mrf.mxu0
  %2162 = vmatprep.mubr.bf16.mxu0 0
  %2163 = vmatmul.mubr.bf16.gmra.mxu0 %v1337
  %v2164 = vpop.f32.mrf.mxu0
  %v2165 = vadd.f32 %v436, %v2164
  %v2166 = vpop.f32.mrf.mxu0
  %v2167 = vpop.f32.mrf.mxu0
  %v2168 = vadd.f32 %v436, %v2167
  %v2169 = vpop.f32.mrf.mxu0
  %2170 = vmatprep.mubr.bf16.mxu0 0
  %2171 = vmatmul.mubr.bf16.gmra.mxu0 %v1340
  %v2172 = vpop.f32.mrf.mxu0
  %v2173 = vadd.f32 %v436, %v2172
  %v2174 = vpop.f32.mrf.mxu0
  %v2175 = vpop.f32.mrf.mxu0
  %v2176 = vadd.f32 %v436, %v2175
  %v2177 = vpop.f32.mrf.mxu0
  %2178 = vmatprep.mubr.bf16.mxu0 0
  %2179 = vmatmul.mubr.bf16.gmra.mxu0 %v1343
  %v2180 = vpop.f32.mrf.mxu0
  %v2181 = vadd.f32 %v436, %v2180
  %v2182 = vpop.f32.mrf.mxu0
  %v2183 = vpop.f32.mrf.mxu0
  %v2184 = vadd.f32 %v436, %v2183
  %v2185 = vpop.f32.mrf.mxu0
  %2186 = vmatprep.mubr.bf16.mxu0 0
  %2187 = vmatmul.mubr.bf16.gmra.mxu0 %v1346
  %v2188 = vpop.f32.mrf.mxu0
  %v2189 = vadd.f32 %v436, %v2188
  %v2190 = vpop.f32.mrf.mxu0
  %v2191 = vpop.f32.mrf.mxu0
  %v2192 = vadd.f32 %v436, %v2191
  %v2193 = vpop.f32.mrf.mxu0
  %2194 = vmatprep.mubr.bf16.mxu0 0
  %2195 = vmatmul.mubr.bf16.gmra.mxu0 %v1349
  %v2196 = vpop.f32.mrf.mxu0
  %v2197 = vadd.f32 %v436, %v2196
  %v2198 = vpop.f32.mrf.mxu0
  %v2199 = vpop.f32.mrf.mxu0
  %v2200 = vadd.f32 %v436, %v2199
  %v2201 = vpop.f32.mrf.mxu0
  %2202 = vmatprep.mubr.bf16.mxu0 0
  %2203 = vmatmul.mubr.bf16.gmra.mxu0 %v1352
  %v2204 = vpop.f32.mrf.mxu0
  %v2205 = vadd.f32 %v436, %v2204
  %v2206 = vpop.f32.mrf.mxu0
  %v2207 = vpop.f32.mrf.mxu0
  %v2208 = vadd.f32 %v436, %v2207
  %v2209 = vpop.f32.mrf.mxu0
  %2210 = vmatprep.mubr.bf16.mxu0 0
  %2211 = vmatmul.mubr.bf16.gmra.mxu0 %v1355
  %v2212 = vpop.f32.mrf.mxu0
  %v2213 = vadd.f32 %v436, %v2212
  %v2214 = vpop.f32.mrf.mxu0
  %v2215 = vpop.f32.mrf.mxu0
  %v2216 = vadd.f32 %v436, %v2215
  %v2217 = vpop.f32.mrf.mxu0
  %2218 = vmatprep.mubr.bf16.mxu0 0
  %2219 = vmatmul.mubr.bf16.gmra.mxu0 %v1358
  %v2220 = vpop.f32.mrf.mxu0
  %v2221 = vadd.f32 %v436, %v2220
  %v2222 = vpop.f32.mrf.mxu0
  %v2223 = vpop.f32.mrf.mxu0
  %v2224 = vadd.f32 %v436, %v2223
  %v2225 = vpop.f32.mrf.mxu0
  %2226 = vmatprep.mubr.bf16.mxu0 0
  %2227 = vmatmul.mubr.bf16.gmra.mxu0 %v1361
  %v2228 = vpop.f32.mrf.mxu0
  %v2229 = vadd.f32 %v436, %v2228
  %v2230 = vpop.f32.mrf.mxu0
  %v2231 = vpop.f32.mrf.mxu0
  %v2232 = vadd.f32 %v436, %v2231
  %v2233 = vpop.f32.mrf.mxu0
  %2234 = vmatprep.mubr.bf16.mxu0 0
  %2235 = vmatmul.mubr.bf16.gmra.mxu0 %v1364
  %v2236 = vpop.f32.mrf.mxu0
  %v2237 = vadd.f32 %v436, %v2236
  %v2238 = vpop.f32.mrf.mxu0
  %v2239 = vpop.f32.mrf.mxu0
  %v2240 = vadd.f32 %v436, %v2239
  %v2241 = vpop.f32.mrf.mxu0
  %2242 = vmatprep.mubr.bf16.mxu0 0
  %2243 = vmatmul.mubr.bf16.gmra.mxu0 %v1367
  %v2244 = vpop.f32.mrf.mxu0
  %v2245 = vadd.f32 %v436, %v2244
  %v2246 = vpop.f32.mrf.mxu0
  %v2247 = vpop.f32.mrf.mxu0
  %v2248 = vadd.f32 %v436, %v2247
  %v2249 = vpop.f32.mrf.mxu0
  %2250 = vmatprep.mubr.bf16.mxu0 0
  %2251 = vmatmul.mubr.bf16.gmra.mxu0 %v1370
  %v2252 = vpop.f32.mrf.mxu0
  %v2253 = vadd.f32 %v436, %v2252
  %v2254 = vpop.f32.mrf.mxu0
  %v2255 = vpop.f32.mrf.mxu0
  %v2256 = vadd.f32 %v436, %v2255
  %v2257 = vpop.f32.mrf.mxu0
  %2258 = vmatprep.mubr.bf16.mxu0 0
  %2259 = vmatmul.mubr.bf16.gmra.mxu0 %v1373
  %v2260 = vpop.f32.mrf.mxu0
  %v2261 = vadd.f32 %v436, %v2260
  %v2262 = vpop.f32.mrf.mxu0
  %v2263 = vpop.f32.mrf.mxu0
  %v2264 = vadd.f32 %v436, %v2263
  %v2265 = vpop.f32.mrf.mxu0
  %2266 = vmatprep.mubr.bf16.mxu0 0
  %2267 = vmatmul.mubr.bf16.gmra.mxu0 %v1376
  %v2268 = vpop.f32.mrf.mxu0
  %v2269 = vadd.f32 %v436, %v2268
  %v2270 = vpop.f32.mrf.mxu0
  %v2271 = vpop.f32.mrf.mxu0
  %v2272 = vadd.f32 %v436, %v2271
  %v2273 = vpop.f32.mrf.mxu0
  %2274 = vmatprep.mubr.bf16.mxu0 0
  %2275 = vmatmul.mubr.bf16.gmra.mxu0 %v1379
  %v2276 = vpop.f32.mrf.mxu0
  %v2277 = vadd.f32 %v436, %v2276
  %v2278 = vpop.f32.mrf.mxu0
  %v2279 = vpop.f32.mrf.mxu0
  %v2280 = vadd.f32 %v436, %v2279
  %v2281 = vpop.f32.mrf.mxu0
  %2282 = vmatprep.mubr.bf16.mxu0 0
  %2283 = vmatmul.mubr.bf16.gmra.mxu0 %v1382
  %v2284 = vpop.f32.mrf.mxu0
  %v2285 = vadd.f32 %v436, %v2284
  %v2286 = vpop.f32.mrf.mxu0
  %v2287 = vpop.f32.mrf.mxu0
  %v2288 = vadd.f32 %v436, %v2287
  %v2289 = vpop.f32.mrf.mxu0
  %2290 = vmatprep.mubr.bf16.mxu0 0
  %2291 = vmatmul.mubr.bf16.gmra.mxu0 %v1385
  %v2292 = vpop.f32.mrf.mxu0
  %v2293 = vadd.f32 %v436, %v2292
  %v2294 = vpop.f32.mrf.mxu0
  %v2295 = vpop.f32.mrf.mxu0
  %v2296 = vadd.f32 %v436, %v2295
  %v2297 = vpop.f32.mrf.mxu0
  %2298 = vmatprep.mubr.bf16.mxu0 0
  %2299 = vmatmul.mubr.bf16.gmra.mxu0 %v1388
  %v2300 = vpop.f32.mrf.mxu0
  %v2301 = vadd.f32 %v436, %v2300
  %v2302 = vpop.f32.mrf.mxu0
  %v2303 = vpop.f32.mrf.mxu0
  %v2304 = vadd.f32 %v436, %v2303
  %v2305 = vpop.f32.mrf.mxu0
  %2306 = vmatprep.mubr.bf16.mxu0 0
  %2307 = vmatmul.mubr.bf16.gmra.mxu0 %v1391
  %v2308 = vpop.f32.mrf.mxu0
  %v2309 = vadd.f32 %v436, %v2308
  %v2310 = vpop.f32.mrf.mxu0
  %v2311 = vpop.f32.mrf.mxu0
  %v2312 = vadd.f32 %v436, %v2311
  %v2313 = vpop.f32.mrf.mxu0
  %2314 = vmatprep.mubr.bf16.mxu0 0
  %2315 = vmatmul.mubr.bf16.gmra.mxu0 %v1394
  %v2316 = vpop.f32.mrf.mxu0
  %v2317 = vadd.f32 %v436, %v2316
  %v2318 = vpop.f32.mrf.mxu0
  %v2319 = vpop.f32.mrf.mxu0
  %v2320 = vadd.f32 %v436, %v2319
  %v2321 = vpop.f32.mrf.mxu0
  %2322 = vmatprep.mubr.bf16.mxu0 0
  %2323 = vmatmul.mubr.bf16.gmra.mxu0 %v1397
  %v2324 = vpop.f32.mrf.mxu0
  %v2325 = vadd.f32 %v436, %v2324
  %v2326 = vpop.f32.mrf.mxu0
  %v2327 = vpop.f32.mrf.mxu0
  %v2328 = vadd.f32 %v436, %v2327
  %v2329 = vpop.f32.mrf.mxu0
  %2330 = vmatprep.mubr.bf16.mxu0 0
  %2331 = vmatmul.mubr.bf16.gmra.mxu0 %v1400
  %v2332 = vpop.f32.mrf.mxu0
  %v2333 = vadd.f32 %v436, %v2332
  %v2334 = vpop.f32.mrf.mxu0
  %v2335 = vpop.f32.mrf.mxu0
  %v2336 = vadd.f32 %v436, %v2335
  %v2337 = vpop.f32.mrf.mxu0
  %2338 = vmatprep.mubr.bf16.mxu0 0
  %2339 = vmatmul.mubr.bf16.gmra.mxu0 %v1403
  %v2340 = vpop.f32.mrf.mxu0
  %v2341 = vadd.f32 %v436, %v2340
  %v2342 = vpop.f32.mrf.mxu0
  %v2343 = vpop.f32.mrf.mxu0
  %v2344 = vadd.f32 %v436, %v2343
  %v2345 = vpop.f32.mrf.mxu0
  %2346 = vmatprep.mubr.bf16.mxu0 0
  %2347 = vmatmul.mubr.bf16.gmra.mxu0 %v1406
  %v2348 = vpop.f32.mrf.mxu0
  %v2349 = vadd.f32 %v436, %v2348
  %v2350 = vpop.f32.mrf.mxu0
  %v2351 = vpop.f32.mrf.mxu0
  %v2352 = vadd.f32 %v436, %v2351
  %v2353 = vpop.f32.mrf.mxu0
  %2354 = vmatprep.mubr.bf16.mxu0 0
  %2355 = vmatmul.mubr.bf16.gmra.mxu0 %v1409
  %v2356 = vpop.f32.mrf.mxu0
  %v2357 = vadd.f32 %v436, %v2356
  %v2358 = vpop.f32.mrf.mxu0
  %v2359 = vpop.f32.mrf.mxu0
  %v2360 = vadd.f32 %v436, %v2359
  %v2361 = vpop.f32.mrf.mxu0
  %2362 = vmatprep.mubr.bf16.mxu0 0
  %2363 = vmatmul.mubr.bf16.gmra.mxu0 %v1412
  %v2364 = vpop.f32.mrf.mxu0
  %v2365 = vadd.f32 %v436, %v2364
  %v2366 = vpop.f32.mrf.mxu0
  %v2367 = vpop.f32.mrf.mxu0
  %v2368 = vadd.f32 %v436, %v2367
  %v2369 = vpop.f32.mrf.mxu0
  %2370 = vmatprep.mubr.bf16.mxu0 0
  %2371 = vmatmul.mubr.bf16.gmra.mxu0 %v1415
  %v2372 = vpop.f32.mrf.mxu0
  %v2373 = vadd.f32 %v436, %v2372
  %v2374 = vpop.f32.mrf.mxu0
  %v2375 = vpop.f32.mrf.mxu0
  %v2376 = vadd.f32 %v436, %v2375
  %v2377 = vpop.f32.mrf.mxu0
  %2378 = vmatprep.mubr.bf16.mxu0 0
  %2379 = vmatmul.mubr.bf16.gmra.mxu0 %v1418
  %v2380 = vpop.f32.mrf.mxu0
  %v2381 = vadd.f32 %v436, %v2380
  %v2382 = vpop.f32.mrf.mxu0
  %v2383 = vpop.f32.mrf.mxu0
  %v2384 = vadd.f32 %v436, %v2383
  %v2385 = vpop.f32.mrf.mxu0
  %2386 = vmatprep.mubr.bf16.mxu0 0
  %2387 = vmatmul.mubr.bf16.gmra.mxu0 %v1421
  %v2388 = vpop.f32.mrf.mxu0
  %v2389 = vadd.f32 %v436, %v2388
  %v2390 = vpop.f32.mrf.mxu0
  %v2391 = vpop.f32.mrf.mxu0
  %v2392 = vadd.f32 %v436, %v2391
  %v2393 = vpop.f32.mrf.mxu0
  %2394 = vmatprep.mubr.bf16.mxu0 0
  %2395 = vmatmul.mubr.bf16.gmra.mxu0 %v1424
  %v2396 = vpop.f32.mrf.mxu0
  %v2397 = vadd.f32 %v436, %v2396
  %v2398 = vpop.f32.mrf.mxu0
  %v2399 = vpop.f32.mrf.mxu0
  %v2400 = vadd.f32 %v436, %v2399
  %v2401 = vpop.f32.mrf.mxu0
  %2402 = vmatprep.mubr.bf16.mxu0 0
  %2403 = vmatmul.mubr.bf16.gmra.mxu0 %v1427
  %v2404 = vpop.f32.mrf.mxu0
  %v2405 = vadd.f32 %v436, %v2404
  %v2406 = vpop.f32.mrf.mxu0
  %v2407 = vpop.f32.mrf.mxu0
  %v2408 = vadd.f32 %v436, %v2407
  %v2409 = vpop.f32.mrf.mxu0
  %2410 = vmatprep.mubr.bf16.mxu0 0
  %2411 = vmatmul.mubr.bf16.gmra.mxu0 %v1430
  %v2412 = vpop.f32.mrf.mxu0
  %v2413 = vadd.f32 %v436, %v2412
  %v2414 = vpop.f32.mrf.mxu0
  %v2415 = vpop.f32.mrf.mxu0
  %v2416 = vadd.f32 %v436, %v2415
  %v2417 = vpop.f32.mrf.mxu0
  %2418 = vmatprep.mubr.bf16.mxu0 0
  %2419 = vmatmul.mubr.bf16.gmra.mxu0 %v1433
  %v2420 = vpop.f32.mrf.mxu0
  %v2421 = vadd.f32 %v436, %v2420
  %v2422 = vpop.f32.mrf.mxu0
  %v2423 = vpop.f32.mrf.mxu0
  %v2424 = vadd.f32 %v436, %v2423
  %v2425 = vpop.f32.mrf.mxu0
  %2426 = vmatprep.mubr.bf16.mxu0 0
  %2427 = vmatmul.mubr.bf16.gmra.mxu0 %v1436
  %v2428 = vpop.f32.mrf.mxu0
  %v2429 = vadd.f32 %v436, %v2428
  %v2430 = vpop.f32.mrf.mxu0
  %v2431 = vpop.f32.mrf.mxu0
  %v2432 = vadd.f32 %v436, %v2431
  %v2433 = vpop.f32.mrf.mxu0
  %2434 = vmatprep.mubr.bf16.mxu0 0
  %2435 = vmatmul.mubr.bf16.gmra.mxu0 %v1439
  %v2436 = vpop.f32.mrf.mxu0
  %v2437 = vadd.f32 %v436, %v2436
  %v2438 = vpop.f32.mrf.mxu0
  %v2439 = vpop.f32.mrf.mxu0
  %v2440 = vadd.f32 %v436, %v2439
  %v2441 = vpop.f32.mrf.mxu0
  %2442 = vmatprep.mubr.bf16.mxu0 0
  %2443 = vmatmul.mubr.bf16.gmra.mxu0 %v1442
  %v2444 = vpop.f32.mrf.mxu0
  %v2445 = vadd.f32 %v436, %v2444
  %v2446 = vpop.f32.mrf.mxu0
  %v2447 = vpop.f32.mrf.mxu0
  %v2448 = vadd.f32 %v436, %v2447
  %v2449 = vpop.f32.mrf.mxu0
  %2450 = vmatprep.mubr.bf16.mxu0 0
  %2451 = vmatmul.mubr.bf16.gmra.mxu0 %v1445
  %v2452 = vpop.f32.mrf.mxu0
  %v2453 = vadd.f32 %v436, %v2452
  %v2454 = vpop.f32.mrf.mxu0
  %v2455 = vpop.f32.mrf.mxu0
  %v2456 = vadd.f32 %v436, %v2455
  %v2457 = vpop.f32.mrf.mxu0
  %2458 = vmatprep.mubr.bf16.mxu0 0
  %2459 = vmatmul.mubr.bf16.gmra.mxu0 %v1448
  %v2460 = vpop.f32.mrf.mxu0
  %v2461 = vadd.f32 %v436, %v2460
  %v2462 = vpop.f32.mrf.mxu0
  %v2463 = vpop.f32.mrf.mxu0
  %v2464 = vadd.f32 %v436, %v2463
  %v2465 = vpop.f32.mrf.mxu0
  %2466 = vmatprep.mubr.bf16.mxu0 0
  %2467 = vmatmul.mubr.bf16.gmra.mxu0 %v1451
  %v2468 = vpop.f32.mrf.mxu0
  %v2469 = vadd.f32 %v436, %v2468
  %v2470 = vpop.f32.mrf.mxu0
  %v2471 = vpop.f32.mrf.mxu0
  %v2472 = vadd.f32 %v436, %v2471
  %v2473 = vpop.f32.mrf.mxu0
  %2474 = vmatprep.mubr.bf16.mxu0 0
  %2475 = vmatmul.mubr.bf16.gmra.mxu0 %v1454
  %v2476 = vpop.f32.mrf.mxu0
  %v2477 = vadd.f32 %v436, %v2476
  %v2478 = vpop.f32.mrf.mxu0
  %v2479 = vpop.f32.mrf.mxu0
  %v2480 = vadd.f32 %v436, %v2479
  %v2481 = vpop.f32.mrf.mxu0
  %2482 = vmatprep.mubr.bf16.mxu0 0
  %2483 = vmatmul.mubr.bf16.gmra.mxu0 %v1457
  %v2484 = vpop.f32.mrf.mxu0
  %v2485 = vadd.f32 %v436, %v2484
  %v2486 = vpop.f32.mrf.mxu0
  %v2487 = vpop.f32.mrf.mxu0
  %v2488 = vadd.f32 %v436, %v2487
  %v2489 = vpop.f32.mrf.mxu0
  %2490 = vmatprep.mubr.bf16.mxu0 0
  %2491 = vmatmul.mubr.bf16.gmra.mxu0 %v1460
  %v2492 = vpop.f32.mrf.mxu0
  %v2493 = vadd.f32 %v436, %v2492
  %v2494 = vpop.f32.mrf.mxu0
  %v2495 = vpop.f32.mrf.mxu0
  %v2496 = vadd.f32 %v436, %v2495
  %v2497 = vpop.f32.mrf.mxu0
  %2498 = vmatprep.mubr.bf16.mxu0 0
  %2499 = vmatmul.mubr.bf16.gmra.mxu0 %v1463
  %v2500 = vpop.f32.mrf.mxu0
  %v2501 = vadd.f32 %v436, %v2500
  %v2502 = vpop.f32.mrf.mxu0
  %v2503 = vpop.f32.mrf.mxu0
  %v2504 = vadd.f32 %v436, %v2503
  %v2505 = vpop.f32.mrf.mxu0
  %2506 = vmatprep.mubr.bf16.mxu0 0
  %2507 = vmatmul.mubr.bf16.gmra.mxu0 %v1466
  %v2508 = vpop.f32.mrf.mxu0
  %v2509 = vadd.f32 %v436, %v2508
  %v2510 = vpop.f32.mrf.mxu0
  %v2511 = vpop.f32.mrf.mxu0
  %v2512 = vadd.f32 %v436, %v2511
  %v2513 = vpop.f32.mrf.mxu0
  %2514 = vmatprep.mubr.bf16.mxu0 0
  %2515 = vmatmul.mubr.bf16.gmra.mxu0 %v1469
  %v2516 = vpop.f32.mrf.mxu0
  %v2517 = vadd.f32 %v436, %v2516
  %v2518 = vpop.f32.mrf.mxu0
  %v2519 = vpop.f32.mrf.mxu0
  %v2520 = vadd.f32 %v436, %v2519
  %v2521 = vpop.f32.mrf.mxu0
  %2522 = vmatprep.mubr.bf16.mxu0 0
  %2523 = vmatmul.mubr.bf16.gmra.mxu0 %v1472
  %v2524 = vpop.f32.mrf.mxu0
  %v2525 = vadd.f32 %v436, %v2524
  %v2526 = vpop.f32.mrf.mxu0
  %v2527 = vpop.f32.mrf.mxu0
  %v2528 = vadd.f32 %v436, %v2527
  %v2529 = vpop.f32.mrf.mxu0
  %2530 = vdwg.mxu0
  %v2531 = vmax.f32 %v1509, %v1573
  %v2532 = vmax.f32 %v1512, %v1576
  %v2533 = vmax.f32 %v1517, %v1581
  %v2534 = vmax.f32 %v1520, %v1584
  %v2535 = vmax.f32 %v1525, %v1589
  %v2536 = vmax.f32 %v1528, %v1592
  %v2537 = vmax.f32 %v1533, %v1597
  %v2538 = vmax.f32 %v1536, %v1600
  %v2539 = vmax.f32 %v1541, %v1605
  %v2540 = vmax.f32 %v1544, %v1608
  %v2541 = vmax.f32 %v1549, %v1613
  %v2542 = vmax.f32 %v1552, %v1616
  %v2543 = vmax.f32 %v1557, %v1621
  %v2544 = vmax.f32 %v1560, %v1624
  %v2545 = vmax.f32 %v1565, %v1629
  %v2546 = vmax.f32 %v1568, %v1632
  %v2547 = vmax.f32 %v1637, %v1701
  %v2548 = vmax.f32 %v1640, %v1704
  %v2549 = vmax.f32 %v1645, %v1709
  %v2550 = vmax.f32 %v1648, %v1712
  %v2551 = vmax.f32 %v1653, %v1717
  %v2552 = vmax.f32 %v1656, %v1720
  %v2553 = vmax.f32 %v1661, %v1725
  %v2554 = vmax.f32 %v1664, %v1728
  %v2555 = vmax.f32 %v1669, %v1733
  %v2556 = vmax.f32 %v1672, %v1736
  %v2557 = vmax.f32 %v1677, %v1741
  %v2558 = vmax.f32 %v1680, %v1744
  %v2559 = vmax.f32 %v1685, %v1749
  %v2560 = vmax.f32 %v1688, %v1752
  %v2561 = vmax.f32 %v1693, %v1757
  %v2562 = vmax.f32 %v1696, %v1760
  %v2563 = vmax.f32 %v1765, %v1829
  %v2564 = vmax.f32 %v1768, %v1832
  %v2565 = vmax.f32 %v1773, %v1837
  %v2566 = vmax.f32 %v1776, %v1840
  %v2567 = vmax.f32 %v1781, %v1845
  %v2568 = vmax.f32 %v1784, %v1848
  %v2569 = vmax.f32 %v1789, %v1853
  %v2570 = vmax.f32 %v1792, %v1856
  %v2571 = vmax.f32 %v1797, %v1861
  %v2572 = vmax.f32 %v1800, %v1864
  %v2573 = vmax.f32 %v1805, %v1869
  %v2574 = vmax.f32 %v1808, %v1872
  %v2575 = vmax.f32 %v1813, %v1877
  %v2576 = vmax.f32 %v1816, %v1880
  %v2577 = vmax.f32 %v1821, %v1885
  %v2578 = vmax.f32 %v1824, %v1888
  %v2579 = vmax.f32 %v1893, %v1957
  %v2580 = vmax.f32 %v1896, %v1960
  %v2581 = vmax.f32 %v1901, %v1965
  %v2582 = vmax.f32 %v1904, %v1968
  %v2583 = vmax.f32 %v1909, %v1973
  %v2584 = vmax.f32 %v1912, %v1976
  %v2585 = vmax.f32 %v1917, %v1981
  %v2586 = vmax.f32 %v1920, %v1984
  %v2587 = vmax.f32 %v1925, %v1989
  %v2588 = vmax.f32 %v1928, %v1992
  %v2589 = vmax.f32 %v1933, %v1997
  %v2590 = vmax.f32 %v1936, %v2000
  %v2591 = vmax.f32 %v1941, %v2005
  %v2592 = vmax.f32 %v1944, %v2008
  %v2593 = vmax.f32 %v1949, %v2013
  %v2594 = vmax.f32 %v1952, %v2016
  %v2595 = vmax.f32 %v2021, %v2085
  %v2596 = vmax.f32 %v2024, %v2088
  %v2597 = vmax.f32 %v2029, %v2093
  %v2598 = vmax.f32 %v2032, %v2096
  %v2599 = vmax.f32 %v2037, %v2101
  %v2600 = vmax.f32 %v2040, %v2104
  %v2601 = vmax.f32 %v2045, %v2109
  %v2602 = vmax.f32 %v2048, %v2112
  %v2603 = vmax.f32 %v2053, %v2117
  %v2604 = vmax.f32 %v2056, %v2120
  %v2605 = vmax.f32 %v2061, %v2125
  %v2606 = vmax.f32 %v2064, %v2128
  %v2607 = vmax.f32 %v2069, %v2133
  %v2608 = vmax.f32 %v2072, %v2136
  %v2609 = vmax.f32 %v2077, %v2141
  %v2610 = vmax.f32 %v2080, %v2144
  %v2611 = vmax.f32 %v2149, %v2213
  %v2612 = vmax.f32 %v2152, %v2216
  %v2613 = vmax.f32 %v2157, %v2221
  %v2614 = vmax.f32 %v2160, %v2224
  %v2615 = vmax.f32 %v2165, %v2229
  %v2616 = vmax.f32 %v2168, %v2232
  %v2617 = vmax.f32 %v2173, %v2237
  %v2618 = vmax.f32 %v2176, %v2240
  %v2619 = vmax.f32 %v2181, %v2245
  %v2620 = vmax.f32 %v2184, %v2248
  %v2621 = vmax.f32 %v2189, %v2253
  %v2622 = vmax.f32 %v2192, %v2256
  %v2623 = vmax.f32 %v2197, %v2261
  %v2624 = vmax.f32 %v2200, %v2264
  %v2625 = vmax.f32 %v2205, %v2269
  %v2626 = vmax.f32 %v2208, %v2272
  %v2627 = vmax.f32 %v2277, %v2341
  %v2628 = vmax.f32 %v2280, %v2344
  %v2629 = vmax.f32 %v2285, %v2349
  %v2630 = vmax.f32 %v2288, %v2352
  %v2631 = vmax.f32 %v2293, %v2357
  %v2632 = vmax.f32 %v2296, %v2360
  %v2633 = vmax.f32 %v2301, %v2365
  %v2634 = vmax.f32 %v2304, %v2368
  %v2635 = vmax.f32 %v2309, %v2373
  %v2636 = vmax.f32 %v2312, %v2376
  %v2637 = vmax.f32 %v2317, %v2381
  %v2638 = vmax.f32 %v2320, %v2384
  %v2639 = vmax.f32 %v2325, %v2389
  %v2640 = vmax.f32 %v2328, %v2392
  %v2641 = vmax.f32 %v2333, %v2397
  %v2642 = vmax.f32 %v2336, %v2400
  %v2643 = vmax.f32 %v2405, %v2469
  %v2644 = vmax.f32 %v2408, %v2472
  %v2645 = vmax.f32 %v2413, %v2477
  %v2646 = vmax.f32 %v2416, %v2480
  %v2647 = vmax.f32 %v2421, %v2485
  %v2648 = vmax.f32 %v2424, %v2488
  %v2649 = vmax.f32 %v2429, %v2493
  %v2650 = vmax.f32 %v2432, %v2496
  %v2651 = vmax.f32 %v2437, %v2501
  %v2652 = vmax.f32 %v2440, %v2504
  %v2653 = vmax.f32 %v2445, %v2509
  %v2654 = vmax.f32 %v2448, %v2512
  %v2655 = vmax.f32 %v2453, %v2517
  %v2656 = vmax.f32 %v2456, %v2520
  %v2657 = vmax.f32 %v2461, %v2525
  %v2658 = vmax.f32 %v2464, %v2528
  %v2659 = vmax.f32 %v2531, %v2532
  %v2660 = vmax.f32 %v2533, %v2534
  %v2661 = vmax.f32 %v2535, %v2536
  %v2662 = vmax.f32 %v2537, %v2538
  %v2663 = vmax.f32 %v2539, %v2540
  %v2664 = vmax.f32 %v2541, %v2542
  %v2665 = vmax.f32 %v2543, %v2544
  %v2666 = vmax.f32 %v2545, %v2546
  %v2667 = vmax.f32 %v2547, %v2548
  %v2668 = vmax.f32 %v2549, %v2550
  %v2669 = vmax.f32 %v2551, %v2552
  %v2670 = vmax.f32 %v2553, %v2554
  %v2671 = vmax.f32 %v2555, %v2556
  %v2672 = vmax.f32 %v2557, %v2558
  %v2673 = vmax.f32 %v2559, %v2560
  %v2674 = vmax.f32 %v2561, %v2562
  %v2675 = vmax.f32 %v2563, %v2564
  %v2676 = vmax.f32 %v2565, %v2566
  %v2677 = vmax.f32 %v2567, %v2568
  %v2678 = vmax.f32 %v2569, %v2570
  %v2679 = vmax.f32 %v2571, %v2572
  %v2680 = vmax.f32 %v2573, %v2574
  %v2681 = vmax.f32 %v2575, %v2576
  %v2682 = vmax.f32 %v2577, %v2578
  %v2683 = vmax.f32 %v2579, %v2580
  %v2684 = vmax.f32 %v2581, %v2582
  %v2685 = vmax.f32 %v2583, %v2584
  %v2686 = vmax.f32 %v2585, %v2586
  %v2687 = vmax.f32 %v2587, %v2588
  %v2688 = vmax.f32 %v2589, %v2590
  %v2689 = vmax.f32 %v2591, %v2592
  %v2690 = vmax.f32 %v2593, %v2594
  %v2691 = vmax.f32 %v2595, %v2596
  %v2692 = vmax.f32 %v2597, %v2598
  %v2693 = vmax.f32 %v2599, %v2600
  %v2694 = vmax.f32 %v2601, %v2602
  %v2695 = vmax.f32 %v2603, %v2604
  %v2696 = vmax.f32 %v2605, %v2606
  %v2697 = vmax.f32 %v2607, %v2608
  %v2698 = vmax.f32 %v2609, %v2610
  %v2699 = vmax.f32 %v2611, %v2612
  %v2700 = vmax.f32 %v2613, %v2614
  %v2701 = vmax.f32 %v2615, %v2616
  %v2702 = vmax.f32 %v2617, %v2618
  %v2703 = vmax.f32 %v2619, %v2620
  %v2704 = vmax.f32 %v2621, %v2622
  %v2705 = vmax.f32 %v2623, %v2624
  %v2706 = vmax.f32 %v2625, %v2626
  %v2707 = vmax.f32 %v2627, %v2628
  %v2708 = vmax.f32 %v2629, %v2630
  %v2709 = vmax.f32 %v2631, %v2632
  %v2710 = vmax.f32 %v2633, %v2634
  %v2711 = vmax.f32 %v2635, %v2636
  %v2712 = vmax.f32 %v2637, %v2638
  %v2713 = vmax.f32 %v2639, %v2640
  %v2714 = vmax.f32 %v2641, %v2642
  %v2715 = vmax.f32 %v2643, %v2644
  %v2716 = vmax.f32 %v2645, %v2646
  %v2717 = vmax.f32 %v2647, %v2648
  %v2718 = vmax.f32 %v2649, %v2650
  %v2719 = vmax.f32 %v2651, %v2652
  %v2720 = vmax.f32 %v2653, %v2654
  %v2721 = vmax.f32 %v2655, %v2656
  %v2722 = vmax.f32 %v2657, %v2658
  %v2723 = vmax.f32 %v2659, 0.0
  %v2724 = vmax.f32 %v2660, 0.0
  %v2725 = vmax.f32 %v2661, 0.0
  %v2726 = vmax.f32 %v2662, 0.0
  %v2727 = vmax.f32 %v2663, 0.0
  %v2728 = vmax.f32 %v2664, 0.0
  %v2729 = vmax.f32 %v2665, 0.0
  %v2730 = vmax.f32 %v2666, 0.0
  %v2731 = vmax.f32 %v2667, 0.0
  %v2732 = vmax.f32 %v2668, 0.0
  %v2733 = vmax.f32 %v2669, 0.0
  %v2734 = vmax.f32 %v2670, 0.0
  %v2735 = vmax.f32 %v2671, 0.0
  %v2736 = vmax.f32 %v2672, 0.0
  %v2737 = vmax.f32 %v2673, 0.0
  %v2738 = vmax.f32 %v2674, 0.0
  %v2739 = vmax.f32 %v2675, 0.0
  %v2740 = vmax.f32 %v2676, 0.0
  %v2741 = vmax.f32 %v2677, 0.0
  %v2742 = vmax.f32 %v2678, 0.0
  %v2743 = vmax.f32 %v2679, 0.0
  %v2744 = vmax.f32 %v2680, 0.0
  %v2745 = vmax.f32 %v2681, 0.0
  %v2746 = vmax.f32 %v2682, 0.0
  %v2747 = vmax.f32 %v2683, 0.0
  %v2748 = vmax.f32 %v2684, 0.0
  %v2749 = vmax.f32 %v2685, 0.0
  %v2750 = vmax.f32 %v2686, 0.0
  %v2751 = vmax.f32 %v2687, 0.0
  %v2752 = vmax.f32 %v2688, 0.0
  %v2753 = vmax.f32 %v2689, 0.0
  %v2754 = vmax.f32 %v2690, 0.0
  %v2755 = vmax.f32 %v2691, 0.0
  %v2756 = vmax.f32 %v2692, 0.0
  %v2757 = vmax.f32 %v2693, 0.0
  %v2758 = vmax.f32 %v2694, 0.0
  %v2759 = vmax.f32 %v2695, 0.0
  %v2760 = vmax.f32 %v2696, 0.0
  %v2761 = vmax.f32 %v2697, 0.0
  %v2762 = vmax.f32 %v2698, 0.0
  %v2763 = vmax.f32 %v2699, 0.0
  %v2764 = vmax.f32 %v2700, 0.0
  %v2765 = vmax.f32 %v2701, 0.0
  %v2766 = vmax.f32 %v2702, 0.0
  %v2767 = vmax.f32 %v2703, 0.0
  %v2768 = vmax.f32 %v2704, 0.0
  %v2769 = vmax.f32 %v2705, 0.0
  %v2770 = vmax.f32 %v2706, 0.0
  %v2771 = vmax.f32 %v2707, 0.0
  %v2772 = vmax.f32 %v2708, 0.0
  %v2773 = vmax.f32 %v2709, 0.0
  %v2774 = vmax.f32 %v2710, 0.0
  %v2775 = vmax.f32 %v2711, 0.0
  %v2776 = vmax.f32 %v2712, 0.0
  %v2777 = vmax.f32 %v2713, 0.0
  %v2778 = vmax.f32 %v2714, 0.0
  %v2779 = vmax.f32 %v2715, 0.0
  %v2780 = vmax.f32 %v2716, 0.0
  %v2781 = vmax.f32 %v2717, 0.0
  %v2782 = vmax.f32 %v2718, 0.0
  %v2783 = vmax.f32 %v2719, 0.0
  %v2784 = vmax.f32 %v2720, 0.0
  %v2785 = vmax.f32 %v2721, 0.0
  %v2786 = vmax.f32 %v2722, 0.0
  %v2787 = vmul.f32 %v2723, %v40
  %v2788 = vmul.f32 %v2724, %v40
  %v2789 = vmul.f32 %v2725, %v40
  %v2790 = vmul.f32 %v2726, %v40
  %v2791 = vmul.f32 %v2727, %v40
  %v2792 = vmul.f32 %v2728, %v40
  %v2793 = vmul.f32 %v2729, %v40
  %v2794 = vmul.f32 %v2730, %v40
  %v2795 = vmul.f32 %v2731, %v40
  %v2796 = vmul.f32 %v2732, %v40
  %v2797 = vmul.f32 %v2733, %v40
  %v2798 = vmul.f32 %v2734, %v40
  %v2799 = vmul.f32 %v2735, %v40
  %v2800 = vmul.f32 %v2736, %v40
  %v2801 = vmul.f32 %v2737, %v40
  %v2802 = vmul.f32 %v2738, %v40
  %v2803 = vmul.f32 %v2739, %v40
  %v2804 = vmul.f32 %v2740, %v40
  %v2805 = vmul.f32 %v2741, %v40
  %v2806 = vmul.f32 %v2742, %v40
  %v2807 = vmul.f32 %v2743, %v40
  %v2808 = vmul.f32 %v2744, %v40
  %v2809 = vmul.f32 %v2745, %v40
  %v2810 = vmul.f32 %v2746, %v40
  %v2811 = vmul.f32 %v2747, %v40
  %v2812 = vmul.f32 %v2748, %v40
  %v2813 = vmul.f32 %v2749, %v40
  %v2814 = vmul.f32 %v2750, %v40
  %v2815 = vmul.f32 %v2751, %v40
  %v2816 = vmul.f32 %v2752, %v40
  %v2817 = vmul.f32 %v2753, %v40
  %v2818 = vmul.f32 %v2754, %v40
  %v2819 = vmul.f32 %v2755, %v40
  %v2820 = vmul.f32 %v2756, %v40
  %v2821 = vmul.f32 %v2757, %v40
  %v2822 = vmul.f32 %v2758, %v40
  %v2823 = vmul.f32 %v2759, %v40
  %v2824 = vmul.f32 %v2760, %v40
  %v2825 = vmul.f32 %v2761, %v40
  %v2826 = vmul.f32 %v2762, %v40
  %v2827 = vmul.f32 %v2763, %v40
  %v2828 = vmul.f32 %v2764, %v40
  %v2829 = vmul.f32 %v2765, %v40
  %v2830 = vmul.f32 %v2766, %v40
  %v2831 = vmul.f32 %v2767, %v40
  %v2832 = vmul.f32 %v2768, %v40
  %v2833 = vmul.f32 %v2769, %v40
  %v2834 = vmul.f32 %v2770, %v40
  %v2835 = vmul.f32 %v2771, %v40
  %v2836 = vmul.f32 %v2772, %v40
  %v2837 = vmul.f32 %v2773, %v40
  %v2838 = vmul.f32 %v2774, %v40
  %v2839 = vmul.f32 %v2775, %v40
  %v2840 = vmul.f32 %v2776, %v40
  %v2841 = vmul.f32 %v2777, %v40
  %v2842 = vmul.f32 %v2778, %v40
  %v2843 = vmul.f32 %v2779, %v40
  %v2844 = vmul.f32 %v2780, %v40
  %v2845 = vmul.f32 %v2781, %v40
  %v2846 = vmul.f32 %v2782, %v40
  %v2847 = vmul.f32 %v2783, %v40
  %v2848 = vmul.f32 %v2784, %v40
  %v2849 = vmul.f32 %v2785, %v40
  %v2850 = vmul.f32 %v2786, %v40
  %v2851 = vsel %vm125, %v2787, 0.0
  %v2852 = vsel %vm125, %v2788, 0.0
  %v2853 = vadd.f32 %v2851, %v2852
  %v2854 = vsel %vm125, %v2789, 0.0
  %v2855 = vadd.f32 %v2853, %v2854
  %v2856 = vsel %vm125, %v2790, 0.0
  %v2857 = vadd.f32 %v2855, %v2856
  %v2858 = vsel %vm125, %v2791, 0.0
  %v2859 = vadd.f32 %v2857, %v2858
  %v2860 = vsel %vm125, %v2792, 0.0
  %v2861 = vadd.f32 %v2859, %v2860
  %v2862 = vsel %vm125, %v2793, 0.0
  %v2863 = vadd.f32 %v2861, %v2862
  %v2864 = vsel %vm125, %v2794, 0.0
  %v2865 = vadd.f32 %v2863, %v2864
  %v2866 = vsel %vm125, %v2795, 0.0
  %v2867 = vadd.f32 %v2865, %v2866
  %v2868 = vsel %vm125, %v2796, 0.0
  %v2869 = vadd.f32 %v2867, %v2868
  %v2870 = vsel %vm125, %v2797, 0.0
  %v2871 = vadd.f32 %v2869, %v2870
  %v2872 = vsel %vm125, %v2798, 0.0
  %v2873 = vadd.f32 %v2871, %v2872
  %v2874 = vsel %vm125, %v2799, 0.0
  %v2875 = vadd.f32 %v2873, %v2874
  %v2876 = vsel %vm125, %v2800, 0.0
  %v2877 = vadd.f32 %v2875, %v2876
  %v2878 = vsel %vm125, %v2801, 0.0
  %v2879 = vadd.f32 %v2877, %v2878
  %v2880 = vsel %vm125, %v2802, 0.0
  %v2881 = vadd.f32 %v2879, %v2880
  %v2882 = vsel %vm125, %v2803, 0.0
  %v2883 = vadd.f32 %v2881, %v2882
  %v2884 = vsel %vm125, %v2804, 0.0
  %v2885 = vadd.f32 %v2883, %v2884
  %v2886 = vsel %vm125, %v2805, 0.0
  %v2887 = vadd.f32 %v2885, %v2886
  %v2888 = vsel %vm125, %v2806, 0.0
  %v2889 = vadd.f32 %v2887, %v2888
  %v2890 = vsel %vm125, %v2807, 0.0
  %v2891 = vadd.f32 %v2889, %v2890
  %v2892 = vsel %vm125, %v2808, 0.0
  %v2893 = vadd.f32 %v2891, %v2892
  %v2894 = vsel %vm125, %v2809, 0.0
  %v2895 = vadd.f32 %v2893, %v2894
  %v2896 = vsel %vm125, %v2810, 0.0
  %v2897 = vadd.f32 %v2895, %v2896
  %v2898 = vsel %vm125, %v2811, 0.0
  %v2899 = vadd.f32 %v2897, %v2898
  %v2900 = vsel %vm125, %v2812, 0.0
  %v2901 = vadd.f32 %v2899, %v2900
  %v2902 = vsel %vm125, %v2813, 0.0
  %v2903 = vadd.f32 %v2901, %v2902
  %v2904 = vsel %vm125, %v2814, 0.0
  %v2905 = vadd.f32 %v2903, %v2904
  %v2906 = vsel %vm125, %v2815, 0.0
  %v2907 = vadd.f32 %v2905, %v2906
  %v2908 = vsel %vm125, %v2816, 0.0
  %v2909 = vadd.f32 %v2907, %v2908
  %v2910 = vsel %vm125, %v2817, 0.0
  %v2911 = vadd.f32 %v2909, %v2910
  %v2912 = vsel %vm125, %v2818, 0.0
  %v2913 = vadd.f32 %v2911, %v2912
  %v2914 = vsel %vm125, %v2819, 0.0
  %v2915 = vadd.f32 %v2913, %v2914
  %v2916 = vsel %vm125, %v2820, 0.0
  %v2917 = vadd.f32 %v2915, %v2916
  %v2918 = vsel %vm125, %v2821, 0.0
  %v2919 = vadd.f32 %v2917, %v2918
  %v2920 = vsel %vm125, %v2822, 0.0
  %v2921 = vadd.f32 %v2919, %v2920
  %v2922 = vsel %vm125, %v2823, 0.0
  %v2923 = vadd.f32 %v2921, %v2922
  %v2924 = vsel %vm125, %v2824, 0.0
  %v2925 = vadd.f32 %v2923, %v2924
  %v2926 = vsel %vm125, %v2825, 0.0
  %v2927 = vadd.f32 %v2925, %v2926
  %v2928 = vsel %vm125, %v2826, 0.0
  %v2929 = vadd.f32 %v2927, %v2928
  %v2930 = vsel %vm125, %v2827, 0.0
  %v2931 = vadd.f32 %v2929, %v2930
  %v2932 = vsel %vm125, %v2828, 0.0
  %v2933 = vadd.f32 %v2931, %v2932
  %v2934 = vsel %vm125, %v2829, 0.0
  %v2935 = vadd.f32 %v2933, %v2934
  %v2936 = vsel %vm125, %v2830, 0.0
  %v2937 = vadd.f32 %v2935, %v2936
  %v2938 = vsel %vm125, %v2831, 0.0
  %v2939 = vadd.f32 %v2937, %v2938
  %v2940 = vsel %vm125, %v2832, 0.0
  %v2941 = vadd.f32 %v2939, %v2940
  %v2942 = vsel %vm125, %v2833, 0.0
  %v2943 = vadd.f32 %v2941, %v2942
  %v2944 = vsel %vm125, %v2834, 0.0
  %v2945 = vadd.f32 %v2943, %v2944
  %v2946 = vsel %vm125, %v2835, 0.0
  %v2947 = vadd.f32 %v2945, %v2946
  %v2948 = vsel %vm125, %v2836, 0.0
  %v2949 = vadd.f32 %v2947, %v2948
  %v2950 = vsel %vm125, %v2837, 0.0
  %v2951 = vadd.f32 %v2949, %v2950
  %v2952 = vsel %vm125, %v2838, 0.0
  %v2953 = vadd.f32 %v2951, %v2952
  %v2954 = vsel %vm125, %v2839, 0.0
  %v2955 = vadd.f32 %v2953, %v2954
  %v2956 = vsel %vm125, %v2840, 0.0
  %v2957 = vadd.f32 %v2955, %v2956
  %v2958 = vsel %vm125, %v2841, 0.0
  %v2959 = vadd.f32 %v2957, %v2958
  %v2960 = vsel %vm125, %v2842, 0.0
  %v2961 = vadd.f32 %v2959, %v2960
  %v2962 = vsel %vm125, %v2843, 0.0
  %v2963 = vadd.f32 %v2961, %v2962
  %v2964 = vsel %vm125, %v2844, 0.0
  %v2965 = vadd.f32 %v2963, %v2964
  %v2966 = vsel %vm125, %v2845, 0.0
  %v2967 = vadd.f32 %v2965, %v2966
  %v2968 = vsel %vm125, %v2846, 0.0
  %v2969 = vadd.f32 %v2967, %v2968
  %v2970 = vsel %vm125, %v2847, 0.0
  %v2971 = vadd.f32 %v2969, %v2970
  %v2972 = vsel %vm125, %v2848, 0.0
  %v2973 = vadd.f32 %v2971, %v2972
  %v2974 = vsel %vm125, %v2849, 0.0
  %v2975 = vadd.f32 %v2973, %v2974
  %v2976 = vsel %vm125, %v2850, 0.0
  %v2977 = vadd.f32 %v2975, %v2976
  %v2978 = vrot.slane %v2977, 4
  %v2979 = vadd.f32 %v2977, %v2978
  %v2980 = vrot.slane %v2979, 2
  %v2981 = vadd.f32 %v2979, %v2980
  %v2982 = vrot.slane %v2981, 1
  %v2983 = vadd.f32 %v2981, %v2982
  %v2984 = vmul.f32 %v2983, 0.0078125
  %v2985 = vmul.f32 %v2787, %v2787
  %v2986 = vmul.f32 %v2788, %v2788
  %v2987 = vmul.f32 %v2789, %v2789
  %v2988 = vmul.f32 %v2790, %v2790
  %v2989 = vmul.f32 %v2791, %v2791
  %v2990 = vmul.f32 %v2792, %v2792
  %v2991 = vmul.f32 %v2793, %v2793
  %v2992 = vmul.f32 %v2794, %v2794
  %v2993 = vmul.f32 %v2795, %v2795
  %v2994 = vmul.f32 %v2796, %v2796
  %v2995 = vmul.f32 %v2797, %v2797
  %v2996 = vmul.f32 %v2798, %v2798
  %v2997 = vmul.f32 %v2799, %v2799
  %v2998 = vmul.f32 %v2800, %v2800
  %v2999 = vmul.f32 %v2801, %v2801
  %v3000 = vmul.f32 %v2802, %v2802
  %v3001 = vmul.f32 %v2803, %v2803
  %v3002 = vmul.f32 %v2804, %v2804
  %v3003 = vmul.f32 %v2805, %v2805
  %v3004 = vmul.f32 %v2806, %v2806
  %v3005 = vmul.f32 %v2807, %v2807
  %v3006 = vmul.f32 %v2808, %v2808
  %v3007 = vmul.f32 %v2809, %v2809
  %v3008 = vmul.f32 %v2810, %v2810
  %v3009 = vmul.f32 %v2811, %v2811
  %v3010 = vmul.f32 %v2812, %v2812
  %v3011 = vmul.f32 %v2813, %v2813
  %v3012 = vmul.f32 %v2814, %v2814
  %v3013 = vmul.f32 %v2815, %v2815
  %v3014 = vmul.f32 %v2816, %v2816
  %v3015 = vmul.f32 %v2817, %v2817
  %v3016 = vmul.f32 %v2818, %v2818
  %v3017 = vmul.f32 %v2819, %v2819
  %v3018 = vmul.f32 %v2820, %v2820
  %v3019 = vmul.f32 %v2821, %v2821
  %v3020 = vmul.f32 %v2822, %v2822
  %v3021 = vmul.f32 %v2823, %v2823
  %v3022 = vmul.f32 %v2824, %v2824
  %v3023 = vmul.f32 %v2825, %v2825
  %v3024 = vmul.f32 %v2826, %v2826
  %v3025 = vmul.f32 %v2827, %v2827
  %v3026 = vmul.f32 %v2828, %v2828
  %v3027 = vmul.f32 %v2829, %v2829
  %v3028 = vmul.f32 %v2830, %v2830
  %v3029 = vmul.f32 %v2831, %v2831
  %v3030 = vmul.f32 %v2832, %v2832
  %v3031 = vmul.f32 %v2833, %v2833
  %v3032 = vmul.f32 %v2834, %v2834
  %v3033 = vmul.f32 %v2835, %v2835
  %v3034 = vmul.f32 %v2836, %v2836
  %v3035 = vmul.f32 %v2837, %v2837
  %v3036 = vmul.f32 %v2838, %v2838
  %v3037 = vmul.f32 %v2839, %v2839
  %v3038 = vmul.f32 %v2840, %v2840
  %v3039 = vmul.f32 %v2841, %v2841
  %v3040 = vmul.f32 %v2842, %v2842
  %v3041 = vmul.f32 %v2843, %v2843
  %v3042 = vmul.f32 %v2844, %v2844
  %v3043 = vmul.f32 %v2845, %v2845
  %v3044 = vmul.f32 %v2846, %v2846
  %v3045 = vmul.f32 %v2847, %v2847
  %v3046 = vmul.f32 %v2848, %v2848
  %v3047 = vmul.f32 %v2849, %v2849
  %v3048 = vmul.f32 %v2850, %v2850
  %v3049 = vsel %vm125, %v2985, 0.0
  %v3050 = vsel %vm125, %v2986, 0.0
  %v3051 = vadd.f32 %v3049, %v3050
  %v3052 = vsel %vm125, %v2987, 0.0
  %v3053 = vadd.f32 %v3051, %v3052
  %v3054 = vsel %vm125, %v2988, 0.0
  %v3055 = vadd.f32 %v3053, %v3054
  %v3056 = vsel %vm125, %v2989, 0.0
  %v3057 = vadd.f32 %v3055, %v3056
  %v3058 = vsel %vm125, %v2990, 0.0
  %v3059 = vadd.f32 %v3057, %v3058
  %v3060 = vsel %vm125, %v2991, 0.0
  %v3061 = vadd.f32 %v3059, %v3060
  %v3062 = vsel %vm125, %v2992, 0.0
  %v3063 = vadd.f32 %v3061, %v3062
  %v3064 = vsel %vm125, %v2993, 0.0
  %v3065 = vadd.f32 %v3063, %v3064
  %v3066 = vsel %vm125, %v2994, 0.0
  %v3067 = vadd.f32 %v3065, %v3066
  %v3068 = vsel %vm125, %v2995, 0.0
  %v3069 = vadd.f32 %v3067, %v3068
  %v3070 = vsel %vm125, %v2996, 0.0
  %v3071 = vadd.f32 %v3069, %v3070
  %v3072 = vsel %vm125, %v2997, 0.0
  %v3073 = vadd.f32 %v3071, %v3072
  %v3074 = vsel %vm125, %v2998, 0.0
  %v3075 = vadd.f32 %v3073, %v3074
  %v3076 = vsel %vm125, %v2999, 0.0
  %v3077 = vadd.f32 %v3075, %v3076
  %v3078 = vsel %vm125, %v3000, 0.0
  %v3079 = vadd.f32 %v3077, %v3078
  %v3080 = vsel %vm125, %v3001, 0.0
  %v3081 = vadd.f32 %v3079, %v3080
  %v3082 = vsel %vm125, %v3002, 0.0
  %v3083 = vadd.f32 %v3081, %v3082
  %v3084 = vsel %vm125, %v3003, 0.0
  %v3085 = vadd.f32 %v3083, %v3084
  %v3086 = vsel %vm125, %v3004, 0.0
  %v3087 = vadd.f32 %v3085, %v3086
  %v3088 = vsel %vm125, %v3005, 0.0
  %v3089 = vadd.f32 %v3087, %v3088
  %v3090 = vsel %vm125, %v3006, 0.0
  %v3091 = vadd.f32 %v3089, %v3090
  %v3092 = vsel %vm125, %v3007, 0.0
  %v3093 = vadd.f32 %v3091, %v3092
  %v3094 = vsel %vm125, %v3008, 0.0
  %v3095 = vadd.f32 %v3093, %v3094
  %v3096 = vsel %vm125, %v3009, 0.0
  %v3097 = vadd.f32 %v3095, %v3096
  %v3098 = vsel %vm125, %v3010, 0.0
  %v3099 = vadd.f32 %v3097, %v3098
  %v3100 = vsel %vm125, %v3011, 0.0
  %v3101 = vadd.f32 %v3099, %v3100
  %v3102 = vsel %vm125, %v3012, 0.0
  %v3103 = vadd.f32 %v3101, %v3102
  %v3104 = vsel %vm125, %v3013, 0.0
  %v3105 = vadd.f32 %v3103, %v3104
  %v3106 = vsel %vm125, %v3014, 0.0
  %v3107 = vadd.f32 %v3105, %v3106
  %v3108 = vsel %vm125, %v3015, 0.0
  %v3109 = vadd.f32 %v3107, %v3108
  %v3110 = vsel %vm125, %v3016, 0.0
  %v3111 = vadd.f32 %v3109, %v3110
  %v3112 = vsel %vm125, %v3017, 0.0
  %v3113 = vadd.f32 %v3111, %v3112
  %v3114 = vsel %vm125, %v3018, 0.0
  %v3115 = vadd.f32 %v3113, %v3114
  %v3116 = vsel %vm125, %v3019, 0.0
  %v3117 = vadd.f32 %v3115, %v3116
  %v3118 = vsel %vm125, %v3020, 0.0
  %v3119 = vadd.f32 %v3117, %v3118
  %v3120 = vsel %vm125, %v3021, 0.0
  %v3121 = vadd.f32 %v3119, %v3120
  %v3122 = vsel %vm125, %v3022, 0.0
  %v3123 = vadd.f32 %v3121, %v3122
  %v3124 = vsel %vm125, %v3023, 0.0
  %v3125 = vadd.f32 %v3123, %v3124
  %v3126 = vsel %vm125, %v3024, 0.0
  %v3127 = vadd.f32 %v3125, %v3126
  %v3128 = vsel %vm125, %v3025, 0.0
  %v3129 = vadd.f32 %v3127, %v3128
  %v3130 = vsel %vm125, %v3026, 0.0
  %v3131 = vadd.f32 %v3129, %v3130
  %v3132 = vsel %vm125, %v3027, 0.0
  %v3133 = vadd.f32 %v3131, %v3132
  %v3134 = vsel %vm125, %v3028, 0.0
  %v3135 = vadd.f32 %v3133, %v3134
  %v3136 = vsel %vm125, %v3029, 0.0
  %v3137 = vadd.f32 %v3135, %v3136
  %v3138 = vsel %vm125, %v3030, 0.0
  %v3139 = vadd.f32 %v3137, %v3138
  %v3140 = vsel %vm125, %v3031, 0.0
  %v3141 = vadd.f32 %v3139, %v3140
  %v3142 = vsel %vm125, %v3032, 0.0
  %v3143 = vadd.f32 %v3141, %v3142
  %v3144 = vsel %vm125, %v3033, 0.0
  %v3145 = vadd.f32 %v3143, %v3144
  %v3146 = vsel %vm125, %v3034, 0.0
  %v3147 = vadd.f32 %v3145, %v3146
  %v3148 = vsel %vm125, %v3035, 0.0
  %v3149 = vadd.f32 %v3147, %v3148
  %v3150 = vsel %vm125, %v3036, 0.0
  %v3151 = vadd.f32 %v3149, %v3150
  %v3152 = vsel %vm125, %v3037, 0.0
  %v3153 = vadd.f32 %v3151, %v3152
  %v3154 = vsel %vm125, %v3038, 0.0
  %v3155 = vadd.f32 %v3153, %v3154
  %v3156 = vsel %vm125, %v3039, 0.0
  %v3157 = vadd.f32 %v3155, %v3156
  %v3158 = vsel %vm125, %v3040, 0.0
  %v3159 = vadd.f32 %v3157, %v3158
  %v3160 = vsel %vm125, %v3041, 0.0
  %v3161 = vadd.f32 %v3159, %v3160
  %v3162 = vsel %vm125, %v3042, 0.0
  %v3163 = vadd.f32 %v3161, %v3162
  %v3164 = vsel %vm125, %v3043, 0.0
  %v3165 = vadd.f32 %v3163, %v3164
  %v3166 = vsel %vm125, %v3044, 0.0
  %v3167 = vadd.f32 %v3165, %v3166
  %v3168 = vsel %vm125, %v3045, 0.0
  %v3169 = vadd.f32 %v3167, %v3168
  %v3170 = vsel %vm125, %v3046, 0.0
  %v3171 = vadd.f32 %v3169, %v3170
  %v3172 = vsel %vm125, %v3047, 0.0
  %v3173 = vadd.f32 %v3171, %v3172
  %v3174 = vsel %vm125, %v3048, 0.0
  %v3175 = vadd.f32 %v3173, %v3174
  %v3176 = vrot.slane %v3175, 4
  %v3177 = vadd.f32 %v3175, %v3176
  %v3178 = vrot.slane %v3177, 2
  %v3179 = vadd.f32 %v3177, %v3178
  %v3180 = vrot.slane %v3179, 1
  %v3181 = vadd.f32 %v3179, %v3180
  %v3182 = vmul.f32 %v3181, 0.0078125
  %v3183 = vmul.f32 %v2984, %v2984
  %v3184 = vsub.f32 %v3182, %v3183
  %v3185 = vsub.f32 %v2723, %v2984
  %v3186 = vsub.f32 %v2724, %v2984
  %v3187 = vsub.f32 %v2725, %v2984
  %v3188 = vsub.f32 %v2726, %v2984
  %v3189 = vsub.f32 %v2727, %v2984
  %v3190 = vsub.f32 %v2728, %v2984
  %v3191 = vsub.f32 %v2729, %v2984
  %v3192 = vsub.f32 %v2730, %v2984
  %v3193 = vsub.f32 %v2731, %v2984
  %v3194 = vsub.f32 %v2732, %v2984
  %v3195 = vsub.f32 %v2733, %v2984
  %v3196 = vsub.f32 %v2734, %v2984
  %v3197 = vsub.f32 %v2735, %v2984
  %v3198 = vsub.f32 %v2736, %v2984
  %v3199 = vsub.f32 %v2737, %v2984
  %v3200 = vsub.f32 %v2738, %v2984
  %v3201 = vsub.f32 %v2739, %v2984
  %v3202 = vsub.f32 %v2740, %v2984
  %v3203 = vsub.f32 %v2741, %v2984
  %v3204 = vsub.f32 %v2742, %v2984
  %v3205 = vsub.f32 %v2743, %v2984
  %v3206 = vsub.f32 %v2744, %v2984
  %v3207 = vsub.f32 %v2745, %v2984
  %v3208 = vsub.f32 %v2746, %v2984
  %v3209 = vsub.f32 %v2747, %v2984
  %v3210 = vsub.f32 %v2748, %v2984
  %v3211 = vsub.f32 %v2749, %v2984
  %v3212 = vsub.f32 %v2750, %v2984
  %v3213 = vsub.f32 %v2751, %v2984
  %v3214 = vsub.f32 %v2752, %v2984
  %v3215 = vsub.f32 %v2753, %v2984
  %v3216 = vsub.f32 %v2754, %v2984
  %v3217 = vsub.f32 %v2755, %v2984
  %v3218 = vsub.f32 %v2756, %v2984
  %v3219 = vsub.f32 %v2757, %v2984
  %v3220 = vsub.f32 %v2758, %v2984
  %v3221 = vsub.f32 %v2759, %v2984
  %v3222 = vsub.f32 %v2760, %v2984
  %v3223 = vsub.f32 %v2761, %v2984
  %v3224 = vsub.f32 %v2762, %v2984
  %v3225 = vsub.f32 %v2763, %v2984
  %v3226 = vsub.f32 %v2764, %v2984
  %v3227 = vsub.f32 %v2765, %v2984
  %v3228 = vsub.f32 %v2766, %v2984
  %v3229 = vsub.f32 %v2767, %v2984
  %v3230 = vsub.f32 %v2768, %v2984
  %v3231 = vsub.f32 %v2769, %v2984
  %v3232 = vsub.f32 %v2770, %v2984
  %v3233 = vsub.f32 %v2771, %v2984
  %v3234 = vsub.f32 %v2772, %v2984
  %v3235 = vsub.f32 %v2773, %v2984
  %v3236 = vsub.f32 %v2774, %v2984
  %v3237 = vsub.f32 %v2775, %v2984
  %v3238 = vsub.f32 %v2776, %v2984
  %v3239 = vsub.f32 %v2777, %v2984
  %v3240 = vsub.f32 %v2778, %v2984
  %v3241 = vsub.f32 %v2779, %v2984
  %v3242 = vsub.f32 %v2780, %v2984
  %v3243 = vsub.f32 %v2781, %v2984
  %v3244 = vsub.f32 %v2782, %v2984
  %v3245 = vsub.f32 %v2783, %v2984
  %v3246 = vsub.f32 %v2784, %v2984
  %v3247 = vsub.f32 %v2785, %v2984
  %v3248 = vsub.f32 %v2786, %v2984
  %v3249 = vadd.f32 %v3184, 1e-05
  %v3250 = vrsqrt.pop %v3249
  %v3251 = vmul.f32 %v3185, %v3250
  %v3252 = vmul.f32 %v3186, %v3250
  %v3253 = vmul.f32 %v3187, %v3250
  %v3254 = vmul.f32 %v3188, %v3250
  %v3255 = vmul.f32 %v3189, %v3250
  %v3256 = vmul.f32 %v3190, %v3250
  %v3257 = vmul.f32 %v3191, %v3250
  %v3258 = vmul.f32 %v3192, %v3250
  %v3259 = vmul.f32 %v3193, %v3250
  %v3260 = vmul.f32 %v3194, %v3250
  %v3261 = vmul.f32 %v3195, %v3250
  %v3262 = vmul.f32 %v3196, %v3250
  %v3263 = vmul.f32 %v3197, %v3250
  %v3264 = vmul.f32 %v3198, %v3250
  %v3265 = vmul.f32 %v3199, %v3250
  %v3266 = vmul.f32 %v3200, %v3250
  %v3267 = vmul.f32 %v3201, %v3250
  %v3268 = vmul.f32 %v3202, %v3250
  %v3269 = vmul.f32 %v3203, %v3250
  %v3270 = vmul.f32 %v3204, %v3250
  %v3271 = vmul.f32 %v3205, %v3250
  %v3272 = vmul.f32 %v3206, %v3250
  %v3273 = vmul.f32 %v3207, %v3250
  %v3274 = vmul.f32 %v3208, %v3250
  %v3275 = vmul.f32 %v3209, %v3250
  %v3276 = vmul.f32 %v3210, %v3250
  %v3277 = vmul.f32 %v3211, %v3250
  %v3278 = vmul.f32 %v3212, %v3250
  %v3279 = vmul.f32 %v3213, %v3250
  %v3280 = vmul.f32 %v3214, %v3250
  %v3281 = vmul.f32 %v3215, %v3250
  %v3282 = vmul.f32 %v3216, %v3250
  %v3283 = vmul.f32 %v3217, %v3250
  %v3284 = vmul.f32 %v3218, %v3250
  %v3285 = vmul.f32 %v3219, %v3250
  %v3286 = vmul.f32 %v3220, %v3250
  %v3287 = vmul.f32 %v3221, %v3250
  %v3288 = vmul.f32 %v3222, %v3250
  %v3289 = vmul.f32 %v3223, %v3250
  %v3290 = vmul.f32 %v3224, %v3250
  %v3291 = vmul.f32 %v3225, %v3250
  %v3292 = vmul.f32 %v3226, %v3250
  %v3293 = vmul.f32 %v3227, %v3250
  %v3294 = vmul.f32 %v3228, %v3250
  %v3295 = vmul.f32 %v3229, %v3250
  %v3296 = vmul.f32 %v3230, %v3250
  %v3297 = vmul.f32 %v3231, %v3250
  %v3298 = vmul.f32 %v3232, %v3250
  %v3299 = vmul.f32 %v3233, %v3250
  %v3300 = vmul.f32 %v3234, %v3250
  %v3301 = vmul.f32 %v3235, %v3250
  %v3302 = vmul.f32 %v3236, %v3250
  %v3303 = vmul.f32 %v3237, %v3250
  %v3304 = vmul.f32 %v3238, %v3250
  %v3305 = vmul.f32 %v3239, %v3250
  %v3306 = vmul.f32 %v3240, %v3250
  %v3307 = vmul.f32 %v3241, %v3250
  %v3308 = vmul.f32 %v3242, %v3250
  %v3309 = vmul.f32 %v3243, %v3250
  %v3310 = vmul.f32 %v3244, %v3250
  %v3311 = vmul.f32 %v3245, %v3250
  %v3312 = vmul.f32 %v3246, %v3250
  %v3313 = vmul.f32 %v3247, %v3250
  %v3314 = vmul.f32 %v3248, %v3250
  %v3315 = vlaneseq
  %v3316 = vshrl.u32 %v3315, 7
  %v3317 = vsub.s32 1, %v3316
  %v3318 = vrot.slane %v432, %v3317
  %v3319 = vmul.f32 %v3251, %v3318
  %v3320 = vmul.f32 %v3252, %v3318
  %v3321 = vmul.f32 %v3253, %v3318
  %v3322 = vmul.f32 %v3254, %v3318
  %v3323 = vmul.f32 %v3255, %v3318
  %v3324 = vmul.f32 %v3256, %v3318
  %v3325 = vmul.f32 %v3257, %v3318
  %v3326 = vmul.f32 %v3258, %v3318
  %v3327 = vmul.f32 %v3259, %v3318
  %v3328 = vmul.f32 %v3260, %v3318
  %v3329 = vmul.f32 %v3261, %v3318
  %v3330 = vmul.f32 %v3262, %v3318
  %v3331 = vmul.f32 %v3263, %v3318
  %v3332 = vmul.f32 %v3264, %v3318
  %v3333 = vmul.f32 %v3265, %v3318
  %v3334 = vmul.f32 %v3266, %v3318
  %v3335 = vmul.f32 %v3267, %v3318
  %v3336 = vmul.f32 %v3268, %v3318
  %v3337 = vmul.f32 %v3269, %v3318
  %v3338 = vmul.f32 %v3270, %v3318
  %v3339 = vmul.f32 %v3271, %v3318
  %v3340 = vmul.f32 %v3272, %v3318
  %v3341 = vmul.f32 %v3273, %v3318
  %v3342 = vmul.f32 %v3274, %v3318
  %v3343 = vmul.f32 %v3275, %v3318
  %v3344 = vmul.f32 %v3276, %v3318
  %v3345 = vmul.f32 %v3277, %v3318
  %v3346 = vmul.f32 %v3278, %v3318
  %v3347 = vmul.f32 %v3279, %v3318
  %v3348 = vmul.f32 %v3280, %v3318
  %v3349 = vmul.f32 %v3281, %v3318
  %v3350 = vmul.f32 %v3282, %v3318
  %v3351 = vmul.f32 %v3283, %v3318
  %v3352 = vmul.f32 %v3284, %v3318
  %v3353 = vmul.f32 %v3285, %v3318
  %v3354 = vmul.f32 %v3286, %v3318
  %v3355 = vmul.f32 %v3287, %v3318
  %v3356 = vmul.f32 %v3288, %v3318
  %v3357 = vmul.f32 %v3289, %v3318
  %v3358 = vmul.f32 %v3290, %v3318
  %v3359 = vmul.f32 %v3291, %v3318
  %v3360 = vmul.f32 %v3292, %v3318
  %v3361 = vmul.f32 %v3293, %v3318
  %v3362 = vmul.f32 %v3294, %v3318
  %v3363 = vmul.f32 %v3295, %v3318
  %v3364 = vmul.f32 %v3296, %v3318
  %v3365 = vmul.f32 %v3297, %v3318
  %v3366 = vmul.f32 %v3298, %v3318
  %v3367 = vmul.f32 %v3299, %v3318
  %v3368 = vmul.f32 %v3300, %v3318
  %v3369 = vmul.f32 %v3301, %v3318
  %v3370 = vmul.f32 %v3302, %v3318
  %v3371 = vmul.f32 %v3303, %v3318
  %v3372 = vmul.f32 %v3304, %v3318
  %v3373 = vmul.f32 %v3305, %v3318
  %v3374 = vmul.f32 %v3306, %v3318
  %v3375 = vmul.f32 %v3307, %v3318
  %v3376 = vmul.f32 %v3308, %v3318
  %v3377 = vmul.f32 %v3309, %v3318
  %v3378 = vmul.f32 %v3310, %v3318
  %v3379 = vmul.f32 %v3311, %v3318
  %v3380 = vmul.f32 %v3312, %v3318
  %v3381 = vmul.f32 %v3313, %v3318
  %v3382 = vmul.f32 %v3314, %v3318
  %v3383 = vlaneseq
  %v3384 = vshrl.u32 %v3383, 7
  %v3385 = vsub.s32 2, %v3384
  %v3386 = vrot.slane %v432, %v3385
  %v3387 = vadd.f32 %v3319, %v3386
  %v3388 = vadd.f32 %v3320, %v3386
  %v3389 = vadd.f32 %v3321, %v3386
  %v3390 = vadd.f32 %v3322, %v3386
  %v3391 = vadd.f32 %v3323, %v3386
  %v3392 = vadd.f32 %v3324, %v3386
  %v3393 = vadd.f32 %v3325, %v3386
  %v3394 = vadd.f32 %v3326, %v3386
  %v3395 = vadd.f32 %v3327, %v3386
  %v3396 = vadd.f32 %v3328, %v3386
  %v3397 = vadd.f32 %v3329, %v3386
  %v3398 = vadd.f32 %v3330, %v3386
  %v3399 = vadd.f32 %v3331, %v3386
  %v3400 = vadd.f32 %v3332, %v3386
  %v3401 = vadd.f32 %v3333, %v3386
  %v3402 = vadd.f32 %v3334, %v3386
  %v3403 = vadd.f32 %v3335, %v3386
  %v3404 = vadd.f32 %v3336, %v3386
  %v3405 = vadd.f32 %v3337, %v3386
  %v3406 = vadd.f32 %v3338, %v3386
  %v3407 = vadd.f32 %v3339, %v3386
  %v3408 = vadd.f32 %v3340, %v3386
  %v3409 = vadd.f32 %v3341, %v3386
  %v3410 = vadd.f32 %v3342, %v3386
  %v3411 = vadd.f32 %v3343, %v3386
  %v3412 = vadd.f32 %v3344, %v3386
  %v3413 = vadd.f32 %v3345, %v3386
  %v3414 = vadd.f32 %v3346, %v3386
  %v3415 = vadd.f32 %v3347, %v3386
  %v3416 = vadd.f32 %v3348, %v3386
  %v3417 = vadd.f32 %v3349, %v3386
  %v3418 = vadd.f32 %v3350, %v3386
  %v3419 = vadd.f32 %v3351, %v3386
  %v3420 = vadd.f32 %v3352, %v3386
  %v3421 = vadd.f32 %v3353, %v3386
  %v3422 = vadd.f32 %v3354, %v3386
  %v3423 = vadd.f32 %v3355, %v3386
  %v3424 = vadd.f32 %v3356, %v3386
  %v3425 = vadd.f32 %v3357, %v3386
  %v3426 = vadd.f32 %v3358, %v3386
  %v3427 = vadd.f32 %v3359, %v3386
  %v3428 = vadd.f32 %v3360, %v3386
  %v3429 = vadd.f32 %v3361, %v3386
  %v3430 = vadd.f32 %v3362, %v3386
  %v3431 = vadd.f32 %v3363, %v3386
  %v3432 = vadd.f32 %v3364, %v3386
  %v3433 = vadd.f32 %v3365, %v3386
  %v3434 = vadd.f32 %v3366, %v3386
  %v3435 = vadd.f32 %v3367, %v3386
  %v3436 = vadd.f32 %v3368, %v3386
  %v3437 = vadd.f32 %v3369, %v3386
  %v3438 = vadd.f32 %v3370, %v3386
  %v3439 = vadd.f32 %v3371, %v3386
  %v3440 = vadd.f32 %v3372, %v3386
  %v3441 = vadd.f32 %v3373, %v3386
  %v3442 = vadd.f32 %v3374, %v3386
  %v3443 = vadd.f32 %v3375, %v3386
  %v3444 = vadd.f32 %v3376, %v3386
  %v3445 = vadd.f32 %v3377, %v3386
  %v3446 = vadd.f32 %v3378, %v3386
  %v3447 = vadd.f32 %v3379, %v3386
  %v3448 = vadd.f32 %v3380, %v3386
  %v3449 = vadd.f32 %v3381, %v3386
  %v3450 = vadd.f32 %v3382, %v3386
  %s3451 = scalar_lea.vmem [#allocation2], 88
  %3452 = vst.msk [vmem:[%s3451] sm:$0xff] %vm125, %v3387
  %3453 = vst.msk [vmem:[%s3451 + $0x8] sm:$0xff] %vm125, %v3388
  %3454 = vst.msk [vmem:[%s3451 + $0x10] sm:$0xff] %vm125, %v3389
  %3455 = vst.msk [vmem:[%s3451 + $0x18] sm:$0xff] %vm125, %v3390
  %3456 = vst.msk [vmem:[%s3451 + $0x20] sm:$0xff] %vm125, %v3391
  %3457 = vst.msk [vmem:[%s3451 + $0x28] sm:$0xff] %vm125, %v3392
  %3458 = vst.msk [vmem:[%s3451 + $0x30] sm:$0xff] %vm125, %v3393
  %3459 = vst.msk [vmem:[%s3451 + $0x38] sm:$0xff] %vm125, %v3394
  %s3460 = scalar_lea.vmem [#allocation2], 168
  %3461 = vst.msk [vmem:[%s3460] sm:$0xff] %vm125, %v3395
  %3462 = vst.msk [vmem:[%s3460 + $0x8] sm:$0xff] %vm125, %v3396
  %3463 = vst.msk [vmem:[%s3460 + $0x10] sm:$0xff] %vm125, %v3397
  %3464 = vst.msk [vmem:[%s3460 + $0x18] sm:$0xff] %vm125, %v3398
  %3465 = vst.msk [vmem:[%s3460 + $0x20] sm:$0xff] %vm125, %v3399
  %3466 = vst.msk [vmem:[%s3460 + $0x28] sm:$0xff] %vm125, %v3400
  %3467 = vst.msk [vmem:[%s3460 + $0x30] sm:$0xff] %vm125, %v3401
  %3468 = vst.msk [vmem:[%s3460 + $0x38] sm:$0xff] %vm125, %v3402
  %s3469 = scalar_lea.vmem [#allocation2], 248
  %3470 = vst.msk [vmem:[%s3469] sm:$0xff] %vm125, %v3403
  %3471 = vst.msk [vmem:[%s3469 + $0x8] sm:$0xff] %vm125, %v3404
  %3472 = vst.msk [vmem:[%s3469 + $0x10] sm:$0xff] %vm125, %v3405
  %3473 = vst.msk [vmem:[%s3469 + $0x18] sm:$0xff] %vm125, %v3406
  %3474 = vst.msk [vmem:[%s3469 + $0x20] sm:$0xff] %vm125, %v3407
  %3475 = vst.msk [vmem:[%s3469 + $0x28] sm:$0xff] %vm125, %v3408
  %3476 = vst.msk [vmem:[%s3469 + $0x30] sm:$0xff] %vm125, %v3409
  %3477 = vst.msk [vmem:[%s3469 + $0x38] sm:$0xff] %vm125, %v3410
  %s3478 = scalar_lea.vmem [#allocation2], 328
  %3479 = vst.msk [vmem:[%s3478] sm:$0xff] %vm125, %v3411
  %3480 = vst.msk [vmem:[%s3478 + $0x8] sm:$0xff] %vm125, %v3412
  %3481 = vst.msk [vmem:[%s3478 + $0x10] sm:$0xff] %vm125, %v3413
  %3482 = vst.msk [vmem:[%s3478 + $0x18] sm:$0xff] %vm125, %v3414
  %3483 = vst.msk [vmem:[%s3478 + $0x20] sm:$0xff] %vm125, %v3415
  %3484 = vst.msk [vmem:[%s3478 + $0x28] sm:$0xff] %vm125, %v3416
  %3485 = vst.msk [vmem:[%s3478 + $0x30] sm:$0xff] %vm125, %v3417
  %3486 = vst.msk [vmem:[%s3478 + $0x38] sm:$0xff] %vm125, %v3418
  %s3487 = scalar_lea.vmem [#allocation2], 408
  %3488 = vst.msk [vmem:[%s3487] sm:$0xff] %vm125, %v3419
  %3489 = vst.msk [vmem:[%s3487 + $0x8] sm:$0xff] %vm125, %v3420
  %3490 = vst.msk [vmem:[%s3487 + $0x10] sm:$0xff] %vm125, %v3421
  %3491 = vst.msk [vmem:[%s3487 + $0x18] sm:$0xff] %vm125, %v3422
  %3492 = vst.msk [vmem:[%s3487 + $0x20] sm:$0xff] %vm125, %v3423
  %3493 = vst.msk [vmem:[%s3487 + $0x28] sm:$0xff] %vm125, %v3424
  %3494 = vst.msk [vmem:[%s3487 + $0x30] sm:$0xff] %vm125, %v3425
  %3495 = vst.msk [vmem:[%s3487 + $0x38] sm:$0xff] %vm125, %v3426
  %s3496 = scalar_lea.vmem [#allocation2], 488
  %3497 = vst.msk [vmem:[%s3496] sm:$0xff] %vm125, %v3427
  %3498 = vst.msk [vmem:[%s3496 + $0x8] sm:$0xff] %vm125, %v3428
  %3499 = vst.msk [vmem:[%s3496 + $0x10] sm:$0xff] %vm125, %v3429
  %3500 = vst.msk [vmem:[%s3496 + $0x18] sm:$0xff] %vm125, %v3430
  %3501 = vst.msk [vmem:[%s3496 + $0x20] sm:$0xff] %vm125, %v3431
  %3502 = vst.msk [vmem:[%s3496 + $0x28] sm:$0xff] %vm125, %v3432
  %3503 = vst.msk [vmem:[%s3496 + $0x30] sm:$0xff] %vm125, %v3433
  %3504 = vst.msk [vmem:[%s3496 + $0x38] sm:$0xff] %vm125, %v3434
  %s3505 = scalar_lea.vmem [#allocation2], 568
  %3506 = vst.msk [vmem:[%s3505] sm:$0xff] %vm125, %v3435
  %3507 = vst.msk [vmem:[%s3505 + $0x8] sm:$0xff] %vm125, %v3436
  %3508 = vst.msk [vmem:[%s3505 + $0x10] sm:$0xff] %vm125, %v3437
  %3509 = vst.msk [vmem:[%s3505 + $0x18] sm:$0xff] %vm125, %v3438
  %3510 = vst.msk [vmem:[%s3505 + $0x20] sm:$0xff] %vm125, %v3439
  %3511 = vst.msk [vmem:[%s3505 + $0x28] sm:$0xff] %vm125, %v3440
  %3512 = vst.msk [vmem:[%s3505 + $0x30] sm:$0xff] %vm125, %v3441
  %3513 = vst.msk [vmem:[%s3505 + $0x38] sm:$0xff] %vm125, %v3442
  %s3514 = scalar_lea.vmem [#allocation2], 648
  %3515 = vst.msk [vmem:[%s3514] sm:$0xff] %vm125, %v3443
  %3516 = vst.msk [vmem:[%s3514 + $0x8] sm:$0xff] %vm125, %v3444
  %3517 = vst.msk [vmem:[%s3514 + $0x10] sm:$0xff] %vm125, %v3445
  %3518 = vst.msk [vmem:[%s3514 + $0x18] sm:$0xff] %vm125, %v3446
  %3519 = vst.msk [vmem:[%s3514 + $0x20] sm:$0xff] %vm125, %v3447
  %3520 = vst.msk [vmem:[%s3514 + $0x28] sm:$0xff] %vm125, %v3448
  %3521 = vst.msk [vmem:[%s3514 + $0x30] sm:$0xff] %vm125, %v3449
  %3522 = vst.msk [vmem:[%s3514 + $0x38] sm:$0xff] %vm125, %v3450
  %v3523 = vld [vmem:[#allocation2] sm:$0xff]
  %v3524 = vld [vmem:[#allocation2 + $0x8] sm:$0xff]
  %v3525 = vld [vmem:[#allocation2 + $0x10] sm:$0xff]
  %v3526 = vld [vmem:[#allocation2 + $0x18] sm:$0xff]
  %v3527 = vld [vmem:[#allocation2 + $0x20] sm:$0xff]
  %v3528 = vld [vmem:[#allocation2 + $0x28] sm:$0xff]
  %v3529 = vld [vmem:[#allocation2 + $0x30] sm:$0xff]
  %v3530 = vld [vmem:[#allocation2 + $0x38] sm:$0xff]
  %v3531 = vld [vmem:[#allocation2 + $0x40] sm:$0xff]
  %v3532 = vld [vmem:[#allocation2 + $0x48] sm:$0xff]
  %v3533 = vld [vmem:[#allocation2 + $0x50] sm:$0xff]
  %v3534 = vld [vmem:[#allocation2 + $0x58] sm:$0xff]
  %v3535 = vld [vmem:[#allocation2 + $0x60] sm:$0xff]
  %v3536 = vld [vmem:[#allocation2 + $0x68] sm:$0xff]
  %v3537 = vld [vmem:[#allocation2 + $0x70] sm:$0xff]
  %v3538 = vld [vmem:[#allocation2 + $0x78] sm:$0xff]
  %v3539 = vld [vmem:[#allocation2 + $0x80] sm:$0xff]
  %v3540 = vld [vmem:[#allocation2 + $0x88] sm:$0xff]
  %v3541 = vld [vmem:[#allocation2 + $0x90] sm:$0xff]
  %v3542 = vld [vmem:[#allocation2 + $0x98] sm:$0xff]
  %v3543 = vld [vmem:[#allocation2 + $0xa0] sm:$0xff]
  %v3544 = vld [vmem:[#allocation2 + $0xa8] sm:$0xff]
  %v3545 = vld [vmem:[#allocation2 + $0xb0] sm:$0xff]
  %v3546 = vld [vmem:[#allocation2 + $0xb8] sm:$0xff]
  %v3547 = vld [vmem:[#allocation2 + $0xc0] sm:$0xff]
  %v3548 = vld [vmem:[#allocation2 + $0xc8] sm:$0xff]
  %v3549 = vld [vmem:[#allocation2 + $0xd0] sm:$0xff]
  %v3550 = vld [vmem:[#allocation2 + $0xd8] sm:$0xff]
  %v3551 = vld [vmem:[#allocation2 + $0xe0] sm:$0xff]
  %v3552 = vld [vmem:[#allocation2 + $0xe8] sm:$0xff]
  %v3553 = vld [vmem:[#allocation2 + $0xf0] sm:$0xff]
  %v3554 = vld [vmem:[#allocation2 + $0xf8] sm:$0xff]
  %v3555 = vld [vmem:[#allocation2 + $0x100] sm:$0xff]
  %v3556 = vld [vmem:[#allocation2 + $0x108] sm:$0xff]
  %v3557 = vld [vmem:[#allocation2 + $0x110] sm:$0xff]
  %v3558 = vld [vmem:[#allocation2 + $0x118] sm:$0xff]
  %v3559 = vld [vmem:[#allocation2 + $0x120] sm:$0xff]
  %v3560 = vld [vmem:[#allocation2 + $0x128] sm:$0xff]
  %v3561 = vld [vmem:[#allocation2 + $0x130] sm:$0xff]
  %v3562 = vld [vmem:[#allocation2 + $0x138] sm:$0xff]
  %v3563 = vld [vmem:[#allocation2 + $0x140] sm:$0xff]
  %v3564 = vld [vmem:[#allocation2 + $0x148] sm:$0xff]
  %v3565 = vld [vmem:[#allocation2 + $0x150] sm:$0xff]
  %v3566 = vld [vmem:[#allocation2 + $0x158] sm:$0xff]
  %v3567 = vld [vmem:[#allocation2 + $0x160] sm:$0xff]
  %v3568 = vld [vmem:[#allocation2 + $0x168] sm:$0xff]
  %v3569 = vld [vmem:[#allocation2 + $0x170] sm:$0xff]
  %v3570 = vld [vmem:[#allocation2 + $0x178] sm:$0xff]
  %v3571 = vld [vmem:[#allocation2 + $0x180] sm:$0xff]
  %v3572 = vld [vmem:[#allocation2 + $0x188] sm:$0xff]
  %v3573 = vld [vmem:[#allocation2 + $0x190] sm:$0xff]
  %v3574 = vld [vmem:[#allocation2 + $0x198] sm:$0xff]
  %v3575 = vld [vmem:[#allocation2 + $0x1a0] sm:$0xff]
  %v3576 = vld [vmem:[#allocation2 + $0x1a8] sm:$0xff]
  %v3577 = vld [vmem:[#allocation2 + $0x1b0] sm:$0xff]
  %v3578 = vld [vmem:[#allocation2 + $0x1b8] sm:$0xff]
  %v3579 = vld [vmem:[#allocation2 + $0x1c0] sm:$0xff]
  %v3580 = vld [vmem:[#allocation2 + $0x1c8] sm:$0xff]
  %v3581 = vld [vmem:[#allocation2 + $0x1d0] sm:$0xff]
  %v3582 = vld [vmem:[#allocation2 + $0x1d8] sm:$0xff]
  %v3583 = vld [vmem:[#allocation2 + $0x1e0] sm:$0xff]
  %v3584 = vld [vmem:[#allocation2 + $0x1e8] sm:$0xff]
  %v3585 = vld [vmem:[#allocation2 + $0x1f0] sm:$0xff]
  %v3586 = vld [vmem:[#allocation2 + $0x1f8] sm:$0xff]
  %v3587 = vld [vmem:[#allocation2 + $0x200] sm:$0xff]
  %v3588 = vld [vmem:[#allocation2 + $0x208] sm:$0xff]
  %v3589 = vld [vmem:[#allocation2 + $0x210] sm:$0xff]
  %v3590 = vld [vmem:[#allocation2 + $0x218] sm:$0xff]
  %v3591 = vld [vmem:[#allocation2 + $0x220] sm:$0xff]
  %v3592 = vld [vmem:[#allocation2 + $0x228] sm:$0xff]
  %v3593 = vld [vmem:[#allocation2 + $0x230] sm:$0xff]
  %v3594 = vld [vmem:[#allocation2 + $0x238] sm:$0xff]
  %v3595 = vld [vmem:[#allocation2 + $0x240] sm:$0xff]
  %v3596 = vld [vmem:[#allocation2 + $0x248] sm:$0xff]
  %v3597 = vld [vmem:[#allocation2 + $0x250] sm:$0xff]
  %v3598 = vld [vmem:[#allocation2 + $0x258] sm:$0xff]
  %v3599 = vld [vmem:[#allocation2 + $0x260] sm:$0xff]
  %v3600 = vld [vmem:[#allocation2 + $0x268] sm:$0xff]
  %v3601 = vld [vmem:[#allocation2 + $0x270] sm:$0xff]
  %v3602 = vld [vmem:[#allocation2 + $0x278] sm:$0xff]
  %v3603 = vpack.c.bf16 %v3524, %v3523
  %v3604 = vpack.c.bf16 %v3526, %v3525
  %v3605 = vpack.c.bf16 %v3528, %v3527
  %v3606 = vpack.c.bf16 %v3530, %v3529
  %v3607 = vpack.c.bf16 %v3532, %v3531
  %v3608 = vpack.c.bf16 %v3534, %v3533
  %v3609 = vpack.c.bf16 %v3536, %v3535
  %v3610 = vpack.c.bf16 %v3538, %v3537
  %v3611 = vpack.c.bf16 %v3540, %v3539
  %v3612 = vpack.c.bf16 %v3542, %v3541
  %v3613 = vpack.c.bf16 %v3544, %v3543
  %v3614 = vpack.c.bf16 %v3546, %v3545
  %v3615 = vpack.c.bf16 %v3548, %v3547
  %v3616 = vpack.c.bf16 %v3550, %v3549
  %v3617 = vpack.c.bf16 %v3552, %v3551
  %v3618 = vpack.c.bf16 %v3554, %v3553
  %v3619 = vpack.c.bf16 %v3556, %v3555
  %v3620 = vpack.c.bf16 %v3558, %v3557
  %v3621 = vpack.c.bf16 %v3560, %v3559
  %v3622 = vpack.c.bf16 %v3562, %v3561
  %v3623 = vpack.c.bf16 %v3564, %v3563
  %v3624 = vpack.c.bf16 %v3566, %v3565
  %v3625 = vpack.c.bf16 %v3568, %v3567
  %v3626 = vpack.c.bf16 %v3570, %v3569
  %v3627 = vpack.c.bf16 %v3572, %v3571
  %v3628 = vpack.c.bf16 %v3574, %v3573
  %v3629 = vpack.c.bf16 %v3576, %v3575
  %v3630 = vpack.c.bf16 %v3578, %v3577
  %v3631 = vpack.c.bf16 %v3580, %v3579
  %v3632 = vpack.c.bf16 %v3582, %v3581
  %v3633 = vpack.c.bf16 %v3584, %v3583
  %v3634 = vpack.c.bf16 %v3586, %v3585
  %v3635 = vpack.c.bf16 %v3588, %v3587
  %v3636 = vpack.c.bf16 %v3590, %v3589
  %v3637 = vpack.c.bf16 %v3592, %v3591
  %v3638 = vpack.c.bf16 %v3594, %v3593
  %v3639 = vpack.c.bf16 %v3596, %v3595
  %v3640 = vpack.c.bf16 %v3598, %v3597
  %v3641 = vpack.c.bf16 %v3600, %v3599
  %v3642 = vpack.c.bf16 %v3602, %v3601
  %v3643 = vld [vmem:[%s6] sm:$0xf]
  %v3644 = vld [vmem:[%s6 + $0x4] sm:$0xf]
  %s3645 = scalar_lea.vmem [#allocation2], 8
  %v3646 = vld [vmem:[%s3645] sm:$0xff]
  %v3647 = vld [vmem:[%s3645 + $0x8] sm:$0xff]
  %v3648 = vld [vmem:[%s3645 + $0x10] sm:$0xff]
  %v3649 = vld [vmem:[%s3645 + $0x18] sm:$0xff]
  %v3650 = vld [vmem:[%s3645 + $0x20] sm:$0xff]
  %v3651 = vld [vmem:[%s3645 + $0x28] sm:$0xff]
  %v3652 = vld [vmem:[%s3645 + $0x30] sm:$0xff]
  %v3653 = vld [vmem:[%s3645 + $0x38] sm:$0xff]
  %v3654 = vld [vmem:[%s3645 + $0x40] sm:$0xff]
  %v3655 = vld [vmem:[%s3645 + $0x48] sm:$0xff]
  %v3656 = vld [vmem:[%s3645 + $0x50] sm:$0xff]
  %v3657 = vld [vmem:[%s3645 + $0x58] sm:$0xff]
  %v3658 = vld [vmem:[%s3645 + $0x60] sm:$0xff]
  %v3659 = vld [vmem:[%s3645 + $0x68] sm:$0xff]
  %v3660 = vld [vmem:[%s3645 + $0x70] sm:$0xff]
  %v3661 = vld [vmem:[%s3645 + $0x78] sm:$0xff]
  %v3662 = vld [vmem:[%s3645 + $0x80] sm:$0xff]
  %v3663 = vld [vmem:[%s3645 + $0x88] sm:$0xff]
  %v3664 = vld [vmem:[%s3645 + $0x90] sm:$0xff]
  %v3665 = vld [vmem:[%s3645 + $0x98] sm:$0xff]
  %v3666 = vld [vmem:[%s3645 + $0xa0] sm:$0xff]
  %v3667 = vld [vmem:[%s3645 + $0xa8] sm:$0xff]
  %v3668 = vld [vmem:[%s3645 + $0xb0] sm:$0xff]
  %v3669 = vld [vmem:[%s3645 + $0xb8] sm:$0xff]
  %v3670 = vld [vmem:[%s3645 + $0xc0] sm:$0xff]
  %v3671 = vld [vmem:[%s3645 + $0xc8] sm:$0xff]
  %v3672 = vld [vmem:[%s3645 + $0xd0] sm:$0xff]
  %v3673 = vld [vmem:[%s3645 + $0xd8] sm:$0xff]
  %v3674 = vld [vmem:[%s3645 + $0xe0] sm:$0xff]
  %v3675 = vld [vmem:[%s3645 + $0xe8] sm:$0xff]
  %v3676 = vld [vmem:[%s3645 + $0xf0] sm:$0xff]
  %v3677 = vld [vmem:[%s3645 + $0xf8] sm:$0xff]
  %v3678 = vld [vmem:[%s3645 + $0x100] sm:$0xff]
  %v3679 = vld [vmem:[%s3645 + $0x108] sm:$0xff]
  %v3680 = vld [vmem:[%s3645 + $0x110] sm:$0xff]
  %v3681 = vld [vmem:[%s3645 + $0x118] sm:$0xff]
  %v3682 = vld [vmem:[%s3645 + $0x120] sm:$0xff]
  %v3683 = vld [vmem:[%s3645 + $0x128] sm:$0xff]
  %v3684 = vld [vmem:[%s3645 + $0x130] sm:$0xff]
  %v3685 = vld [vmem:[%s3645 + $0x138] sm:$0xff]
  %v3686 = vld [vmem:[%s3645 + $0x140] sm:$0xff]
  %v3687 = vld [vmem:[%s3645 + $0x148] sm:$0xff]
  %v3688 = vld [vmem:[%s3645 + $0x150] sm:$0xff]
  %v3689 = vld [vmem:[%s3645 + $0x158] sm:$0xff]
  %v3690 = vld [vmem:[%s3645 + $0x160] sm:$0xff]
  %v3691 = vld [vmem:[%s3645 + $0x168] sm:$0xff]
  %v3692 = vld [vmem:[%s3645 + $0x170] sm:$0xff]
  %v3693 = vld [vmem:[%s3645 + $0x178] sm:$0xff]
  %v3694 = vld [vmem:[%s3645 + $0x180] sm:$0xff]
  %v3695 = vld [vmem:[%s3645 + $0x188] sm:$0xff]
  %v3696 = vld [vmem:[%s3645 + $0x190] sm:$0xff]
  %v3697 = vld [vmem:[%s3645 + $0x198] sm:$0xff]
  %v3698 = vld [vmem:[%s3645 + $0x1a0] sm:$0xff]
  %v3699 = vld [vmem:[%s3645 + $0x1a8] sm:$0xff]
  %v3700 = vld [vmem:[%s3645 + $0x1b0] sm:$0xff]
  %v3701 = vld [vmem:[%s3645 + $0x1b8] sm:$0xff]
  %v3702 = vld [vmem:[%s3645 + $0x1c0] sm:$0xff]
  %v3703 = vld [vmem:[%s3645 + $0x1c8] sm:$0xff]
  %v3704 = vld [vmem:[%s3645 + $0x1d0] sm:$0xff]
  %v3705 = vld [vmem:[%s3645 + $0x1d8] sm:$0xff]
  %v3706 = vld [vmem:[%s3645 + $0x1e0] sm:$0xff]
  %v3707 = vld [vmem:[%s3645 + $0x1e8] sm:$0xff]
  %v3708 = vld [vmem:[%s3645 + $0x1f0] sm:$0xff]
  %v3709 = vld [vmem:[%s3645 + $0x1f8] sm:$0xff]
  %v3710 = vld [vmem:[%s3645 + $0x200] sm:$0xff]
  %v3711 = vld [vmem:[%s3645 + $0x208] sm:$0xff]
  %v3712 = vld [vmem:[%s3645 + $0x210] sm:$0xff]
  %v3713 = vld [vmem:[%s3645 + $0x218] sm:$0xff]
  %v3714 = vld [vmem:[%s3645 + $0x220] sm:$0xff]
  %v3715 = vld [vmem:[%s3645 + $0x228] sm:$0xff]
  %v3716 = vld [vmem:[%s3645 + $0x230] sm:$0xff]
  %v3717 = vld [vmem:[%s3645 + $0x238] sm:$0xff]
  %v3718 = vld [vmem:[%s3645 + $0x240] sm:$0xff]
  %v3719 = vld [vmem:[%s3645 + $0x248] sm:$0xff]
  %v3720 = vld [vmem:[%s3645 + $0x250] sm:$0xff]
  %v3721 = vld [vmem:[%s3645 + $0x258] sm:$0xff]
  %v3722 = vld [vmem:[%s3645 + $0x260] sm:$0xff]
  %v3723 = vld [vmem:[%s3645 + $0x268] sm:$0xff]
  %v3724 = vld [vmem:[%s3645 + $0x270] sm:$0xff]
  %v3725 = vld [vmem:[%s3645 + $0x278] sm:$0xff]
  %v3726 = vpack.c.bf16 %v3647, %v3646
  %v3727 = vpack.c.bf16 %v3649, %v3648
  %v3728 = vpack.c.bf16 %v3651, %v3650
  %v3729 = vpack.c.bf16 %v3653, %v3652
  %v3730 = vpack.c.bf16 %v3655, %v3654
  %v3731 = vpack.c.bf16 %v3657, %v3656
  %v3732 = vpack.c.bf16 %v3659, %v3658
  %v3733 = vpack.c.bf16 %v3661, %v3660
  %v3734 = vpack.c.bf16 %v3663, %v3662
  %v3735 = vpack.c.bf16 %v3665, %v3664
  %v3736 = vpack.c.bf16 %v3667, %v3666
  %v3737 = vpack.c.bf16 %v3669, %v3668
  %v3738 = vpack.c.bf16 %v3671, %v3670
  %v3739 = vpack.c.bf16 %v3673, %v3672
  %v3740 = vpack.c.bf16 %v3675, %v3674
  %v3741 = vpack.c.bf16 %v3677, %v3676
  %v3742 = vpack.c.bf16 %v3679, %v3678
  %v3743 = vpack.c.bf16 %v3681, %v3680
  %v3744 = vpack.c.bf16 %v3683, %v3682
  %v3745 = vpack.c.bf16 %v3685, %v3684
  %v3746 = vpack.c.bf16 %v3687, %v3686
  %v3747 = vpack.c.bf16 %v3689, %v3688
  %v3748 = vpack.c.bf16 %v3691, %v3690
  %v3749 = vpack.c.bf16 %v3693, %v3692
  %v3750 = vpack.c.bf16 %v3695, %v3694
  %v3751 = vpack.c.bf16 %v3697, %v3696
  %v3752 = vpack.c.bf16 %v3699, %v3698
  %v3753 = vpack.c.bf16 %v3701, %v3700
  %v3754 = vpack.c.bf16 %v3703, %v3702
  %v3755 = vpack.c.bf16 %v3705, %v3704
  %v3756 = vpack.c.bf16 %v3707, %v3706
  %v3757 = vpack.c.bf16 %v3709, %v3708
  %v3758 = vpack.c.bf16 %v3711, %v3710
  %v3759 = vpack.c.bf16 %v3713, %v3712
  %v3760 = vpack.c.bf16 %v3715, %v3714
  %v3761 = vpack.c.bf16 %v3717, %v3716
  %v3762 = vpack.c.bf16 %v3719, %v3718
  %v3763 = vpack.c.bf16 %v3721, %v3720
  %v3764 = vpack.c.bf16 %v3723, %v3722
  %v3765 = vpack.c.bf16 %v3725, %v3724
  %s3766 = scalar_lea.vmem %s6, 8
  %v3767 = vld [vmem:[%s3766] sm:$0xf]
  %v3768 = vld [vmem:[%s3766 + $0x4] sm:$0xf]
  %v3771 = vunpack.c.l.b16 %v3767
  %v3772 = vunpack.c.l.b16 %v3768
  %v3773 = vpack.c.b16 %v3772, %v3771
  %v3776 = vsel %vm125, %v3726, 0
  %v3779 = vsel %vm125, %v3727, 0
  %v3782 = vsel %vm125, %v3728, 0
  %v3785 = vsel %vm125, %v3729, 0
  %v3788 = vsel %vm125, %v3730, 0
  %v3791 = vsel %vm125, %v3731, 0
  %v3794 = vsel %vm125, %v3732, 0
  %v3797 = vsel %vm125, %v3733, 0
  %v3800 = vsel %vm125, %v3734, 0
  %v3803 = vsel %vm125, %v3735, 0
  %v3806 = vsel %vm125, %v3736, 0
  %v3809 = vsel %vm125, %v3737, 0
  %v3812 = vsel %vm125, %v3738, 0
  %v3815 = vsel %vm125, %v3739, 0
  %v3818 = vsel %vm125, %v3740, 0
  %v3821 = vsel %vm125, %v3741, 0
  %v3824 = vsel %vm125, %v3742, 0
  %v3827 = vsel %vm125, %v3743, 0
  %v3830 = vsel %vm125, %v3744, 0
  %v3833 = vsel %vm125, %v3745, 0
  %v3836 = vsel %vm125, %v3746, 0
  %v3839 = vsel %vm125, %v3747, 0
  %v3842 = vsel %vm125, %v3748, 0
  %v3845 = vsel %vm125, %v3749, 0
  %v3848 = vsel %vm125, %v3750, 0
  %v3851 = vsel %vm125, %v3751, 0
  %v3854 = vsel %vm125, %v3752, 0
  %v3857 = vsel %vm125, %v3753, 0
  %v3860 = vsel %vm125, %v3754, 0
  %v3863 = vsel %vm125, %v3755, 0
  %v3866 = vsel %vm125, %v3756, 0
  %v3869 = vsel %vm125, %v3757, 0
  %v3872 = vsel %vm125, %v3758, 0
  %v3875 = vsel %vm125, %v3759, 0
  %v3878 = vsel %vm125, %v3760, 0
  %v3881 = vsel %vm125, %v3761, 0
  %v3884 = vsel %vm125, %v3762, 0
  %v3887 = vsel %vm125, %v3763, 0
  %v3890 = vsel %vm125, %v3764, 0
  %v3893 = vsel %vm125, %v3765, 0
  %3895 = vmatprep.subr.bf16.mxu0 0
  %3896 = vmatpush1.bf16.msra.mxu0 0
  %3897 = vmatprep.subr.bf16.mxu0 0
  %3898 = vmatpush1.bf16.msra.mxu0 0
  %3899 = vmatprep.subr.bf16.mxu0 0
  %3900 = vmatpush1.bf16.msra.mxu0 0
  %3901 = vmatprep.subr.bf16.mxu0 0
  %3902 = vmatpush1.bf16.msra.mxu0 0
  %3903 = vmatprep.subr.bf16.mxu0 0
  %3904 = vmatpush1.bf16.msra.mxu0 0
  %3905 = vmatprep.subr.bf16.mxu0 0
  %3906 = vmatpush1.bf16.msra.mxu0 0
  %3907 = vmatprep.subr.bf16.mxu0 0
  %3908 = vmatpush1.bf16.msra.mxu0 0
  %3909 = vmatprep.subr.bf16.mxu0 0
  %3910 = vmatpush1.bf16.msra.mxu0 %v3773
  %3911 = vmatprep.subr.bf16.mxu0 0
  %3912 = vmatpush2.bf16.msra.mxu0 0
  %3913 = vmatprep.subr.bf16.mxu0 0
  %3914 = vmatpush2.bf16.msra.mxu0 0
  %3915 = vmatprep.subr.bf16.mxu0 0
  %3916 = vmatpush2.bf16.msra.mxu0 0
  %3917 = vmatprep.subr.bf16.mxu0 0
  %3918 = vmatpush2.bf16.msra.mxu0 0
  %3919 = vmatprep.subr.bf16.mxu0 0
  %3920 = vmatpush2.bf16.msra.mxu0 0
  %3921 = vmatprep.subr.bf16.mxu0 0
  %3922 = vmatpush2.bf16.msra.mxu0 0
  %3923 = vmatprep.subr.bf16.mxu0 0
  %3924 = vmatpush2.bf16.msra.mxu0 0
  %3925 = vmatprep.subr.bf16.mxu0 0
  %3926 = vmatpush2.bf16.msra.mxu0 0
  %3927 = vmatprep.mubr.bf16.mxu0 0
  %3928 = vmatmul.mubr.bf16.gmra.mxu0 %v3776
  %v3929 = vpop.f32.mrf.mxu0
  %v3930 = vadd.f32 0.0, %v3929
  %v3931 = vpop.f32.mrf.mxu0
  %v3932 = vpop.f32.mrf.mxu0
  %v3933 = vadd.f32 0.0, %v3932
  %v3934 = vpop.f32.mrf.mxu0
  %3935 = vmatprep.mubr.bf16.mxu0 0
  %3936 = vmatmul.mubr.bf16.gmra.mxu0 %v3779
  %v3937 = vpop.f32.mrf.mxu0
  %v3938 = vadd.f32 0.0, %v3937
  %v3939 = vpop.f32.mrf.mxu0
  %v3940 = vpop.f32.mrf.mxu0
  %v3941 = vadd.f32 0.0, %v3940
  %v3942 = vpop.f32.mrf.mxu0
  %3943 = vmatprep.mubr.bf16.mxu0 0
  %3944 = vmatmul.mubr.bf16.gmra.mxu0 %v3782
  %v3945 = vpop.f32.mrf.mxu0
  %v3946 = vadd.f32 0.0, %v3945
  %v3947 = vpop.f32.mrf.mxu0
  %v3948 = vpop.f32.mrf.mxu0
  %v3949 = vadd.f32 0.0, %v3948
  %v3950 = vpop.f32.mrf.mxu0
  %3951 = vmatprep.mubr.bf16.mxu0 0
  %3952 = vmatmul.mubr.bf16.gmra.mxu0 %v3785
  %v3953 = vpop.f32.mrf.mxu0
  %v3954 = vadd.f32 0.0, %v3953
  %v3955 = vpop.f32.mrf.mxu0
  %v3956 = vpop.f32.mrf.mxu0
  %v3957 = vadd.f32 0.0, %v3956
  %v3958 = vpop.f32.mrf.mxu0
  %3959 = vmatprep.mubr.bf16.mxu0 0
  %3960 = vmatmul.mubr.bf16.gmra.mxu0 %v3788
  %v3961 = vpop.f32.mrf.mxu0
  %v3962 = vpop.f32.mrf.mxu0
  %v3963 = vpop.f32.mrf.mxu0
  %v3964 = vpop.f32.mrf.mxu0
  %3965 = vmatprep.mubr.bf16.mxu0 0
  %3966 = vmatmul.mubr.bf16.gmra.mxu0 %v3791
  %v3967 = vpop.f32.mrf.mxu0
  %v3968 = vadd.f32 0.0, %v3967
  %v3969 = vpop.f32.mrf.mxu0
  %v3970 = vpop.f32.mrf.mxu0
  %v3971 = vadd.f32 0.0, %v3970
  %v3972 = vpop.f32.mrf.mxu0
  %3973 = vmatprep.mubr.bf16.mxu0 0
  %3974 = vmatmul.mubr.bf16.gmra.mxu0 %v3794
  %v3975 = vpop.f32.mrf.mxu0
  %v3976 = vadd.f32 0.0, %v3975
  %v3977 = vpop.f32.mrf.mxu0
  %v3978 = vpop.f32.mrf.mxu0
  %v3979 = vadd.f32 0.0, %v3978
  %v3980 = vpop.f32.mrf.mxu0
  %3981 = vmatprep.mubr.bf16.mxu0 0
  %3982 = vmatmul.mubr.bf16.gmra.mxu0 %v3797
  %v3983 = vpop.f32.mrf.mxu0
  %v3984 = vadd.f32 0.0, %v3983
  %v3985 = vpop.f32.mrf.mxu0
  %v3986 = vpop.f32.mrf.mxu0
  %v3987 = vadd.f32 0.0, %v3986
  %v3988 = vpop.f32.mrf.mxu0
  %3989 = vmatprep.mubr.bf16.mxu0 0
  %3990 = vmatmul.mubr.bf16.gmra.mxu0 %v3800
  %v3991 = vpop.f32.mrf.mxu0
  %v3992 = vadd.f32 0.0, %v3991
  %v3993 = vpop.f32.mrf.mxu0
  %v3994 = vpop.f32.mrf.mxu0
  %v3995 = vadd.f32 0.0, %v3994
  %v3996 = vpop.f32.mrf.mxu0
  %3997 = vmatprep.mubr.bf16.mxu0 0
  %3998 = vmatmul.mubr.bf16.gmra.mxu0 %v3803
  %v3999 = vpop.f32.mrf.mxu0
  %v4000 = vpop.f32.mrf.mxu0
  %v4001 = vpop.f32.mrf.mxu0
  %v4002 = vpop.f32.mrf.mxu0
  %4003 = vmatprep.mubr.bf16.mxu0 0
  %4004 = vmatmul.mubr.bf16.gmra.mxu0 %v3806
  %v4005 = vpop.f32.mrf.mxu0
  %v4006 = vadd.f32 0.0, %v4005
  %v4007 = vpop.f32.mrf.mxu0
  %v4008 = vpop.f32.mrf.mxu0
  %v4009 = vadd.f32 0.0, %v4008
  %v4010 = vpop.f32.mrf.mxu0
  %4011 = vmatprep.mubr.bf16.mxu0 0
  %4012 = vmatmul.mubr.bf16.gmra.mxu0 %v3809
  %v4013 = vpop.f32.mrf.mxu0
  %v4014 = vadd.f32 0.0, %v4013
  %v4015 = vpop.f32.mrf.mxu0
  %v4016 = vpop.f32.mrf.mxu0
  %v4017 = vadd.f32 0.0, %v4016
  %v4018 = vpop.f32.mrf.mxu0
  %4019 = vmatprep.mubr.bf16.mxu0 0
  %4020 = vmatmul.mubr.bf16.gmra.mxu0 %v3812
  %v4021 = vpop.f32.mrf.mxu0
  %v4022 = vadd.f32 0.0, %v4021
  %v4023 = vpop.f32.mrf.mxu0
  %v4024 = vpop.f32.mrf.mxu0
  %v4025 = vadd.f32 0.0, %v4024
  %v4026 = vpop.f32.mrf.mxu0
  %4027 = vmatprep.mubr.bf16.mxu0 0
  %4028 = vmatmul.mubr.bf16.gmra.mxu0 %v3815
  %v4029 = vpop.f32.mrf.mxu0
  %v4030 = vadd.f32 0.0, %v4029
  %v4031 = vpop.f32.mrf.mxu0
  %v4032 = vpop.f32.mrf.mxu0
  %v4033 = vadd.f32 0.0, %v4032
  %v4034 = vpop.f32.mrf.mxu0
  %4035 = vmatprep.mubr.bf16.mxu0 0
  %4036 = vmatmul.mubr.bf16.gmra.mxu0 %v3818
  %v4037 = vpop.f32.mrf.mxu0
  %v4038 = vpop.f32.mrf.mxu0
  %v4039 = vpop.f32.mrf.mxu0
  %v4040 = vpop.f32.mrf.mxu0
  %4041 = vmatprep.mubr.bf16.mxu0 0
  %4042 = vmatmul.mubr.bf16.gmra.mxu0 %v3821
  %v4043 = vpop.f32.mrf.mxu0
  %v4044 = vadd.f32 0.0, %v4043
  %v4045 = vpop.f32.mrf.mxu0
  %v4046 = vpop.f32.mrf.mxu0
  %v4047 = vadd.f32 0.0, %v4046
  %v4048 = vpop.f32.mrf.mxu0
  %4049 = vmatprep.mubr.bf16.mxu0 0
  %4050 = vmatmul.mubr.bf16.gmra.mxu0 %v3824
  %v4051 = vpop.f32.mrf.mxu0
  %v4052 = vadd.f32 0.0, %v4051
  %v4053 = vpop.f32.mrf.mxu0
  %v4054 = vpop.f32.mrf.mxu0
  %v4055 = vadd.f32 0.0, %v4054
  %v4056 = vpop.f32.mrf.mxu0
  %4057 = vmatprep.mubr.bf16.mxu0 0
  %4058 = vmatmul.mubr.bf16.gmra.mxu0 %v3827
  %v4059 = vpop.f32.mrf.mxu0
  %v4060 = vadd.f32 0.0, %v4059
  %v4061 = vpop.f32.mrf.mxu0
  %v4062 = vpop.f32.mrf.mxu0
  %v4063 = vadd.f32 0.0, %v4062
  %v4064 = vpop.f32.mrf.mxu0
  %4065 = vmatprep.mubr.bf16.mxu0 0
  %4066 = vmatmul.mubr.bf16.gmra.mxu0 %v3830
  %v4067 = vpop.f32.mrf.mxu0
  %v4068 = vadd.f32 0.0, %v4067
  %v4069 = vpop.f32.mrf.mxu0
  %v4070 = vpop.f32.mrf.mxu0
  %v4071 = vadd.f32 0.0, %v4070
  %v4072 = vpop.f32.mrf.mxu0
  %4073 = vmatprep.mubr.bf16.mxu0 0
  %4074 = vmatmul.mubr.bf16.gmra.mxu0 %v3833
  %v4075 = vpop.f32.mrf.mxu0
  %v4076 = vpop.f32.mrf.mxu0
  %v4077 = vpop.f32.mrf.mxu0
  %v4078 = vpop.f32.mrf.mxu0
  %4079 = vmatprep.mubr.bf16.mxu0 0
  %4080 = vmatmul.mubr.bf16.gmra.mxu0 %v3836
  %v4081 = vpop.f32.mrf.mxu0
  %v4082 = vadd.f32 0.0, %v4081
  %v4083 = vpop.f32.mrf.mxu0
  %v4084 = vpop.f32.mrf.mxu0
  %v4085 = vadd.f32 0.0, %v4084
  %v4086 = vpop.f32.mrf.mxu0
  %4087 = vmatprep.mubr.bf16.mxu0 0
  %4088 = vmatmul.mubr.bf16.gmra.mxu0 %v3839
  %v4089 = vpop.f32.mrf.mxu0
  %v4090 = vadd.f32 0.0, %v4089
  %v4091 = vpop.f32.mrf.mxu0
  %v4092 = vpop.f32.mrf.mxu0
  %v4093 = vadd.f32 0.0, %v4092
  %v4094 = vpop.f32.mrf.mxu0
  %4095 = vmatprep.mubr.bf16.mxu0 0
  %4096 = vmatmul.mubr.bf16.gmra.mxu0 %v3842
  %v4097 = vpop.f32.mrf.mxu0
  %v4098 = vadd.f32 0.0, %v4097
  %v4099 = vpop.f32.mrf.mxu0
  %v4100 = vpop.f32.mrf.mxu0
  %v4101 = vadd.f32 0.0, %v4100
  %v4102 = vpop.f32.mrf.mxu0
  %4103 = vmatprep.mubr.bf16.mxu0 0
  %4104 = vmatmul.mubr.bf16.gmra.mxu0 %v3845
  %v4105 = vpop.f32.mrf.mxu0
  %v4106 = vadd.f32 0.0, %v4105
  %v4107 = vpop.f32.mrf.mxu0
  %v4108 = vpop.f32.mrf.mxu0
  %v4109 = vadd.f32 0.0, %v4108
  %v4110 = vpop.f32.mrf.mxu0
  %4111 = vmatprep.mubr.bf16.mxu0 0
  %4112 = vmatmul.mubr.bf16.gmra.mxu0 %v3848
  %v4113 = vpop.f32.mrf.mxu0
  %v4114 = vpop.f32.mrf.mxu0
  %v4115 = vpop.f32.mrf.mxu0
  %v4116 = vpop.f32.mrf.mxu0
  %4117 = vmatprep.mubr.bf16.mxu0 0
  %4118 = vmatmul.mubr.bf16.gmra.mxu0 %v3851
  %v4119 = vpop.f32.mrf.mxu0
  %v4120 = vadd.f32 0.0, %v4119
  %v4121 = vpop.f32.mrf.mxu0
  %v4122 = vpop.f32.mrf.mxu0
  %v4123 = vadd.f32 0.0, %v4122
  %v4124 = vpop.f32.mrf.mxu0
  %4125 = vmatprep.mubr.bf16.mxu0 0
  %4126 = vmatmul.mubr.bf16.gmra.mxu0 %v3854
  %v4127 = vpop.f32.mrf.mxu0
  %v4128 = vadd.f32 0.0, %v4127
  %v4129 = vpop.f32.mrf.mxu0
  %v4130 = vpop.f32.mrf.mxu0
  %v4131 = vadd.f32 0.0, %v4130
  %v4132 = vpop.f32.mrf.mxu0
  %4133 = vmatprep.mubr.bf16.mxu0 0
  %4134 = vmatmul.mubr.bf16.gmra.mxu0 %v3857
  %v4135 = vpop.f32.mrf.mxu0
  %v4136 = vadd.f32 0.0, %v4135
  %v4137 = vpop.f32.mrf.mxu0
  %v4138 = vpop.f32.mrf.mxu0
  %v4139 = vadd.f32 0.0, %v4138
  %v4140 = vpop.f32.mrf.mxu0
  %4141 = vmatprep.mubr.bf16.mxu0 0
  %4142 = vmatmul.mubr.bf16.gmra.mxu0 %v3860
  %v4143 = vpop.f32.mrf.mxu0
  %v4144 = vadd.f32 0.0, %v4143
  %v4145 = vpop.f32.mrf.mxu0
  %v4146 = vpop.f32.mrf.mxu0
  %v4147 = vadd.f32 0.0, %v4146
  %v4148 = vpop.f32.mrf.mxu0
  %4149 = vmatprep.mubr.bf16.mxu0 0
  %4150 = vmatmul.mubr.bf16.gmra.mxu0 %v3863
  %v4151 = vpop.f32.mrf.mxu0
  %v4152 = vpop.f32.mrf.mxu0
  %v4153 = vpop.f32.mrf.mxu0
  %v4154 = vpop.f32.mrf.mxu0
  %4155 = vmatprep.mubr.bf16.mxu0 0
  %4156 = vmatmul.mubr.bf16.gmra.mxu0 %v3866
  %v4157 = vpop.f32.mrf.mxu0
  %v4158 = vadd.f32 0.0, %v4157
  %v4159 = vpop.f32.mrf.mxu0
  %v4160 = vpop.f32.mrf.mxu0
  %v4161 = vadd.f32 0.0, %v4160
  %v4162 = vpop.f32.mrf.mxu0
  %4163 = vmatprep.mubr.bf16.mxu0 0
  %4164 = vmatmul.mubr.bf16.gmra.mxu0 %v3869
  %v4165 = vpop.f32.mrf.mxu0
  %v4166 = vadd.f32 0.0, %v4165
  %v4167 = vpop.f32.mrf.mxu0
  %v4168 = vpop.f32.mrf.mxu0
  %v4169 = vadd.f32 0.0, %v4168
  %v4170 = vpop.f32.mrf.mxu0
  %4171 = vmatprep.mubr.bf16.mxu0 0
  %4172 = vmatmul.mubr.bf16.gmra.mxu0 %v3872
  %v4173 = vpop.f32.mrf.mxu0
  %v4174 = vadd.f32 0.0, %v4173
  %v4175 = vpop.f32.mrf.mxu0
  %v4176 = vpop.f32.mrf.mxu0
  %v4177 = vadd.f32 0.0, %v4176
  %v4178 = vpop.f32.mrf.mxu0
  %4179 = vmatprep.mubr.bf16.mxu0 0
  %4180 = vmatmul.mubr.bf16.gmra.mxu0 %v3875
  %v4181 = vpop.f32.mrf.mxu0
  %v4182 = vadd.f32 0.0, %v4181
  %v4183 = vpop.f32.mrf.mxu0
  %v4184 = vpop.f32.mrf.mxu0
  %v4185 = vadd.f32 0.0, %v4184
  %v4186 = vpop.f32.mrf.mxu0
  %4187 = vmatprep.mubr.bf16.mxu0 0
  %4188 = vmatmul.mubr.bf16.gmra.mxu0 %v3878
  %v4189 = vpop.f32.mrf.mxu0
  %v4190 = vpop.f32.mrf.mxu0
  %v4191 = vpop.f32.mrf.mxu0
  %v4192 = vpop.f32.mrf.mxu0
  %4193 = vmatprep.mubr.bf16.mxu0 0
  %4194 = vmatmul.mubr.bf16.gmra.mxu0 %v3881
  %v4195 = vpop.f32.mrf.mxu0
  %v4196 = vadd.f32 0.0, %v4195
  %v4197 = vpop.f32.mrf.mxu0
  %v4198 = vpop.f32.mrf.mxu0
  %v4199 = vadd.f32 0.0, %v4198
  %v4200 = vpop.f32.mrf.mxu0
  %4201 = vmatprep.mubr.bf16.mxu0 0
  %4202 = vmatmul.mubr.bf16.gmra.mxu0 %v3884
  %v4203 = vpop.f32.mrf.mxu0
  %v4204 = vadd.f32 0.0, %v4203
  %v4205 = vpop.f32.mrf.mxu0
  %v4206 = vpop.f32.mrf.mxu0
  %v4207 = vadd.f32 0.0, %v4206
  %v4208 = vpop.f32.mrf.mxu0
  %4209 = vmatprep.mubr.bf16.mxu0 0
  %4210 = vmatmul.mubr.bf16.gmra.mxu0 %v3887
  %v4211 = vpop.f32.mrf.mxu0
  %v4212 = vadd.f32 0.0, %v4211
  %v4213 = vpop.f32.mrf.mxu0
  %v4214 = vpop.f32.mrf.mxu0
  %v4215 = vadd.f32 0.0, %v4214
  %v4216 = vpop.f32.mrf.mxu0
  %4217 = vmatprep.mubr.bf16.mxu0 0
  %4218 = vmatmul.mubr.bf16.gmra.mxu0 %v3890
  %v4219 = vpop.f32.mrf.mxu0
  %v4220 = vadd.f32 0.0, %v4219
  %v4221 = vpop.f32.mrf.mxu0
  %v4222 = vpop.f32.mrf.mxu0
  %v4223 = vadd.f32 0.0, %v4222
  %v4224 = vpop.f32.mrf.mxu0
  %4225 = vmatprep.mubr.bf16.mxu0 0
  %4226 = vmatmul.mubr.bf16.gmra.mxu0 %v3893
  %v4227 = vpop.f32.mrf.mxu0
  %v4228 = vpop.f32.mrf.mxu0
  %v4229 = vpop.f32.mrf.mxu0
  %v4230 = vpop.f32.mrf.mxu0
  %4231 = vdwg.mxu0
  %v4234 = vunpack.c.l.b16 %v3643
  %v4235 = vunpack.c.l.b16 %v3644
  %v4236 = vpack.c.b16 %v4235, %v4234
  %v4239 = vsel %vm125, %v3603, 0
  %v4242 = vsel %vm125, %v3604, 0
  %v4245 = vsel %vm125, %v3605, 0
  %v4248 = vsel %vm125, %v3606, 0
  %v4251 = vsel %vm125, %v3607, 0
  %v4254 = vsel %vm125, %v3608, 0
  %v4257 = vsel %vm125, %v3609, 0
  %v4260 = vsel %vm125, %v3610, 0
  %v4263 = vsel %vm125, %v3611, 0
  %v4266 = vsel %vm125, %v3612, 0
  %v4269 = vsel %vm125, %v3613, 0
  %v4272 = vsel %vm125, %v3614, 0
  %v4275 = vsel %vm125, %v3615, 0
  %v4278 = vsel %vm125, %v3616, 0
  %v4281 = vsel %vm125, %v3617, 0
  %v4284 = vsel %vm125, %v3618, 0
  %v4287 = vsel %vm125, %v3619, 0
  %v4290 = vsel %vm125, %v3620, 0
  %v4293 = vsel %vm125, %v3621, 0
  %v4296 = vsel %vm125, %v3622, 0
  %v4299 = vsel %vm125, %v3623, 0
  %v4302 = vsel %vm125, %v3624, 0
  %v4305 = vsel %vm125, %v3625, 0
  %v4308 = vsel %vm125, %v3626, 0
  %v4311 = vsel %vm125, %v3627, 0
  %v4314 = vsel %vm125, %v3628, 0
  %v4317 = vsel %vm125, %v3629, 0
  %v4320 = vsel %vm125, %v3630, 0
  %v4323 = vsel %vm125, %v3631, 0
  %v4326 = vsel %vm125, %v3632, 0
  %v4329 = vsel %vm125, %v3633, 0
  %v4332 = vsel %vm125, %v3634, 0
  %v4335 = vsel %vm125, %v3635, 0
  %v4338 = vsel %vm125, %v3636, 0
  %v4341 = vsel %vm125, %v3637, 0
  %v4344 = vsel %vm125, %v3638, 0
  %v4347 = vsel %vm125, %v3639, 0
  %v4350 = vsel %vm125, %v3640, 0
  %v4353 = vsel %vm125, %v3641, 0
  %v4356 = vsel %vm125, %v3642, 0
  %4358 = vmatprep.subr.bf16.mxu0 0
  %4359 = vmatpush1.bf16.msra.mxu0 0
  %4360 = vmatprep.subr.bf16.mxu0 0
  %4361 = vmatpush1.bf16.msra.mxu0 0
  %4362 = vmatprep.subr.bf16.mxu0 0
  %4363 = vmatpush1.bf16.msra.mxu0 0
  %4364 = vmatprep.subr.bf16.mxu0 0
  %4365 = vmatpush1.bf16.msra.mxu0 0
  %4366 = vmatprep.subr.bf16.mxu0 0
  %4367 = vmatpush1.bf16.msra.mxu0 0
  %4368 = vmatprep.subr.bf16.mxu0 0
  %4369 = vmatpush1.bf16.msra.mxu0 0
  %4370 = vmatprep.subr.bf16.mxu0 0
  %4371 = vmatpush1.bf16.msra.mxu0 0
  %4372 = vmatprep.subr.bf16.mxu0 0
  %4373 = vmatpush1.bf16.msra.mxu0 %v4236
  %4374 = vmatprep.subr.bf16.mxu0 0
  %4375 = vmatpush2.bf16.msra.mxu0 0
  %4376 = vmatprep.subr.bf16.mxu0 0
  %4377 = vmatpush2.bf16.msra.mxu0 0
  %4378 = vmatprep.subr.bf16.mxu0 0
  %4379 = vmatpush2.bf16.msra.mxu0 0
  %4380 = vmatprep.subr.bf16.mxu0 0
  %4381 = vmatpush2.bf16.msra.mxu0 0
  %4382 = vmatprep.subr.bf16.mxu0 0
  %4383 = vmatpush2.bf16.msra.mxu0 0
  %4384 = vmatprep.subr.bf16.mxu0 0
  %4385 = vmatpush2.bf16.msra.mxu0 0
  %4386 = vmatprep.subr.bf16.mxu0 0
  %4387 = vmatpush2.bf16.msra.mxu0 0
  %4388 = vmatprep.subr.bf16.mxu0 0
  %4389 = vmatpush2.bf16.msra.mxu0 0
  %4390 = vmatprep.mubr.bf16.mxu0 0
  %4391 = vmatmul.mubr.bf16.gmra.mxu0 %v4239
  %v4392 = vpop.f32.mrf.mxu0
  %v4393 = vadd.f32 %v3930, %v4392
  %v4394 = vpop.f32.mrf.mxu0
  %v4395 = vpop.f32.mrf.mxu0
  %v4396 = vadd.f32 %v3933, %v4395
  %v4397 = vpop.f32.mrf.mxu0
  %4398 = vmatprep.mubr.bf16.mxu0 0
  %4399 = vmatmul.mubr.bf16.gmra.mxu0 %v4242
  %v4400 = vpop.f32.mrf.mxu0
  %v4401 = vadd.f32 %v3938, %v4400
  %v4402 = vpop.f32.mrf.mxu0
  %v4403 = vpop.f32.mrf.mxu0
  %v4404 = vadd.f32 %v3941, %v4403
  %v4405 = vpop.f32.mrf.mxu0
  %4406 = vmatprep.mubr.bf16.mxu0 0
  %4407 = vmatmul.mubr.bf16.gmra.mxu0 %v4245
  %v4408 = vpop.f32.mrf.mxu0
  %v4409 = vadd.f32 %v3946, %v4408
  %v4410 = vpop.f32.mrf.mxu0
  %v4411 = vpop.f32.mrf.mxu0
  %v4412 = vadd.f32 %v3949, %v4411
  %v4413 = vpop.f32.mrf.mxu0
  %4414 = vmatprep.mubr.bf16.mxu0 0
  %4415 = vmatmul.mubr.bf16.gmra.mxu0 %v4248
  %v4416 = vpop.f32.mrf.mxu0
  %v4417 = vadd.f32 %v3954, %v4416
  %v4418 = vpop.f32.mrf.mxu0
  %v4419 = vpop.f32.mrf.mxu0
  %v4420 = vadd.f32 %v3957, %v4419
  %v4421 = vpop.f32.mrf.mxu0
  %4422 = vmatprep.mubr.bf16.mxu0 0
  %4423 = vmatmul.mubr.bf16.gmra.mxu0 %v4251
  %v4424 = vpop.f32.mrf.mxu0
  %v4425 = vpop.f32.mrf.mxu0
  %v4426 = vpop.f32.mrf.mxu0
  %v4427 = vpop.f32.mrf.mxu0
  %4428 = vmatprep.mubr.bf16.mxu0 0
  %4429 = vmatmul.mubr.bf16.gmra.mxu0 %v4254
  %v4430 = vpop.f32.mrf.mxu0
  %v4431 = vadd.f32 %v3968, %v4430
  %v4432 = vpop.f32.mrf.mxu0
  %v4433 = vpop.f32.mrf.mxu0
  %v4434 = vadd.f32 %v3971, %v4433
  %v4435 = vpop.f32.mrf.mxu0
  %4436 = vmatprep.mubr.bf16.mxu0 0
  %4437 = vmatmul.mubr.bf16.gmra.mxu0 %v4257
  %v4438 = vpop.f32.mrf.mxu0
  %v4439 = vadd.f32 %v3976, %v4438
  %v4440 = vpop.f32.mrf.mxu0
  %v4441 = vpop.f32.mrf.mxu0
  %v4442 = vadd.f32 %v3979, %v4441
  %v4443 = vpop.f32.mrf.mxu0
  %4444 = vmatprep.mubr.bf16.mxu0 0
  %4445 = vmatmul.mubr.bf16.gmra.mxu0 %v4260
  %v4446 = vpop.f32.mrf.mxu0
  %v4447 = vadd.f32 %v3984, %v4446
  %v4448 = vpop.f32.mrf.mxu0
  %v4449 = vpop.f32.mrf.mxu0
  %v4450 = vadd.f32 %v3987, %v4449
  %v4451 = vpop.f32.mrf.mxu0
  %4452 = vmatprep.mubr.bf16.mxu0 0
  %4453 = vmatmul.mubr.bf16.gmra.mxu0 %v4263
  %v4454 = vpop.f32.mrf.mxu0
  %v4455 = vadd.f32 %v3992, %v4454
  %v4456 = vpop.f32.mrf.mxu0
  %v4457 = vpop.f32.mrf.mxu0
  %v4458 = vadd.f32 %v3995, %v4457
  %v4459 = vpop.f32.mrf.mxu0
  %4460 = vmatprep.mubr.bf16.mxu0 0
  %4461 = vmatmul.mubr.bf16.gmra.mxu0 %v4266
  %v4462 = vpop.f32.mrf.mxu0
  %v4463 = vpop.f32.mrf.mxu0
  %v4464 = vpop.f32.mrf.mxu0
  %v4465 = vpop.f32.mrf.mxu0
  %4466 = vmatprep.mubr.bf16.mxu0 0
  %4467 = vmatmul.mubr.bf16.gmra.mxu0 %v4269
  %v4468 = vpop.f32.mrf.mxu0
  %v4469 = vadd.f32 %v4006, %v4468
  %v4470 = vpop.f32.mrf.mxu0
  %v4471 = vpop.f32.mrf.mxu0
  %v4472 = vadd.f32 %v4009, %v4471
  %v4473 = vpop.f32.mrf.mxu0
  %4474 = vmatprep.mubr.bf16.mxu0 0
  %4475 = vmatmul.mubr.bf16.gmra.mxu0 %v4272
  %v4476 = vpop.f32.mrf.mxu0
  %v4477 = vadd.f32 %v4014, %v4476
  %v4478 = vpop.f32.mrf.mxu0
  %v4479 = vpop.f32.mrf.mxu0
  %v4480 = vadd.f32 %v4017, %v4479
  %v4481 = vpop.f32.mrf.mxu0
  %4482 = vmatprep.mubr.bf16.mxu0 0
  %4483 = vmatmul.mubr.bf16.gmra.mxu0 %v4275
  %v4484 = vpop.f32.mrf.mxu0
  %v4485 = vadd.f32 %v4022, %v4484
  %v4486 = vpop.f32.mrf.mxu0
  %v4487 = vpop.f32.mrf.mxu0
  %v4488 = vadd.f32 %v4025, %v4487
  %v4489 = vpop.f32.mrf.mxu0
  %4490 = vmatprep.mubr.bf16.mxu0 0
  %4491 = vmatmul.mubr.bf16.gmra.mxu0 %v4278
  %v4492 = vpop.f32.mrf.mxu0
  %v4493 = vadd.f32 %v4030, %v4492
  %v4494 = vpop.f32.mrf.mxu0
  %v4495 = vpop.f32.mrf.mxu0
  %v4496 = vadd.f32 %v4033, %v4495
  %v4497 = vpop.f32.mrf.mxu0
  %4498 = vmatprep.mubr.bf16.mxu0 0
  %4499 = vmatmul.mubr.bf16.gmra.mxu0 %v4281
  %v4500 = vpop.f32.mrf.mxu0
  %v4501 = vpop.f32.mrf.mxu0
  %v4502 = vpop.f32.mrf.mxu0
  %v4503 = vpop.f32.mrf.mxu0
  %4504 = vmatprep.mubr.bf16.mxu0 0
  %4505 = vmatmul.mubr.bf16.gmra.mxu0 %v4284
  %v4506 = vpop.f32.mrf.mxu0
  %v4507 = vadd.f32 %v4044, %v4506
  %v4508 = vpop.f32.mrf.mxu0
  %v4509 = vpop.f32.mrf.mxu0
  %v4510 = vadd.f32 %v4047, %v4509
  %v4511 = vpop.f32.mrf.mxu0
  %4512 = vmatprep.mubr.bf16.mxu0 0
  %4513 = vmatmul.mubr.bf16.gmra.mxu0 %v4287
  %v4514 = vpop.f32.mrf.mxu0
  %v4515 = vadd.f32 %v4052, %v4514
  %v4516 = vpop.f32.mrf.mxu0
  %v4517 = vpop.f32.mrf.mxu0
  %v4518 = vadd.f32 %v4055, %v4517
  %v4519 = vpop.f32.mrf.mxu0
  %4520 = vmatprep.mubr.bf16.mxu0 0
  %4521 = vmatmul.mubr.bf16.gmra.mxu0 %v4290
  %v4522 = vpop.f32.mrf.mxu0
  %v4523 = vadd.f32 %v4060, %v4522
  %v4524 = vpop.f32.mrf.mxu0
  %v4525 = vpop.f32.mrf.mxu0
  %v4526 = vadd.f32 %v4063, %v4525
  %v4527 = vpop.f32.mrf.mxu0
  %4528 = vmatprep.mubr.bf16.mxu0 0
  %4529 = vmatmul.mubr.bf16.gmra.mxu0 %v4293
  %v4530 = vpop.f32.mrf.mxu0
  %v4531 = vadd.f32 %v4068, %v4530
  %v4532 = vpop.f32.mrf.mxu0
  %v4533 = vpop.f32.mrf.mxu0
  %v4534 = vadd.f32 %v4071, %v4533
  %v4535 = vpop.f32.mrf.mxu0
  %4536 = vmatprep.mubr.bf16.mxu0 0
  %4537 = vmatmul.mubr.bf16.gmra.mxu0 %v4296
  %v4538 = vpop.f32.mrf.mxu0
  %v4539 = vpop.f32.mrf.mxu0
  %v4540 = vpop.f32.mrf.mxu0
  %v4541 = vpop.f32.mrf.mxu0
  %4542 = vmatprep.mubr.bf16.mxu0 0
  %4543 = vmatmul.mubr.bf16.gmra.mxu0 %v4299
  %v4544 = vpop.f32.mrf.mxu0
  %v4545 = vadd.f32 %v4082, %v4544
  %v4546 = vpop.f32.mrf.mxu0
  %v4547 = vpop.f32.mrf.mxu0
  %v4548 = vadd.f32 %v4085, %v4547
  %v4549 = vpop.f32.mrf.mxu0
  %4550 = vmatprep.mubr.bf16.mxu0 0
  %4551 = vmatmul.mubr.bf16.gmra.mxu0 %v4302
  %v4552 = vpop.f32.mrf.mxu0
  %v4553 = vadd.f32 %v4090, %v4552
  %v4554 = vpop.f32.mrf.mxu0
  %v4555 = vpop.f32.mrf.mxu0
  %v4556 = vadd.f32 %v4093, %v4555
  %v4557 = vpop.f32.mrf.mxu0
  %4558 = vmatprep.mubr.bf16.mxu0 0
  %4559 = vmatmul.mubr.bf16.gmra.mxu0 %v4305
  %v4560 = vpop.f32.mrf.mxu0
  %v4561 = vadd.f32 %v4098, %v4560
  %v4562 = vpop.f32.mrf.mxu0
  %v4563 = vpop.f32.mrf.mxu0
  %v4564 = vadd.f32 %v4101, %v4563
  %v4565 = vpop.f32.mrf.mxu0
  %4566 = vmatprep.mubr.bf16.mxu0 0
  %4567 = vmatmul.mubr.bf16.gmra.mxu0 %v4308
  %v4568 = vpop.f32.mrf.mxu0
  %v4569 = vadd.f32 %v4106, %v4568
  %v4570 = vpop.f32.mrf.mxu0
  %v4571 = vpop.f32.mrf.mxu0
  %v4572 = vadd.f32 %v4109, %v4571
  %v4573 = vpop.f32.mrf.mxu0
  %4574 = vmatprep.mubr.bf16.mxu0 0
  %4575 = vmatmul.mubr.bf16.gmra.mxu0 %v4311
  %v4576 = vpop.f32.mrf.mxu0
  %v4577 = vpop.f32.mrf.mxu0
  %v4578 = vpop.f32.mrf.mxu0
  %v4579 = vpop.f32.mrf.mxu0
  %4580 = vmatprep.mubr.bf16.mxu0 0
  %4581 = vmatmul.mubr.bf16.gmra.mxu0 %v4314
  %v4582 = vpop.f32.mrf.mxu0
  %v4583 = vadd.f32 %v4120, %v4582
  %v4584 = vpop.f32.mrf.mxu0
  %v4585 = vpop.f32.mrf.mxu0
  %v4586 = vadd.f32 %v4123, %v4585
  %v4587 = vpop.f32.mrf.mxu0
  %4588 = vmatprep.mubr.bf16.mxu0 0
  %4589 = vmatmul.mubr.bf16.gmra.mxu0 %v4317
  %v4590 = vpop.f32.mrf.mxu0
  %v4591 = vadd.f32 %v4128, %v4590
  %v4592 = vpop.f32.mrf.mxu0
  %v4593 = vpop.f32.mrf.mxu0
  %v4594 = vadd.f32 %v4131, %v4593
  %v4595 = vpop.f32.mrf.mxu0
  %4596 = vmatprep.mubr.bf16.mxu0 0
  %4597 = vmatmul.mubr.bf16.gmra.mxu0 %v4320
  %v4598 = vpop.f32.mrf.mxu0
  %v4599 = vadd.f32 %v4136, %v4598
  %v4600 = vpop.f32.mrf.mxu0
  %v4601 = vpop.f32.mrf.mxu0
  %v4602 = vadd.f32 %v4139, %v4601
  %v4603 = vpop.f32.mrf.mxu0
  %4604 = vmatprep.mubr.bf16.mxu0 0
  %4605 = vmatmul.mubr.bf16.gmra.mxu0 %v4323
  %v4606 = vpop.f32.mrf.mxu0
  %v4607 = vadd.f32 %v4144, %v4606
  %v4608 = vpop.f32.mrf.mxu0
  %v4609 = vpop.f32.mrf.mxu0
  %v4610 = vadd.f32 %v4147, %v4609
  %v4611 = vpop.f32.mrf.mxu0
  %4612 = vmatprep.mubr.bf16.mxu0 0
  %4613 = vmatmul.mubr.bf16.gmra.mxu0 %v4326
  %v4614 = vpop.f32.mrf.mxu0
  %v4615 = vpop.f32.mrf.mxu0
  %v4616 = vpop.f32.mrf.mxu0
  %v4617 = vpop.f32.mrf.mxu0
  %4618 = vmatprep.mubr.bf16.mxu0 0
  %4619 = vmatmul.mubr.bf16.gmra.mxu0 %v4329
  %v4620 = vpop.f32.mrf.mxu0
  %v4621 = vadd.f32 %v4158, %v4620
  %v4622 = vpop.f32.mrf.mxu0
  %v4623 = vpop.f32.mrf.mxu0
  %v4624 = vadd.f32 %v4161, %v4623
  %v4625 = vpop.f32.mrf.mxu0
  %4626 = vmatprep.mubr.bf16.mxu0 0
  %4627 = vmatmul.mubr.bf16.gmra.mxu0 %v4332
  %v4628 = vpop.f32.mrf.mxu0
  %v4629 = vadd.f32 %v4166, %v4628
  %v4630 = vpop.f32.mrf.mxu0
  %v4631 = vpop.f32.mrf.mxu0
  %v4632 = vadd.f32 %v4169, %v4631
  %v4633 = vpop.f32.mrf.mxu0
  %4634 = vmatprep.mubr.bf16.mxu0 0
  %4635 = vmatmul.mubr.bf16.gmra.mxu0 %v4335
  %v4636 = vpop.f32.mrf.mxu0
  %v4637 = vadd.f32 %v4174, %v4636
  %v4638 = vpop.f32.mrf.mxu0
  %v4639 = vpop.f32.mrf.mxu0
  %v4640 = vadd.f32 %v4177, %v4639
  %v4641 = vpop.f32.mrf.mxu0
  %4642 = vmatprep.mubr.bf16.mxu0 0
  %4643 = vmatmul.mubr.bf16.gmra.mxu0 %v4338
  %v4644 = vpop.f32.mrf.mxu0
  %v4645 = vadd.f32 %v4182, %v4644
  %v4646 = vpop.f32.mrf.mxu0
  %v4647 = vpop.f32.mrf.mxu0
  %v4648 = vadd.f32 %v4185, %v4647
  %v4649 = vpop.f32.mrf.mxu0
  %4650 = vmatprep.mubr.bf16.mxu0 0
  %4651 = vmatmul.mubr.bf16.gmra.mxu0 %v4341
  %v4652 = vpop.f32.mrf.mxu0
  %v4653 = vpop.f32.mrf.mxu0
  %v4654 = vpop.f32.mrf.mxu0
  %v4655 = vpop.f32.mrf.mxu0
  %4656 = vmatprep.mubr.bf16.mxu0 0
  %4657 = vmatmul.mubr.bf16.gmra.mxu0 %v4344
  %v4658 = vpop.f32.mrf.mxu0
  %v4659 = vadd.f32 %v4196, %v4658
  %v4660 = vpop.f32.mrf.mxu0
  %v4661 = vpop.f32.mrf.mxu0
  %v4662 = vadd.f32 %v4199, %v4661
  %v4663 = vpop.f32.mrf.mxu0
  %4664 = vmatprep.mubr.bf16.mxu0 0
  %4665 = vmatmul.mubr.bf16.gmra.mxu0 %v4347
  %v4666 = vpop.f32.mrf.mxu0
  %v4667 = vadd.f32 %v4204, %v4666
  %v4668 = vpop.f32.mrf.mxu0
  %v4669 = vpop.f32.mrf.mxu0
  %v4670 = vadd.f32 %v4207, %v4669
  %v4671 = vpop.f32.mrf.mxu0
  %4672 = vmatprep.mubr.bf16.mxu0 0
  %4673 = vmatmul.mubr.bf16.gmra.mxu0 %v4350
  %v4674 = vpop.f32.mrf.mxu0
  %v4675 = vadd.f32 %v4212, %v4674
  %v4676 = vpop.f32.mrf.mxu0
  %v4677 = vpop.f32.mrf.mxu0
  %v4678 = vadd.f32 %v4215, %v4677
  %v4679 = vpop.f32.mrf.mxu0
  %4680 = vmatprep.mubr.bf16.mxu0 0
  %4681 = vmatmul.mubr.bf16.gmra.mxu0 %v4353
  %v4682 = vpop.f32.mrf.mxu0
  %v4683 = vadd.f32 %v4220, %v4682
  %v4684 = vpop.f32.mrf.mxu0
  %v4685 = vpop.f32.mrf.mxu0
  %v4686 = vadd.f32 %v4223, %v4685
  %v4687 = vpop.f32.mrf.mxu0
  %4688 = vmatprep.mubr.bf16.mxu0 0
  %4689 = vmatmul.mubr.bf16.gmra.mxu0 %v4356
  %v4690 = vpop.f32.mrf.mxu0
  %v4691 = vpop.f32.mrf.mxu0
  %v4692 = vpop.f32.mrf.mxu0
  %v4693 = vpop.f32.mrf.mxu0
  %4694 = vdwg.mxu0
  %s4695 = scalar_lea.vmem [#allocation2], 16
  %v4696 = vld [vmem:[%s4695] sm:$0xff]
  %v4697 = vld [vmem:[%s4695 + $0x8] sm:$0xff]
  %v4698 = vld [vmem:[%s4695 + $0x10] sm:$0xff]
  %v4699 = vld [vmem:[%s4695 + $0x18] sm:$0xff]
  %v4700 = vld [vmem:[%s4695 + $0x20] sm:$0xff]
  %v4701 = vld [vmem:[%s4695 + $0x28] sm:$0xff]
  %v4702 = vld [vmem:[%s4695 + $0x30] sm:$0xff]
  %v4703 = vld [vmem:[%s4695 + $0x38] sm:$0xff]
  %v4704 = vld [vmem:[%s4695 + $0x40] sm:$0xff]
  %v4705 = vld [vmem:[%s4695 + $0x48] sm:$0xff]
  %v4706 = vld [vmem:[%s4695 + $0x50] sm:$0xff]
  %v4707 = vld [vmem:[%s4695 + $0x58] sm:$0xff]
  %v4708 = vld [vmem:[%s4695 + $0x60] sm:$0xff]
  %v4709 = vld [vmem:[%s4695 + $0x68] sm:$0xff]
  %v4710 = vld [vmem:[%s4695 + $0x70] sm:$0xff]
  %v4711 = vld [vmem:[%s4695 + $0x78] sm:$0xff]
  %v4712 = vld [vmem:[%s4695 + $0x80] sm:$0xff]
  %v4713 = vld [vmem:[%s4695 + $0x88] sm:$0xff]
  %v4714 = vld [vmem:[%s4695 + $0x90] sm:$0xff]
  %v4715 = vld [vmem:[%s4695 + $0x98] sm:$0xff]
  %v4716 = vld [vmem:[%s4695 + $0xa0] sm:$0xff]
  %v4717 = vld [vmem:[%s4695 + $0xa8] sm:$0xff]
  %v4718 = vld [vmem:[%s4695 + $0xb0] sm:$0xff]
  %v4719 = vld [vmem:[%s4695 + $0xb8] sm:$0xff]
  %v4720 = vld [vmem:[%s4695 + $0xc0] sm:$0xff]
  %v4721 = vld [vmem:[%s4695 + $0xc8] sm:$0xff]
  %v4722 = vld [vmem:[%s4695 + $0xd0] sm:$0xff]
  %v4723 = vld [vmem:[%s4695 + $0xd8] sm:$0xff]
  %v4724 = vld [vmem:[%s4695 + $0xe0] sm:$0xff]
  %v4725 = vld [vmem:[%s4695 + $0xe8] sm:$0xff]
  %v4726 = vld [vmem:[%s4695 + $0xf0] sm:$0xff]
  %v4727 = vld [vmem:[%s4695 + $0xf8] sm:$0xff]
  %v4728 = vld [vmem:[%s4695 + $0x100] sm:$0xff]
  %v4729 = vld [vmem:[%s4695 + $0x108] sm:$0xff]
  %v4730 = vld [vmem:[%s4695 + $0x110] sm:$0xff]
  %v4731 = vld [vmem:[%s4695 + $0x118] sm:$0xff]
  %v4732 = vld [vmem:[%s4695 + $0x120] sm:$0xff]
  %v4733 = vld [vmem:[%s4695 + $0x128] sm:$0xff]
  %v4734 = vld [vmem:[%s4695 + $0x130] sm:$0xff]
  %v4735 = vld [vmem:[%s4695 + $0x138] sm:$0xff]
  %v4736 = vld [vmem:[%s4695 + $0x140] sm:$0xff]
  %v4737 = vld [vmem:[%s4695 + $0x148] sm:$0xff]
  %v4738 = vld [vmem:[%s4695 + $0x150] sm:$0xff]
  %v4739 = vld [vmem:[%s4695 + $0x158] sm:$0xff]
  %v4740 = vld [vmem:[%s4695 + $0x160] sm:$0xff]
  %v4741 = vld [vmem:[%s4695 + $0x168] sm:$0xff]
  %v4742 = vld [vmem:[%s4695 + $0x170] sm:$0xff]
  %v4743 = vld [vmem:[%s4695 + $0x178] sm:$0xff]
  %v4744 = vld [vmem:[%s4695 + $0x180] sm:$0xff]
  %v4745 = vld [vmem:[%s4695 + $0x188] sm:$0xff]
  %v4746 = vld [vmem:[%s4695 + $0x190] sm:$0xff]
  %v4747 = vld [vmem:[%s4695 + $0x198] sm:$0xff]
  %v4748 = vld [vmem:[%s4695 + $0x1a0] sm:$0xff]
  %v4749 = vld [vmem:[%s4695 + $0x1a8] sm:$0xff]
  %v4750 = vld [vmem:[%s4695 + $0x1b0] sm:$0xff]
  %v4751 = vld [vmem:[%s4695 + $0x1b8] sm:$0xff]
  %v4752 = vld [vmem:[%s4695 + $0x1c0] sm:$0xff]
  %v4753 = vld [vmem:[%s4695 + $0x1c8] sm:$0xff]
  %v4754 = vld [vmem:[%s4695 + $0x1d0] sm:$0xff]
  %v4755 = vld [vmem:[%s4695 + $0x1d8] sm:$0xff]
  %v4756 = vld [vmem:[%s4695 + $0x1e0] sm:$0xff]
  %v4757 = vld [vmem:[%s4695 + $0x1e8] sm:$0xff]
  %v4758 = vld [vmem:[%s4695 + $0x1f0] sm:$0xff]
  %v4759 = vld [vmem:[%s4695 + $0x1f8] sm:$0xff]
  %v4760 = vld [vmem:[%s4695 + $0x200] sm:$0xff]
  %v4761 = vld [vmem:[%s4695 + $0x208] sm:$0xff]
  %v4762 = vld [vmem:[%s4695 + $0x210] sm:$0xff]
  %v4763 = vld [vmem:[%s4695 + $0x218] sm:$0xff]
  %v4764 = vld [vmem:[%s4695 + $0x220] sm:$0xff]
  %v4765 = vld [vmem:[%s4695 + $0x228] sm:$0xff]
  %v4766 = vld [vmem:[%s4695 + $0x230] sm:$0xff]
  %v4767 = vld [vmem:[%s4695 + $0x238] sm:$0xff]
  %v4768 = vld [vmem:[%s4695 + $0x240] sm:$0xff]
  %v4769 = vld [vmem:[%s4695 + $0x248] sm:$0xff]
  %v4770 = vld [vmem:[%s4695 + $0x250] sm:$0xff]
  %v4771 = vld [vmem:[%s4695 + $0x258] sm:$0xff]
  %v4772 = vld [vmem:[%s4695 + $0x260] sm:$0xff]
  %v4773 = vld [vmem:[%s4695 + $0x268] sm:$0xff]
  %v4774 = vld [vmem:[%s4695 + $0x270] sm:$0xff]
  %v4775 = vld [vmem:[%s4695 + $0x278] sm:$0xff]
  %v4776 = vpack.c.bf16 %v4697, %v4696
  %v4777 = vpack.c.bf16 %v4699, %v4698
  %v4778 = vpack.c.bf16 %v4701, %v4700
  %v4779 = vpack.c.bf16 %v4703, %v4702
  %v4780 = vpack.c.bf16 %v4705, %v4704
  %v4781 = vpack.c.bf16 %v4707, %v4706
  %v4782 = vpack.c.bf16 %v4709, %v4708
  %v4783 = vpack.c.bf16 %v4711, %v4710
  %v4784 = vpack.c.bf16 %v4713, %v4712
  %v4785 = vpack.c.bf16 %v4715, %v4714
  %v4786 = vpack.c.bf16 %v4717, %v4716
  %v4787 = vpack.c.bf16 %v4719, %v4718
  %v4788 = vpack.c.bf16 %v4721, %v4720
  %v4789 = vpack.c.bf16 %v4723, %v4722
  %v4790 = vpack.c.bf16 %v4725, %v4724
  %v4791 = vpack.c.bf16 %v4727, %v4726
  %v4792 = vpack.c.bf16 %v4729, %v4728
  %v4793 = vpack.c.bf16 %v4731, %v4730
  %v4794 = vpack.c.bf16 %v4733, %v4732
  %v4795 = vpack.c.bf16 %v4735, %v4734
  %v4796 = vpack.c.bf16 %v4737, %v4736
  %v4797 = vpack.c.bf16 %v4739, %v4738
  %v4798 = vpack.c.bf16 %v4741, %v4740
  %v4799 = vpack.c.bf16 %v4743, %v4742
  %v4800 = vpack.c.bf16 %v4745, %v4744
  %v4801 = vpack.c.bf16 %v4747, %v4746
  %v4802 = vpack.c.bf16 %v4749, %v4748
  %v4803 = vpack.c.bf16 %v4751, %v4750
  %v4804 = vpack.c.bf16 %v4753, %v4752
  %v4805 = vpack.c.bf16 %v4755, %v4754
  %v4806 = vpack.c.bf16 %v4757, %v4756
  %v4807 = vpack.c.bf16 %v4759, %v4758
  %v4808 = vpack.c.bf16 %v4761, %v4760
  %v4809 = vpack.c.bf16 %v4763, %v4762
  %v4810 = vpack.c.bf16 %v4765, %v4764
  %v4811 = vpack.c.bf16 %v4767, %v4766
  %v4812 = vpack.c.bf16 %v4769, %v4768
  %v4813 = vpack.c.bf16 %v4771, %v4770
  %v4814 = vpack.c.bf16 %v4773, %v4772
  %v4815 = vpack.c.bf16 %v4775, %v4774
  %s4816 = scalar_lea.vmem %s6, 16
  %v4817 = vld [vmem:[%s4816] sm:$0xf]
  %v4818 = vld [vmem:[%s4816 + $0x4] sm:$0xf]
  %v4821 = vunpack.c.l.b16 %v4817
  %v4822 = vunpack.c.l.b16 %v4818
  %v4823 = vpack.c.b16 %v4822, %v4821
  %v4826 = vsel %vm125, %v4776, 0
  %v4829 = vsel %vm125, %v4777, 0
  %v4832 = vsel %vm125, %v4778, 0
  %v4835 = vsel %vm125, %v4779, 0
  %v4838 = vsel %vm125, %v4780, 0
  %v4841 = vsel %vm125, %v4781, 0
  %v4844 = vsel %vm125, %v4782, 0
  %v4847 = vsel %vm125, %v4783, 0
  %v4850 = vsel %vm125, %v4784, 0
  %v4853 = vsel %vm125, %v4785, 0
  %v4856 = vsel %vm125, %v4786, 0
  %v4859 = vsel %vm125, %v4787, 0
  %v4862 = vsel %vm125, %v4788, 0
  %v4865 = vsel %vm125, %v4789, 0
  %v4868 = vsel %vm125, %v4790, 0
  %v4871 = vsel %vm125, %v4791, 0
  %v4874 = vsel %vm125, %v4792, 0
  %v4877 = vsel %vm125, %v4793, 0
  %v4880 = vsel %vm125, %v4794, 0
  %v4883 = vsel %vm125, %v4795, 0
  %v4886 = vsel %vm125, %v4796, 0
  %v4889 = vsel %vm125, %v4797, 0
  %v4892 = vsel %vm125, %v4798, 0
  %v4895 = vsel %vm125, %v4799, 0
  %v4898 = vsel %vm125, %v4800, 0
  %v4901 = vsel %vm125, %v4801, 0
  %v4904 = vsel %vm125, %v4802, 0
  %v4907 = vsel %vm125, %v4803, 0
  %v4910 = vsel %vm125, %v4804, 0
  %v4913 = vsel %vm125, %v4805, 0
  %v4916 = vsel %vm125, %v4806, 0
  %v4919 = vsel %vm125, %v4807, 0
  %v4922 = vsel %vm125, %v4808, 0
  %v4925 = vsel %vm125, %v4809, 0
  %v4928 = vsel %vm125, %v4810, 0
  %v4931 = vsel %vm125, %v4811, 0
  %v4934 = vsel %vm125, %v4812, 0
  %v4937 = vsel %vm125, %v4813, 0
  %v4940 = vsel %vm125, %v4814, 0
  %v4943 = vsel %vm125, %v4815, 0
  %4945 = vmatprep.subr.bf16.mxu0 0
  %4946 = vmatpush1.bf16.msra.mxu0 0
  %4947 = vmatprep.subr.bf16.mxu0 0
  %4948 = vmatpush1.bf16.msra.mxu0 0
  %4949 = vmatprep.subr.bf16.mxu0 0
  %4950 = vmatpush1.bf16.msra.mxu0 0
  %4951 = vmatprep.subr.bf16.mxu0 0
  %4952 = vmatpush1.bf16.msra.mxu0 0
  %4953 = vmatprep.subr.bf16.mxu0 0
  %4954 = vmatpush1.bf16.msra.mxu0 0
  %4955 = vmatprep.subr.bf16.mxu0 0
  %4956 = vmatpush1.bf16.msra.mxu0 0
  %4957 = vmatprep.subr.bf16.mxu0 0
  %4958 = vmatpush1.bf16.msra.mxu0 0
  %4959 = vmatprep.subr.bf16.mxu0 0
  %4960 = vmatpush1.bf16.msra.mxu0 %v4823
  %4961 = vmatprep.subr.bf16.mxu0 0
  %4962 = vmatpush2.bf16.msra.mxu0 0
  %4963 = vmatprep.subr.bf16.mxu0 0
  %4964 = vmatpush2.bf16.msra.mxu0 0
  %4965 = vmatprep.subr.bf16.mxu0 0
  %4966 = vmatpush2.bf16.msra.mxu0 0
  %4967 = vmatprep.subr.bf16.mxu0 0
  %4968 = vmatpush2.bf16.msra.mxu0 0
  %4969 = vmatprep.subr.bf16.mxu0 0
  %4970 = vmatpush2.bf16.msra.mxu0 0
  %4971 = vmatprep.subr.bf16.mxu0 0
  %4972 = vmatpush2.bf16.msra.mxu0 0
  %4973 = vmatprep.subr.bf16.mxu0 0
  %4974 = vmatpush2.bf16.msra.mxu0 0
  %4975 = vmatprep.subr.bf16.mxu0 0
  %4976 = vmatpush2.bf16.msra.mxu0 0
  %4977 = vmatprep.mubr.bf16.mxu0 0
  %4978 = vmatmul.mubr.bf16.gmra.mxu0 %v4826
  %v4979 = vpop.f32.mrf.mxu0
  %v4980 = vadd.f32 0.0, %v4979
  %v4981 = vpop.f32.mrf.mxu0
  %v4982 = vpop.f32.mrf.mxu0
  %v4983 = vadd.f32 0.0, %v4982
  %v4984 = vpop.f32.mrf.mxu0
  %4985 = vmatprep.mubr.bf16.mxu0 0
  %4986 = vmatmul.mubr.bf16.gmra.mxu0 %v4829
  %v4987 = vpop.f32.mrf.mxu0
  %v4988 = vadd.f32 0.0, %v4987
  %v4989 = vpop.f32.mrf.mxu0
  %v4990 = vpop.f32.mrf.mxu0
  %v4991 = vadd.f32 0.0, %v4990
  %v4992 = vpop.f32.mrf.mxu0
  %4993 = vmatprep.mubr.bf16.mxu0 0
  %4994 = vmatmul.mubr.bf16.gmra.mxu0 %v4832
  %v4995 = vpop.f32.mrf.mxu0
  %v4996 = vadd.f32 0.0, %v4995
  %v4997 = vpop.f32.mrf.mxu0
  %v4998 = vpop.f32.mrf.mxu0
  %v4999 = vadd.f32 0.0, %v4998
  %v5000 = vpop.f32.mrf.mxu0
  %5001 = vmatprep.mubr.bf16.mxu0 0
  %5002 = vmatmul.mubr.bf16.gmra.mxu0 %v4835
  %v5003 = vpop.f32.mrf.mxu0
  %v5004 = vadd.f32 0.0, %v5003
  %v5005 = vpop.f32.mrf.mxu0
  %v5006 = vpop.f32.mrf.mxu0
  %v5007 = vadd.f32 0.0, %v5006
  %v5008 = vpop.f32.mrf.mxu0
  %5009 = vmatprep.mubr.bf16.mxu0 0
  %5010 = vmatmul.mubr.bf16.gmra.mxu0 %v4838
  %v5011 = vpop.f32.mrf.mxu0
  %v5012 = vpop.f32.mrf.mxu0
  %v5013 = vpop.f32.mrf.mxu0
  %v5014 = vpop.f32.mrf.mxu0
  %5015 = vmatprep.mubr.bf16.mxu0 0
  %5016 = vmatmul.mubr.bf16.gmra.mxu0 %v4841
  %v5017 = vpop.f32.mrf.mxu0
  %v5018 = vadd.f32 0.0, %v5017
  %v5019 = vpop.f32.mrf.mxu0
  %v5020 = vpop.f32.mrf.mxu0
  %v5021 = vadd.f32 0.0, %v5020
  %v5022 = vpop.f32.mrf.mxu0
  %5023 = vmatprep.mubr.bf16.mxu0 0
  %5024 = vmatmul.mubr.bf16.gmra.mxu0 %v4844
  %v5025 = vpop.f32.mrf.mxu0
  %v5026 = vadd.f32 0.0, %v5025
  %v5027 = vpop.f32.mrf.mxu0
  %v5028 = vpop.f32.mrf.mxu0
  %v5029 = vadd.f32 0.0, %v5028
  %v5030 = vpop.f32.mrf.mxu0
  %5031 = vmatprep.mubr.bf16.mxu0 0
  %5032 = vmatmul.mubr.bf16.gmra.mxu0 %v4847
  %v5033 = vpop.f32.mrf.mxu0
  %v5034 = vadd.f32 0.0, %v5033
  %v5035 = vpop.f32.mrf.mxu0
  %v5036 = vpop.f32.mrf.mxu0
  %v5037 = vadd.f32 0.0, %v5036
  %v5038 = vpop.f32.mrf.mxu0
  %5039 = vmatprep.mubr.bf16.mxu0 0
  %5040 = vmatmul.mubr.bf16.gmra.mxu0 %v4850
  %v5041 = vpop.f32.mrf.mxu0
  %v5042 = vadd.f32 0.0, %v5041
  %v5043 = vpop.f32.mrf.mxu0
  %v5044 = vpop.f32.mrf.mxu0
  %v5045 = vadd.f32 0.0, %v5044
  %v5046 = vpop.f32.mrf.mxu0
  %5047 = vmatprep.mubr.bf16.mxu0 0
  %5048 = vmatmul.mubr.bf16.gmra.mxu0 %v4853
  %v5049 = vpop.f32.mrf.mxu0
  %v5050 = vpop.f32.mrf.mxu0
  %v5051 = vpop.f32.mrf.mxu0
  %v5052 = vpop.f32.mrf.mxu0
  %5053 = vmatprep.mubr.bf16.mxu0 0
  %5054 = vmatmul.mubr.bf16.gmra.mxu0 %v4856
  %v5055 = vpop.f32.mrf.mxu0
  %v5056 = vadd.f32 0.0, %v5055
  %v5057 = vpop.f32.mrf.mxu0
  %v5058 = vpop.f32.mrf.mxu0
  %v5059 = vadd.f32 0.0, %v5058
  %v5060 = vpop.f32.mrf.mxu0
  %5061 = vmatprep.mubr.bf16.mxu0 0
  %5062 = vmatmul.mubr.bf16.gmra.mxu0 %v4859
  %v5063 = vpop.f32.mrf.mxu0
  %v5064 = vadd.f32 0.0, %v5063
  %v5065 = vpop.f32.mrf.mxu0
  %v5066 = vpop.f32.mrf.mxu0
  %v5067 = vadd.f32 0.0, %v5066
  %v5068 = vpop.f32.mrf.mxu0
  %5069 = vmatprep.mubr.bf16.mxu0 0
  %5070 = vmatmul.mubr.bf16.gmra.mxu0 %v4862
  %v5071 = vpop.f32.mrf.mxu0
  %v5072 = vadd.f32 0.0, %v5071
  %v5073 = vpop.f32.mrf.mxu0
  %v5074 = vpop.f32.mrf.mxu0
  %v5075 = vadd.f32 0.0, %v5074
  %v5076 = vpop.f32.mrf.mxu0
  %5077 = vmatprep.mubr.bf16.mxu0 0
  %5078 = vmatmul.mubr.bf16.gmra.mxu0 %v4865
  %v5079 = vpop.f32.mrf.mxu0
  %v5080 = vadd.f32 0.0, %v5079
  %v5081 = vpop.f32.mrf.mxu0
  %v5082 = vpop.f32.mrf.mxu0
  %v5083 = vadd.f32 0.0, %v5082
  %v5084 = vpop.f32.mrf.mxu0
  %5085 = vmatprep.mubr.bf16.mxu0 0
  %5086 = vmatmul.mubr.bf16.gmra.mxu0 %v4868
  %v5087 = vpop.f32.mrf.mxu0
  %v5088 = vpop.f32.mrf.mxu0
  %v5089 = vpop.f32.mrf.mxu0
  %v5090 = vpop.f32.mrf.mxu0
  %5091 = vmatprep.mubr.bf16.mxu0 0
  %5092 = vmatmul.mubr.bf16.gmra.mxu0 %v4871
  %v5093 = vpop.f32.mrf.mxu0
  %v5094 = vadd.f32 0.0, %v5093
  %v5095 = vpop.f32.mrf.mxu0
  %v5096 = vpop.f32.mrf.mxu0
  %v5097 = vadd.f32 0.0, %v5096
  %v5098 = vpop.f32.mrf.mxu0
  %5099 = vmatprep.mubr.bf16.mxu0 0
  %5100 = vmatmul.mubr.bf16.gmra.mxu0 %v4874
  %v5101 = vpop.f32.mrf.mxu0
  %v5102 = vadd.f32 0.0, %v5101
  %v5103 = vpop.f32.mrf.mxu0
  %v5104 = vpop.f32.mrf.mxu0
  %v5105 = vadd.f32 0.0, %v5104
  %v5106 = vpop.f32.mrf.mxu0
  %5107 = vmatprep.mubr.bf16.mxu0 0
  %5108 = vmatmul.mubr.bf16.gmra.mxu0 %v4877
  %v5109 = vpop.f32.mrf.mxu0
  %v5110 = vadd.f32 0.0, %v5109
  %v5111 = vpop.f32.mrf.mxu0
  %v5112 = vpop.f32.mrf.mxu0
  %v5113 = vadd.f32 0.0, %v5112
  %v5114 = vpop.f32.mrf.mxu0
  %5115 = vmatprep.mubr.bf16.mxu0 0
  %5116 = vmatmul.mubr.bf16.gmra.mxu0 %v4880
  %v5117 = vpop.f32.mrf.mxu0
  %v5118 = vadd.f32 0.0, %v5117
  %v5119 = vpop.f32.mrf.mxu0
  %v5120 = vpop.f32.mrf.mxu0
  %v5121 = vadd.f32 0.0, %v5120
  %v5122 = vpop.f32.mrf.mxu0
  %5123 = vmatprep.mubr.bf16.mxu0 0
  %5124 = vmatmul.mubr.bf16.gmra.mxu0 %v4883
  %v5125 = vpop.f32.mrf.mxu0
  %v5126 = vpop.f32.mrf.mxu0
  %v5127 = vpop.f32.mrf.mxu0
  %v5128 = vpop.f32.mrf.mxu0
  %5129 = vmatprep.mubr.bf16.mxu0 0
  %5130 = vmatmul.mubr.bf16.gmra.mxu0 %v4886
  %v5131 = vpop.f32.mrf.mxu0
  %v5132 = vadd.f32 0.0, %v5131
  %v5133 = vpop.f32.mrf.mxu0
  %v5134 = vpop.f32.mrf.mxu0
  %v5135 = vadd.f32 0.0, %v5134
  %v5136 = vpop.f32.mrf.mxu0
  %5137 = vmatprep.mubr.bf16.mxu0 0
  %5138 = vmatmul.mubr.bf16.gmra.mxu0 %v4889
  %v5139 = vpop.f32.mrf.mxu0
  %v5140 = vadd.f32 0.0, %v5139
  %v5141 = vpop.f32.mrf.mxu0
  %v5142 = vpop.f32.mrf.mxu0
  %v5143 = vadd.f32 0.0, %v5142
  %v5144 = vpop.f32.mrf.mxu0
  %5145 = vmatprep.mubr.bf16.mxu0 0
  %5146 = vmatmul.mubr.bf16.gmra.mxu0 %v4892
  %v5147 = vpop.f32.mrf.mxu0
  %v5148 = vadd.f32 0.0, %v5147
  %v5149 = vpop.f32.mrf.mxu0
  %v5150 = vpop.f32.mrf.mxu0
  %v5151 = vadd.f32 0.0, %v5150
  %v5152 = vpop.f32.mrf.mxu0
  %5153 = vmatprep.mubr.bf16.mxu0 0
  %5154 = vmatmul.mubr.bf16.gmra.mxu0 %v4895
  %v5155 = vpop.f32.mrf.mxu0
  %v5156 = vadd.f32 0.0, %v5155
  %v5157 = vpop.f32.mrf.mxu0
  %v5158 = vpop.f32.mrf.mxu0
  %v5159 = vadd.f32 0.0, %v5158
  %v5160 = vpop.f32.mrf.mxu0
  %5161 = vmatprep.mubr.bf16.mxu0 0
  %5162 = vmatmul.mubr.bf16.gmra.mxu0 %v4898
  %v5163 = vpop.f32.mrf.mxu0
  %v5164 = vpop.f32.mrf.mxu0
  %v5165 = vpop.f32.mrf.mxu0
  %v5166 = vpop.f32.mrf.mxu0
  %5167 = vmatprep.mubr.bf16.mxu0 0
  %5168 = vmatmul.mubr.bf16.gmra.mxu0 %v4901
  %v5169 = vpop.f32.mrf.mxu0
  %v5170 = vadd.f32 0.0, %v5169
  %v5171 = vpop.f32.mrf.mxu0
  %v5172 = vpop.f32.mrf.mxu0
  %v5173 = vadd.f32 0.0, %v5172
  %v5174 = vpop.f32.mrf.mxu0
  %5175 = vmatprep.mubr.bf16.mxu0 0
  %5176 = vmatmul.mubr.bf16.gmra.mxu0 %v4904
  %v5177 = vpop.f32.mrf.mxu0
  %v5178 = vadd.f32 0.0, %v5177
  %v5179 = vpop.f32.mrf.mxu0
  %v5180 = vpop.f32.mrf.mxu0
  %v5181 = vadd.f32 0.0, %v5180
  %v5182 = vpop.f32.mrf.mxu0
  %5183 = vmatprep.mubr.bf16.mxu0 0
  %5184 = vmatmul.mubr.bf16.gmra.mxu0 %v4907
  %v5185 = vpop.f32.mrf.mxu0
  %v5186 = vadd.f32 0.0, %v5185
  %v5187 = vpop.f32.mrf.mxu0
  %v5188 = vpop.f32.mrf.mxu0
  %v5189 = vadd.f32 0.0, %v5188
  %v5190 = vpop.f32.mrf.mxu0
  %5191 = vmatprep.mubr.bf16.mxu0 0
  %5192 = vmatmul.mubr.bf16.gmra.mxu0 %v4910
  %v5193 = vpop.f32.mrf.mxu0
  %v5194 = vadd.f32 0.0, %v5193
  %v5195 = vpop.f32.mrf.mxu0
  %v5196 = vpop.f32.mrf.mxu0
  %v5197 = vadd.f32 0.0, %v5196
  %v5198 = vpop.f32.mrf.mxu0
  %5199 = vmatprep.mubr.bf16.mxu0 0
  %5200 = vmatmul.mubr.bf16.gmra.mxu0 %v4913
  %v5201 = vpop.f32.mrf.mxu0
  %v5202 = vpop.f32.mrf.mxu0
  %v5203 = vpop.f32.mrf.mxu0
  %v5204 = vpop.f32.mrf.mxu0
  %5205 = vmatprep.mubr.bf16.mxu0 0
  %5206 = vmatmul.mubr.bf16.gmra.mxu0 %v4916
  %v5207 = vpop.f32.mrf.mxu0
  %v5208 = vadd.f32 0.0, %v5207
  %v5209 = vpop.f32.mrf.mxu0
  %v5210 = vpop.f32.mrf.mxu0
  %v5211 = vadd.f32 0.0, %v5210
  %v5212 = vpop.f32.mrf.mxu0
  %5213 = vmatprep.mubr.bf16.mxu0 0
  %5214 = vmatmul.mubr.bf16.gmra.mxu0 %v4919
  %v5215 = vpop.f32.mrf.mxu0
  %v5216 = vadd.f32 0.0, %v5215
  %v5217 = vpop.f32.mrf.mxu0
  %v5218 = vpop.f32.mrf.mxu0
  %v5219 = vadd.f32 0.0, %v5218
  %v5220 = vpop.f32.mrf.mxu0
  %5221 = vmatprep.mubr.bf16.mxu0 0
  %5222 = vmatmul.mubr.bf16.gmra.mxu0 %v4922
  %v5223 = vpop.f32.mrf.mxu0
  %v5224 = vadd.f32 0.0, %v5223
  %v5225 = vpop.f32.mrf.mxu0
  %v5226 = vpop.f32.mrf.mxu0
  %v5227 = vadd.f32 0.0, %v5226
  %v5228 = vpop.f32.mrf.mxu0
  %5229 = vmatprep.mubr.bf16.mxu0 0
  %5230 = vmatmul.mubr.bf16.gmra.mxu0 %v4925
  %v5231 = vpop.f32.mrf.mxu0
  %v5232 = vadd.f32 0.0, %v5231
  %v5233 = vpop.f32.mrf.mxu0
  %v5234 = vpop.f32.mrf.mxu0
  %v5235 = vadd.f32 0.0, %v5234
  %v5236 = vpop.f32.mrf.mxu0
  %5237 = vmatprep.mubr.bf16.mxu0 0
  %5238 = vmatmul.mubr.bf16.gmra.mxu0 %v4928
  %v5239 = vpop.f32.mrf.mxu0
  %v5240 = vpop.f32.mrf.mxu0
  %v5241 = vpop.f32.mrf.mxu0
  %v5242 = vpop.f32.mrf.mxu0
  %5243 = vmatprep.mubr.bf16.mxu0 0
  %5244 = vmatmul.mubr.bf16.gmra.mxu0 %v4931
  %v5245 = vpop.f32.mrf.mxu0
  %v5246 = vadd.f32 0.0, %v5245
  %v5247 = vpop.f32.mrf.mxu0
  %v5248 = vpop.f32.mrf.mxu0
  %v5249 = vadd.f32 0.0, %v5248
  %v5250 = vpop.f32.mrf.mxu0
  %5251 = vmatprep.mubr.bf16.mxu0 0
  %5252 = vmatmul.mubr.bf16.gmra.mxu0 %v4934
  %v5253 = vpop.f32.mrf.mxu0
  %v5254 = vadd.f32 0.0, %v5253
  %v5255 = vpop.f32.mrf.mxu0
  %v5256 = vpop.f32.mrf.mxu0
  %v5257 = vadd.f32 0.0, %v5256
  %v5258 = vpop.f32.mrf.mxu0
  %5259 = vmatprep.mubr.bf16.mxu0 0
  %5260 = vmatmul.mubr.bf16.gmra.mxu0 %v4937
  %v5261 = vpop.f32.mrf.mxu0
  %v5262 = vadd.f32 0.0, %v5261
  %v5263 = vpop.f32.mrf.mxu0
  %v5264 = vpop.f32.mrf.mxu0
  %v5265 = vadd.f32 0.0, %v5264
  %v5266 = vpop.f32.mrf.mxu0
  %5267 = vmatprep.mubr.bf16.mxu0 0
  %5268 = vmatmul.mubr.bf16.gmra.mxu0 %v4940
  %v5269 = vpop.f32.mrf.mxu0
  %v5270 = vadd.f32 0.0, %v5269
  %v5271 = vpop.f32.mrf.mxu0
  %v5272 = vpop.f32.mrf.mxu0
  %v5273 = vadd.f32 0.0, %v5272
  %v5274 = vpop.f32.mrf.mxu0
  %5275 = vmatprep.mubr.bf16.mxu0 0
  %5276 = vmatmul.mubr.bf16.gmra.mxu0 %v4943
  %v5277 = vpop.f32.mrf.mxu0
  %v5278 = vpop.f32.mrf.mxu0
  %v5279 = vpop.f32.mrf.mxu0
  %v5280 = vpop.f32.mrf.mxu0
  %5281 = vdwg.mxu0
  %v5282 = vadd.f32 %v4393, %v4980
  %v5283 = vadd.f32 %v4396, %v4983
  %v5284 = vadd.f32 %v4401, %v4988
  %v5285 = vadd.f32 %v4404, %v4991
  %v5286 = vadd.f32 %v4409, %v4996
  %v5287 = vadd.f32 %v4412, %v4999
  %v5288 = vadd.f32 %v4417, %v5004
  %v5289 = vadd.f32 %v4420, %v5007
  %v5290 = vadd.f32 %v4431, %v5018
  %v5291 = vadd.f32 %v4434, %v5021
  %v5292 = vadd.f32 %v4439, %v5026
  %v5293 = vadd.f32 %v4442, %v5029
  %v5294 = vadd.f32 %v4447, %v5034
  %v5295 = vadd.f32 %v4450, %v5037
  %v5296 = vadd.f32 %v4455, %v5042
  %v5297 = vadd.f32 %v4458, %v5045
  %v5298 = vadd.f32 %v4469, %v5056
  %v5299 = vadd.f32 %v4472, %v5059
  %v5300 = vadd.f32 %v4477, %v5064
  %v5301 = vadd.f32 %v4480, %v5067
  %v5302 = vadd.f32 %v4485, %v5072
  %v5303 = vadd.f32 %v4488, %v5075
  %v5304 = vadd.f32 %v4493, %v5080
  %v5305 = vadd.f32 %v4496, %v5083
  %v5306 = vadd.f32 %v4507, %v5094
  %v5307 = vadd.f32 %v4510, %v5097
  %v5308 = vadd.f32 %v4515, %v5102
  %v5309 = vadd.f32 %v4518, %v5105
  %v5310 = vadd.f32 %v4523, %v5110
  %v5311 = vadd.f32 %v4526, %v5113
  %v5312 = vadd.f32 %v4531, %v5118
  %v5313 = vadd.f32 %v4534, %v5121
  %v5314 = vadd.f32 %v4545, %v5132
  %v5315 = vadd.f32 %v4548, %v5135
  %v5316 = vadd.f32 %v4553, %v5140
  %v5317 = vadd.f32 %v4556, %v5143
  %v5318 = vadd.f32 %v4561, %v5148
  %v5319 = vadd.f32 %v4564, %v5151
  %v5320 = vadd.f32 %v4569, %v5156
  %v5321 = vadd.f32 %v4572, %v5159
  %v5322 = vadd.f32 %v4583, %v5170
  %v5323 = vadd.f32 %v4586, %v5173
  %v5324 = vadd.f32 %v4591, %v5178
  %v5325 = vadd.f32 %v4594, %v5181
  %v5326 = vadd.f32 %v4599, %v5186
  %v5327 = vadd.f32 %v4602, %v5189
  %v5328 = vadd.f32 %v4607, %v5194
  %v5329 = vadd.f32 %v4610, %v5197
  %v5330 = vadd.f32 %v4621, %v5208
  %v5331 = vadd.f32 %v4624, %v5211
  %v5332 = vadd.f32 %v4629, %v5216
  %v5333 = vadd.f32 %v4632, %v5219
  %v5334 = vadd.f32 %v4637, %v5224
  %v5335 = vadd.f32 %v4640, %v5227
  %v5336 = vadd.f32 %v4645, %v5232
  %v5337 = vadd.f32 %v4648, %v5235
  %v5338 = vadd.f32 %v4659, %v5246
  %v5339 = vadd.f32 %v4662, %v5249
  %v5340 = vadd.f32 %v4667, %v5254
  %v5341 = vadd.f32 %v4670, %v5257
  %v5342 = vadd.f32 %v4675, %v5262
  %v5343 = vadd.f32 %v4678, %v5265
  %v5344 = vadd.f32 %v4683, %v5270
  %v5345 = vadd.f32 %v4686, %v5273
  %s5346 = scalar_lea.vmem [#allocation2], 80
  %v5347 = vld [vmem:[%s5346] sm:$0xff]
  %v5348 = vld [vmem:[%s5346 + $0x8] sm:$0xff]
  %v5349 = vld [vmem:[%s5346 + $0x10] sm:$0xff]
  %v5350 = vld [vmem:[%s5346 + $0x18] sm:$0xff]
  %v5351 = vld [vmem:[%s5346 + $0x20] sm:$0xff]
  %v5352 = vld [vmem:[%s5346 + $0x28] sm:$0xff]
  %v5353 = vld [vmem:[%s5346 + $0x30] sm:$0xff]
  %v5354 = vld [vmem:[%s5346 + $0x38] sm:$0xff]
  %v5355 = vld [vmem:[%s5346 + $0x40] sm:$0xff]
  %v5356 = vld [vmem:[%s5346 + $0x48] sm:$0xff]
  %v5357 = vld [vmem:[%s5346 + $0x50] sm:$0xff]
  %v5358 = vld [vmem:[%s5346 + $0x58] sm:$0xff]
  %v5359 = vld [vmem:[%s5346 + $0x60] sm:$0xff]
  %v5360 = vld [vmem:[%s5346 + $0x68] sm:$0xff]
  %v5361 = vld [vmem:[%s5346 + $0x70] sm:$0xff]
  %v5362 = vld [vmem:[%s5346 + $0x78] sm:$0xff]
  %v5363 = vld [vmem:[%s5346 + $0x80] sm:$0xff]
  %v5364 = vld [vmem:[%s5346 + $0x88] sm:$0xff]
  %v5365 = vld [vmem:[%s5346 + $0x90] sm:$0xff]
  %v5366 = vld [vmem:[%s5346 + $0x98] sm:$0xff]
  %v5367 = vld [vmem:[%s5346 + $0xa0] sm:$0xff]
  %v5368 = vld [vmem:[%s5346 + $0xa8] sm:$0xff]
  %v5369 = vld [vmem:[%s5346 + $0xb0] sm:$0xff]
  %v5370 = vld [vmem:[%s5346 + $0xb8] sm:$0xff]
  %v5371 = vld [vmem:[%s5346 + $0xc0] sm:$0xff]
  %v5372 = vld [vmem:[%s5346 + $0xc8] sm:$0xff]
  %v5373 = vld [vmem:[%s5346 + $0xd0] sm:$0xff]
  %v5374 = vld [vmem:[%s5346 + $0xd8] sm:$0xff]
  %v5375 = vld [vmem:[%s5346 + $0xe0] sm:$0xff]
  %v5376 = vld [vmem:[%s5346 + $0xe8] sm:$0xff]
  %v5377 = vld [vmem:[%s5346 + $0xf0] sm:$0xff]
  %v5378 = vld [vmem:[%s5346 + $0xf8] sm:$0xff]
  %v5379 = vld [vmem:[%s5346 + $0x100] sm:$0xff]
  %v5380 = vld [vmem:[%s5346 + $0x108] sm:$0xff]
  %v5381 = vld [vmem:[%s5346 + $0x110] sm:$0xff]
  %v5382 = vld [vmem:[%s5346 + $0x118] sm:$0xff]
  %v5383 = vld [vmem:[%s5346 + $0x120] sm:$0xff]
  %v5384 = vld [vmem:[%s5346 + $0x128] sm:$0xff]
  %v5385 = vld [vmem:[%s5346 + $0x130] sm:$0xff]
  %v5386 = vld [vmem:[%s5346 + $0x138] sm:$0xff]
  %v5387 = vld [vmem:[%s5346 + $0x140] sm:$0xff]
  %v5388 = vld [vmem:[%s5346 + $0x148] sm:$0xff]
  %v5389 = vld [vmem:[%s5346 + $0x150] sm:$0xff]
  %v5390 = vld [vmem:[%s5346 + $0x158] sm:$0xff]
  %v5391 = vld [vmem:[%s5346 + $0x160] sm:$0xff]
  %v5392 = vld [vmem:[%s5346 + $0x168] sm:$0xff]
  %v5393 = vld [vmem:[%s5346 + $0x170] sm:$0xff]
  %v5394 = vld [vmem:[%s5346 + $0x178] sm:$0xff]
  %v5395 = vld [vmem:[%s5346 + $0x180] sm:$0xff]
  %v5396 = vld [vmem:[%s5346 + $0x188] sm:$0xff]
  %v5397 = vld [vmem:[%s5346 + $0x190] sm:$0xff]
  %v5398 = vld [vmem:[%s5346 + $0x198] sm:$0xff]
  %v5399 = vld [vmem:[%s5346 + $0x1a0] sm:$0xff]
  %v5400 = vld [vmem:[%s5346 + $0x1a8] sm:$0xff]
  %v5401 = vld [vmem:[%s5346 + $0x1b0] sm:$0xff]
  %v5402 = vld [vmem:[%s5346 + $0x1b8] sm:$0xff]
  %v5403 = vld [vmem:[%s5346 + $0x1c0] sm:$0xff]
  %v5404 = vld [vmem:[%s5346 + $0x1c8] sm:$0xff]
  %v5405 = vld [vmem:[%s5346 + $0x1d0] sm:$0xff]
  %v5406 = vld [vmem:[%s5346 + $0x1d8] sm:$0xff]
  %v5407 = vld [vmem:[%s5346 + $0x1e0] sm:$0xff]
  %v5408 = vld [vmem:[%s5346 + $0x1e8] sm:$0xff]
  %v5409 = vld [vmem:[%s5346 + $0x1f0] sm:$0xff]
  %v5410 = vld [vmem:[%s5346 + $0x1f8] sm:$0xff]
  %v5411 = vld [vmem:[%s5346 + $0x200] sm:$0xff]
  %v5412 = vld [vmem:[%s5346 + $0x208] sm:$0xff]
  %v5413 = vld [vmem:[%s5346 + $0x210] sm:$0xff]
  %v5414 = vld [vmem:[%s5346 + $0x218] sm:$0xff]
  %v5415 = vld [vmem:[%s5346 + $0x220] sm:$0xff]
  %v5416 = vld [vmem:[%s5346 + $0x228] sm:$0xff]
  %v5417 = vld [vmem:[%s5346 + $0x230] sm:$0xff]
  %v5418 = vld [vmem:[%s5346 + $0x238] sm:$0xff]
  %v5419 = vld [vmem:[%s5346 + $0x240] sm:$0xff]
  %v5420 = vld [vmem:[%s5346 + $0x248] sm:$0xff]
  %v5421 = vld [vmem:[%s5346 + $0x250] sm:$0xff]
  %v5422 = vld [vmem:[%s5346 + $0x258] sm:$0xff]
  %v5423 = vld [vmem:[%s5346 + $0x260] sm:$0xff]
  %v5424 = vld [vmem:[%s5346 + $0x268] sm:$0xff]
  %v5425 = vld [vmem:[%s5346 + $0x270] sm:$0xff]
  %v5426 = vld [vmem:[%s5346 + $0x278] sm:$0xff]
  %v5427 = vpack.c.bf16 %v5348, %v5347
  %v5428 = vpack.c.bf16 %v5350, %v5349
  %v5429 = vpack.c.bf16 %v5352, %v5351
  %v5430 = vpack.c.bf16 %v5354, %v5353
  %v5431 = vpack.c.bf16 %v5356, %v5355
  %v5432 = vpack.c.bf16 %v5358, %v5357
  %v5433 = vpack.c.bf16 %v5360, %v5359
  %v5434 = vpack.c.bf16 %v5362, %v5361
  %v5435 = vpack.c.bf16 %v5364, %v5363
  %v5436 = vpack.c.bf16 %v5366, %v5365
  %v5437 = vpack.c.bf16 %v5368, %v5367
  %v5438 = vpack.c.bf16 %v5370, %v5369
  %v5439 = vpack.c.bf16 %v5372, %v5371
  %v5440 = vpack.c.bf16 %v5374, %v5373
  %v5441 = vpack.c.bf16 %v5376, %v5375
  %v5442 = vpack.c.bf16 %v5378, %v5377
  %v5443 = vpack.c.bf16 %v5380, %v5379
  %v5444 = vpack.c.bf16 %v5382, %v5381
  %v5445 = vpack.c.bf16 %v5384, %v5383
  %v5446 = vpack.c.bf16 %v5386, %v5385
  %v5447 = vpack.c.bf16 %v5388, %v5387
  %v5448 = vpack.c.bf16 %v5390, %v5389
  %v5449 = vpack.c.bf16 %v5392, %v5391
  %v5450 = vpack.c.bf16 %v5394, %v5393
  %v5451 = vpack.c.bf16 %v5396, %v5395
  %v5452 = vpack.c.bf16 %v5398, %v5397
  %v5453 = vpack.c.bf16 %v5400, %v5399
  %v5454 = vpack.c.bf16 %v5402, %v5401
  %v5455 = vpack.c.bf16 %v5404, %v5403
  %v5456 = vpack.c.bf16 %v5406, %v5405
  %v5457 = vpack.c.bf16 %v5408, %v5407
  %v5458 = vpack.c.bf16 %v5410, %v5409
  %v5459 = vpack.c.bf16 %v5412, %v5411
  %v5460 = vpack.c.bf16 %v5414, %v5413
  %v5461 = vpack.c.bf16 %v5416, %v5415
  %v5462 = vpack.c.bf16 %v5418, %v5417
  %v5463 = vpack.c.bf16 %v5420, %v5419
  %v5464 = vpack.c.bf16 %v5422, %v5421
  %v5465 = vpack.c.bf16 %v5424, %v5423
  %v5466 = vpack.c.bf16 %v5426, %v5425
  %s5467 = scalar_lea.vmem %s6, 24
  %v5468 = vld [vmem:[%s5467] sm:$0xf]
  %v5469 = vld [vmem:[%s5467 + $0x4] sm:$0xf]
  %v5472 = vunpack.c.l.b16 %v5468
  %v5473 = vunpack.c.l.b16 %v5469
  %v5474 = vpack.c.b16 %v5473, %v5472
  %v5477 = vsel %vm125, %v5427, 0
  %v5480 = vsel %vm125, %v5428, 0
  %v5483 = vsel %vm125, %v5429, 0
  %v5486 = vsel %vm125, %v5430, 0
  %v5489 = vsel %vm125, %v5431, 0
  %v5492 = vsel %vm125, %v5432, 0
  %v5495 = vsel %vm125, %v5433, 0
  %v5498 = vsel %vm125, %v5434, 0
  %v5501 = vsel %vm125, %v5435, 0
  %v5504 = vsel %vm125, %v5436, 0
  %v5507 = vsel %vm125, %v5437, 0
  %v5510 = vsel %vm125, %v5438, 0
  %v5513 = vsel %vm125, %v5439, 0
  %v5516 = vsel %vm125, %v5440, 0
  %v5519 = vsel %vm125, %v5441, 0
  %v5522 = vsel %vm125, %v5442, 0
  %v5525 = vsel %vm125, %v5443, 0
  %v5528 = vsel %vm125, %v5444, 0
  %v5531 = vsel %vm125, %v5445, 0
  %v5534 = vsel %vm125, %v5446, 0
  %v5537 = vsel %vm125, %v5447, 0
  %v5540 = vsel %vm125, %v5448, 0
  %v5543 = vsel %vm125, %v5449, 0
  %v5546 = vsel %vm125, %v5450, 0
  %v5549 = vsel %vm125, %v5451, 0
  %v5552 = vsel %vm125, %v5452, 0
  %v5555 = vsel %vm125, %v5453, 0
  %v5558 = vsel %vm125, %v5454, 0
  %v5561 = vsel %vm125, %v5455, 0
  %v5564 = vsel %vm125, %v5456, 0
  %v5567 = vsel %vm125, %v5457, 0
  %v5570 = vsel %vm125, %v5458, 0
  %v5573 = vsel %vm125, %v5459, 0
  %v5576 = vsel %vm125, %v5460, 0
  %v5579 = vsel %vm125, %v5461, 0
  %v5582 = vsel %vm125, %v5462, 0
  %v5585 = vsel %vm125, %v5463, 0
  %v5588 = vsel %vm125, %v5464, 0
  %v5591 = vsel %vm125, %v5465, 0
  %v5594 = vsel %vm125, %v5466, 0
  %5596 = vmatprep.subr.bf16.mxu0 0
  %5597 = vmatpush1.bf16.msra.mxu0 0
  %5598 = vmatprep.subr.bf16.mxu0 0
  %5599 = vmatpush1.bf16.msra.mxu0 0
  %5600 = vmatprep.subr.bf16.mxu0 0
  %5601 = vmatpush1.bf16.msra.mxu0 0
  %5602 = vmatprep.subr.bf16.mxu0 0
  %5603 = vmatpush1.bf16.msra.mxu0 0
  %5604 = vmatprep.subr.bf16.mxu0 0
  %5605 = vmatpush1.bf16.msra.mxu0 0
  %5606 = vmatprep.subr.bf16.mxu0 0
  %5607 = vmatpush1.bf16.msra.mxu0 0
  %5608 = vmatprep.subr.bf16.mxu0 0
  %5609 = vmatpush1.bf16.msra.mxu0 0
  %5610 = vmatprep.subr.bf16.mxu0 0
  %5611 = vmatpush1.bf16.msra.mxu0 %v5474
  %5612 = vmatprep.subr.bf16.mxu0 0
  %5613 = vmatpush2.bf16.msra.mxu0 0
  %5614 = vmatprep.subr.bf16.mxu0 0
  %5615 = vmatpush2.bf16.msra.mxu0 0
  %5616 = vmatprep.subr.bf16.mxu0 0
  %5617 = vmatpush2.bf16.msra.mxu0 0
  %5618 = vmatprep.subr.bf16.mxu0 0
  %5619 = vmatpush2.bf16.msra.mxu0 0
  %5620 = vmatprep.subr.bf16.mxu0 0
  %5621 = vmatpush2.bf16.msra.mxu0 0
  %5622 = vmatprep.subr.bf16.mxu0 0
  %5623 = vmatpush2.bf16.msra.mxu0 0
  %5624 = vmatprep.subr.bf16.mxu0 0
  %5625 = vmatpush2.bf16.msra.mxu0 0
  %5626 = vmatprep.subr.bf16.mxu0 0
  %5627 = vmatpush2.bf16.msra.mxu0 0
  %5628 = vmatprep.mubr.bf16.mxu0 0
  %5629 = vmatmul.mubr.bf16.gmra.mxu0 %v5477
  %v5630 = vpop.f32.mrf.mxu0
  %v5631 = vadd.f32 0.0, %v5630
  %v5632 = vpop.f32.mrf.mxu0
  %v5633 = vpop.f32.mrf.mxu0
  %v5634 = vadd.f32 0.0, %v5633
  %v5635 = vpop.f32.mrf.mxu0
  %5636 = vmatprep.mubr.bf16.mxu0 0
  %5637 = vmatmul.mubr.bf16.gmra.mxu0 %v5480
  %v5638 = vpop.f32.mrf.mxu0
  %v5639 = vadd.f32 0.0, %v5638
  %v5640 = vpop.f32.mrf.mxu0
  %v5641 = vpop.f32.mrf.mxu0
  %v5642 = vadd.f32 0.0, %v5641
  %v5643 = vpop.f32.mrf.mxu0
  %5644 = vmatprep.mubr.bf16.mxu0 0
  %5645 = vmatmul.mubr.bf16.gmra.mxu0 %v5483
  %v5646 = vpop.f32.mrf.mxu0
  %v5647 = vadd.f32 0.0, %v5646
  %v5648 = vpop.f32.mrf.mxu0
  %v5649 = vpop.f32.mrf.mxu0
  %v5650 = vadd.f32 0.0, %v5649
  %v5651 = vpop.f32.mrf.mxu0
  %5652 = vmatprep.mubr.bf16.mxu0 0
  %5653 = vmatmul.mubr.bf16.gmra.mxu0 %v5486
  %v5654 = vpop.f32.mrf.mxu0
  %v5655 = vadd.f32 0.0, %v5654
  %v5656 = vpop.f32.mrf.mxu0
  %v5657 = vpop.f32.mrf.mxu0
  %v5658 = vadd.f32 0.0, %v5657
  %v5659 = vpop.f32.mrf.mxu0
  %5660 = vmatprep.mubr.bf16.mxu0 0
  %5661 = vmatmul.mubr.bf16.gmra.mxu0 %v5489
  %v5662 = vpop.f32.mrf.mxu0
  %v5663 = vpop.f32.mrf.mxu0
  %v5664 = vpop.f32.mrf.mxu0
  %v5665 = vpop.f32.mrf.mxu0
  %5666 = vmatprep.mubr.bf16.mxu0 0
  %5667 = vmatmul.mubr.bf16.gmra.mxu0 %v5492
  %v5668 = vpop.f32.mrf.mxu0
  %v5669 = vadd.f32 0.0, %v5668
  %v5670 = vpop.f32.mrf.mxu0
  %v5671 = vpop.f32.mrf.mxu0
  %v5672 = vadd.f32 0.0, %v5671
  %v5673 = vpop.f32.mrf.mxu0
  %5674 = vmatprep.mubr.bf16.mxu0 0
  %5675 = vmatmul.mubr.bf16.gmra.mxu0 %v5495
  %v5676 = vpop.f32.mrf.mxu0
  %v5677 = vadd.f32 0.0, %v5676
  %v5678 = vpop.f32.mrf.mxu0
  %v5679 = vpop.f32.mrf.mxu0
  %v5680 = vadd.f32 0.0, %v5679
  %v5681 = vpop.f32.mrf.mxu0
  %5682 = vmatprep.mubr.bf16.mxu0 0
  %5683 = vmatmul.mubr.bf16.gmra.mxu0 %v5498
  %v5684 = vpop.f32.mrf.mxu0
  %v5685 = vadd.f32 0.0, %v5684
  %v5686 = vpop.f32.mrf.mxu0
  %v5687 = vpop.f32.mrf.mxu0
  %v5688 = vadd.f32 0.0, %v5687
  %v5689 = vpop.f32.mrf.mxu0
  %5690 = vmatprep.mubr.bf16.mxu0 0
  %5691 = vmatmul.mubr.bf16.gmra.mxu0 %v5501
  %v5692 = vpop.f32.mrf.mxu0
  %v5693 = vadd.f32 0.0, %v5692
  %v5694 = vpop.f32.mrf.mxu0
  %v5695 = vpop.f32.mrf.mxu0
  %v5696 = vadd.f32 0.0, %v5695
  %v5697 = vpop.f32.mrf.mxu0
  %5698 = vmatprep.mubr.bf16.mxu0 0
  %5699 = vmatmul.mubr.bf16.gmra.mxu0 %v5504
  %v5700 = vpop.f32.mrf.mxu0
  %v5701 = vpop.f32.mrf.mxu0
  %v5702 = vpop.f32.mrf.mxu0
  %v5703 = vpop.f32.mrf.mxu0
  %5704 = vmatprep.mubr.bf16.mxu0 0
  %5705 = vmatmul.mubr.bf16.gmra.mxu0 %v5507
  %v5706 = vpop.f32.mrf.mxu0
  %v5707 = vadd.f32 0.0, %v5706
  %v5708 = vpop.f32.mrf.mxu0
  %v5709 = vpop.f32.mrf.mxu0
  %v5710 = vadd.f32 0.0, %v5709
  %v5711 = vpop.f32.mrf.mxu0
  %5712 = vmatprep.mubr.bf16.mxu0 0
  %5713 = vmatmul.mubr.bf16.gmra.mxu0 %v5510
  %v5714 = vpop.f32.mrf.mxu0
  %v5715 = vadd.f32 0.0, %v5714
  %v5716 = vpop.f32.mrf.mxu0
  %v5717 = vpop.f32.mrf.mxu0
  %v5718 = vadd.f32 0.0, %v5717
  %v5719 = vpop.f32.mrf.mxu0
  %5720 = vmatprep.mubr.bf16.mxu0 0
  %5721 = vmatmul.mubr.bf16.gmra.mxu0 %v5513
  %v5722 = vpop.f32.mrf.mxu0
  %v5723 = vadd.f32 0.0, %v5722
  %v5724 = vpop.f32.mrf.mxu0
  %v5725 = vpop.f32.mrf.mxu0
  %v5726 = vadd.f32 0.0, %v5725
  %v5727 = vpop.f32.mrf.mxu0
  %5728 = vmatprep.mubr.bf16.mxu0 0
  %5729 = vmatmul.mubr.bf16.gmra.mxu0 %v5516
  %v5730 = vpop.f32.mrf.mxu0
  %v5731 = vadd.f32 0.0, %v5730
  %v5732 = vpop.f32.mrf.mxu0
  %v5733 = vpop.f32.mrf.mxu0
  %v5734 = vadd.f32 0.0, %v5733
  %v5735 = vpop.f32.mrf.mxu0
  %5736 = vmatprep.mubr.bf16.mxu0 0
  %5737 = vmatmul.mubr.bf16.gmra.mxu0 %v5519
  %v5738 = vpop.f32.mrf.mxu0
  %v5739 = vpop.f32.mrf.mxu0
  %v5740 = vpop.f32.mrf.mxu0
  %v5741 = vpop.f32.mrf.mxu0
  %5742 = vmatprep.mubr.bf16.mxu0 0
  %5743 = vmatmul.mubr.bf16.gmra.mxu0 %v5522
  %v5744 = vpop.f32.mrf.mxu0
  %v5745 = vadd.f32 0.0, %v5744
  %v5746 = vpop.f32.mrf.mxu0
  %v5747 = vpop.f32.mrf.mxu0
  %v5748 = vadd.f32 0.0, %v5747
  %v5749 = vpop.f32.mrf.mxu0
  %5750 = vmatprep.mubr.bf16.mxu0 0
  %5751 = vmatmul.mubr.bf16.gmra.mxu0 %v5525
  %v5752 = vpop.f32.mrf.mxu0
  %v5753 = vadd.f32 0.0, %v5752
  %v5754 = vpop.f32.mrf.mxu0
  %v5755 = vpop.f32.mrf.mxu0
  %v5756 = vadd.f32 0.0, %v5755
  %v5757 = vpop.f32.mrf.mxu0
  %5758 = vmatprep.mubr.bf16.mxu0 0
  %5759 = vmatmul.mubr.bf16.gmra.mxu0 %v5528
  %v5760 = vpop.f32.mrf.mxu0
  %v5761 = vadd.f32 0.0, %v5760
  %v5762 = vpop.f32.mrf.mxu0
  %v5763 = vpop.f32.mrf.mxu0
  %v5764 = vadd.f32 0.0, %v5763
  %v5765 = vpop.f32.mrf.mxu0
  %5766 = vmatprep.mubr.bf16.mxu0 0
  %5767 = vmatmul.mubr.bf16.gmra.mxu0 %v5531
  %v5768 = vpop.f32.mrf.mxu0
  %v5769 = vadd.f32 0.0, %v5768
  %v5770 = vpop.f32.mrf.mxu0
  %v5771 = vpop.f32.mrf.mxu0
  %v5772 = vadd.f32 0.0, %v5771
  %v5773 = vpop.f32.mrf.mxu0
  %5774 = vmatprep.mubr.bf16.mxu0 0
  %5775 = vmatmul.mubr.bf16.gmra.mxu0 %v5534
  %v5776 = vpop.f32.mrf.mxu0
  %v5777 = vpop.f32.mrf.mxu0
  %v5778 = vpop.f32.mrf.mxu0
  %v5779 = vpop.f32.mrf.mxu0
  %5780 = vmatprep.mubr.bf16.mxu0 0
  %5781 = vmatmul.mubr.bf16.gmra.mxu0 %v5537
  %v5782 = vpop.f32.mrf.mxu0
  %v5783 = vadd.f32 0.0, %v5782
  %v5784 = vpop.f32.mrf.mxu0
  %v5785 = vpop.f32.mrf.mxu0
  %v5786 = vadd.f32 0.0, %v5785
  %v5787 = vpop.f32.mrf.mxu0
  %5788 = vmatprep.mubr.bf16.mxu0 0
  %5789 = vmatmul.mubr.bf16.gmra.mxu0 %v5540
  %v5790 = vpop.f32.mrf.mxu0
  %v5791 = vadd.f32 0.0, %v5790
  %v5792 = vpop.f32.mrf.mxu0
  %v5793 = vpop.f32.mrf.mxu0
  %v5794 = vadd.f32 0.0, %v5793
  %v5795 = vpop.f32.mrf.mxu0
  %5796 = vmatprep.mubr.bf16.mxu0 0
  %5797 = vmatmul.mubr.bf16.gmra.mxu0 %v5543
  %v5798 = vpop.f32.mrf.mxu0
  %v5799 = vadd.f32 0.0, %v5798
  %v5800 = vpop.f32.mrf.mxu0
  %v5801 = vpop.f32.mrf.mxu0
  %v5802 = vadd.f32 0.0, %v5801
  %v5803 = vpop.f32.mrf.mxu0
  %5804 = vmatprep.mubr.bf16.mxu0 0
  %5805 = vmatmul.mubr.bf16.gmra.mxu0 %v5546
  %v5806 = vpop.f32.mrf.mxu0
  %v5807 = vadd.f32 0.0, %v5806
  %v5808 = vpop.f32.mrf.mxu0
  %v5809 = vpop.f32.mrf.mxu0
  %v5810 = vadd.f32 0.0, %v5809
  %v5811 = vpop.f32.mrf.mxu0
  %5812 = vmatprep.mubr.bf16.mxu0 0
  %5813 = vmatmul.mubr.bf16.gmra.mxu0 %v5549
  %v5814 = vpop.f32.mrf.mxu0
  %v5815 = vpop.f32.mrf.mxu0
  %v5816 = vpop.f32.mrf.mxu0
  %v5817 = vpop.f32.mrf.mxu0
  %5818 = vmatprep.mubr.bf16.mxu0 0
  %5819 = vmatmul.mubr.bf16.gmra.mxu0 %v5552
  %v5820 = vpop.f32.mrf.mxu0
  %v5821 = vadd.f32 0.0, %v5820
  %v5822 = vpop.f32.mrf.mxu0
  %v5823 = vpop.f32.mrf.mxu0
  %v5824 = vadd.f32 0.0, %v5823
  %v5825 = vpop.f32.mrf.mxu0
  %5826 = vmatprep.mubr.bf16.mxu0 0
  %5827 = vmatmul.mubr.bf16.gmra.mxu0 %v5555
  %v5828 = vpop.f32.mrf.mxu0
  %v5829 = vadd.f32 0.0, %v5828
  %v5830 = vpop.f32.mrf.mxu0
  %v5831 = vpop.f32.mrf.mxu0
  %v5832 = vadd.f32 0.0, %v5831
  %v5833 = vpop.f32.mrf.mxu0
  %5834 = vmatprep.mubr.bf16.mxu0 0
  %5835 = vmatmul.mubr.bf16.gmra.mxu0 %v5558
  %v5836 = vpop.f32.mrf.mxu0
  %v5837 = vadd.f32 0.0, %v5836
  %v5838 = vpop.f32.mrf.mxu0
  %v5839 = vpop.f32.mrf.mxu0
  %v5840 = vadd.f32 0.0, %v5839
  %v5841 = vpop.f32.mrf.mxu0
  %5842 = vmatprep.mubr.bf16.mxu0 0
  %5843 = vmatmul.mubr.bf16.gmra.mxu0 %v5561
  %v5844 = vpop.f32.mrf.mxu0
  %v5845 = vadd.f32 0.0, %v5844
  %v5846 = vpop.f32.mrf.mxu0
  %v5847 = vpop.f32.mrf.mxu0
  %v5848 = vadd.f32 0.0, %v5847
  %v5849 = vpop.f32.mrf.mxu0
  %5850 = vmatprep.mubr.bf16.mxu0 0
  %5851 = vmatmul.mubr.bf16.gmra.mxu0 %v5564
  %v5852 = vpop.f32.mrf.mxu0
  %v5853 = vpop.f32.mrf.mxu0
  %v5854 = vpop.f32.mrf.mxu0
  %v5855 = vpop.f32.mrf.mxu0
  %5856 = vmatprep.mubr.bf16.mxu0 0
  %5857 = vmatmul.mubr.bf16.gmra.mxu0 %v5567
  %v5858 = vpop.f32.mrf.mxu0
  %v5859 = vadd.f32 0.0, %v5858
  %v5860 = vpop.f32.mrf.mxu0
  %v5861 = vpop.f32.mrf.mxu0
  %v5862 = vadd.f32 0.0, %v5861
  %v5863 = vpop.f32.mrf.mxu0
  %5864 = vmatprep.mubr.bf16.mxu0 0
  %5865 = vmatmul.mubr.bf16.gmra.mxu0 %v5570
  %v5866 = vpop.f32.mrf.mxu0
  %v5867 = vadd.f32 0.0, %v5866
  %v5868 = vpop.f32.mrf.mxu0
  %v5869 = vpop.f32.mrf.mxu0
  %v5870 = vadd.f32 0.0, %v5869
  %v5871 = vpop.f32.mrf.mxu0
  %5872 = vmatprep.mubr.bf16.mxu0 0
  %5873 = vmatmul.mubr.bf16.gmra.mxu0 %v5573
  %v5874 = vpop.f32.mrf.mxu0
  %v5875 = vadd.f32 0.0, %v5874
  %v5876 = vpop.f32.mrf.mxu0
  %v5877 = vpop.f32.mrf.mxu0
  %v5878 = vadd.f32 0.0, %v5877
  %v5879 = vpop.f32.mrf.mxu0
  %5880 = vmatprep.mubr.bf16.mxu0 0
  %5881 = vmatmul.mubr.bf16.gmra.mxu0 %v5576
  %v5882 = vpop.f32.mrf.mxu0
  %v5883 = vadd.f32 0.0, %v5882
  %v5884 = vpop.f32.mrf.mxu0
  %v5885 = vpop.f32.mrf.mxu0
  %v5886 = vadd.f32 0.0, %v5885
  %v5887 = vpop.f32.mrf.mxu0
  %5888 = vmatprep.mubr.bf16.mxu0 0
  %5889 = vmatmul.mubr.bf16.gmra.mxu0 %v5579
  %v5890 = vpop.f32.mrf.mxu0
  %v5891 = vpop.f32.mrf.mxu0
  %v5892 = vpop.f32.mrf.mxu0
  %v5893 = vpop.f32.mrf.mxu0
  %5894 = vmatprep.mubr.bf16.mxu0 0
  %5895 = vmatmul.mubr.bf16.gmra.mxu0 %v5582
  %v5896 = vpop.f32.mrf.mxu0
  %v5897 = vadd.f32 0.0, %v5896
  %v5898 = vpop.f32.mrf.mxu0
  %v5899 = vpop.f32.mrf.mxu0
  %v5900 = vadd.f32 0.0, %v5899
  %v5901 = vpop.f32.mrf.mxu0
  %5902 = vmatprep.mubr.bf16.mxu0 0
  %5903 = vmatmul.mubr.bf16.gmra.mxu0 %v5585
  %v5904 = vpop.f32.mrf.mxu0
  %v5905 = vadd.f32 0.0, %v5904
  %v5906 = vpop.f32.mrf.mxu0
  %v5907 = vpop.f32.mrf.mxu0
  %v5908 = vadd.f32 0.0, %v5907
  %v5909 = vpop.f32.mrf.mxu0
  %5910 = vmatprep.mubr.bf16.mxu0 0
  %5911 = vmatmul.mubr.bf16.gmra.mxu0 %v5588
  %v5912 = vpop.f32.mrf.mxu0
  %v5913 = vadd.f32 0.0, %v5912
  %v5914 = vpop.f32.mrf.mxu0
  %v5915 = vpop.f32.mrf.mxu0
  %v5916 = vadd.f32 0.0, %v5915
  %v5917 = vpop.f32.mrf.mxu0
  %5918 = vmatprep.mubr.bf16.mxu0 0
  %5919 = vmatmul.mubr.bf16.gmra.mxu0 %v5591
  %v5920 = vpop.f32.mrf.mxu0
  %v5921 = vadd.f32 0.0, %v5920
  %v5922 = vpop.f32.mrf.mxu0
  %v5923 = vpop.f32.mrf.mxu0
  %v5924 = vadd.f32 0.0, %v5923
  %v5925 = vpop.f32.mrf.mxu0
  %5926 = vmatprep.mubr.bf16.mxu0 0
  %5927 = vmatmul.mubr.bf16.gmra.mxu0 %v5594
  %v5928 = vpop.f32.mrf.mxu0
  %v5929 = vpop.f32.mrf.mxu0
  %v5930 = vpop.f32.mrf.mxu0
  %v5931 = vpop.f32.mrf.mxu0
  %5932 = vdwg.mxu0
  %v5933 = vadd.f32 %v5282, %v5631
  %v5934 = vadd.f32 %v5283, %v5634
  %v5935 = vadd.f32 %v5284, %v5639
  %v5936 = vadd.f32 %v5285, %v5642
  %v5937 = vadd.f32 %v5286, %v5647
  %v5938 = vadd.f32 %v5287, %v5650
  %v5939 = vadd.f32 %v5288, %v5655
  %v5940 = vadd.f32 %v5289, %v5658
  %v5941 = vadd.f32 %v5290, %v5669
  %v5942 = vadd.f32 %v5291, %v5672
  %v5943 = vadd.f32 %v5292, %v5677
  %v5944 = vadd.f32 %v5293, %v5680
  %v5945 = vadd.f32 %v5294, %v5685
  %v5946 = vadd.f32 %v5295, %v5688
  %v5947 = vadd.f32 %v5296, %v5693
  %v5948 = vadd.f32 %v5297, %v5696
  %v5949 = vadd.f32 %v5298, %v5707
  %v5950 = vadd.f32 %v5299, %v5710
  %v5951 = vadd.f32 %v5300, %v5715
  %v5952 = vadd.f32 %v5301, %v5718
  %v5953 = vadd.f32 %v5302, %v5723
  %v5954 = vadd.f32 %v5303, %v5726
  %v5955 = vadd.f32 %v5304, %v5731
  %v5956 = vadd.f32 %v5305, %v5734
  %v5957 = vadd.f32 %v5306, %v5745
  %v5958 = vadd.f32 %v5307, %v5748
  %v5959 = vadd.f32 %v5308, %v5753
  %v5960 = vadd.f32 %v5309, %v5756
  %v5961 = vadd.f32 %v5310, %v5761
  %v5962 = vadd.f32 %v5311, %v5764
  %v5963 = vadd.f32 %v5312, %v5769
  %v5964 = vadd.f32 %v5313, %v5772
  %v5965 = vadd.f32 %v5314, %v5783
  %v5966 = vadd.f32 %v5315, %v5786
  %v5967 = vadd.f32 %v5316, %v5791
  %v5968 = vadd.f32 %v5317, %v5794
  %v5969 = vadd.f32 %v5318, %v5799
  %v5970 = vadd.f32 %v5319, %v5802
  %v5971 = vadd.f32 %v5320, %v5807
  %v5972 = vadd.f32 %v5321, %v5810
  %v5973 = vadd.f32 %v5322, %v5821
  %v5974 = vadd.f32 %v5323, %v5824
  %v5975 = vadd.f32 %v5324, %v5829
  %v5976 = vadd.f32 %v5325, %v5832
  %v5977 = vadd.f32 %v5326, %v5837
  %v5978 = vadd.f32 %v5327, %v5840
  %v5979 = vadd.f32 %v5328, %v5845
  %v5980 = vadd.f32 %v5329, %v5848
  %v5981 = vadd.f32 %v5330, %v5859
  %v5982 = vadd.f32 %v5331, %v5862
  %v5983 = vadd.f32 %v5332, %v5867
  %v5984 = vadd.f32 %v5333, %v5870
  %v5985 = vadd.f32 %v5334, %v5875
  %v5986 = vadd.f32 %v5335, %v5878
  %v5987 = vadd.f32 %v5336, %v5883
  %v5988 = vadd.f32 %v5337, %v5886
  %v5989 = vadd.f32 %v5338, %v5897
  %v5990 = vadd.f32 %v5339, %v5900
  %v5991 = vadd.f32 %v5340, %v5905
  %v5992 = vadd.f32 %v5341, %v5908
  %v5993 = vadd.f32 %v5342, %v5913
  %v5994 = vadd.f32 %v5343, %v5916
  %v5995 = vadd.f32 %v5344, %v5921
  %v5996 = vadd.f32 %v5345, %v5924
  %v5997 = vld [vmem:[%s3451] sm:$0xff]
  %v5998 = vld [vmem:[%s3451 + $0x8] sm:$0xff]
  %v5999 = vld [vmem:[%s3451 + $0x10] sm:$0xff]
  %v6000 = vld [vmem:[%s3451 + $0x18] sm:$0xff]
  %v6001 = vld [vmem:[%s3451 + $0x20] sm:$0xff]
  %v6002 = vld [vmem:[%s3451 + $0x28] sm:$0xff]
  %v6003 = vld [vmem:[%s3451 + $0x30] sm:$0xff]
  %v6004 = vld [vmem:[%s3451 + $0x38] sm:$0xff]
  %v6005 = vld [vmem:[%s3451 + $0x40] sm:$0xff]
  %v6006 = vld [vmem:[%s3451 + $0x48] sm:$0xff]
  %v6007 = vld [vmem:[%s3451 + $0x50] sm:$0xff]
  %v6008 = vld [vmem:[%s3451 + $0x58] sm:$0xff]
  %v6009 = vld [vmem:[%s3451 + $0x60] sm:$0xff]
  %v6010 = vld [vmem:[%s3451 + $0x68] sm:$0xff]
  %v6011 = vld [vmem:[%s3451 + $0x70] sm:$0xff]
  %v6012 = vld [vmem:[%s3451 + $0x78] sm:$0xff]
  %v6013 = vld [vmem:[%s3451 + $0x80] sm:$0xff]
  %v6014 = vld [vmem:[%s3451 + $0x88] sm:$0xff]
  %v6015 = vld [vmem:[%s3451 + $0x90] sm:$0xff]
  %v6016 = vld [vmem:[%s3451 + $0x98] sm:$0xff]
  %v6017 = vld [vmem:[%s3451 + $0xa0] sm:$0xff]
  %v6018 = vld [vmem:[%s3451 + $0xa8] sm:$0xff]
  %v6019 = vld [vmem:[%s3451 + $0xb0] sm:$0xff]
  %v6020 = vld [vmem:[%s3451 + $0xb8] sm:$0xff]
  %v6021 = vld [vmem:[%s3451 + $0xc0] sm:$0xff]
  %v6022 = vld [vmem:[%s3451 + $0xc8] sm:$0xff]
  %v6023 = vld [vmem:[%s3451 + $0xd0] sm:$0xff]
  %v6024 = vld [vmem:[%s3451 + $0xd8] sm:$0xff]
  %v6025 = vld [vmem:[%s3451 + $0xe0] sm:$0xff]
  %v6026 = vld [vmem:[%s3451 + $0xe8] sm:$0xff]
  %v6027 = vld [vmem:[%s3451 + $0xf0] sm:$0xff]
  %v6028 = vld [vmem:[%s3451 + $0xf8] sm:$0xff]
  %v6029 = vld [vmem:[%s3451 + $0x100] sm:$0xff]
  %v6030 = vld [vmem:[%s3451 + $0x108] sm:$0xff]
  %v6031 = vld [vmem:[%s3451 + $0x110] sm:$0xff]
  %v6032 = vld [vmem:[%s3451 + $0x118] sm:$0xff]
  %v6033 = vld [vmem:[%s3451 + $0x120] sm:$0xff]
  %v6034 = vld [vmem:[%s3451 + $0x128] sm:$0xff]
  %v6035 = vld [vmem:[%s3451 + $0x130] sm:$0xff]
  %v6036 = vld [vmem:[%s3451 + $0x138] sm:$0xff]
  %v6037 = vld [vmem:[%s3451 + $0x140] sm:$0xff]
  %v6038 = vld [vmem:[%s3451 + $0x148] sm:$0xff]
  %v6039 = vld [vmem:[%s3451 + $0x150] sm:$0xff]
  %v6040 = vld [vmem:[%s3451 + $0x158] sm:$0xff]
  %v6041 = vld [vmem:[%s3451 + $0x160] sm:$0xff]
  %v6042 = vld [vmem:[%s3451 + $0x168] sm:$0xff]
  %v6043 = vld [vmem:[%s3451 + $0x170] sm:$0xff]
  %v6044 = vld [vmem:[%s3451 + $0x178] sm:$0xff]
  %v6045 = vld [vmem:[%s3451 + $0x180] sm:$0xff]
  %v6046 = vld [vmem:[%s3451 + $0x188] sm:$0xff]
  %v6047 = vld [vmem:[%s3451 + $0x190] sm:$0xff]
  %v6048 = vld [vmem:[%s3451 + $0x198] sm:$0xff]
  %v6049 = vld [vmem:[%s3451 + $0x1a0] sm:$0xff]
  %v6050 = vld [vmem:[%s3451 + $0x1a8] sm:$0xff]
  %v6051 = vld [vmem:[%s3451 + $0x1b0] sm:$0xff]
  %v6052 = vld [vmem:[%s3451 + $0x1b8] sm:$0xff]
  %v6053 = vld [vmem:[%s3451 + $0x1c0] sm:$0xff]
  %v6054 = vld [vmem:[%s3451 + $0x1c8] sm:$0xff]
  %v6055 = vld [vmem:[%s3451 + $0x1d0] sm:$0xff]
  %v6056 = vld [vmem:[%s3451 + $0x1d8] sm:$0xff]
  %v6057 = vld [vmem:[%s3451 + $0x1e0] sm:$0xff]
  %v6058 = vld [vmem:[%s3451 + $0x1e8] sm:$0xff]
  %v6059 = vld [vmem:[%s3451 + $0x1f0] sm:$0xff]
  %v6060 = vld [vmem:[%s3451 + $0x1f8] sm:$0xff]
  %v6061 = vld [vmem:[%s3451 + $0x200] sm:$0xff]
  %v6062 = vld [vmem:[%s3451 + $0x208] sm:$0xff]
  %v6063 = vld [vmem:[%s3451 + $0x210] sm:$0xff]
  %v6064 = vld [vmem:[%s3451 + $0x218] sm:$0xff]
  %v6065 = vld [vmem:[%s3451 + $0x220] sm:$0xff]
  %v6066 = vld [vmem:[%s3451 + $0x228] sm:$0xff]
  %v6067 = vld [vmem:[%s3451 + $0x230] sm:$0xff]
  %v6068 = vld [vmem:[%s3451 + $0x238] sm:$0xff]
  %v6069 = vld [vmem:[%s3451 + $0x240] sm:$0xff]
  %v6070 = vld [vmem:[%s3451 + $0x248] sm:$0xff]
  %v6071 = vld [vmem:[%s3451 + $0x250] sm:$0xff]
  %v6072 = vld [vmem:[%s3451 + $0x258] sm:$0xff]
  %v6073 = vld [vmem:[%s3451 + $0x260] sm:$0xff]
  %v6074 = vld [vmem:[%s3451 + $0x268] sm:$0xff]
  %v6075 = vld [vmem:[%s3451 + $0x270] sm:$0xff]
  %v6076 = vld [vmem:[%s3451 + $0x278] sm:$0xff]
  %v6077 = vpack.c.bf16 %v5998, %v5997
  %v6078 = vpack.c.bf16 %v6000, %v5999
  %v6079 = vpack.c.bf16 %v6002, %v6001
  %v6080 = vpack.c.bf16 %v6004, %v6003
  %v6081 = vpack.c.bf16 %v6006, %v6005
  %v6082 = vpack.c.bf16 %v6008, %v6007
  %v6083 = vpack.c.bf16 %v6010, %v6009
  %v6084 = vpack.c.bf16 %v6012, %v6011
  %v6085 = vpack.c.bf16 %v6014, %v6013
  %v6086 = vpack.c.bf16 %v6016, %v6015
  %v6087 = vpack.c.bf16 %v6018, %v6017
  %v6088 = vpack.c.bf16 %v6020, %v6019
  %v6089 = vpack.c.bf16 %v6022, %v6021
  %v6090 = vpack.c.bf16 %v6024, %v6023
  %v6091 = vpack.c.bf16 %v6026, %v6025
  %v6092 = vpack.c.bf16 %v6028, %v6027
  %v6093 = vpack.c.bf16 %v6030, %v6029
  %v6094 = vpack.c.bf16 %v6032, %v6031
  %v6095 = vpack.c.bf16 %v6034, %v6033
  %v6096 = vpack.c.bf16 %v6036, %v6035
  %v6097 = vpack.c.bf16 %v6038, %v6037
  %v6098 = vpack.c.bf16 %v6040, %v6039
  %v6099 = vpack.c.bf16 %v6042, %v6041
  %v6100 = vpack.c.bf16 %v6044, %v6043
  %v6101 = vpack.c.bf16 %v6046, %v6045
  %v6102 = vpack.c.bf16 %v6048, %v6047
  %v6103 = vpack.c.bf16 %v6050, %v6049
  %v6104 = vpack.c.bf16 %v6052, %v6051
  %v6105 = vpack.c.bf16 %v6054, %v6053
  %v6106 = vpack.c.bf16 %v6056, %v6055
  %v6107 = vpack.c.bf16 %v6058, %v6057
  %v6108 = vpack.c.bf16 %v6060, %v6059
  %v6109 = vpack.c.bf16 %v6062, %v6061
  %v6110 = vpack.c.bf16 %v6064, %v6063
  %v6111 = vpack.c.bf16 %v6066, %v6065
  %v6112 = vpack.c.bf16 %v6068, %v6067
  %v6113 = vpack.c.bf16 %v6070, %v6069
  %v6114 = vpack.c.bf16 %v6072, %v6071
  %v6115 = vpack.c.bf16 %v6074, %v6073
  %v6116 = vpack.c.bf16 %v6076, %v6075
  %s6117 = scalar_lea.vmem %s6, 32
  %v6118 = vld [vmem:[%s6117] sm:$0xf]
  %v6119 = vld [vmem:[%s6117 + $0x4] sm:$0xf]
  %v6122 = vunpack.c.l.b16 %v6118
  %v6123 = vunpack.c.l.b16 %v6119
  %v6124 = vpack.c.b16 %v6123, %v6122
  %v6127 = vsel %vm125, %v6077, 0
  %v6130 = vsel %vm125, %v6078, 0
  %v6133 = vsel %vm125, %v6079, 0
  %v6136 = vsel %vm125, %v6080, 0
  %v6139 = vsel %vm125, %v6081, 0
  %v6142 = vsel %vm125, %v6082, 0
  %v6145 = vsel %vm125, %v6083, 0
  %v6148 = vsel %vm125, %v6084, 0
  %v6151 = vsel %vm125, %v6085, 0
  %v6154 = vsel %vm125, %v6086, 0
  %v6157 = vsel %vm125, %v6087, 0
  %v6160 = vsel %vm125, %v6088, 0
  %v6163 = vsel %vm125, %v6089, 0
  %v6166 = vsel %vm125, %v6090, 0
  %v6169 = vsel %vm125, %v6091, 0
  %v6172 = vsel %vm125, %v6092, 0
  %v6175 = vsel %vm125, %v6093, 0
  %v6178 = vsel %vm125, %v6094, 0
  %v6181 = vsel %vm125, %v6095, 0
  %v6184 = vsel %vm125, %v6096, 0
  %v6187 = vsel %vm125, %v6097, 0
  %v6190 = vsel %vm125, %v6098, 0
  %v6193 = vsel %vm125, %v6099, 0
  %v6196 = vsel %vm125, %v6100, 0
  %v6199 = vsel %vm125, %v6101, 0
  %v6202 = vsel %vm125, %v6102, 0
  %v6205 = vsel %vm125, %v6103, 0
  %v6208 = vsel %vm125, %v6104, 0
  %v6211 = vsel %vm125, %v6105, 0
  %v6214 = vsel %vm125, %v6106, 0
  %v6217 = vsel %vm125, %v6107, 0
  %v6220 = vsel %vm125, %v6108, 0
  %v6223 = vsel %vm125, %v6109, 0
  %v6226 = vsel %vm125, %v6110, 0
  %v6229 = vsel %vm125, %v6111, 0
  %v6232 = vsel %vm125, %v6112, 0
  %v6235 = vsel %vm125, %v6113, 0
  %v6238 = vsel %vm125, %v6114, 0
  %v6241 = vsel %vm125, %v6115, 0
  %v6244 = vsel %vm125, %v6116, 0
  %6246 = vmatprep.subr.bf16.mxu0 0
  %6247 = vmatpush1.bf16.msra.mxu0 0
  %6248 = vmatprep.subr.bf16.mxu0 0
  %6249 = vmatpush1.bf16.msra.mxu0 0
  %6250 = vmatprep.subr.bf16.mxu0 0
  %6251 = vmatpush1.bf16.msra.mxu0 0
  %6252 = vmatprep.subr.bf16.mxu0 0
  %6253 = vmatpush1.bf16.msra.mxu0 0
  %6254 = vmatprep.subr.bf16.mxu0 0
  %6255 = vmatpush1.bf16.msra.mxu0 0
  %6256 = vmatprep.subr.bf16.mxu0 0
  %6257 = vmatpush1.bf16.msra.mxu0 0
  %6258 = vmatprep.subr.bf16.mxu0 0
  %6259 = vmatpush1.bf16.msra.mxu0 0
  %6260 = vmatprep.subr.bf16.mxu0 0
  %6261 = vmatpush1.bf16.msra.mxu0 %v6124
  %6262 = vmatprep.subr.bf16.mxu0 0
  %6263 = vmatpush2.bf16.msra.mxu0 0
  %6264 = vmatprep.subr.bf16.mxu0 0
  %6265 = vmatpush2.bf16.msra.mxu0 0
  %6266 = vmatprep.subr.bf16.mxu0 0
  %6267 = vmatpush2.bf16.msra.mxu0 0
  %6268 = vmatprep.subr.bf16.mxu0 0
  %6269 = vmatpush2.bf16.msra.mxu0 0
  %6270 = vmatprep.subr.bf16.mxu0 0
  %6271 = vmatpush2.bf16.msra.mxu0 0
  %6272 = vmatprep.subr.bf16.mxu0 0
  %6273 = vmatpush2.bf16.msra.mxu0 0
  %6274 = vmatprep.subr.bf16.mxu0 0
  %6275 = vmatpush2.bf16.msra.mxu0 0
  %6276 = vmatprep.subr.bf16.mxu0 0
  %6277 = vmatpush2.bf16.msra.mxu0 0
  %6278 = vmatprep.mubr.bf16.mxu0 0
  %6279 = vmatmul.mubr.bf16.gmra.mxu0 %v6127
  %v6280 = vpop.f32.mrf.mxu0
  %v6281 = vadd.f32 0.0, %v6280
  %v6282 = vpop.f32.mrf.mxu0
  %v6283 = vpop.f32.mrf.mxu0
  %v6284 = vadd.f32 0.0, %v6283
  %v6285 = vpop.f32.mrf.mxu0
  %6286 = vmatprep.mubr.bf16.mxu0 0
  %6287 = vmatmul.mubr.bf16.gmra.mxu0 %v6130
  %v6288 = vpop.f32.mrf.mxu0
  %v6289 = vadd.f32 0.0, %v6288
  %v6290 = vpop.f32.mrf.mxu0
  %v6291 = vpop.f32.mrf.mxu0
  %v6292 = vadd.f32 0.0, %v6291
  %v6293 = vpop.f32.mrf.mxu0
  %6294 = vmatprep.mubr.bf16.mxu0 0
  %6295 = vmatmul.mubr.bf16.gmra.mxu0 %v6133
  %v6296 = vpop.f32.mrf.mxu0
  %v6297 = vadd.f32 0.0, %v6296
  %v6298 = vpop.f32.mrf.mxu0
  %v6299 = vpop.f32.mrf.mxu0
  %v6300 = vadd.f32 0.0, %v6299
  %v6301 = vpop.f32.mrf.mxu0
  %6302 = vmatprep.mubr.bf16.mxu0 0
  %6303 = vmatmul.mubr.bf16.gmra.mxu0 %v6136
  %v6304 = vpop.f32.mrf.mxu0
  %v6305 = vadd.f32 0.0, %v6304
  %v6306 = vpop.f32.mrf.mxu0
  %v6307 = vpop.f32.mrf.mxu0
  %v6308 = vadd.f32 0.0, %v6307
  %v6309 = vpop.f32.mrf.mxu0
  %6310 = vmatprep.mubr.bf16.mxu0 0
  %6311 = vmatmul.mubr.bf16.gmra.mxu0 %v6139
  %v6312 = vpop.f32.mrf.mxu0
  %v6313 = vpop.f32.mrf.mxu0
  %v6314 = vpop.f32.mrf.mxu0
  %v6315 = vpop.f32.mrf.mxu0
  %6316 = vmatprep.mubr.bf16.mxu0 0
  %6317 = vmatmul.mubr.bf16.gmra.mxu0 %v6142
  %v6318 = vpop.f32.mrf.mxu0
  %v6319 = vadd.f32 0.0, %v6318
  %v6320 = vpop.f32.mrf.mxu0
  %v6321 = vpop.f32.mrf.mxu0
  %v6322 = vadd.f32 0.0, %v6321
  %v6323 = vpop.f32.mrf.mxu0
  %6324 = vmatprep.mubr.bf16.mxu0 0
  %6325 = vmatmul.mubr.bf16.gmra.mxu0 %v6145
  %v6326 = vpop.f32.mrf.mxu0
  %v6327 = vadd.f32 0.0, %v6326
  %v6328 = vpop.f32.mrf.mxu0
  %v6329 = vpop.f32.mrf.mxu0
  %v6330 = vadd.f32 0.0, %v6329
  %v6331 = vpop.f32.mrf.mxu0
  %6332 = vmatprep.mubr.bf16.mxu0 0
  %6333 = vmatmul.mubr.bf16.gmra.mxu0 %v6148
  %v6334 = vpop.f32.mrf.mxu0
  %v6335 = vadd.f32 0.0, %v6334
  %v6336 = vpop.f32.mrf.mxu0
  %v6337 = vpop.f32.mrf.mxu0
  %v6338 = vadd.f32 0.0, %v6337
  %v6339 = vpop.f32.mrf.mxu0
  %6340 = vmatprep.mubr.bf16.mxu0 0
  %6341 = vmatmul.mubr.bf16.gmra.mxu0 %v6151
  %v6342 = vpop.f32.mrf.mxu0
  %v6343 = vadd.f32 0.0, %v6342
  %v6344 = vpop.f32.mrf.mxu0
  %v6345 = vpop.f32.mrf.mxu0
  %v6346 = vadd.f32 0.0, %v6345
  %v6347 = vpop.f32.mrf.mxu0
  %6348 = vmatprep.mubr.bf16.mxu0 0
  %6349 = vmatmul.mubr.bf16.gmra.mxu0 %v6154
  %v6350 = vpop.f32.mrf.mxu0
  %v6351 = vpop.f32.mrf.mxu0
  %v6352 = vpop.f32.mrf.mxu0
  %v6353 = vpop.f32.mrf.mxu0
  %6354 = vmatprep.mubr.bf16.mxu0 0
  %6355 = vmatmul.mubr.bf16.gmra.mxu0 %v6157
  %v6356 = vpop.f32.mrf.mxu0
  %v6357 = vadd.f32 0.0, %v6356
  %v6358 = vpop.f32.mrf.mxu0
  %v6359 = vpop.f32.mrf.mxu0
  %v6360 = vadd.f32 0.0, %v6359
  %v6361 = vpop.f32.mrf.mxu0
  %6362 = vmatprep.mubr.bf16.mxu0 0
  %6363 = vmatmul.mubr.bf16.gmra.mxu0 %v6160
  %v6364 = vpop.f32.mrf.mxu0
  %v6365 = vadd.f32 0.0, %v6364
  %v6366 = vpop.f32.mrf.mxu0
  %v6367 = vpop.f32.mrf.mxu0
  %v6368 = vadd.f32 0.0, %v6367
  %v6369 = vpop.f32.mrf.mxu0
  %6370 = vmatprep.mubr.bf16.mxu0 0
  %6371 = vmatmul.mubr.bf16.gmra.mxu0 %v6163
  %v6372 = vpop.f32.mrf.mxu0
  %v6373 = vadd.f32 0.0, %v6372
  %v6374 = vpop.f32.mrf.mxu0
  %v6375 = vpop.f32.mrf.mxu0
  %v6376 = vadd.f32 0.0, %v6375
  %v6377 = vpop.f32.mrf.mxu0
  %6378 = vmatprep.mubr.bf16.mxu0 0
  %6379 = vmatmul.mubr.bf16.gmra.mxu0 %v6166
  %v6380 = vpop.f32.mrf.mxu0
  %v6381 = vadd.f32 0.0, %v6380
  %v6382 = vpop.f32.mrf.mxu0
  %v6383 = vpop.f32.mrf.mxu0
  %v6384 = vadd.f32 0.0, %v6383
  %v6385 = vpop.f32.mrf.mxu0
  %6386 = vmatprep.mubr.bf16.mxu0 0
  %6387 = vmatmul.mubr.bf16.gmra.mxu0 %v6169
  %v6388 = vpop.f32.mrf.mxu0
  %v6389 = vpop.f32.mrf.mxu0
  %v6390 = vpop.f32.mrf.mxu0
  %v6391 = vpop.f32.mrf.mxu0
  %6392 = vmatprep.mubr.bf16.mxu0 0
  %6393 = vmatmul.mubr.bf16.gmra.mxu0 %v6172
  %v6394 = vpop.f32.mrf.mxu0
  %v6395 = vadd.f32 0.0, %v6394
  %v6396 = vpop.f32.mrf.mxu0
  %v6397 = vpop.f32.mrf.mxu0
  %v6398 = vadd.f32 0.0, %v6397
  %v6399 = vpop.f32.mrf.mxu0
  %6400 = vmatprep.mubr.bf16.mxu0 0
  %6401 = vmatmul.mubr.bf16.gmra.mxu0 %v6175
  %v6402 = vpop.f32.mrf.mxu0
  %v6403 = vadd.f32 0.0, %v6402
  %v6404 = vpop.f32.mrf.mxu0
  %v6405 = vpop.f32.mrf.mxu0
  %v6406 = vadd.f32 0.0, %v6405
  %v6407 = vpop.f32.mrf.mxu0
  %6408 = vmatprep.mubr.bf16.mxu0 0
  %6409 = vmatmul.mubr.bf16.gmra.mxu0 %v6178
  %v6410 = vpop.f32.mrf.mxu0
  %v6411 = vadd.f32 0.0, %v6410
  %v6412 = vpop.f32.mrf.mxu0
  %v6413 = vpop.f32.mrf.mxu0
  %v6414 = vadd.f32 0.0, %v6413
  %v6415 = vpop.f32.mrf.mxu0
  %6416 = vmatprep.mubr.bf16.mxu0 0
  %6417 = vmatmul.mubr.bf16.gmra.mxu0 %v6181
  %v6418 = vpop.f32.mrf.mxu0
  %v6419 = vadd.f32 0.0, %v6418
  %v6420 = vpop.f32.mrf.mxu0
  %v6421 = vpop.f32.mrf.mxu0
  %v6422 = vadd.f32 0.0, %v6421
  %v6423 = vpop.f32.mrf.mxu0
  %6424 = vmatprep.mubr.bf16.mxu0 0
  %6425 = vmatmul.mubr.bf16.gmra.mxu0 %v6184
  %v6426 = vpop.f32.mrf.mxu0
  %v6427 = vpop.f32.mrf.mxu0
  %v6428 = vpop.f32.mrf.mxu0
  %v6429 = vpop.f32.mrf.mxu0
  %6430 = vmatprep.mubr.bf16.mxu0 0
  %6431 = vmatmul.mubr.bf16.gmra.mxu0 %v6187
  %v6432 = vpop.f32.mrf.mxu0
  %v6433 = vadd.f32 0.0, %v6432
  %v6434 = vpop.f32.mrf.mxu0
  %v6435 = vpop.f32.mrf.mxu0
  %v6436 = vadd.f32 0.0, %v6435
  %v6437 = vpop.f32.mrf.mxu0
  %6438 = vmatprep.mubr.bf16.mxu0 0
  %6439 = vmatmul.mubr.bf16.gmra.mxu0 %v6190
  %v6440 = vpop.f32.mrf.mxu0
  %v6441 = vadd.f32 0.0, %v6440
  %v6442 = vpop.f32.mrf.mxu0
  %v6443 = vpop.f32.mrf.mxu0
  %v6444 = vadd.f32 0.0, %v6443
  %v6445 = vpop.f32.mrf.mxu0
  %6446 = vmatprep.mubr.bf16.mxu0 0
  %6447 = vmatmul.mubr.bf16.gmra.mxu0 %v6193
  %v6448 = vpop.f32.mrf.mxu0
  %v6449 = vadd.f32 0.0, %v6448
  %v6450 = vpop.f32.mrf.mxu0
  %v6451 = vpop.f32.mrf.mxu0
  %v6452 = vadd.f32 0.0, %v6451
  %v6453 = vpop.f32.mrf.mxu0
  %6454 = vmatprep.mubr.bf16.mxu0 0
  %6455 = vmatmul.mubr.bf16.gmra.mxu0 %v6196
  %v6456 = vpop.f32.mrf.mxu0
  %v6457 = vadd.f32 0.0, %v6456
  %v6458 = vpop.f32.mrf.mxu0
  %v6459 = vpop.f32.mrf.mxu0
  %v6460 = vadd.f32 0.0, %v6459
  %v6461 = vpop.f32.mrf.mxu0
  %6462 = vmatprep.mubr.bf16.mxu0 0
  %6463 = vmatmul.mubr.bf16.gmra.mxu0 %v6199
  %v6464 = vpop.f32.mrf.mxu0
  %v6465 = vpop.f32.mrf.mxu0
  %v6466 = vpop.f32.mrf.mxu0
  %v6467 = vpop.f32.mrf.mxu0
  %6468 = vmatprep.mubr.bf16.mxu0 0
  %6469 = vmatmul.mubr.bf16.gmra.mxu0 %v6202
  %v6470 = vpop.f32.mrf.mxu0
  %v6471 = vadd.f32 0.0, %v6470
  %v6472 = vpop.f32.mrf.mxu0
  %v6473 = vpop.f32.mrf.mxu0
  %v6474 = vadd.f32 0.0, %v6473
  %v6475 = vpop.f32.mrf.mxu0
  %6476 = vmatprep.mubr.bf16.mxu0 0
  %6477 = vmatmul.mubr.bf16.gmra.mxu0 %v6205
  %v6478 = vpop.f32.mrf.mxu0
  %v6479 = vadd.f32 0.0, %v6478
  %v6480 = vpop.f32.mrf.mxu0
  %v6481 = vpop.f32.mrf.mxu0
  %v6482 = vadd.f32 0.0, %v6481
  %v6483 = vpop.f32.mrf.mxu0
  %6484 = vmatprep.mubr.bf16.mxu0 0
  %6485 = vmatmul.mubr.bf16.gmra.mxu0 %v6208
  %v6486 = vpop.f32.mrf.mxu0
  %v6487 = vadd.f32 0.0, %v6486
  %v6488 = vpop.f32.mrf.mxu0
  %v6489 = vpop.f32.mrf.mxu0
  %v6490 = vadd.f32 0.0, %v6489
  %v6491 = vpop.f32.mrf.mxu0
  %6492 = vmatprep.mubr.bf16.mxu0 0
  %6493 = vmatmul.mubr.bf16.gmra.mxu0 %v6211
  %v6494 = vpop.f32.mrf.mxu0
  %v6495 = vadd.f32 0.0, %v6494
  %v6496 = vpop.f32.mrf.mxu0
  %v6497 = vpop.f32.mrf.mxu0
  %v6498 = vadd.f32 0.0, %v6497
  %v6499 = vpop.f32.mrf.mxu0
  %6500 = vmatprep.mubr.bf16.mxu0 0
  %6501 = vmatmul.mubr.bf16.gmra.mxu0 %v6214
  %v6502 = vpop.f32.mrf.mxu0
  %v6503 = vpop.f32.mrf.mxu0
  %v6504 = vpop.f32.mrf.mxu0
  %v6505 = vpop.f32.mrf.mxu0
  %6506 = vmatprep.mubr.bf16.mxu0 0
  %6507 = vmatmul.mubr.bf16.gmra.mxu0 %v6217
  %v6508 = vpop.f32.mrf.mxu0
  %v6509 = vadd.f32 0.0, %v6508
  %v6510 = vpop.f32.mrf.mxu0
  %v6511 = vpop.f32.mrf.mxu0
  %v6512 = vadd.f32 0.0, %v6511
  %v6513 = vpop.f32.mrf.mxu0
  %6514 = vmatprep.mubr.bf16.mxu0 0
  %6515 = vmatmul.mubr.bf16.gmra.mxu0 %v6220
  %v6516 = vpop.f32.mrf.mxu0
  %v6517 = vadd.f32 0.0, %v6516
  %v6518 = vpop.f32.mrf.mxu0
  %v6519 = vpop.f32.mrf.mxu0
  %v6520 = vadd.f32 0.0, %v6519
  %v6521 = vpop.f32.mrf.mxu0
  %6522 = vmatprep.mubr.bf16.mxu0 0
  %6523 = vmatmul.mubr.bf16.gmra.mxu0 %v6223
  %v6524 = vpop.f32.mrf.mxu0
  %v6525 = vadd.f32 0.0, %v6524
  %v6526 = vpop.f32.mrf.mxu0
  %v6527 = vpop.f32.mrf.mxu0
  %v6528 = vadd.f32 0.0, %v6527
  %v6529 = vpop.f32.mrf.mxu0
  %6530 = vmatprep.mubr.bf16.mxu0 0
  %6531 = vmatmul.mubr.bf16.gmra.mxu0 %v6226
  %v6532 = vpop.f32.mrf.mxu0
  %v6533 = vadd.f32 0.0, %v6532
  %v6534 = vpop.f32.mrf.mxu0
  %v6535 = vpop.f32.mrf.mxu0
  %v6536 = vadd.f32 0.0, %v6535
  %v6537 = vpop.f32.mrf.mxu0
  %6538 = vmatprep.mubr.bf16.mxu0 0
  %6539 = vmatmul.mubr.bf16.gmra.mxu0 %v6229
  %v6540 = vpop.f32.mrf.mxu0
  %v6541 = vpop.f32.mrf.mxu0
  %v6542 = vpop.f32.mrf.mxu0
  %v6543 = vpop.f32.mrf.mxu0
  %6544 = vmatprep.mubr.bf16.mxu0 0
  %6545 = vmatmul.mubr.bf16.gmra.mxu0 %v6232
  %v6546 = vpop.f32.mrf.mxu0
  %v6547 = vadd.f32 0.0, %v6546
  %v6548 = vpop.f32.mrf.mxu0
  %v6549 = vpop.f32.mrf.mxu0
  %v6550 = vadd.f32 0.0, %v6549
  %v6551 = vpop.f32.mrf.mxu0
  %6552 = vmatprep.mubr.bf16.mxu0 0
  %6553 = vmatmul.mubr.bf16.gmra.mxu0 %v6235
  %v6554 = vpop.f32.mrf.mxu0
  %v6555 = vadd.f32 0.0, %v6554
  %v6556 = vpop.f32.mrf.mxu0
  %v6557 = vpop.f32.mrf.mxu0
  %v6558 = vadd.f32 0.0, %v6557
  %v6559 = vpop.f32.mrf.mxu0
  %6560 = vmatprep.mubr.bf16.mxu0 0
  %6561 = vmatmul.mubr.bf16.gmra.mxu0 %v6238
  %v6562 = vpop.f32.mrf.mxu0
  %v6563 = vadd.f32 0.0, %v6562
  %v6564 = vpop.f32.mrf.mxu0
  %v6565 = vpop.f32.mrf.mxu0
  %v6566 = vadd.f32 0.0, %v6565
  %v6567 = vpop.f32.mrf.mxu0
  %6568 = vmatprep.mubr.bf16.mxu0 0
  %6569 = vmatmul.mubr.bf16.gmra.mxu0 %v6241
  %v6570 = vpop.f32.mrf.mxu0
  %v6571 = vadd.f32 0.0, %v6570
  %v6572 = vpop.f32.mrf.mxu0
  %v6573 = vpop.f32.mrf.mxu0
  %v6574 = vadd.f32 0.0, %v6573
  %v6575 = vpop.f32.mrf.mxu0
  %6576 = vmatprep.mubr.bf16.mxu0 0
  %6577 = vmatmul.mubr.bf16.gmra.mxu0 %v6244
  %v6578 = vpop.f32.mrf.mxu0
  %v6579 = vpop.f32.mrf.mxu0
  %v6580 = vpop.f32.mrf.mxu0
  %v6581 = vpop.f32.mrf.mxu0
  %6582 = vdwg.mxu0
  %v6583 = vadd.f32 %v5933, %v6281
  %v6584 = vadd.f32 %v5934, %v6284
  %v6585 = vadd.f32 %v5935, %v6289
  %v6586 = vadd.f32 %v5936, %v6292
  %v6587 = vadd.f32 %v5937, %v6297
  %v6588 = vadd.f32 %v5938, %v6300
  %v6589 = vadd.f32 %v5939, %v6305
  %v6590 = vadd.f32 %v5940, %v6308
  %v6591 = vadd.f32 %v5941, %v6319
  %v6592 = vadd.f32 %v5942, %v6322
  %v6593 = vadd.f32 %v5943, %v6327
  %v6594 = vadd.f32 %v5944, %v6330
  %v6595 = vadd.f32 %v5945, %v6335
  %v6596 = vadd.f32 %v5946, %v6338
  %v6597 = vadd.f32 %v5947, %v6343
  %v6598 = vadd.f32 %v5948, %v6346
  %v6599 = vadd.f32 %v5949, %v6357
  %v6600 = vadd.f32 %v5950, %v6360
  %v6601 = vadd.f32 %v5951, %v6365
  %v6602 = vadd.f32 %v5952, %v6368
  %v6603 = vadd.f32 %v5953, %v6373
  %v6604 = vadd.f32 %v5954, %v6376
  %v6605 = vadd.f32 %v5955, %v6381
  %v6606 = vadd.f32 %v5956, %v6384
  %v6607 = vadd.f32 %v5957, %v6395
  %v6608 = vadd.f32 %v5958, %v6398
  %v6609 = vadd.f32 %v5959, %v6403
  %v6610 = vadd.f32 %v5960, %v6406
  %v6611 = vadd.f32 %v5961, %v6411
  %v6612 = vadd.f32 %v5962, %v6414
  %v6613 = vadd.f32 %v5963, %v6419
  %v6614 = vadd.f32 %v5964, %v6422
  %v6615 = vadd.f32 %v5965, %v6433
  %v6616 = vadd.f32 %v5966, %v6436
  %v6617 = vadd.f32 %v5967, %v6441
  %v6618 = vadd.f32 %v5968, %v6444
  %v6619 = vadd.f32 %v5969, %v6449
  %v6620 = vadd.f32 %v5970, %v6452
  %v6621 = vadd.f32 %v5971, %v6457
  %v6622 = vadd.f32 %v5972, %v6460
  %v6623 = vadd.f32 %v5973, %v6471
  %v6624 = vadd.f32 %v5974, %v6474
  %v6625 = vadd.f32 %v5975, %v6479
  %v6626 = vadd.f32 %v5976, %v6482
  %v6627 = vadd.f32 %v5977, %v6487
  %v6628 = vadd.f32 %v5978, %v6490
  %v6629 = vadd.f32 %v5979, %v6495
  %v6630 = vadd.f32 %v5980, %v6498
  %v6631 = vadd.f32 %v5981, %v6509
  %v6632 = vadd.f32 %v5982, %v6512
  %v6633 = vadd.f32 %v5983, %v6517
  %v6634 = vadd.f32 %v5984, %v6520
  %v6635 = vadd.f32 %v5985, %v6525
  %v6636 = vadd.f32 %v5986, %v6528
  %v6637 = vadd.f32 %v5987, %v6533
  %v6638 = vadd.f32 %v5988, %v6536
  %v6639 = vadd.f32 %v5989, %v6547
  %v6640 = vadd.f32 %v5990, %v6550
  %v6641 = vadd.f32 %v5991, %v6555
  %v6642 = vadd.f32 %v5992, %v6558
  %v6643 = vadd.f32 %v5993, %v6563
  %v6644 = vadd.f32 %v5994, %v6566
  %v6645 = vadd.f32 %v5995, %v6571
  %v6646 = vadd.f32 %v5996, %v6574
  %s6647 = scalar_lea.vmem [#allocation2], 96
  %v6648 = vld [vmem:[%s6647] sm:$0xff]
  %v6649 = vld [vmem:[%s6647 + $0x8] sm:$0xff]
  %v6650 = vld [vmem:[%s6647 + $0x10] sm:$0xff]
  %v6651 = vld [vmem:[%s6647 + $0x18] sm:$0xff]
  %v6652 = vld [vmem:[%s6647 + $0x20] sm:$0xff]
  %v6653 = vld [vmem:[%s6647 + $0x28] sm:$0xff]
  %v6654 = vld [vmem:[%s6647 + $0x30] sm:$0xff]
  %v6655 = vld [vmem:[%s6647 + $0x38] sm:$0xff]
  %v6656 = vld [vmem:[%s6647 + $0x40] sm:$0xff]
  %v6657 = vld [vmem:[%s6647 + $0x48] sm:$0xff]
  %v6658 = vld [vmem:[%s6647 + $0x50] sm:$0xff]
  %v6659 = vld [vmem:[%s6647 + $0x58] sm:$0xff]
  %v6660 = vld [vmem:[%s6647 + $0x60] sm:$0xff]
  %v6661 = vld [vmem:[%s6647 + $0x68] sm:$0xff]
  %v6662 = vld [vmem:[%s6647 + $0x70] sm:$0xff]
  %v6663 = vld [vmem:[%s6647 + $0x78] sm:$0xff]
  %v6664 = vld [vmem:[%s6647 + $0x80] sm:$0xff]
  %v6665 = vld [vmem:[%s6647 + $0x88] sm:$0xff]
  %v6666 = vld [vmem:[%s6647 + $0x90] sm:$0xff]
  %v6667 = vld [vmem:[%s6647 + $0x98] sm:$0xff]
  %v6668 = vld [vmem:[%s6647 + $0xa0] sm:$0xff]
  %v6669 = vld [vmem:[%s6647 + $0xa8] sm:$0xff]
  %v6670 = vld [vmem:[%s6647 + $0xb0] sm:$0xff]
  %v6671 = vld [vmem:[%s6647 + $0xb8] sm:$0xff]
  %v6672 = vld [vmem:[%s6647 + $0xc0] sm:$0xff]
  %v6673 = vld [vmem:[%s6647 + $0xc8] sm:$0xff]
  %v6674 = vld [vmem:[%s6647 + $0xd0] sm:$0xff]
  %v6675 = vld [vmem:[%s6647 + $0xd8] sm:$0xff]
  %v6676 = vld [vmem:[%s6647 + $0xe0] sm:$0xff]
  %v6677 = vld [vmem:[%s6647 + $0xe8] sm:$0xff]
  %v6678 = vld [vmem:[%s6647 + $0xf0] sm:$0xff]
  %v6679 = vld [vmem:[%s6647 + $0xf8] sm:$0xff]
  %v6680 = vld [vmem:[%s6647 + $0x100] sm:$0xff]
  %v6681 = vld [vmem:[%s6647 + $0x108] sm:$0xff]
  %v6682 = vld [vmem:[%s6647 + $0x110] sm:$0xff]
  %v6683 = vld [vmem:[%s6647 + $0x118] sm:$0xff]
  %v6684 = vld [vmem:[%s6647 + $0x120] sm:$0xff]
  %v6685 = vld [vmem:[%s6647 + $0x128] sm:$0xff]
  %v6686 = vld [vmem:[%s6647 + $0x130] sm:$0xff]
  %v6687 = vld [vmem:[%s6647 + $0x138] sm:$0xff]
  %v6688 = vld [vmem:[%s6647 + $0x140] sm:$0xff]
  %v6689 = vld [vmem:[%s6647 + $0x148] sm:$0xff]
  %v6690 = vld [vmem:[%s6647 + $0x150] sm:$0xff]
  %v6691 = vld [vmem:[%s6647 + $0x158] sm:$0xff]
  %v6692 = vld [vmem:[%s6647 + $0x160] sm:$0xff]
  %v6693 = vld [vmem:[%s6647 + $0x168] sm:$0xff]
  %v6694 = vld [vmem:[%s6647 + $0x170] sm:$0xff]
  %v6695 = vld [vmem:[%s6647 + $0x178] sm:$0xff]
  %v6696 = vld [vmem:[%s6647 + $0x180] sm:$0xff]
  %v6697 = vld [vmem:[%s6647 + $0x188] sm:$0xff]
  %v6698 = vld [vmem:[%s6647 + $0x190] sm:$0xff]
  %v6699 = vld [vmem:[%s6647 + $0x198] sm:$0xff]
  %v6700 = vld [vmem:[%s6647 + $0x1a0] sm:$0xff]
  %v6701 = vld [vmem:[%s6647 + $0x1a8] sm:$0xff]
  %v6702 = vld [vmem:[%s6647 + $0x1b0] sm:$0xff]
  %v6703 = vld [vmem:[%s6647 + $0x1b8] sm:$0xff]
  %v6704 = vld [vmem:[%s6647 + $0x1c0] sm:$0xff]
  %v6705 = vld [vmem:[%s6647 + $0x1c8] sm:$0xff]
  %v6706 = vld [vmem:[%s6647 + $0x1d0] sm:$0xff]
  %v6707 = vld [vmem:[%s6647 + $0x1d8] sm:$0xff]
  %v6708 = vld [vmem:[%s6647 + $0x1e0] sm:$0xff]
  %v6709 = vld [vmem:[%s6647 + $0x1e8] sm:$0xff]
  %v6710 = vld [vmem:[%s6647 + $0x1f0] sm:$0xff]
  %v6711 = vld [vmem:[%s6647 + $0x1f8] sm:$0xff]
  %v6712 = vld [vmem:[%s6647 + $0x200] sm:$0xff]
  %v6713 = vld [vmem:[%s6647 + $0x208] sm:$0xff]
  %v6714 = vld [vmem:[%s6647 + $0x210] sm:$0xff]
  %v6715 = vld [vmem:[%s6647 + $0x218] sm:$0xff]
  %v6716 = vld [vmem:[%s6647 + $0x220] sm:$0xff]
  %v6717 = vld [vmem:[%s6647 + $0x228] sm:$0xff]
  %v6718 = vld [vmem:[%s6647 + $0x230] sm:$0xff]
  %v6719 = vld [vmem:[%s6647 + $0x238] sm:$0xff]
  %v6720 = vld [vmem:[%s6647 + $0x240] sm:$0xff]
  %v6721 = vld [vmem:[%s6647 + $0x248] sm:$0xff]
  %v6722 = vld [vmem:[%s6647 + $0x250] sm:$0xff]
  %v6723 = vld [vmem:[%s6647 + $0x258] sm:$0xff]
  %v6724 = vld [vmem:[%s6647 + $0x260] sm:$0xff]
  %v6725 = vld [vmem:[%s6647 + $0x268] sm:$0xff]
  %v6726 = vld [vmem:[%s6647 + $0x270] sm:$0xff]
  %v6727 = vld [vmem:[%s6647 + $0x278] sm:$0xff]
  %v6728 = vpack.c.bf16 %v6649, %v6648
  %v6729 = vpack.c.bf16 %v6651, %v6650
  %v6730 = vpack.c.bf16 %v6653, %v6652
  %v6731 = vpack.c.bf16 %v6655, %v6654
  %v6732 = vpack.c.bf16 %v6657, %v6656
  %v6733 = vpack.c.bf16 %v6659, %v6658
  %v6734 = vpack.c.bf16 %v6661, %v6660
  %v6735 = vpack.c.bf16 %v6663, %v6662
  %v6736 = vpack.c.bf16 %v6665, %v6664
  %v6737 = vpack.c.bf16 %v6667, %v6666
  %v6738 = vpack.c.bf16 %v6669, %v6668
  %v6739 = vpack.c.bf16 %v6671, %v6670
  %v6740 = vpack.c.bf16 %v6673, %v6672
  %v6741 = vpack.c.bf16 %v6675, %v6674
  %v6742 = vpack.c.bf16 %v6677, %v6676
  %v6743 = vpack.c.bf16 %v6679, %v6678
  %v6744 = vpack.c.bf16 %v6681, %v6680
  %v6745 = vpack.c.bf16 %v6683, %v6682
  %v6746 = vpack.c.bf16 %v6685, %v6684
  %v6747 = vpack.c.bf16 %v6687, %v6686
  %v6748 = vpack.c.bf16 %v6689, %v6688
  %v6749 = vpack.c.bf16 %v6691, %v6690
  %v6750 = vpack.c.bf16 %v6693, %v6692
  %v6751 = vpack.c.bf16 %v6695, %v6694
  %v6752 = vpack.c.bf16 %v6697, %v6696
  %v6753 = vpack.c.bf16 %v6699, %v6698
  %v6754 = vpack.c.bf16 %v6701, %v6700
  %v6755 = vpack.c.bf16 %v6703, %v6702
  %v6756 = vpack.c.bf16 %v6705, %v6704
  %v6757 = vpack.c.bf16 %v6707, %v6706
  %v6758 = vpack.c.bf16 %v6709, %v6708
  %v6759 = vpack.c.bf16 %v6711, %v6710
  %v6760 = vpack.c.bf16 %v6713, %v6712
  %v6761 = vpack.c.bf16 %v6715, %v6714
  %v6762 = vpack.c.bf16 %v6717, %v6716
  %v6763 = vpack.c.bf16 %v6719, %v6718
  %v6764 = vpack.c.bf16 %v6721, %v6720
  %v6765 = vpack.c.bf16 %v6723, %v6722
  %v6766 = vpack.c.bf16 %v6725, %v6724
  %v6767 = vpack.c.bf16 %v6727, %v6726
  %s6768 = scalar_lea.vmem %s6, 40
  %v6769 = vld [vmem:[%s6768] sm:$0xf]
  %v6770 = vld [vmem:[%s6768 + $0x4] sm:$0xf]
  %v6773 = vunpack.c.l.b16 %v6769
  %v6774 = vunpack.c.l.b16 %v6770
  %v6775 = vpack.c.b16 %v6774, %v6773
  %v6778 = vsel %vm125, %v6728, 0
  %v6781 = vsel %vm125, %v6729, 0
  %v6784 = vsel %vm125, %v6730, 0
  %v6787 = vsel %vm125, %v6731, 0
  %v6790 = vsel %vm125, %v6732, 0
  %v6793 = vsel %vm125, %v6733, 0
  %v6796 = vsel %vm125, %v6734, 0
  %v6799 = vsel %vm125, %v6735, 0
  %v6802 = vsel %vm125, %v6736, 0
  %v6805 = vsel %vm125, %v6737, 0
  %v6808 = vsel %vm125, %v6738, 0
  %v6811 = vsel %vm125, %v6739, 0
  %v6814 = vsel %vm125, %v6740, 0
  %v6817 = vsel %vm125, %v6741, 0
  %v6820 = vsel %vm125, %v6742, 0
  %v6823 = vsel %vm125, %v6743, 0
  %v6826 = vsel %vm125, %v6744, 0
  %v6829 = vsel %vm125, %v6745, 0
  %v6832 = vsel %vm125, %v6746, 0
  %v6835 = vsel %vm125, %v6747, 0
  %v6838 = vsel %vm125, %v6748, 0
  %v6841 = vsel %vm125, %v6749, 0
  %v6844 = vsel %vm125, %v6750, 0
  %v6847 = vsel %vm125, %v6751, 0
  %v6850 = vsel %vm125, %v6752, 0
  %v6853 = vsel %vm125, %v6753, 0
  %v6856 = vsel %vm125, %v6754, 0
  %v6859 = vsel %vm125, %v6755, 0
  %v6862 = vsel %vm125, %v6756, 0
  %v6865 = vsel %vm125, %v6757, 0
  %v6868 = vsel %vm125, %v6758, 0
  %v6871 = vsel %vm125, %v6759, 0
  %v6874 = vsel %vm125, %v6760, 0
  %v6877 = vsel %vm125, %v6761, 0
  %v6880 = vsel %vm125, %v6762, 0
  %v6883 = vsel %vm125, %v6763, 0
  %v6886 = vsel %vm125, %v6764, 0
  %v6889 = vsel %vm125, %v6765, 0
  %v6892 = vsel %vm125, %v6766, 0
  %v6895 = vsel %vm125, %v6767, 0
  %6897 = vmatprep.subr.bf16.mxu0 0
  %6898 = vmatpush1.bf16.msra.mxu0 0
  %6899 = vmatprep.subr.bf16.mxu0 0
  %6900 = vmatpush1.bf16.msra.mxu0 0
  %6901 = vmatprep.subr.bf16.mxu0 0
  %6902 = vmatpush1.bf16.msra.mxu0 0
  %6903 = vmatprep.subr.bf16.mxu0 0
  %6904 = vmatpush1.bf16.msra.mxu0 0
  %6905 = vmatprep.subr.bf16.mxu0 0
  %6906 = vmatpush1.bf16.msra.mxu0 0
  %6907 = vmatprep.subr.bf16.mxu0 0
  %6908 = vmatpush1.bf16.msra.mxu0 0
  %6909 = vmatprep.subr.bf16.mxu0 0
  %6910 = vmatpush1.bf16.msra.mxu0 0
  %6911 = vmatprep.subr.bf16.mxu0 0
  %6912 = vmatpush1.bf16.msra.mxu0 %v6775
  %6913 = vmatprep.subr.bf16.mxu0 0
  %6914 = vmatpush2.bf16.msra.mxu0 0
  %6915 = vmatprep.subr.bf16.mxu0 0
  %6916 = vmatpush2.bf16.msra.mxu0 0
  %6917 = vmatprep.subr.bf16.mxu0 0
  %6918 = vmatpush2.bf16.msra.mxu0 0
  %6919 = vmatprep.subr.bf16.mxu0 0
  %6920 = vmatpush2.bf16.msra.mxu0 0
  %6921 = vmatprep.subr.bf16.mxu0 0
  %6922 = vmatpush2.bf16.msra.mxu0 0
  %6923 = vmatprep.subr.bf16.mxu0 0
  %6924 = vmatpush2.bf16.msra.mxu0 0
  %6925 = vmatprep.subr.bf16.mxu0 0
  %6926 = vmatpush2.bf16.msra.mxu0 0
  %6927 = vmatprep.subr.bf16.mxu0 0
  %6928 = vmatpush2.bf16.msra.mxu0 0
  %6929 = vmatprep.mubr.bf16.mxu0 0
  %6930 = vmatmul.mubr.bf16.gmra.mxu0 %v6778
  %v6931 = vpop.f32.mrf.mxu0
  %v6932 = vadd.f32 0.0, %v6931
  %v6933 = vpop.f32.mrf.mxu0
  %v6934 = vpop.f32.mrf.mxu0
  %v6935 = vadd.f32 0.0, %v6934
  %v6936 = vpop.f32.mrf.mxu0
  %6937 = vmatprep.mubr.bf16.mxu0 0
  %6938 = vmatmul.mubr.bf16.gmra.mxu0 %v6781
  %v6939 = vpop.f32.mrf.mxu0
  %v6940 = vadd.f32 0.0, %v6939
  %v6941 = vpop.f32.mrf.mxu0
  %v6942 = vpop.f32.mrf.mxu0
  %v6943 = vadd.f32 0.0, %v6942
  %v6944 = vpop.f32.mrf.mxu0
  %6945 = vmatprep.mubr.bf16.mxu0 0
  %6946 = vmatmul.mubr.bf16.gmra.mxu0 %v6784
  %v6947 = vpop.f32.mrf.mxu0
  %v6948 = vadd.f32 0.0, %v6947
  %v6949 = vpop.f32.mrf.mxu0
  %v6950 = vpop.f32.mrf.mxu0
  %v6951 = vadd.f32 0.0, %v6950
  %v6952 = vpop.f32.mrf.mxu0
  %6953 = vmatprep.mubr.bf16.mxu0 0
  %6954 = vmatmul.mubr.bf16.gmra.mxu0 %v6787
  %v6955 = vpop.f32.mrf.mxu0
  %v6956 = vadd.f32 0.0, %v6955
  %v6957 = vpop.f32.mrf.mxu0
  %v6958 = vpop.f32.mrf.mxu0
  %v6959 = vadd.f32 0.0, %v6958
  %v6960 = vpop.f32.mrf.mxu0
  %6961 = vmatprep.mubr.bf16.mxu0 0
  %6962 = vmatmul.mubr.bf16.gmra.mxu0 %v6790
  %v6963 = vpop.f32.mrf.mxu0
  %v6964 = vpop.f32.mrf.mxu0
  %v6965 = vpop.f32.mrf.mxu0
  %v6966 = vpop.f32.mrf.mxu0
  %6967 = vmatprep.mubr.bf16.mxu0 0
  %6968 = vmatmul.mubr.bf16.gmra.mxu0 %v6793
  %v6969 = vpop.f32.mrf.mxu0
  %v6970 = vadd.f32 0.0, %v6969
  %v6971 = vpop.f32.mrf.mxu0
  %v6972 = vpop.f32.mrf.mxu0
  %v6973 = vadd.f32 0.0, %v6972
  %v6974 = vpop.f32.mrf.mxu0
  %6975 = vmatprep.mubr.bf16.mxu0 0
  %6976 = vmatmul.mubr.bf16.gmra.mxu0 %v6796
  %v6977 = vpop.f32.mrf.mxu0
  %v6978 = vadd.f32 0.0, %v6977
  %v6979 = vpop.f32.mrf.mxu0
  %v6980 = vpop.f32.mrf.mxu0
  %v6981 = vadd.f32 0.0, %v6980
  %v6982 = vpop.f32.mrf.mxu0
  %6983 = vmatprep.mubr.bf16.mxu0 0
  %6984 = vmatmul.mubr.bf16.gmra.mxu0 %v6799
  %v6985 = vpop.f32.mrf.mxu0
  %v6986 = vadd.f32 0.0, %v6985
  %v6987 = vpop.f32.mrf.mxu0
  %v6988 = vpop.f32.mrf.mxu0
  %v6989 = vadd.f32 0.0, %v6988
  %v6990 = vpop.f32.mrf.mxu0
  %6991 = vmatprep.mubr.bf16.mxu0 0
  %6992 = vmatmul.mubr.bf16.gmra.mxu0 %v6802
  %v6993 = vpop.f32.mrf.mxu0
  %v6994 = vadd.f32 0.0, %v6993
  %v6995 = vpop.f32.mrf.mxu0
  %v6996 = vpop.f32.mrf.mxu0
  %v6997 = vadd.f32 0.0, %v6996
  %v6998 = vpop.f32.mrf.mxu0
  %6999 = vmatprep.mubr.bf16.mxu0 0
  %7000 = vmatmul.mubr.bf16.gmra.mxu0 %v6805
  %v7001 = vpop.f32.mrf.mxu0
  %v7002 = vpop.f32.mrf.mxu0
  %v7003 = vpop.f32.mrf.mxu0
  %v7004 = vpop.f32.mrf.mxu0
  %7005 = vmatprep.mubr.bf16.mxu0 0
  %7006 = vmatmul.mubr.bf16.gmra.mxu0 %v6808
  %v7007 = vpop.f32.mrf.mxu0
  %v7008 = vadd.f32 0.0, %v7007
  %v7009 = vpop.f32.mrf.mxu0
  %v7010 = vpop.f32.mrf.mxu0
  %v7011 = vadd.f32 0.0, %v7010
  %v7012 = vpop.f32.mrf.mxu0
  %7013 = vmatprep.mubr.bf16.mxu0 0
  %7014 = vmatmul.mubr.bf16.gmra.mxu0 %v6811
  %v7015 = vpop.f32.mrf.mxu0
  %v7016 = vadd.f32 0.0, %v7015
  %v7017 = vpop.f32.mrf.mxu0
  %v7018 = vpop.f32.mrf.mxu0
  %v7019 = vadd.f32 0.0, %v7018
  %v7020 = vpop.f32.mrf.mxu0
  %7021 = vmatprep.mubr.bf16.mxu0 0
  %7022 = vmatmul.mubr.bf16.gmra.mxu0 %v6814
  %v7023 = vpop.f32.mrf.mxu0
  %v7024 = vadd.f32 0.0, %v7023
  %v7025 = vpop.f32.mrf.mxu0
  %v7026 = vpop.f32.mrf.mxu0
  %v7027 = vadd.f32 0.0, %v7026
  %v7028 = vpop.f32.mrf.mxu0
  %7029 = vmatprep.mubr.bf16.mxu0 0
  %7030 = vmatmul.mubr.bf16.gmra.mxu0 %v6817
  %v7031 = vpop.f32.mrf.mxu0
  %v7032 = vadd.f32 0.0, %v7031
  %v7033 = vpop.f32.mrf.mxu0
  %v7034 = vpop.f32.mrf.mxu0
  %v7035 = vadd.f32 0.0, %v7034
  %v7036 = vpop.f32.mrf.mxu0
  %7037 = vmatprep.mubr.bf16.mxu0 0
  %7038 = vmatmul.mubr.bf16.gmra.mxu0 %v6820
  %v7039 = vpop.f32.mrf.mxu0
  %v7040 = vpop.f32.mrf.mxu0
  %v7041 = vpop.f32.mrf.mxu0
  %v7042 = vpop.f32.mrf.mxu0
  %7043 = vmatprep.mubr.bf16.mxu0 0
  %7044 = vmatmul.mubr.bf16.gmra.mxu0 %v6823
  %v7045 = vpop.f32.mrf.mxu0
  %v7046 = vadd.f32 0.0, %v7045
  %v7047 = vpop.f32.mrf.mxu0
  %v7048 = vpop.f32.mrf.mxu0
  %v7049 = vadd.f32 0.0, %v7048
  %v7050 = vpop.f32.mrf.mxu0
  %7051 = vmatprep.mubr.bf16.mxu0 0
  %7052 = vmatmul.mubr.bf16.gmra.mxu0 %v6826
  %v7053 = vpop.f32.mrf.mxu0
  %v7054 = vadd.f32 0.0, %v7053
  %v7055 = vpop.f32.mrf.mxu0
  %v7056 = vpop.f32.mrf.mxu0
  %v7057 = vadd.f32 0.0, %v7056
  %v7058 = vpop.f32.mrf.mxu0
  %7059 = vmatprep.mubr.bf16.mxu0 0
  %7060 = vmatmul.mubr.bf16.gmra.mxu0 %v6829
  %v7061 = vpop.f32.mrf.mxu0
  %v7062 = vadd.f32 0.0, %v7061
  %v7063 = vpop.f32.mrf.mxu0
  %v7064 = vpop.f32.mrf.mxu0
  %v7065 = vadd.f32 0.0, %v7064
  %v7066 = vpop.f32.mrf.mxu0
  %7067 = vmatprep.mubr.bf16.mxu0 0
  %7068 = vmatmul.mubr.bf16.gmra.mxu0 %v6832
  %v7069 = vpop.f32.mrf.mxu0
  %v7070 = vadd.f32 0.0, %v7069
  %v7071 = vpop.f32.mrf.mxu0
  %v7072 = vpop.f32.mrf.mxu0
  %v7073 = vadd.f32 0.0, %v7072
  %v7074 = vpop.f32.mrf.mxu0
  %7075 = vmatprep.mubr.bf16.mxu0 0
  %7076 = vmatmul.mubr.bf16.gmra.mxu0 %v6835
  %v7077 = vpop.f32.mrf.mxu0
  %v7078 = vpop.f32.mrf.mxu0
  %v7079 = vpop.f32.mrf.mxu0
  %v7080 = vpop.f32.mrf.mxu0
  %7081 = vmatprep.mubr.bf16.mxu0 0
  %7082 = vmatmul.mubr.bf16.gmra.mxu0 %v6838
  %v7083 = vpop.f32.mrf.mxu0
  %v7084 = vadd.f32 0.0, %v7083
  %v7085 = vpop.f32.mrf.mxu0
  %v7086 = vpop.f32.mrf.mxu0
  %v7087 = vadd.f32 0.0, %v7086
  %v7088 = vpop.f32.mrf.mxu0
  %7089 = vmatprep.mubr.bf16.mxu0 0
  %7090 = vmatmul.mubr.bf16.gmra.mxu0 %v6841
  %v7091 = vpop.f32.mrf.mxu0
  %v7092 = vadd.f32 0.0, %v7091
  %v7093 = vpop.f32.mrf.mxu0
  %v7094 = vpop.f32.mrf.mxu0
  %v7095 = vadd.f32 0.0, %v7094
  %v7096 = vpop.f32.mrf.mxu0
  %7097 = vmatprep.mubr.bf16.mxu0 0
  %7098 = vmatmul.mubr.bf16.gmra.mxu0 %v6844
  %v7099 = vpop.f32.mrf.mxu0
  %v7100 = vadd.f32 0.0, %v7099
  %v7101 = vpop.f32.mrf.mxu0
  %v7102 = vpop.f32.mrf.mxu0
  %v7103 = vadd.f32 0.0, %v7102
  %v7104 = vpop.f32.mrf.mxu0
  %7105 = vmatprep.mubr.bf16.mxu0 0
  %7106 = vmatmul.mubr.bf16.gmra.mxu0 %v6847
  %v7107 = vpop.f32.mrf.mxu0
  %v7108 = vadd.f32 0.0, %v7107
  %v7109 = vpop.f32.mrf.mxu0
  %v7110 = vpop.f32.mrf.mxu0
  %v7111 = vadd.f32 0.0, %v7110
  %v7112 = vpop.f32.mrf.mxu0
  %7113 = vmatprep.mubr.bf16.mxu0 0
  %7114 = vmatmul.mubr.bf16.gmra.mxu0 %v6850
  %v7115 = vpop.f32.mrf.mxu0
  %v7116 = vpop.f32.mrf.mxu0
  %v7117 = vpop.f32.mrf.mxu0
  %v7118 = vpop.f32.mrf.mxu0
  %7119 = vmatprep.mubr.bf16.mxu0 0
  %7120 = vmatmul.mubr.bf16.gmra.mxu0 %v6853
  %v7121 = vpop.f32.mrf.mxu0
  %v7122 = vadd.f32 0.0, %v7121
  %v7123 = vpop.f32.mrf.mxu0
  %v7124 = vpop.f32.mrf.mxu0
  %v7125 = vadd.f32 0.0, %v7124
  %v7126 = vpop.f32.mrf.mxu0
  %7127 = vmatprep.mubr.bf16.mxu0 0
  %7128 = vmatmul.mubr.bf16.gmra.mxu0 %v6856
  %v7129 = vpop.f32.mrf.mxu0
  %v7130 = vadd.f32 0.0, %v7129
  %v7131 = vpop.f32.mrf.mxu0
  %v7132 = vpop.f32.mrf.mxu0
  %v7133 = vadd.f32 0.0, %v7132
  %v7134 = vpop.f32.mrf.mxu0
  %7135 = vmatprep.mubr.bf16.mxu0 0
  %7136 = vmatmul.mubr.bf16.gmra.mxu0 %v6859
  %v7137 = vpop.f32.mrf.mxu0
  %v7138 = vadd.f32 0.0, %v7137
  %v7139 = vpop.f32.mrf.mxu0
  %v7140 = vpop.f32.mrf.mxu0
  %v7141 = vadd.f32 0.0, %v7140
  %v7142 = vpop.f32.mrf.mxu0
  %7143 = vmatprep.mubr.bf16.mxu0 0
  %7144 = vmatmul.mubr.bf16.gmra.mxu0 %v6862
  %v7145 = vpop.f32.mrf.mxu0
  %v7146 = vadd.f32 0.0, %v7145
  %v7147 = vpop.f32.mrf.mxu0
  %v7148 = vpop.f32.mrf.mxu0
  %v7149 = vadd.f32 0.0, %v7148
  %v7150 = vpop.f32.mrf.mxu0
  %7151 = vmatprep.mubr.bf16.mxu0 0
  %7152 = vmatmul.mubr.bf16.gmra.mxu0 %v6865
  %v7153 = vpop.f32.mrf.mxu0
  %v7154 = vpop.f32.mrf.mxu0
  %v7155 = vpop.f32.mrf.mxu0
  %v7156 = vpop.f32.mrf.mxu0
  %7157 = vmatprep.mubr.bf16.mxu0 0
  %7158 = vmatmul.mubr.bf16.gmra.mxu0 %v6868
  %v7159 = vpop.f32.mrf.mxu0
  %v7160 = vadd.f32 0.0, %v7159
  %v7161 = vpop.f32.mrf.mxu0
  %v7162 = vpop.f32.mrf.mxu0
  %v7163 = vadd.f32 0.0, %v7162
  %v7164 = vpop.f32.mrf.mxu0
  %7165 = vmatprep.mubr.bf16.mxu0 0
  %7166 = vmatmul.mubr.bf16.gmra.mxu0 %v6871
  %v7167 = vpop.f32.mrf.mxu0
  %v7168 = vadd.f32 0.0, %v7167
  %v7169 = vpop.f32.mrf.mxu0
  %v7170 = vpop.f32.mrf.mxu0
  %v7171 = vadd.f32 0.0, %v7170
  %v7172 = vpop.f32.mrf.mxu0
  %7173 = vmatprep.mubr.bf16.mxu0 0
  %7174 = vmatmul.mubr.bf16.gmra.mxu0 %v6874
  %v7175 = vpop.f32.mrf.mxu0
  %v7176 = vadd.f32 0.0, %v7175
  %v7177 = vpop.f32.mrf.mxu0
  %v7178 = vpop.f32.mrf.mxu0
  %v7179 = vadd.f32 0.0, %v7178
  %v7180 = vpop.f32.mrf.mxu0
  %7181 = vmatprep.mubr.bf16.mxu0 0
  %7182 = vmatmul.mubr.bf16.gmra.mxu0 %v6877
  %v7183 = vpop.f32.mrf.mxu0
  %v7184 = vadd.f32 0.0, %v7183
  %v7185 = vpop.f32.mrf.mxu0
  %v7186 = vpop.f32.mrf.mxu0
  %v7187 = vadd.f32 0.0, %v7186
  %v7188 = vpop.f32.mrf.mxu0
  %7189 = vmatprep.mubr.bf16.mxu0 0
  %7190 = vmatmul.mubr.bf16.gmra.mxu0 %v6880
  %v7191 = vpop.f32.mrf.mxu0
  %v7192 = vpop.f32.mrf.mxu0
  %v7193 = vpop.f32.mrf.mxu0
  %v7194 = vpop.f32.mrf.mxu0
  %7195 = vmatprep.mubr.bf16.mxu0 0
  %7196 = vmatmul.mubr.bf16.gmra.mxu0 %v6883
  %v7197 = vpop.f32.mrf.mxu0
  %v7198 = vadd.f32 0.0, %v7197
  %v7199 = vpop.f32.mrf.mxu0
  %v7200 = vpop.f32.mrf.mxu0
  %v7201 = vadd.f32 0.0, %v7200
  %v7202 = vpop.f32.mrf.mxu0
  %7203 = vmatprep.mubr.bf16.mxu0 0
  %7204 = vmatmul.mubr.bf16.gmra.mxu0 %v6886
  %v7205 = vpop.f32.mrf.mxu0
  %v7206 = vadd.f32 0.0, %v7205
  %v7207 = vpop.f32.mrf.mxu0
  %v7208 = vpop.f32.mrf.mxu0
  %v7209 = vadd.f32 0.0, %v7208
  %v7210 = vpop.f32.mrf.mxu0
  %7211 = vmatprep.mubr.bf16.mxu0 0
  %7212 = vmatmul.mubr.bf16.gmra.mxu0 %v6889
  %v7213 = vpop.f32.mrf.mxu0
  %v7214 = vadd.f32 0.0, %v7213
  %v7215 = vpop.f32.mrf.mxu0
  %v7216 = vpop.f32.mrf.mxu0
  %v7217 = vadd.f32 0.0, %v7216
  %v7218 = vpop.f32.mrf.mxu0
  %7219 = vmatprep.mubr.bf16.mxu0 0
  %7220 = vmatmul.mubr.bf16.gmra.mxu0 %v6892
  %v7221 = vpop.f32.mrf.mxu0
  %v7222 = vadd.f32 0.0, %v7221
  %v7223 = vpop.f32.mrf.mxu0
  %v7224 = vpop.f32.mrf.mxu0
  %v7225 = vadd.f32 0.0, %v7224
  %v7226 = vpop.f32.mrf.mxu0
  %7227 = vmatprep.mubr.bf16.mxu0 0
  %7228 = vmatmul.mubr.bf16.gmra.mxu0 %v6895
  %v7229 = vpop.f32.mrf.mxu0
  %v7230 = vpop.f32.mrf.mxu0
  %v7231 = vpop.f32.mrf.mxu0
  %v7232 = vpop.f32.mrf.mxu0
  %7233 = vdwg.mxu0
  %v7234 = vadd.f32 %v6583, %v6932
  %v7235 = vadd.f32 %v6584, %v6935
  %v7236 = vadd.f32 %v6585, %v6940
  %v7237 = vadd.f32 %v6586, %v6943
  %v7238 = vadd.f32 %v6587, %v6948
  %v7239 = vadd.f32 %v6588, %v6951
  %v7240 = vadd.f32 %v6589, %v6956
  %v7241 = vadd.f32 %v6590, %v6959
  %v7242 = vadd.f32 %v6591, %v6970
  %v7243 = vadd.f32 %v6592, %v6973
  %v7244 = vadd.f32 %v6593, %v6978
  %v7245 = vadd.f32 %v6594, %v6981
  %v7246 = vadd.f32 %v6595, %v6986
  %v7247 = vadd.f32 %v6596, %v6989
  %v7248 = vadd.f32 %v6597, %v6994
  %v7249 = vadd.f32 %v6598, %v6997
  %v7250 = vadd.f32 %v6599, %v7008
  %v7251 = vadd.f32 %v6600, %v7011
  %v7252 = vadd.f32 %v6601, %v7016
  %v7253 = vadd.f32 %v6602, %v7019
  %v7254 = vadd.f32 %v6603, %v7024
  %v7255 = vadd.f32 %v6604, %v7027
  %v7256 = vadd.f32 %v6605, %v7032
  %v7257 = vadd.f32 %v6606, %v7035
  %v7258 = vadd.f32 %v6607, %v7046
  %v7259 = vadd.f32 %v6608, %v7049
  %v7260 = vadd.f32 %v6609, %v7054
  %v7261 = vadd.f32 %v6610, %v7057
  %v7262 = vadd.f32 %v6611, %v7062
  %v7263 = vadd.f32 %v6612, %v7065
  %v7264 = vadd.f32 %v6613, %v7070
  %v7265 = vadd.f32 %v6614, %v7073
  %v7266 = vadd.f32 %v6615, %v7084
  %v7267 = vadd.f32 %v6616, %v7087
  %v7268 = vadd.f32 %v6617, %v7092
  %v7269 = vadd.f32 %v6618, %v7095
  %v7270 = vadd.f32 %v6619, %v7100
  %v7271 = vadd.f32 %v6620, %v7103
  %v7272 = vadd.f32 %v6621, %v7108
  %v7273 = vadd.f32 %v6622, %v7111
  %v7274 = vadd.f32 %v6623, %v7122
  %v7275 = vadd.f32 %v6624, %v7125
  %v7276 = vadd.f32 %v6625, %v7130
  %v7277 = vadd.f32 %v6626, %v7133
  %v7278 = vadd.f32 %v6627, %v7138
  %v7279 = vadd.f32 %v6628, %v7141
  %v7280 = vadd.f32 %v6629, %v7146
  %v7281 = vadd.f32 %v6630, %v7149
  %v7282 = vadd.f32 %v6631, %v7160
  %v7283 = vadd.f32 %v6632, %v7163
  %v7284 = vadd.f32 %v6633, %v7168
  %v7285 = vadd.f32 %v6634, %v7171
  %v7286 = vadd.f32 %v6635, %v7176
  %v7287 = vadd.f32 %v6636, %v7179
  %v7288 = vadd.f32 %v6637, %v7184
  %v7289 = vadd.f32 %v6638, %v7187
  %v7290 = vadd.f32 %v6639, %v7198
  %v7291 = vadd.f32 %v6640, %v7201
  %v7292 = vadd.f32 %v6641, %v7206
  %v7293 = vadd.f32 %v6642, %v7209
  %v7294 = vadd.f32 %v6643, %v7214
  %v7295 = vadd.f32 %v6644, %v7217
  %v7296 = vadd.f32 %v6645, %v7222
  %v7297 = vadd.f32 %v6646, %v7225
  %s7298 = scalar_lea.vmem [#allocation2], 160
  %v7299 = vld [vmem:[%s7298] sm:$0xff]
  %v7300 = vld [vmem:[%s7298 + $0x8] sm:$0xff]
  %v7301 = vld [vmem:[%s7298 + $0x10] sm:$0xff]
  %v7302 = vld [vmem:[%s7298 + $0x18] sm:$0xff]
  %v7303 = vld [vmem:[%s7298 + $0x20] sm:$0xff]
  %v7304 = vld [vmem:[%s7298 + $0x28] sm:$0xff]
  %v7305 = vld [vmem:[%s7298 + $0x30] sm:$0xff]
  %v7306 = vld [vmem:[%s7298 + $0x38] sm:$0xff]
  %v7307 = vld [vmem:[%s7298 + $0x40] sm:$0xff]
  %v7308 = vld [vmem:[%s7298 + $0x48] sm:$0xff]
  %v7309 = vld [vmem:[%s7298 + $0x50] sm:$0xff]
  %v7310 = vld [vmem:[%s7298 + $0x58] sm:$0xff]
  %v7311 = vld [vmem:[%s7298 + $0x60] sm:$0xff]
  %v7312 = vld [vmem:[%s7298 + $0x68] sm:$0xff]
  %v7313 = vld [vmem:[%s7298 + $0x70] sm:$0xff]
  %v7314 = vld [vmem:[%s7298 + $0x78] sm:$0xff]
  %v7315 = vld [vmem:[%s7298 + $0x80] sm:$0xff]
  %v7316 = vld [vmem:[%s7298 + $0x88] sm:$0xff]
  %v7317 = vld [vmem:[%s7298 + $0x90] sm:$0xff]
  %v7318 = vld [vmem:[%s7298 + $0x98] sm:$0xff]
  %v7319 = vld [vmem:[%s7298 + $0xa0] sm:$0xff]
  %v7320 = vld [vmem:[%s7298 + $0xa8] sm:$0xff]
  %v7321 = vld [vmem:[%s7298 + $0xb0] sm:$0xff]
  %v7322 = vld [vmem:[%s7298 + $0xb8] sm:$0xff]
  %v7323 = vld [vmem:[%s7298 + $0xc0] sm:$0xff]
  %v7324 = vld [vmem:[%s7298 + $0xc8] sm:$0xff]
  %v7325 = vld [vmem:[%s7298 + $0xd0] sm:$0xff]
  %v7326 = vld [vmem:[%s7298 + $0xd8] sm:$0xff]
  %v7327 = vld [vmem:[%s7298 + $0xe0] sm:$0xff]
  %v7328 = vld [vmem:[%s7298 + $0xe8] sm:$0xff]
  %v7329 = vld [vmem:[%s7298 + $0xf0] sm:$0xff]
  %v7330 = vld [vmem:[%s7298 + $0xf8] sm:$0xff]
  %v7331 = vld [vmem:[%s7298 + $0x100] sm:$0xff]
  %v7332 = vld [vmem:[%s7298 + $0x108] sm:$0xff]
  %v7333 = vld [vmem:[%s7298 + $0x110] sm:$0xff]
  %v7334 = vld [vmem:[%s7298 + $0x118] sm:$0xff]
  %v7335 = vld [vmem:[%s7298 + $0x120] sm:$0xff]
  %v7336 = vld [vmem:[%s7298 + $0x128] sm:$0xff]
  %v7337 = vld [vmem:[%s7298 + $0x130] sm:$0xff]
  %v7338 = vld [vmem:[%s7298 + $0x138] sm:$0xff]
  %v7339 = vld [vmem:[%s7298 + $0x140] sm:$0xff]
  %v7340 = vld [vmem:[%s7298 + $0x148] sm:$0xff]
  %v7341 = vld [vmem:[%s7298 + $0x150] sm:$0xff]
  %v7342 = vld [vmem:[%s7298 + $0x158] sm:$0xff]
  %v7343 = vld [vmem:[%s7298 + $0x160] sm:$0xff]
  %v7344 = vld [vmem:[%s7298 + $0x168] sm:$0xff]
  %v7345 = vld [vmem:[%s7298 + $0x170] sm:$0xff]
  %v7346 = vld [vmem:[%s7298 + $0x178] sm:$0xff]
  %v7347 = vld [vmem:[%s7298 + $0x180] sm:$0xff]
  %v7348 = vld [vmem:[%s7298 + $0x188] sm:$0xff]
  %v7349 = vld [vmem:[%s7298 + $0x190] sm:$0xff]
  %v7350 = vld [vmem:[%s7298 + $0x198] sm:$0xff]
  %v7351 = vld [vmem:[%s7298 + $0x1a0] sm:$0xff]
  %v7352 = vld [vmem:[%s7298 + $0x1a8] sm:$0xff]
  %v7353 = vld [vmem:[%s7298 + $0x1b0] sm:$0xff]
  %v7354 = vld [vmem:[%s7298 + $0x1b8] sm:$0xff]
  %v7355 = vld [vmem:[%s7298 + $0x1c0] sm:$0xff]
  %v7356 = vld [vmem:[%s7298 + $0x1c8] sm:$0xff]
  %v7357 = vld [vmem:[%s7298 + $0x1d0] sm:$0xff]
  %v7358 = vld [vmem:[%s7298 + $0x1d8] sm:$0xff]
  %v7359 = vld [vmem:[%s7298 + $0x1e0] sm:$0xff]
  %v7360 = vld [vmem:[%s7298 + $0x1e8] sm:$0xff]
  %v7361 = vld [vmem:[%s7298 + $0x1f0] sm:$0xff]
  %v7362 = vld [vmem:[%s7298 + $0x1f8] sm:$0xff]
  %v7363 = vld [vmem:[%s7298 + $0x200] sm:$0xff]
  %v7364 = vld [vmem:[%s7298 + $0x208] sm:$0xff]
  %v7365 = vld [vmem:[%s7298 + $0x210] sm:$0xff]
  %v7366 = vld [vmem:[%s7298 + $0x218] sm:$0xff]
  %v7367 = vld [vmem:[%s7298 + $0x220] sm:$0xff]
  %v7368 = vld [vmem:[%s7298 + $0x228] sm:$0xff]
  %v7369 = vld [vmem:[%s7298 + $0x230] sm:$0xff]
  %v7370 = vld [vmem:[%s7298 + $0x238] sm:$0xff]
  %v7371 = vld [vmem:[%s7298 + $0x240] sm:$0xff]
  %v7372 = vld [vmem:[%s7298 + $0x248] sm:$0xff]
  %v7373 = vld [vmem:[%s7298 + $0x250] sm:$0xff]
  %v7374 = vld [vmem:[%s7298 + $0x258] sm:$0xff]
  %v7375 = vld [vmem:[%s7298 + $0x260] sm:$0xff]
  %v7376 = vld [vmem:[%s7298 + $0x268] sm:$0xff]
  %v7377 = vld [vmem:[%s7298 + $0x270] sm:$0xff]
  %v7378 = vld [vmem:[%s7298 + $0x278] sm:$0xff]
  %v7379 = vpack.c.bf16 %v7300, %v7299
  %v7380 = vpack.c.bf16 %v7302, %v7301
  %v7381 = vpack.c.bf16 %v7304, %v7303
  %v7382 = vpack.c.bf16 %v7306, %v7305
  %v7383 = vpack.c.bf16 %v7308, %v7307
  %v7384 = vpack.c.bf16 %v7310, %v7309
  %v7385 = vpack.c.bf16 %v7312, %v7311
  %v7386 = vpack.c.bf16 %v7314, %v7313
  %v7387 = vpack.c.bf16 %v7316, %v7315
  %v7388 = vpack.c.bf16 %v7318, %v7317
  %v7389 = vpack.c.bf16 %v7320, %v7319
  %v7390 = vpack.c.bf16 %v7322, %v7321
  %v7391 = vpack.c.bf16 %v7324, %v7323
  %v7392 = vpack.c.bf16 %v7326, %v7325
  %v7393 = vpack.c.bf16 %v7328, %v7327
  %v7394 = vpack.c.bf16 %v7330, %v7329
  %v7395 = vpack.c.bf16 %v7332, %v7331
  %v7396 = vpack.c.bf16 %v7334, %v7333
  %v7397 = vpack.c.bf16 %v7336, %v7335
  %v7398 = vpack.c.bf16 %v7338, %v7337
  %v7399 = vpack.c.bf16 %v7340, %v7339
  %v7400 = vpack.c.bf16 %v7342, %v7341
  %v7401 = vpack.c.bf16 %v7344, %v7343
  %v7402 = vpack.c.bf16 %v7346, %v7345
  %v7403 = vpack.c.bf16 %v7348, %v7347
  %v7404 = vpack.c.bf16 %v7350, %v7349
  %v7405 = vpack.c.bf16 %v7352, %v7351
  %v7406 = vpack.c.bf16 %v7354, %v7353
  %v7407 = vpack.c.bf16 %v7356, %v7355
  %v7408 = vpack.c.bf16 %v7358, %v7357
  %v7409 = vpack.c.bf16 %v7360, %v7359
  %v7410 = vpack.c.bf16 %v7362, %v7361
  %v7411 = vpack.c.bf16 %v7364, %v7363
  %v7412 = vpack.c.bf16 %v7366, %v7365
  %v7413 = vpack.c.bf16 %v7368, %v7367
  %v7414 = vpack.c.bf16 %v7370, %v7369
  %v7415 = vpack.c.bf16 %v7372, %v7371
  %v7416 = vpack.c.bf16 %v7374, %v7373
  %v7417 = vpack.c.bf16 %v7376, %v7375
  %v7418 = vpack.c.bf16 %v7378, %v7377
  %s7419 = scalar_lea.vmem %s6, 48
  %v7420 = vld [vmem:[%s7419] sm:$0xf]
  %v7421 = vld [vmem:[%s7419 + $0x4] sm:$0xf]
  %v7424 = vunpack.c.l.b16 %v7420
  %v7425 = vunpack.c.l.b16 %v7421
  %v7426 = vpack.c.b16 %v7425, %v7424
  %v7429 = vsel %vm125, %v7379, 0
  %v7432 = vsel %vm125, %v7380, 0
  %v7435 = vsel %vm125, %v7381, 0
  %v7438 = vsel %vm125, %v7382, 0
  %v7441 = vsel %vm125, %v7383, 0
  %v7444 = vsel %vm125, %v7384, 0
  %v7447 = vsel %vm125, %v7385, 0
  %v7450 = vsel %vm125, %v7386, 0
  %v7453 = vsel %vm125, %v7387, 0
  %v7456 = vsel %vm125, %v7388, 0
  %v7459 = vsel %vm125, %v7389, 0
  %v7462 = vsel %vm125, %v7390, 0
  %v7465 = vsel %vm125, %v7391, 0
  %v7468 = vsel %vm125, %v7392, 0
  %v7471 = vsel %vm125, %v7393, 0
  %v7474 = vsel %vm125, %v7394, 0
  %v7477 = vsel %vm125, %v7395, 0
  %v7480 = vsel %vm125, %v7396, 0
  %v7483 = vsel %vm125, %v7397, 0
  %v7486 = vsel %vm125, %v7398, 0
  %v7489 = vsel %vm125, %v7399, 0
  %v7492 = vsel %vm125, %v7400, 0
  %v7495 = vsel %vm125, %v7401, 0
  %v7498 = vsel %vm125, %v7402, 0
  %v7501 = vsel %vm125, %v7403, 0
  %v7504 = vsel %vm125, %v7404, 0
  %v7507 = vsel %vm125, %v7405, 0
  %v7510 = vsel %vm125, %v7406, 0
  %v7513 = vsel %vm125, %v7407, 0
  %v7516 = vsel %vm125, %v7408, 0
  %v7519 = vsel %vm125, %v7409, 0
  %v7522 = vsel %vm125, %v7410, 0
  %v7525 = vsel %vm125, %v7411, 0
  %v7528 = vsel %vm125, %v7412, 0
  %v7531 = vsel %vm125, %v7413, 0
  %v7534 = vsel %vm125, %v7414, 0
  %v7537 = vsel %vm125, %v7415, 0
  %v7540 = vsel %vm125, %v7416, 0
  %v7543 = vsel %vm125, %v7417, 0
  %v7546 = vsel %vm125, %v7418, 0
  %7548 = vmatprep.subr.bf16.mxu0 0
  %7549 = vmatpush1.bf16.msra.mxu0 0
  %7550 = vmatprep.subr.bf16.mxu0 0
  %7551 = vmatpush1.bf16.msra.mxu0 0
  %7552 = vmatprep.subr.bf16.mxu0 0
  %7553 = vmatpush1.bf16.msra.mxu0 0
  %7554 = vmatprep.subr.bf16.mxu0 0
  %7555 = vmatpush1.bf16.msra.mxu0 0
  %7556 = vmatprep.subr.bf16.mxu0 0
  %7557 = vmatpush1.bf16.msra.mxu0 0
  %7558 = vmatprep.subr.bf16.mxu0 0
  %7559 = vmatpush1.bf16.msra.mxu0 0
  %7560 = vmatprep.subr.bf16.mxu0 0
  %7561 = vmatpush1.bf16.msra.mxu0 0
  %7562 = vmatprep.subr.bf16.mxu0 0
  %7563 = vmatpush1.bf16.msra.mxu0 %v7426
  %7564 = vmatprep.subr.bf16.mxu0 0
  %7565 = vmatpush2.bf16.msra.mxu0 0
  %7566 = vmatprep.subr.bf16.mxu0 0
  %7567 = vmatpush2.bf16.msra.mxu0 0
  %7568 = vmatprep.subr.bf16.mxu0 0
  %7569 = vmatpush2.bf16.msra.mxu0 0
  %7570 = vmatprep.subr.bf16.mxu0 0
  %7571 = vmatpush2.bf16.msra.mxu0 0
  %7572 = vmatprep.subr.bf16.mxu0 0
  %7573 = vmatpush2.bf16.msra.mxu0 0
  %7574 = vmatprep.subr.bf16.mxu0 0
  %7575 = vmatpush2.bf16.msra.mxu0 0
  %7576 = vmatprep.subr.bf16.mxu0 0
  %7577 = vmatpush2.bf16.msra.mxu0 0
  %7578 = vmatprep.subr.bf16.mxu0 0
  %7579 = vmatpush2.bf16.msra.mxu0 0
  %7580 = vmatprep.mubr.bf16.mxu0 0
  %7581 = vmatmul.mubr.bf16.gmra.mxu0 %v7429
  %v7582 = vpop.f32.mrf.mxu0
  %v7583 = vadd.f32 0.0, %v7582
  %v7584 = vpop.f32.mrf.mxu0
  %v7585 = vpop.f32.mrf.mxu0
  %v7586 = vadd.f32 0.0, %v7585
  %v7587 = vpop.f32.mrf.mxu0
  %7588 = vmatprep.mubr.bf16.mxu0 0
  %7589 = vmatmul.mubr.bf16.gmra.mxu0 %v7432
  %v7590 = vpop.f32.mrf.mxu0
  %v7591 = vadd.f32 0.0, %v7590
  %v7592 = vpop.f32.mrf.mxu0
  %v7593 = vpop.f32.mrf.mxu0
  %v7594 = vadd.f32 0.0, %v7593
  %v7595 = vpop.f32.mrf.mxu0
  %7596 = vmatprep.mubr.bf16.mxu0 0
  %7597 = vmatmul.mubr.bf16.gmra.mxu0 %v7435
  %v7598 = vpop.f32.mrf.mxu0
  %v7599 = vadd.f32 0.0, %v7598
  %v7600 = vpop.f32.mrf.mxu0
  %v7601 = vpop.f32.mrf.mxu0
  %v7602 = vadd.f32 0.0, %v7601
  %v7603 = vpop.f32.mrf.mxu0
  %7604 = vmatprep.mubr.bf16.mxu0 0
  %7605 = vmatmul.mubr.bf16.gmra.mxu0 %v7438
  %v7606 = vpop.f32.mrf.mxu0
  %v7607 = vadd.f32 0.0, %v7606
  %v7608 = vpop.f32.mrf.mxu0
  %v7609 = vpop.f32.mrf.mxu0
  %v7610 = vadd.f32 0.0, %v7609
  %v7611 = vpop.f32.mrf.mxu0
  %7612 = vmatprep.mubr.bf16.mxu0 0
  %7613 = vmatmul.mubr.bf16.gmra.mxu0 %v7441
  %v7614 = vpop.f32.mrf.mxu0
  %v7615 = vpop.f32.mrf.mxu0
  %v7616 = vpop.f32.mrf.mxu0
  %v7617 = vpop.f32.mrf.mxu0
  %7618 = vmatprep.mubr.bf16.mxu0 0
  %7619 = vmatmul.mubr.bf16.gmra.mxu0 %v7444
  %v7620 = vpop.f32.mrf.mxu0
  %v7621 = vadd.f32 0.0, %v7620
  %v7622 = vpop.f32.mrf.mxu0
  %v7623 = vpop.f32.mrf.mxu0
  %v7624 = vadd.f32 0.0, %v7623
  %v7625 = vpop.f32.mrf.mxu0
  %7626 = vmatprep.mubr.bf16.mxu0 0
  %7627 = vmatmul.mubr.bf16.gmra.mxu0 %v7447
  %v7628 = vpop.f32.mrf.mxu0
  %v7629 = vadd.f32 0.0, %v7628
  %v7630 = vpop.f32.mrf.mxu0
  %v7631 = vpop.f32.mrf.mxu0
  %v7632 = vadd.f32 0.0, %v7631
  %v7633 = vpop.f32.mrf.mxu0
  %7634 = vmatprep.mubr.bf16.mxu0 0
  %7635 = vmatmul.mubr.bf16.gmra.mxu0 %v7450
  %v7636 = vpop.f32.mrf.mxu0
  %v7637 = vadd.f32 0.0, %v7636
  %v7638 = vpop.f32.mrf.mxu0
  %v7639 = vpop.f32.mrf.mxu0
  %v7640 = vadd.f32 0.0, %v7639
  %v7641 = vpop.f32.mrf.mxu0
  %7642 = vmatprep.mubr.bf16.mxu0 0
  %7643 = vmatmul.mubr.bf16.gmra.mxu0 %v7453
  %v7644 = vpop.f32.mrf.mxu0
  %v7645 = vadd.f32 0.0, %v7644
  %v7646 = vpop.f32.mrf.mxu0
  %v7647 = vpop.f32.mrf.mxu0
  %v7648 = vadd.f32 0.0, %v7647
  %v7649 = vpop.f32.mrf.mxu0
  %7650 = vmatprep.mubr.bf16.mxu0 0
  %7651 = vmatmul.mubr.bf16.gmra.mxu0 %v7456
  %v7652 = vpop.f32.mrf.mxu0
  %v7653 = vpop.f32.mrf.mxu0
  %v7654 = vpop.f32.mrf.mxu0
  %v7655 = vpop.f32.mrf.mxu0
  %7656 = vmatprep.mubr.bf16.mxu0 0
  %7657 = vmatmul.mubr.bf16.gmra.mxu0 %v7459
  %v7658 = vpop.f32.mrf.mxu0
  %v7659 = vadd.f32 0.0, %v7658
  %v7660 = vpop.f32.mrf.mxu0
  %v7661 = vpop.f32.mrf.mxu0
  %v7662 = vadd.f32 0.0, %v7661
  %v7663 = vpop.f32.mrf.mxu0
  %7664 = vmatprep.mubr.bf16.mxu0 0
  %7665 = vmatmul.mubr.bf16.gmra.mxu0 %v7462
  %v7666 = vpop.f32.mrf.mxu0
  %v7667 = vadd.f32 0.0, %v7666
  %v7668 = vpop.f32.mrf.mxu0
  %v7669 = vpop.f32.mrf.mxu0
  %v7670 = vadd.f32 0.0, %v7669
  %v7671 = vpop.f32.mrf.mxu0
  %7672 = vmatprep.mubr.bf16.mxu0 0
  %7673 = vmatmul.mubr.bf16.gmra.mxu0 %v7465
  %v7674 = vpop.f32.mrf.mxu0
  %v7675 = vadd.f32 0.0, %v7674
  %v7676 = vpop.f32.mrf.mxu0
  %v7677 = vpop.f32.mrf.mxu0
  %v7678 = vadd.f32 0.0, %v7677
  %v7679 = vpop.f32.mrf.mxu0
  %7680 = vmatprep.mubr.bf16.mxu0 0
  %7681 = vmatmul.mubr.bf16.gmra.mxu0 %v7468
  %v7682 = vpop.f32.mrf.mxu0
  %v7683 = vadd.f32 0.0, %v7682
  %v7684 = vpop.f32.mrf.mxu0
  %v7685 = vpop.f32.mrf.mxu0
  %v7686 = vadd.f32 0.0, %v7685
  %v7687 = vpop.f32.mrf.mxu0
  %7688 = vmatprep.mubr.bf16.mxu0 0
  %7689 = vmatmul.mubr.bf16.gmra.mxu0 %v7471
  %v7690 = vpop.f32.mrf.mxu0
  %v7691 = vpop.f32.mrf.mxu0
  %v7692 = vpop.f32.mrf.mxu0
  %v7693 = vpop.f32.mrf.mxu0
  %7694 = vmatprep.mubr.bf16.mxu0 0
  %7695 = vmatmul.mubr.bf16.gmra.mxu0 %v7474
  %v7696 = vpop.f32.mrf.mxu0
  %v7697 = vadd.f32 0.0, %v7696
  %v7698 = vpop.f32.mrf.mxu0
  %v7699 = vpop.f32.mrf.mxu0
  %v7700 = vadd.f32 0.0, %v7699
  %v7701 = vpop.f32.mrf.mxu0
  %7702 = vmatprep.mubr.bf16.mxu0 0
  %7703 = vmatmul.mubr.bf16.gmra.mxu0 %v7477
  %v7704 = vpop.f32.mrf.mxu0
  %v7705 = vadd.f32 0.0, %v7704
  %v7706 = vpop.f32.mrf.mxu0
  %v7707 = vpop.f32.mrf.mxu0
  %v7708 = vadd.f32 0.0, %v7707
  %v7709 = vpop.f32.mrf.mxu0
  %7710 = vmatprep.mubr.bf16.mxu0 0
  %7711 = vmatmul.mubr.bf16.gmra.mxu0 %v7480
  %v7712 = vpop.f32.mrf.mxu0
  %v7713 = vadd.f32 0.0, %v7712
  %v7714 = vpop.f32.mrf.mxu0
  %v7715 = vpop.f32.mrf.mxu0
  %v7716 = vadd.f32 0.0, %v7715
  %v7717 = vpop.f32.mrf.mxu0
  %7718 = vmatprep.mubr.bf16.mxu0 0
  %7719 = vmatmul.mubr.bf16.gmra.mxu0 %v7483
  %v7720 = vpop.f32.mrf.mxu0
  %v7721 = vadd.f32 0.0, %v7720
  %v7722 = vpop.f32.mrf.mxu0
  %v7723 = vpop.f32.mrf.mxu0
  %v7724 = vadd.f32 0.0, %v7723
  %v7725 = vpop.f32.mrf.mxu0
  %7726 = vmatprep.mubr.bf16.mxu0 0
  %7727 = vmatmul.mubr.bf16.gmra.mxu0 %v7486
  %v7728 = vpop.f32.mrf.mxu0
  %v7729 = vpop.f32.mrf.mxu0
  %v7730 = vpop.f32.mrf.mxu0
  %v7731 = vpop.f32.mrf.mxu0
  %7732 = vmatprep.mubr.bf16.mxu0 0
  %7733 = vmatmul.mubr.bf16.gmra.mxu0 %v7489
  %v7734 = vpop.f32.mrf.mxu0
  %v7735 = vadd.f32 0.0, %v7734
  %v7736 = vpop.f32.mrf.mxu0
  %v7737 = vpop.f32.mrf.mxu0
  %v7738 = vadd.f32 0.0, %v7737
  %v7739 = vpop.f32.mrf.mxu0
  %7740 = vmatprep.mubr.bf16.mxu0 0
  %7741 = vmatmul.mubr.bf16.gmra.mxu0 %v7492
  %v7742 = vpop.f32.mrf.mxu0
  %v7743 = vadd.f32 0.0, %v7742
  %v7744 = vpop.f32.mrf.mxu0
  %v7745 = vpop.f32.mrf.mxu0
  %v7746 = vadd.f32 0.0, %v7745
  %v7747 = vpop.f32.mrf.mxu0
  %7748 = vmatprep.mubr.bf16.mxu0 0
  %7749 = vmatmul.mubr.bf16.gmra.mxu0 %v7495
  %v7750 = vpop.f32.mrf.mxu0
  %v7751 = vadd.f32 0.0, %v7750
  %v7752 = vpop.f32.mrf.mxu0
  %v7753 = vpop.f32.mrf.mxu0
  %v7754 = vadd.f32 0.0, %v7753
  %v7755 = vpop.f32.mrf.mxu0
  %7756 = vmatprep.mubr.bf16.mxu0 0
  %7757 = vmatmul.mubr.bf16.gmra.mxu0 %v7498
  %v7758 = vpop.f32.mrf.mxu0
  %v7759 = vadd.f32 0.0, %v7758
  %v7760 = vpop.f32.mrf.mxu0
  %v7761 = vpop.f32.mrf.mxu0
  %v7762 = vadd.f32 0.0, %v7761
  %v7763 = vpop.f32.mrf.mxu0
  %7764 = vmatprep.mubr.bf16.mxu0 0
  %7765 = vmatmul.mubr.bf16.gmra.mxu0 %v7501
  %v7766 = vpop.f32.mrf.mxu0
  %v7767 = vpop.f32.mrf.mxu0
  %v7768 = vpop.f32.mrf.mxu0
  %v7769 = vpop.f32.mrf.mxu0
  %7770 = vmatprep.mubr.bf16.mxu0 0
  %7771 = vmatmul.mubr.bf16.gmra.mxu0 %v7504
  %v7772 = vpop.f32.mrf.mxu0
  %v7773 = vadd.f32 0.0, %v7772
  %v7774 = vpop.f32.mrf.mxu0
  %v7775 = vpop.f32.mrf.mxu0
  %v7776 = vadd.f32 0.0, %v7775
  %v7777 = vpop.f32.mrf.mxu0
  %7778 = vmatprep.mubr.bf16.mxu0 0
  %7779 = vmatmul.mubr.bf16.gmra.mxu0 %v7507
  %v7780 = vpop.f32.mrf.mxu0
  %v7781 = vadd.f32 0.0, %v7780
  %v7782 = vpop.f32.mrf.mxu0
  %v7783 = vpop.f32.mrf.mxu0
  %v7784 = vadd.f32 0.0, %v7783
  %v7785 = vpop.f32.mrf.mxu0
  %7786 = vmatprep.mubr.bf16.mxu0 0
  %7787 = vmatmul.mubr.bf16.gmra.mxu0 %v7510
  %v7788 = vpop.f32.mrf.mxu0
  %v7789 = vadd.f32 0.0, %v7788
  %v7790 = vpop.f32.mrf.mxu0
  %v7791 = vpop.f32.mrf.mxu0
  %v7792 = vadd.f32 0.0, %v7791
  %v7793 = vpop.f32.mrf.mxu0
  %7794 = vmatprep.mubr.bf16.mxu0 0
  %7795 = vmatmul.mubr.bf16.gmra.mxu0 %v7513
  %v7796 = vpop.f32.mrf.mxu0
  %v7797 = vadd.f32 0.0, %v7796
  %v7798 = vpop.f32.mrf.mxu0
  %v7799 = vpop.f32.mrf.mxu0
  %v7800 = vadd.f32 0.0, %v7799
  %v7801 = vpop.f32.mrf.mxu0
  %7802 = vmatprep.mubr.bf16.mxu0 0
  %7803 = vmatmul.mubr.bf16.gmra.mxu0 %v7516
  %v7804 = vpop.f32.mrf.mxu0
  %v7805 = vpop.f32.mrf.mxu0
  %v7806 = vpop.f32.mrf.mxu0
  %v7807 = vpop.f32.mrf.mxu0
  %7808 = vmatprep.mubr.bf16.mxu0 0
  %7809 = vmatmul.mubr.bf16.gmra.mxu0 %v7519
  %v7810 = vpop.f32.mrf.mxu0
  %v7811 = vadd.f32 0.0, %v7810
  %v7812 = vpop.f32.mrf.mxu0
  %v7813 = vpop.f32.mrf.mxu0
  %v7814 = vadd.f32 0.0, %v7813
  %v7815 = vpop.f32.mrf.mxu0
  %7816 = vmatprep.mubr.bf16.mxu0 0
  %7817 = vmatmul.mubr.bf16.gmra.mxu0 %v7522
  %v7818 = vpop.f32.mrf.mxu0
  %v7819 = vadd.f32 0.0, %v7818
  %v7820 = vpop.f32.mrf.mxu0
  %v7821 = vpop.f32.mrf.mxu0
  %v7822 = vadd.f32 0.0, %v7821
  %v7823 = vpop.f32.mrf.mxu0
  %7824 = vmatprep.mubr.bf16.mxu0 0
  %7825 = vmatmul.mubr.bf16.gmra.mxu0 %v7525
  %v7826 = vpop.f32.mrf.mxu0
  %v7827 = vadd.f32 0.0, %v7826
  %v7828 = vpop.f32.mrf.mxu0
  %v7829 = vpop.f32.mrf.mxu0
  %v7830 = vadd.f32 0.0, %v7829
  %v7831 = vpop.f32.mrf.mxu0
  %7832 = vmatprep.mubr.bf16.mxu0 0
  %7833 = vmatmul.mubr.bf16.gmra.mxu0 %v7528
  %v7834 = vpop.f32.mrf.mxu0
  %v7835 = vadd.f32 0.0, %v7834
  %v7836 = vpop.f32.mrf.mxu0
  %v7837 = vpop.f32.mrf.mxu0
  %v7838 = vadd.f32 0.0, %v7837
  %v7839 = vpop.f32.mrf.mxu0
  %7840 = vmatprep.mubr.bf16.mxu0 0
  %7841 = vmatmul.mubr.bf16.gmra.mxu0 %v7531
  %v7842 = vpop.f32.mrf.mxu0
  %v7843 = vpop.f32.mrf.mxu0
  %v7844 = vpop.f32.mrf.mxu0
  %v7845 = vpop.f32.mrf.mxu0
  %7846 = vmatprep.mubr.bf16.mxu0 0
  %7847 = vmatmul.mubr.bf16.gmra.mxu0 %v7534
  %v7848 = vpop.f32.mrf.mxu0
  %v7849 = vadd.f32 0.0, %v7848
  %v7850 = vpop.f32.mrf.mxu0
  %v7851 = vpop.f32.mrf.mxu0
  %v7852 = vadd.f32 0.0, %v7851
  %v7853 = vpop.f32.mrf.mxu0
  %7854 = vmatprep.mubr.bf16.mxu0 0
  %7855 = vmatmul.mubr.bf16.gmra.mxu0 %v7537
  %v7856 = vpop.f32.mrf.mxu0
  %v7857 = vadd.f32 0.0, %v7856
  %v7858 = vpop.f32.mrf.mxu0
  %v7859 = vpop.f32.mrf.mxu0
  %v7860 = vadd.f32 0.0, %v7859
  %v7861 = vpop.f32.mrf.mxu0
  %7862 = vmatprep.mubr.bf16.mxu0 0
  %7863 = vmatmul.mubr.bf16.gmra.mxu0 %v7540
  %v7864 = vpop.f32.mrf.mxu0
  %v7865 = vadd.f32 0.0, %v7864
  %v7866 = vpop.f32.mrf.mxu0
  %v7867 = vpop.f32.mrf.mxu0
  %v7868 = vadd.f32 0.0, %v7867
  %v7869 = vpop.f32.mrf.mxu0
  %7870 = vmatprep.mubr.bf16.mxu0 0
  %7871 = vmatmul.mubr.bf16.gmra.mxu0 %v7543
  %v7872 = vpop.f32.mrf.mxu0
  %v7873 = vadd.f32 0.0, %v7872
  %v7874 = vpop.f32.mrf.mxu0
  %v7875 = vpop.f32.mrf.mxu0
  %v7876 = vadd.f32 0.0, %v7875
  %v7877 = vpop.f32.mrf.mxu0
  %7878 = vmatprep.mubr.bf16.mxu0 0
  %7879 = vmatmul.mubr.bf16.gmra.mxu0 %v7546
  %v7880 = vpop.f32.mrf.mxu0
  %v7881 = vpop.f32.mrf.mxu0
  %v7882 = vpop.f32.mrf.mxu0
  %v7883 = vpop.f32.mrf.mxu0
  %7884 = vdwg.mxu0
  %v7885 = vadd.f32 %v7234, %v7583
  %v7886 = vadd.f32 %v7235, %v7586
  %v7887 = vadd.f32 %v7236, %v7591
  %v7888 = vadd.f32 %v7237, %v7594
  %v7889 = vadd.f32 %v7238, %v7599
  %v7890 = vadd.f32 %v7239, %v7602
  %v7891 = vadd.f32 %v7240, %v7607
  %v7892 = vadd.f32 %v7241, %v7610
  %v7893 = vadd.f32 %v7242, %v7621
  %v7894 = vadd.f32 %v7243, %v7624
  %v7895 = vadd.f32 %v7244, %v7629
  %v7896 = vadd.f32 %v7245, %v7632
  %v7897 = vadd.f32 %v7246, %v7637
  %v7898 = vadd.f32 %v7247, %v7640
  %v7899 = vadd.f32 %v7248, %v7645
  %v7900 = vadd.f32 %v7249, %v7648
  %v7901 = vadd.f32 %v7250, %v7659
  %v7902 = vadd.f32 %v7251, %v7662
  %v7903 = vadd.f32 %v7252, %v7667
  %v7904 = vadd.f32 %v7253, %v7670
  %v7905 = vadd.f32 %v7254, %v7675
  %v7906 = vadd.f32 %v7255, %v7678
  %v7907 = vadd.f32 %v7256, %v7683
  %v7908 = vadd.f32 %v7257, %v7686
  %v7909 = vadd.f32 %v7258, %v7697
  %v7910 = vadd.f32 %v7259, %v7700
  %v7911 = vadd.f32 %v7260, %v7705
  %v7912 = vadd.f32 %v7261, %v7708
  %v7913 = vadd.f32 %v7262, %v7713
  %v7914 = vadd.f32 %v7263, %v7716
  %v7915 = vadd.f32 %v7264, %v7721
  %v7916 = vadd.f32 %v7265, %v7724
  %v7917 = vadd.f32 %v7266, %v7735
  %v7918 = vadd.f32 %v7267, %v7738
  %v7919 = vadd.f32 %v7268, %v7743
  %v7920 = vadd.f32 %v7269, %v7746
  %v7921 = vadd.f32 %v7270, %v7751
  %v7922 = vadd.f32 %v7271, %v7754
  %v7923 = vadd.f32 %v7272, %v7759
  %v7924 = vadd.f32 %v7273, %v7762
  %v7925 = vadd.f32 %v7274, %v7773
  %v7926 = vadd.f32 %v7275, %v7776
  %v7927 = vadd.f32 %v7276, %v7781
  %v7928 = vadd.f32 %v7277, %v7784
  %v7929 = vadd.f32 %v7278, %v7789
  %v7930 = vadd.f32 %v7279, %v7792
  %v7931 = vadd.f32 %v7280, %v7797
  %v7932 = vadd.f32 %v7281, %v7800
  %v7933 = vadd.f32 %v7282, %v7811
  %v7934 = vadd.f32 %v7283, %v7814
  %v7935 = vadd.f32 %v7284, %v7819
  %v7936 = vadd.f32 %v7285, %v7822
  %v7937 = vadd.f32 %v7286, %v7827
  %v7938 = vadd.f32 %v7287, %v7830
  %v7939 = vadd.f32 %v7288, %v7835
  %v7940 = vadd.f32 %v7289, %v7838
  %v7941 = vadd.f32 %v7290, %v7849
  %v7942 = vadd.f32 %v7291, %v7852
  %v7943 = vadd.f32 %v7292, %v7857
  %v7944 = vadd.f32 %v7293, %v7860
  %v7945 = vadd.f32 %v7294, %v7865
  %v7946 = vadd.f32 %v7295, %v7868
  %v7947 = vadd.f32 %v7296, %v7873
  %v7948 = vadd.f32 %v7297, %v7876
  %v7949 = vld [vmem:[%s3460] sm:$0xff]
  %v7950 = vld [vmem:[%s3460 + $0x8] sm:$0xff]
  %v7951 = vld [vmem:[%s3460 + $0x10] sm:$0xff]
  %v7952 = vld [vmem:[%s3460 + $0x18] sm:$0xff]
  %v7953 = vld [vmem:[%s3460 + $0x20] sm:$0xff]
  %v7954 = vld [vmem:[%s3460 + $0x28] sm:$0xff]
  %v7955 = vld [vmem:[%s3460 + $0x30] sm:$0xff]
  %v7956 = vld [vmem:[%s3460 + $0x38] sm:$0xff]
  %v7957 = vld [vmem:[%s3460 + $0x40] sm:$0xff]
  %v7958 = vld [vmem:[%s3460 + $0x48] sm:$0xff]
  %v7959 = vld [vmem:[%s3460 + $0x50] sm:$0xff]
  %v7960 = vld [vmem:[%s3460 + $0x58] sm:$0xff]
  %v7961 = vld [vmem:[%s3460 + $0x60] sm:$0xff]
  %v7962 = vld [vmem:[%s3460 + $0x68] sm:$0xff]
  %v7963 = vld [vmem:[%s3460 + $0x70] sm:$0xff]
  %v7964 = vld [vmem:[%s3460 + $0x78] sm:$0xff]
  %v7965 = vld [vmem:[%s3460 + $0x80] sm:$0xff]
  %v7966 = vld [vmem:[%s3460 + $0x88] sm:$0xff]
  %v7967 = vld [vmem:[%s3460 + $0x90] sm:$0xff]
  %v7968 = vld [vmem:[%s3460 + $0x98] sm:$0xff]
  %v7969 = vld [vmem:[%s3460 + $0xa0] sm:$0xff]
  %v7970 = vld [vmem:[%s3460 + $0xa8] sm:$0xff]
  %v7971 = vld [vmem:[%s3460 + $0xb0] sm:$0xff]
  %v7972 = vld [vmem:[%s3460 + $0xb8] sm:$0xff]
  %v7973 = vld [vmem:[%s3460 + $0xc0] sm:$0xff]
  %v7974 = vld [vmem:[%s3460 + $0xc8] sm:$0xff]
  %v7975 = vld [vmem:[%s3460 + $0xd0] sm:$0xff]
  %v7976 = vld [vmem:[%s3460 + $0xd8] sm:$0xff]
  %v7977 = vld [vmem:[%s3460 + $0xe0] sm:$0xff]
  %v7978 = vld [vmem:[%s3460 + $0xe8] sm:$0xff]
  %v7979 = vld [vmem:[%s3460 + $0xf0] sm:$0xff]
  %v7980 = vld [vmem:[%s3460 + $0xf8] sm:$0xff]
  %v7981 = vld [vmem:[%s3460 + $0x100] sm:$0xff]
  %v7982 = vld [vmem:[%s3460 + $0x108] sm:$0xff]
  %v7983 = vld [vmem:[%s3460 + $0x110] sm:$0xff]
  %v7984 = vld [vmem:[%s3460 + $0x118] sm:$0xff]
  %v7985 = vld [vmem:[%s3460 + $0x120] sm:$0xff]
  %v7986 = vld [vmem:[%s3460 + $0x128] sm:$0xff]
  %v7987 = vld [vmem:[%s3460 + $0x130] sm:$0xff]
  %v7988 = vld [vmem:[%s3460 + $0x138] sm:$0xff]
  %v7989 = vld [vmem:[%s3460 + $0x140] sm:$0xff]
  %v7990 = vld [vmem:[%s3460 + $0x148] sm:$0xff]
  %v7991 = vld [vmem:[%s3460 + $0x150] sm:$0xff]
  %v7992 = vld [vmem:[%s3460 + $0x158] sm:$0xff]
  %v7993 = vld [vmem:[%s3460 + $0x160] sm:$0xff]
  %v7994 = vld [vmem:[%s3460 + $0x168] sm:$0xff]
  %v7995 = vld [vmem:[%s3460 + $0x170] sm:$0xff]
  %v7996 = vld [vmem:[%s3460 + $0x178] sm:$0xff]
  %v7997 = vld [vmem:[%s3460 + $0x180] sm:$0xff]
  %v7998 = vld [vmem:[%s3460 + $0x188] sm:$0xff]
  %v7999 = vld [vmem:[%s3460 + $0x190] sm:$0xff]
  %v8000 = vld [vmem:[%s3460 + $0x198] sm:$0xff]
  %v8001 = vld [vmem:[%s3460 + $0x1a0] sm:$0xff]
  %v8002 = vld [vmem:[%s3460 + $0x1a8] sm:$0xff]
  %v8003 = vld [vmem:[%s3460 + $0x1b0] sm:$0xff]
  %v8004 = vld [vmem:[%s3460 + $0x1b8] sm:$0xff]
  %v8005 = vld [vmem:[%s3460 + $0x1c0] sm:$0xff]
  %v8006 = vld [vmem:[%s3460 + $0x1c8] sm:$0xff]
  %v8007 = vld [vmem:[%s3460 + $0x1d0] sm:$0xff]
  %v8008 = vld [vmem:[%s3460 + $0x1d8] sm:$0xff]
  %v8009 = vld [vmem:[%s3460 + $0x1e0] sm:$0xff]
  %v8010 = vld [vmem:[%s3460 + $0x1e8] sm:$0xff]
  %v8011 = vld [vmem:[%s3460 + $0x1f0] sm:$0xff]
  %v8012 = vld [vmem:[%s3460 + $0x1f8] sm:$0xff]
  %v8013 = vld [vmem:[%s3460 + $0x200] sm:$0xff]
  %v8014 = vld [vmem:[%s3460 + $0x208] sm:$0xff]
  %v8015 = vld [vmem:[%s3460 + $0x210] sm:$0xff]
  %v8016 = vld [vmem:[%s3460 + $0x218] sm:$0xff]
  %v8017 = vld [vmem:[%s3460 + $0x220] sm:$0xff]
  %v8018 = vld [vmem:[%s3460 + $0x228] sm:$0xff]
  %v8019 = vld [vmem:[%s3460 + $0x230] sm:$0xff]
  %v8020 = vld [vmem:[%s3460 + $0x238] sm:$0xff]
  %v8021 = vld [vmem:[%s3460 + $0x240] sm:$0xff]
  %v8022 = vld [vmem:[%s3460 + $0x248] sm:$0xff]
  %v8023 = vld [vmem:[%s3460 + $0x250] sm:$0xff]
  %v8024 = vld [vmem:[%s3460 + $0x258] sm:$0xff]
  %v8025 = vld [vmem:[%s3460 + $0x260] sm:$0xff]
  %v8026 = vld [vmem:[%s3460 + $0x268] sm:$0xff]
  %v8027 = vld [vmem:[%s3460 + $0x270] sm:$0xff]
  %v8028 = vld [vmem:[%s3460 + $0x278] sm:$0xff]
  %v8029 = vpack.c.bf16 %v7950, %v7949
  %v8030 = vpack.c.bf16 %v7952, %v7951
  %v8031 = vpack.c.bf16 %v7954, %v7953
  %v8032 = vpack.c.bf16 %v7956, %v7955
  %v8033 = vpack.c.bf16 %v7958, %v7957
  %v8034 = vpack.c.bf16 %v7960, %v7959
  %v8035 = vpack.c.bf16 %v7962, %v7961
  %v8036 = vpack.c.bf16 %v7964, %v7963
  %v8037 = vpack.c.bf16 %v7966, %v7965
  %v8038 = vpack.c.bf16 %v7968, %v7967
  %v8039 = vpack.c.bf16 %v7970, %v7969
  %v8040 = vpack.c.bf16 %v7972, %v7971
  %v8041 = vpack.c.bf16 %v7974, %v7973
  %v8042 = vpack.c.bf16 %v7976, %v7975
  %v8043 = vpack.c.bf16 %v7978, %v7977
  %v8044 = vpack.c.bf16 %v7980, %v7979
  %v8045 = vpack.c.bf16 %v7982, %v7981
  %v8046 = vpack.c.bf16 %v7984, %v7983
  %v8047 = vpack.c.bf16 %v7986, %v7985
  %v8048 = vpack.c.bf16 %v7988, %v7987
  %v8049 = vpack.c.bf16 %v7990, %v7989
  %v8050 = vpack.c.bf16 %v7992, %v7991
  %v8051 = vpack.c.bf16 %v7994, %v7993
  %v8052 = vpack.c.bf16 %v7996, %v7995
  %v8053 = vpack.c.bf16 %v7998, %v7997
  %v8054 = vpack.c.bf16 %v8000, %v7999
  %v8055 = vpack.c.bf16 %v8002, %v8001
  %v8056 = vpack.c.bf16 %v8004, %v8003
  %v8057 = vpack.c.bf16 %v8006, %v8005
  %v8058 = vpack.c.bf16 %v8008, %v8007
  %v8059 = vpack.c.bf16 %v8010, %v8009
  %v8060 = vpack.c.bf16 %v8012, %v8011
  %v8061 = vpack.c.bf16 %v8014, %v8013
  %v8062 = vpack.c.bf16 %v8016, %v8015
  %v8063 = vpack.c.bf16 %v8018, %v8017
  %v8064 = vpack.c.bf16 %v8020, %v8019
  %v8065 = vpack.c.bf16 %v8022, %v8021
  %v8066 = vpack.c.bf16 %v8024, %v8023
  %v8067 = vpack.c.bf16 %v8026, %v8025
  %v8068 = vpack.c.bf16 %v8028, %v8027
  %s8069 = scalar_lea.vmem %s6, 56
  %v8070 = vld [vmem:[%s8069] sm:$0xf]
  %v8071 = vld [vmem:[%s8069 + $0x4] sm:$0xf]
  %v8074 = vunpack.c.l.b16 %v8070
  %v8075 = vunpack.c.l.b16 %v8071
  %v8076 = vpack.c.b16 %v8075, %v8074
  %v8079 = vsel %vm125, %v8029, 0
  %v8082 = vsel %vm125, %v8030, 0
  %v8085 = vsel %vm125, %v8031, 0
  %v8088 = vsel %vm125, %v8032, 0
  %v8091 = vsel %vm125, %v8033, 0
  %v8094 = vsel %vm125, %v8034, 0
  %v8097 = vsel %vm125, %v8035, 0
  %v8100 = vsel %vm125, %v8036, 0
  %v8103 = vsel %vm125, %v8037, 0
  %v8106 = vsel %vm125, %v8038, 0
  %v8109 = vsel %vm125, %v8039, 0
  %v8112 = vsel %vm125, %v8040, 0
  %v8115 = vsel %vm125, %v8041, 0
  %v8118 = vsel %vm125, %v8042, 0
  %v8121 = vsel %vm125, %v8043, 0
  %v8124 = vsel %vm125, %v8044, 0
  %v8127 = vsel %vm125, %v8045, 0
  %v8130 = vsel %vm125, %v8046, 0
  %v8133 = vsel %vm125, %v8047, 0
  %v8136 = vsel %vm125, %v8048, 0
  %v8139 = vsel %vm125, %v8049, 0
  %v8142 = vsel %vm125, %v8050, 0
  %v8145 = vsel %vm125, %v8051, 0
  %v8148 = vsel %vm125, %v8052, 0
  %v8151 = vsel %vm125, %v8053, 0
  %v8154 = vsel %vm125, %v8054, 0
  %v8157 = vsel %vm125, %v8055, 0
  %v8160 = vsel %vm125, %v8056, 0
  %v8163 = vsel %vm125, %v8057, 0
  %v8166 = vsel %vm125, %v8058, 0
  %v8169 = vsel %vm125, %v8059, 0
  %v8172 = vsel %vm125, %v8060, 0
  %v8175 = vsel %vm125, %v8061, 0
  %v8178 = vsel %vm125, %v8062, 0
  %v8181 = vsel %vm125, %v8063, 0
  %v8184 = vsel %vm125, %v8064, 0
  %v8187 = vsel %vm125, %v8065, 0
  %v8190 = vsel %vm125, %v8066, 0
  %v8193 = vsel %vm125, %v8067, 0
  %v8196 = vsel %vm125, %v8068, 0
  %8198 = vmatprep.subr.bf16.mxu0 0
  %8199 = vmatpush1.bf16.msra.mxu0 0
  %8200 = vmatprep.subr.bf16.mxu0 0
  %8201 = vmatpush1.bf16.msra.mxu0 0
  %8202 = vmatprep.subr.bf16.mxu0 0
  %8203 = vmatpush1.bf16.msra.mxu0 0
  %8204 = vmatprep.subr.bf16.mxu0 0
  %8205 = vmatpush1.bf16.msra.mxu0 0
  %8206 = vmatprep.subr.bf16.mxu0 0
  %8207 = vmatpush1.bf16.msra.mxu0 0
  %8208 = vmatprep.subr.bf16.mxu0 0
  %8209 = vmatpush1.bf16.msra.mxu0 0
  %8210 = vmatprep.subr.bf16.mxu0 0
  %8211 = vmatpush1.bf16.msra.mxu0 0
  %8212 = vmatprep.subr.bf16.mxu0 0
  %8213 = vmatpush1.bf16.msra.mxu0 %v8076
  %8214 = vmatprep.subr.bf16.mxu0 0
  %8215 = vmatpush2.bf16.msra.mxu0 0
  %8216 = vmatprep.subr.bf16.mxu0 0
  %8217 = vmatpush2.bf16.msra.mxu0 0
  %8218 = vmatprep.subr.bf16.mxu0 0
  %8219 = vmatpush2.bf16.msra.mxu0 0
  %8220 = vmatprep.subr.bf16.mxu0 0
  %8221 = vmatpush2.bf16.msra.mxu0 0
  %8222 = vmatprep.subr.bf16.mxu0 0
  %8223 = vmatpush2.bf16.msra.mxu0 0
  %8224 = vmatprep.subr.bf16.mxu0 0
  %8225 = vmatpush2.bf16.msra.mxu0 0
  %8226 = vmatprep.subr.bf16.mxu0 0
  %8227 = vmatpush2.bf16.msra.mxu0 0
  %8228 = vmatprep.subr.bf16.mxu0 0
  %8229 = vmatpush2.bf16.msra.mxu0 0
  %8230 = vmatprep.mubr.bf16.mxu0 0
  %8231 = vmatmul.mubr.bf16.gmra.mxu0 %v8079
  %v8232 = vpop.f32.mrf.mxu0
  %v8233 = vadd.f32 0.0, %v8232
  %v8234 = vpop.f32.mrf.mxu0
  %v8235 = vpop.f32.mrf.mxu0
  %v8236 = vadd.f32 0.0, %v8235
  %v8237 = vpop.f32.mrf.mxu0
  %8238 = vmatprep.mubr.bf16.mxu0 0
  %8239 = vmatmul.mubr.bf16.gmra.mxu0 %v8082
  %v8240 = vpop.f32.mrf.mxu0
  %v8241 = vadd.f32 0.0, %v8240
  %v8242 = vpop.f32.mrf.mxu0
  %v8243 = vpop.f32.mrf.mxu0
  %v8244 = vadd.f32 0.0, %v8243
  %v8245 = vpop.f32.mrf.mxu0
  %8246 = vmatprep.mubr.bf16.mxu0 0
  %8247 = vmatmul.mubr.bf16.gmra.mxu0 %v8085
  %v8248 = vpop.f32.mrf.mxu0
  %v8249 = vadd.f32 0.0, %v8248
  %v8250 = vpop.f32.mrf.mxu0
  %v8251 = vpop.f32.mrf.mxu0
  %v8252 = vadd.f32 0.0, %v8251
  %v8253 = vpop.f32.mrf.mxu0
  %8254 = vmatprep.mubr.bf16.mxu0 0
  %8255 = vmatmul.mubr.bf16.gmra.mxu0 %v8088
  %v8256 = vpop.f32.mrf.mxu0
  %v8257 = vadd.f32 0.0, %v8256
  %v8258 = vpop.f32.mrf.mxu0
  %v8259 = vpop.f32.mrf.mxu0
  %v8260 = vadd.f32 0.0, %v8259
  %v8261 = vpop.f32.mrf.mxu0
  %8262 = vmatprep.mubr.bf16.mxu0 0
  %8263 = vmatmul.mubr.bf16.gmra.mxu0 %v8091
  %v8264 = vpop.f32.mrf.mxu0
  %v8265 = vpop.f32.mrf.mxu0
  %v8266 = vpop.f32.mrf.mxu0
  %v8267 = vpop.f32.mrf.mxu0
  %8268 = vmatprep.mubr.bf16.mxu0 0
  %8269 = vmatmul.mubr.bf16.gmra.mxu0 %v8094
  %v8270 = vpop.f32.mrf.mxu0
  %v8271 = vadd.f32 0.0, %v8270
  %v8272 = vpop.f32.mrf.mxu0
  %v8273 = vpop.f32.mrf.mxu0
  %v8274 = vadd.f32 0.0, %v8273
  %v8275 = vpop.f32.mrf.mxu0
  %8276 = vmatprep.mubr.bf16.mxu0 0
  %8277 = vmatmul.mubr.bf16.gmra.mxu0 %v8097
  %v8278 = vpop.f32.mrf.mxu0
  %v8279 = vadd.f32 0.0, %v8278
  %v8280 = vpop.f32.mrf.mxu0
  %v8281 = vpop.f32.mrf.mxu0
  %v8282 = vadd.f32 0.0, %v8281
  %v8283 = vpop.f32.mrf.mxu0
  %8284 = vmatprep.mubr.bf16.mxu0 0
  %8285 = vmatmul.mubr.bf16.gmra.mxu0 %v8100
  %v8286 = vpop.f32.mrf.mxu0
  %v8287 = vadd.f32 0.0, %v8286
  %v8288 = vpop.f32.mrf.mxu0
  %v8289 = vpop.f32.mrf.mxu0
  %v8290 = vadd.f32 0.0, %v8289
  %v8291 = vpop.f32.mrf.mxu0
  %8292 = vmatprep.mubr.bf16.mxu0 0
  %8293 = vmatmul.mubr.bf16.gmra.mxu0 %v8103
  %v8294 = vpop.f32.mrf.mxu0
  %v8295 = vadd.f32 0.0, %v8294
  %v8296 = vpop.f32.mrf.mxu0
  %v8297 = vpop.f32.mrf.mxu0
  %v8298 = vadd.f32 0.0, %v8297
  %v8299 = vpop.f32.mrf.mxu0
  %8300 = vmatprep.mubr.bf16.mxu0 0
  %8301 = vmatmul.mubr.bf16.gmra.mxu0 %v8106
  %v8302 = vpop.f32.mrf.mxu0
  %v8303 = vpop.f32.mrf.mxu0
  %v8304 = vpop.f32.mrf.mxu0
  %v8305 = vpop.f32.mrf.mxu0
  %8306 = vmatprep.mubr.bf16.mxu0 0
  %8307 = vmatmul.mubr.bf16.gmra.mxu0 %v8109
  %v8308 = vpop.f32.mrf.mxu0
  %v8309 = vadd.f32 0.0, %v8308
  %v8310 = vpop.f32.mrf.mxu0
  %v8311 = vpop.f32.mrf.mxu0
  %v8312 = vadd.f32 0.0, %v8311
  %v8313 = vpop.f32.mrf.mxu0
  %8314 = vmatprep.mubr.bf16.mxu0 0
  %8315 = vmatmul.mubr.bf16.gmra.mxu0 %v8112
  %v8316 = vpop.f32.mrf.mxu0
  %v8317 = vadd.f32 0.0, %v8316
  %v8318 = vpop.f32.mrf.mxu0
  %v8319 = vpop.f32.mrf.mxu0
  %v8320 = vadd.f32 0.0, %v8319
  %v8321 = vpop.f32.mrf.mxu0
  %8322 = vmatprep.mubr.bf16.mxu0 0
  %8323 = vmatmul.mubr.bf16.gmra.mxu0 %v8115
  %v8324 = vpop.f32.mrf.mxu0
  %v8325 = vadd.f32 0.0, %v8324
  %v8326 = vpop.f32.mrf.mxu0
  %v8327 = vpop.f32.mrf.mxu0
  %v8328 = vadd.f32 0.0, %v8327
  %v8329 = vpop.f32.mrf.mxu0
  %8330 = vmatprep.mubr.bf16.mxu0 0
  %8331 = vmatmul.mubr.bf16.gmra.mxu0 %v8118
  %v8332 = vpop.f32.mrf.mxu0
  %v8333 = vadd.f32 0.0, %v8332
  %v8334 = vpop.f32.mrf.mxu0
  %v8335 = vpop.f32.mrf.mxu0
  %v8336 = vadd.f32 0.0, %v8335
  %v8337 = vpop.f32.mrf.mxu0
  %8338 = vmatprep.mubr.bf16.mxu0 0
  %8339 = vmatmul.mubr.bf16.gmra.mxu0 %v8121
  %v8340 = vpop.f32.mrf.mxu0
  %v8341 = vpop.f32.mrf.mxu0
  %v8342 = vpop.f32.mrf.mxu0
  %v8343 = vpop.f32.mrf.mxu0
  %8344 = vmatprep.mubr.bf16.mxu0 0
  %8345 = vmatmul.mubr.bf16.gmra.mxu0 %v8124
  %v8346 = vpop.f32.mrf.mxu0
  %v8347 = vadd.f32 0.0, %v8346
  %v8348 = vpop.f32.mrf.mxu0
  %v8349 = vpop.f32.mrf.mxu0
  %v8350 = vadd.f32 0.0, %v8349
  %v8351 = vpop.f32.mrf.mxu0
  %8352 = vmatprep.mubr.bf16.mxu0 0
  %8353 = vmatmul.mubr.bf16.gmra.mxu0 %v8127
  %v8354 = vpop.f32.mrf.mxu0
  %v8355 = vadd.f32 0.0, %v8354
  %v8356 = vpop.f32.mrf.mxu0
  %v8357 = vpop.f32.mrf.mxu0
  %v8358 = vadd.f32 0.0, %v8357
  %v8359 = vpop.f32.mrf.mxu0
  %8360 = vmatprep.mubr.bf16.mxu0 0
  %8361 = vmatmul.mubr.bf16.gmra.mxu0 %v8130
  %v8362 = vpop.f32.mrf.mxu0
  %v8363 = vadd.f32 0.0, %v8362
  %v8364 = vpop.f32.mrf.mxu0
  %v8365 = vpop.f32.mrf.mxu0
  %v8366 = vadd.f32 0.0, %v8365
  %v8367 = vpop.f32.mrf.mxu0
  %8368 = vmatprep.mubr.bf16.mxu0 0
  %8369 = vmatmul.mubr.bf16.gmra.mxu0 %v8133
  %v8370 = vpop.f32.mrf.mxu0
  %v8371 = vadd.f32 0.0, %v8370
  %v8372 = vpop.f32.mrf.mxu0
  %v8373 = vpop.f32.mrf.mxu0
  %v8374 = vadd.f32 0.0, %v8373
  %v8375 = vpop.f32.mrf.mxu0
  %8376 = vmatprep.mubr.bf16.mxu0 0
  %8377 = vmatmul.mubr.bf16.gmra.mxu0 %v8136
  %v8378 = vpop.f32.mrf.mxu0
  %v8379 = vpop.f32.mrf.mxu0
  %v8380 = vpop.f32.mrf.mxu0
  %v8381 = vpop.f32.mrf.mxu0
  %8382 = vmatprep.mubr.bf16.mxu0 0
  %8383 = vmatmul.mubr.bf16.gmra.mxu0 %v8139
  %v8384 = vpop.f32.mrf.mxu0
  %v8385 = vadd.f32 0.0, %v8384
  %v8386 = vpop.f32.mrf.mxu0
  %v8387 = vpop.f32.mrf.mxu0
  %v8388 = vadd.f32 0.0, %v8387
  %v8389 = vpop.f32.mrf.mxu0
  %8390 = vmatprep.mubr.bf16.mxu0 0
  %8391 = vmatmul.mubr.bf16.gmra.mxu0 %v8142
  %v8392 = vpop.f32.mrf.mxu0
  %v8393 = vadd.f32 0.0, %v8392
  %v8394 = vpop.f32.mrf.mxu0
  %v8395 = vpop.f32.mrf.mxu0
  %v8396 = vadd.f32 0.0, %v8395
  %v8397 = vpop.f32.mrf.mxu0
  %8398 = vmatprep.mubr.bf16.mxu0 0
  %8399 = vmatmul.mubr.bf16.gmra.mxu0 %v8145
  %v8400 = vpop.f32.mrf.mxu0
  %v8401 = vadd.f32 0.0, %v8400
  %v8402 = vpop.f32.mrf.mxu0
  %v8403 = vpop.f32.mrf.mxu0
  %v8404 = vadd.f32 0.0, %v8403
  %v8405 = vpop.f32.mrf.mxu0
  %8406 = vmatprep.mubr.bf16.mxu0 0
  %8407 = vmatmul.mubr.bf16.gmra.mxu0 %v8148
  %v8408 = vpop.f32.mrf.mxu0
  %v8409 = vadd.f32 0.0, %v8408
  %v8410 = vpop.f32.mrf.mxu0
  %v8411 = vpop.f32.mrf.mxu0
  %v8412 = vadd.f32 0.0, %v8411
  %v8413 = vpop.f32.mrf.mxu0
  %8414 = vmatprep.mubr.bf16.mxu0 0
  %8415 = vmatmul.mubr.bf16.gmra.mxu0 %v8151
  %v8416 = vpop.f32.mrf.mxu0
  %v8417 = vpop.f32.mrf.mxu0
  %v8418 = vpop.f32.mrf.mxu0
  %v8419 = vpop.f32.mrf.mxu0
  %8420 = vmatprep.mubr.bf16.mxu0 0
  %8421 = vmatmul.mubr.bf16.gmra.mxu0 %v8154
  %v8422 = vpop.f32.mrf.mxu0
  %v8423 = vadd.f32 0.0, %v8422
  %v8424 = vpop.f32.mrf.mxu0
  %v8425 = vpop.f32.mrf.mxu0
  %v8426 = vadd.f32 0.0, %v8425
  %v8427 = vpop.f32.mrf.mxu0
  %8428 = vmatprep.mubr.bf16.mxu0 0
  %8429 = vmatmul.mubr.bf16.gmra.mxu0 %v8157
  %v8430 = vpop.f32.mrf.mxu0
  %v8431 = vadd.f32 0.0, %v8430
  %v8432 = vpop.f32.mrf.mxu0
  %v8433 = vpop.f32.mrf.mxu0
  %v8434 = vadd.f32 0.0, %v8433
  %v8435 = vpop.f32.mrf.mxu0
  %8436 = vmatprep.mubr.bf16.mxu0 0
  %8437 = vmatmul.mubr.bf16.gmra.mxu0 %v8160
  %v8438 = vpop.f32.mrf.mxu0
  %v8439 = vadd.f32 0.0, %v8438
  %v8440 = vpop.f32.mrf.mxu0
  %v8441 = vpop.f32.mrf.mxu0
  %v8442 = vadd.f32 0.0, %v8441
  %v8443 = vpop.f32.mrf.mxu0
  %8444 = vmatprep.mubr.bf16.mxu0 0
  %8445 = vmatmul.mubr.bf16.gmra.mxu0 %v8163
  %v8446 = vpop.f32.mrf.mxu0
  %v8447 = vadd.f32 0.0, %v8446
  %v8448 = vpop.f32.mrf.mxu0
  %v8449 = vpop.f32.mrf.mxu0
  %v8450 = vadd.f32 0.0, %v8449
  %v8451 = vpop.f32.mrf.mxu0
  %8452 = vmatprep.mubr.bf16.mxu0 0
  %8453 = vmatmul.mubr.bf16.gmra.mxu0 %v8166
  %v8454 = vpop.f32.mrf.mxu0
  %v8455 = vpop.f32.mrf.mxu0
  %v8456 = vpop.f32.mrf.mxu0
  %v8457 = vpop.f32.mrf.mxu0
  %8458 = vmatprep.mubr.bf16.mxu0 0
  %8459 = vmatmul.mubr.bf16.gmra.mxu0 %v8169
  %v8460 = vpop.f32.mrf.mxu0
  %v8461 = vadd.f32 0.0, %v8460
  %v8462 = vpop.f32.mrf.mxu0
  %v8463 = vpop.f32.mrf.mxu0
  %v8464 = vadd.f32 0.0, %v8463
  %v8465 = vpop.f32.mrf.mxu0
  %8466 = vmatprep.mubr.bf16.mxu0 0
  %8467 = vmatmul.mubr.bf16.gmra.mxu0 %v8172
  %v8468 = vpop.f32.mrf.mxu0
  %v8469 = vadd.f32 0.0, %v8468
  %v8470 = vpop.f32.mrf.mxu0
  %v8471 = vpop.f32.mrf.mxu0
  %v8472 = vadd.f32 0.0, %v8471
  %v8473 = vpop.f32.mrf.mxu0
  %8474 = vmatprep.mubr.bf16.mxu0 0
  %8475 = vmatmul.mubr.bf16.gmra.mxu0 %v8175
  %v8476 = vpop.f32.mrf.mxu0
  %v8477 = vadd.f32 0.0, %v8476
  %v8478 = vpop.f32.mrf.mxu0
  %v8479 = vpop.f32.mrf.mxu0
  %v8480 = vadd.f32 0.0, %v8479
  %v8481 = vpop.f32.mrf.mxu0
  %8482 = vmatprep.mubr.bf16.mxu0 0
  %8483 = vmatmul.mubr.bf16.gmra.mxu0 %v8178
  %v8484 = vpop.f32.mrf.mxu0
  %v8485 = vadd.f32 0.0, %v8484
  %v8486 = vpop.f32.mrf.mxu0
  %v8487 = vpop.f32.mrf.mxu0
  %v8488 = vadd.f32 0.0, %v8487
  %v8489 = vpop.f32.mrf.mxu0
  %8490 = vmatprep.mubr.bf16.mxu0 0
  %8491 = vmatmul.mubr.bf16.gmra.mxu0 %v8181
  %v8492 = vpop.f32.mrf.mxu0
  %v8493 = vpop.f32.mrf.mxu0
  %v8494 = vpop.f32.mrf.mxu0
  %v8495 = vpop.f32.mrf.mxu0
  %8496 = vmatprep.mubr.bf16.mxu0 0
  %8497 = vmatmul.mubr.bf16.gmra.mxu0 %v8184
  %v8498 = vpop.f32.mrf.mxu0
  %v8499 = vadd.f32 0.0, %v8498
  %v8500 = vpop.f32.mrf.mxu0
  %v8501 = vpop.f32.mrf.mxu0
  %v8502 = vadd.f32 0.0, %v8501
  %v8503 = vpop.f32.mrf.mxu0
  %8504 = vmatprep.mubr.bf16.mxu0 0
  %8505 = vmatmul.mubr.bf16.gmra.mxu0 %v8187
  %v8506 = vpop.f32.mrf.mxu0
  %v8507 = vadd.f32 0.0, %v8506
  %v8508 = vpop.f32.mrf.mxu0
  %v8509 = vpop.f32.mrf.mxu0
  %v8510 = vadd.f32 0.0, %v8509
  %v8511 = vpop.f32.mrf.mxu0
  %8512 = vmatprep.mubr.bf16.mxu0 0
  %8513 = vmatmul.mubr.bf16.gmra.mxu0 %v8190
  %v8514 = vpop.f32.mrf.mxu0
  %v8515 = vadd.f32 0.0, %v8514
  %v8516 = vpop.f32.mrf.mxu0
  %v8517 = vpop.f32.mrf.mxu0
  %v8518 = vadd.f32 0.0, %v8517
  %v8519 = vpop.f32.mrf.mxu0
  %8520 = vmatprep.mubr.bf16.mxu0 0
  %8521 = vmatmul.mubr.bf16.gmra.mxu0 %v8193
  %v8522 = vpop.f32.mrf.mxu0
  %v8523 = vadd.f32 0.0, %v8522
  %v8524 = vpop.f32.mrf.mxu0
  %v8525 = vpop.f32.mrf.mxu0
  %v8526 = vadd.f32 0.0, %v8525
  %v8527 = vpop.f32.mrf.mxu0
  %8528 = vmatprep.mubr.bf16.mxu0 0
  %8529 = vmatmul.mubr.bf16.gmra.mxu0 %v8196
  %v8530 = vpop.f32.mrf.mxu0
  %v8531 = vpop.f32.mrf.mxu0
  %v8532 = vpop.f32.mrf.mxu0
  %v8533 = vpop.f32.mrf.mxu0
  %8534 = vdwg.mxu0
  %v8535 = vadd.f32 %v7885, %v8233
  %v8536 = vadd.f32 %v7886, %v8236
  %v8537 = vadd.f32 %v7887, %v8241
  %v8538 = vadd.f32 %v7888, %v8244
  %v8539 = vadd.f32 %v7889, %v8249
  %v8540 = vadd.f32 %v7890, %v8252
  %v8541 = vadd.f32 %v7891, %v8257
  %v8542 = vadd.f32 %v7892, %v8260
  %v8543 = vadd.f32 %v7893, %v8271
  %v8544 = vadd.f32 %v7894, %v8274
  %v8545 = vadd.f32 %v7895, %v8279
  %v8546 = vadd.f32 %v7896, %v8282
  %v8547 = vadd.f32 %v7897, %v8287
  %v8548 = vadd.f32 %v7898, %v8290
  %v8549 = vadd.f32 %v7899, %v8295
  %v8550 = vadd.f32 %v7900, %v8298
  %v8551 = vadd.f32 %v7901, %v8309
  %v8552 = vadd.f32 %v7902, %v8312
  %v8553 = vadd.f32 %v7903, %v8317
  %v8554 = vadd.f32 %v7904, %v8320
  %v8555 = vadd.f32 %v7905, %v8325
  %v8556 = vadd.f32 %v7906, %v8328
  %v8557 = vadd.f32 %v7907, %v8333
  %v8558 = vadd.f32 %v7908, %v8336
  %v8559 = vadd.f32 %v7909, %v8347
  %v8560 = vadd.f32 %v7910, %v8350
  %v8561 = vadd.f32 %v7911, %v8355
  %v8562 = vadd.f32 %v7912, %v8358
  %v8563 = vadd.f32 %v7913, %v8363
  %v8564 = vadd.f32 %v7914, %v8366
  %v8565 = vadd.f32 %v7915, %v8371
  %v8566 = vadd.f32 %v7916, %v8374
  %v8567 = vadd.f32 %v7917, %v8385
  %v8568 = vadd.f32 %v7918, %v8388
  %v8569 = vadd.f32 %v7919, %v8393
  %v8570 = vadd.f32 %v7920, %v8396
  %v8571 = vadd.f32 %v7921, %v8401
  %v8572 = vadd.f32 %v7922, %v8404
  %v8573 = vadd.f32 %v7923, %v8409
  %v8574 = vadd.f32 %v7924, %v8412
  %v8575 = vadd.f32 %v7925, %v8423
  %v8576 = vadd.f32 %v7926, %v8426
  %v8577 = vadd.f32 %v7927, %v8431
  %v8578 = vadd.f32 %v7928, %v8434
  %v8579 = vadd.f32 %v7929, %v8439
  %v8580 = vadd.f32 %v7930, %v8442
  %v8581 = vadd.f32 %v7931, %v8447
  %v8582 = vadd.f32 %v7932, %v8450
  %v8583 = vadd.f32 %v7933, %v8461
  %v8584 = vadd.f32 %v7934, %v8464
  %v8585 = vadd.f32 %v7935, %v8469
  %v8586 = vadd.f32 %v7936, %v8472
  %v8587 = vadd.f32 %v7937, %v8477
  %v8588 = vadd.f32 %v7938, %v8480
  %v8589 = vadd.f32 %v7939, %v8485
  %v8590 = vadd.f32 %v7940, %v8488
  %v8591 = vadd.f32 %v7941, %v8499
  %v8592 = vadd.f32 %v7942, %v8502
  %v8593 = vadd.f32 %v7943, %v8507
  %v8594 = vadd.f32 %v7944, %v8510
  %v8595 = vadd.f32 %v7945, %v8515
  %v8596 = vadd.f32 %v7946, %v8518
  %v8597 = vadd.f32 %v7947, %v8523
  %v8598 = vadd.f32 %v7948, %v8526
  %s8599 = scalar_lea.vmem [#allocation2], 176
  %v8600 = vld [vmem:[%s8599] sm:$0xff]
  %v8601 = vld [vmem:[%s8599 + $0x8] sm:$0xff]
  %v8602 = vld [vmem:[%s8599 + $0x10] sm:$0xff]
  %v8603 = vld [vmem:[%s8599 + $0x18] sm:$0xff]
  %v8604 = vld [vmem:[%s8599 + $0x20] sm:$0xff]
  %v8605 = vld [vmem:[%s8599 + $0x28] sm:$0xff]
  %v8606 = vld [vmem:[%s8599 + $0x30] sm:$0xff]
  %v8607 = vld [vmem:[%s8599 + $0x38] sm:$0xff]
  %v8608 = vld [vmem:[%s8599 + $0x40] sm:$0xff]
  %v8609 = vld [vmem:[%s8599 + $0x48] sm:$0xff]
  %v8610 = vld [vmem:[%s8599 + $0x50] sm:$0xff]
  %v8611 = vld [vmem:[%s8599 + $0x58] sm:$0xff]
  %v8612 = vld [vmem:[%s8599 + $0x60] sm:$0xff]
  %v8613 = vld [vmem:[%s8599 + $0x68] sm:$0xff]
  %v8614 = vld [vmem:[%s8599 + $0x70] sm:$0xff]
  %v8615 = vld [vmem:[%s8599 + $0x78] sm:$0xff]
  %v8616 = vld [vmem:[%s8599 + $0x80] sm:$0xff]
  %v8617 = vld [vmem:[%s8599 + $0x88] sm:$0xff]
  %v8618 = vld [vmem:[%s8599 + $0x90] sm:$0xff]
  %v8619 = vld [vmem:[%s8599 + $0x98] sm:$0xff]
  %v8620 = vld [vmem:[%s8599 + $0xa0] sm:$0xff]
  %v8621 = vld [vmem:[%s8599 + $0xa8] sm:$0xff]
  %v8622 = vld [vmem:[%s8599 + $0xb0] sm:$0xff]
  %v8623 = vld [vmem:[%s8599 + $0xb8] sm:$0xff]
  %v8624 = vld [vmem:[%s8599 + $0xc0] sm:$0xff]
  %v8625 = vld [vmem:[%s8599 + $0xc8] sm:$0xff]
  %v8626 = vld [vmem:[%s8599 + $0xd0] sm:$0xff]
  %v8627 = vld [vmem:[%s8599 + $0xd8] sm:$0xff]
  %v8628 = vld [vmem:[%s8599 + $0xe0] sm:$0xff]
  %v8629 = vld [vmem:[%s8599 + $0xe8] sm:$0xff]
  %v8630 = vld [vmem:[%s8599 + $0xf0] sm:$0xff]
  %v8631 = vld [vmem:[%s8599 + $0xf8] sm:$0xff]
  %v8632 = vld [vmem:[%s8599 + $0x100] sm:$0xff]
  %v8633 = vld [vmem:[%s8599 + $0x108] sm:$0xff]
  %v8634 = vld [vmem:[%s8599 + $0x110] sm:$0xff]
  %v8635 = vld [vmem:[%s8599 + $0x118] sm:$0xff]
  %v8636 = vld [vmem:[%s8599 + $0x120] sm:$0xff]
  %v8637 = vld [vmem:[%s8599 + $0x128] sm:$0xff]
  %v8638 = vld [vmem:[%s8599 + $0x130] sm:$0xff]
  %v8639 = vld [vmem:[%s8599 + $0x138] sm:$0xff]
  %v8640 = vld [vmem:[%s8599 + $0x140] sm:$0xff]
  %v8641 = vld [vmem:[%s8599 + $0x148] sm:$0xff]
  %v8642 = vld [vmem:[%s8599 + $0x150] sm:$0xff]
  %v8643 = vld [vmem:[%s8599 + $0x158] sm:$0xff]
  %v8644 = vld [vmem:[%s8599 + $0x160] sm:$0xff]
  %v8645 = vld [vmem:[%s8599 + $0x168] sm:$0xff]
  %v8646 = vld [vmem:[%s8599 + $0x170] sm:$0xff]
  %v8647 = vld [vmem:[%s8599 + $0x178] sm:$0xff]
  %v8648 = vld [vmem:[%s8599 + $0x180] sm:$0xff]
  %v8649 = vld [vmem:[%s8599 + $0x188] sm:$0xff]
  %v8650 = vld [vmem:[%s8599 + $0x190] sm:$0xff]
  %v8651 = vld [vmem:[%s8599 + $0x198] sm:$0xff]
  %v8652 = vld [vmem:[%s8599 + $0x1a0] sm:$0xff]
  %v8653 = vld [vmem:[%s8599 + $0x1a8] sm:$0xff]
  %v8654 = vld [vmem:[%s8599 + $0x1b0] sm:$0xff]
  %v8655 = vld [vmem:[%s8599 + $0x1b8] sm:$0xff]
  %v8656 = vld [vmem:[%s8599 + $0x1c0] sm:$0xff]
  %v8657 = vld [vmem:[%s8599 + $0x1c8] sm:$0xff]
  %v8658 = vld [vmem:[%s8599 + $0x1d0] sm:$0xff]
  %v8659 = vld [vmem:[%s8599 + $0x1d8] sm:$0xff]
  %v8660 = vld [vmem:[%s8599 + $0x1e0] sm:$0xff]
  %v8661 = vld [vmem:[%s8599 + $0x1e8] sm:$0xff]
  %v8662 = vld [vmem:[%s8599 + $0x1f0] sm:$0xff]
  %v8663 = vld [vmem:[%s8599 + $0x1f8] sm:$0xff]
  %v8664 = vld [vmem:[%s8599 + $0x200] sm:$0xff]
  %v8665 = vld [vmem:[%s8599 + $0x208] sm:$0xff]
  %v8666 = vld [vmem:[%s8599 + $0x210] sm:$0xff]
  %v8667 = vld [vmem:[%s8599 + $0x218] sm:$0xff]
  %v8668 = vld [vmem:[%s8599 + $0x220] sm:$0xff]
  %v8669 = vld [vmem:[%s8599 + $0x228] sm:$0xff]
  %v8670 = vld [vmem:[%s8599 + $0x230] sm:$0xff]
  %v8671 = vld [vmem:[%s8599 + $0x238] sm:$0xff]
  %v8672 = vld [vmem:[%s8599 + $0x240] sm:$0xff]
  %v8673 = vld [vmem:[%s8599 + $0x248] sm:$0xff]
  %v8674 = vld [vmem:[%s8599 + $0x250] sm:$0xff]
  %v8675 = vld [vmem:[%s8599 + $0x258] sm:$0xff]
  %v8676 = vld [vmem:[%s8599 + $0x260] sm:$0xff]
  %v8677 = vld [vmem:[%s8599 + $0x268] sm:$0xff]
  %v8678 = vld [vmem:[%s8599 + $0x270] sm:$0xff]
  %v8679 = vld [vmem:[%s8599 + $0x278] sm:$0xff]
  %v8680 = vpack.c.bf16 %v8601, %v8600
  %v8681 = vpack.c.bf16 %v8603, %v8602
  %v8682 = vpack.c.bf16 %v8605, %v8604
  %v8683 = vpack.c.bf16 %v8607, %v8606
  %v8684 = vpack.c.bf16 %v8609, %v8608
  %v8685 = vpack.c.bf16 %v8611, %v8610
  %v8686 = vpack.c.bf16 %v8613, %v8612
  %v8687 = vpack.c.bf16 %v8615, %v8614
  %v8688 = vpack.c.bf16 %v8617, %v8616
  %v8689 = vpack.c.bf16 %v8619, %v8618
  %v8690 = vpack.c.bf16 %v8621, %v8620
  %v8691 = vpack.c.bf16 %v8623, %v8622
  %v8692 = vpack.c.bf16 %v8625, %v8624
  %v8693 = vpack.c.bf16 %v8627, %v8626
  %v8694 = vpack.c.bf16 %v8629, %v8628
  %v8695 = vpack.c.bf16 %v8631, %v8630
  %v8696 = vpack.c.bf16 %v8633, %v8632
  %v8697 = vpack.c.bf16 %v8635, %v8634
  %v8698 = vpack.c.bf16 %v8637, %v8636
  %v8699 = vpack.c.bf16 %v8639, %v8638
  %v8700 = vpack.c.bf16 %v8641, %v8640
  %v8701 = vpack.c.bf16 %v8643, %v8642
  %v8702 = vpack.c.bf16 %v8645, %v8644
  %v8703 = vpack.c.bf16 %v8647, %v8646
  %v8704 = vpack.c.bf16 %v8649, %v8648
  %v8705 = vpack.c.bf16 %v8651, %v8650
  %v8706 = vpack.c.bf16 %v8653, %v8652
  %v8707 = vpack.c.bf16 %v8655, %v8654
  %v8708 = vpack.c.bf16 %v8657, %v8656
  %v8709 = vpack.c.bf16 %v8659, %v8658
  %v8710 = vpack.c.bf16 %v8661, %v8660
  %v8711 = vpack.c.bf16 %v8663, %v8662
  %v8712 = vpack.c.bf16 %v8665, %v8664
  %v8713 = vpack.c.bf16 %v8667, %v8666
  %v8714 = vpack.c.bf16 %v8669, %v8668
  %v8715 = vpack.c.bf16 %v8671, %v8670
  %v8716 = vpack.c.bf16 %v8673, %v8672
  %v8717 = vpack.c.bf16 %v8675, %v8674
  %v8718 = vpack.c.bf16 %v8677, %v8676
  %v8719 = vpack.c.bf16 %v8679, %v8678
  %s8720 = scalar_lea.vmem %s6, 64
  %v8721 = vld [vmem:[%s8720] sm:$0xf]
  %v8722 = vld [vmem:[%s8720 + $0x4] sm:$0xf]
  %v8725 = vunpack.c.l.b16 %v8721
  %v8726 = vunpack.c.l.b16 %v8722
  %v8727 = vpack.c.b16 %v8726, %v8725
  %v8730 = vsel %vm125, %v8680, 0
  %v8733 = vsel %vm125, %v8681, 0
  %v8736 = vsel %vm125, %v8682, 0
  %v8739 = vsel %vm125, %v8683, 0
  %v8742 = vsel %vm125, %v8684, 0
  %v8745 = vsel %vm125, %v8685, 0
  %v8748 = vsel %vm125, %v8686, 0
  %v8751 = vsel %vm125, %v8687, 0
  %v8754 = vsel %vm125, %v8688, 0
  %v8757 = vsel %vm125, %v8689, 0
  %v8760 = vsel %vm125, %v8690, 0
  %v8763 = vsel %vm125, %v8691, 0
  %v8766 = vsel %vm125, %v8692, 0
  %v8769 = vsel %vm125, %v8693, 0
  %v8772 = vsel %vm125, %v8694, 0
  %v8775 = vsel %vm125, %v8695, 0
  %v8778 = vsel %vm125, %v8696, 0
  %v8781 = vsel %vm125, %v8697, 0
  %v8784 = vsel %vm125, %v8698, 0
  %v8787 = vsel %vm125, %v8699, 0
  %v8790 = vsel %vm125, %v8700, 0
  %v8793 = vsel %vm125, %v8701, 0
  %v8796 = vsel %vm125, %v8702, 0
  %v8799 = vsel %vm125, %v8703, 0
  %v8802 = vsel %vm125, %v8704, 0
  %v8805 = vsel %vm125, %v8705, 0
  %v8808 = vsel %vm125, %v8706, 0
  %v8811 = vsel %vm125, %v8707, 0
  %v8814 = vsel %vm125, %v8708, 0
  %v8817 = vsel %vm125, %v8709, 0
  %v8820 = vsel %vm125, %v8710, 0
  %v8823 = vsel %vm125, %v8711, 0
  %v8826 = vsel %vm125, %v8712, 0
  %v8829 = vsel %vm125, %v8713, 0
  %v8832 = vsel %vm125, %v8714, 0
  %v8835 = vsel %vm125, %v8715, 0
  %v8838 = vsel %vm125, %v8716, 0
  %v8841 = vsel %vm125, %v8717, 0
  %v8844 = vsel %vm125, %v8718, 0
  %v8847 = vsel %vm125, %v8719, 0
  %8849 = vmatprep.subr.bf16.mxu0 0
  %8850 = vmatpush1.bf16.msra.mxu0 0
  %8851 = vmatprep.subr.bf16.mxu0 0
  %8852 = vmatpush1.bf16.msra.mxu0 0
  %8853 = vmatprep.subr.bf16.mxu0 0
  %8854 = vmatpush1.bf16.msra.mxu0 0
  %8855 = vmatprep.subr.bf16.mxu0 0
  %8856 = vmatpush1.bf16.msra.mxu0 0
  %8857 = vmatprep.subr.bf16.mxu0 0
  %8858 = vmatpush1.bf16.msra.mxu0 0
  %8859 = vmatprep.subr.bf16.mxu0 0
  %8860 = vmatpush1.bf16.msra.mxu0 0
  %8861 = vmatprep.subr.bf16.mxu0 0
  %8862 = vmatpush1.bf16.msra.mxu0 0
  %8863 = vmatprep.subr.bf16.mxu0 0
  %8864 = vmatpush1.bf16.msra.mxu0 %v8727
  %8865 = vmatprep.subr.bf16.mxu0 0
  %8866 = vmatpush2.bf16.msra.mxu0 0
  %8867 = vmatprep.subr.bf16.mxu0 0
  %8868 = vmatpush2.bf16.msra.mxu0 0
  %8869 = vmatprep.subr.bf16.mxu0 0
  %8870 = vmatpush2.bf16.msra.mxu0 0
  %8871 = vmatprep.subr.bf16.mxu0 0
  %8872 = vmatpush2.bf16.msra.mxu0 0
  %8873 = vmatprep.subr.bf16.mxu0 0
  %8874 = vmatpush2.bf16.msra.mxu0 0
  %8875 = vmatprep.subr.bf16.mxu0 0
  %8876 = vmatpush2.bf16.msra.mxu0 0
  %8877 = vmatprep.subr.bf16.mxu0 0
  %8878 = vmatpush2.bf16.msra.mxu0 0
  %8879 = vmatprep.subr.bf16.mxu0 0
  %8880 = vmatpush2.bf16.msra.mxu0 0
  %8881 = vmatprep.mubr.bf16.mxu0 0
  %8882 = vmatmul.mubr.bf16.gmra.mxu0 %v8730
  %v8883 = vpop.f32.mrf.mxu0
  %v8884 = vadd.f32 0.0, %v8883
  %v8885 = vpop.f32.mrf.mxu0
  %v8886 = vpop.f32.mrf.mxu0
  %v8887 = vadd.f32 0.0, %v8886
  %v8888 = vpop.f32.mrf.mxu0
  %8889 = vmatprep.mubr.bf16.mxu0 0
  %8890 = vmatmul.mubr.bf16.gmra.mxu0 %v8733
  %v8891 = vpop.f32.mrf.mxu0
  %v8892 = vadd.f32 0.0, %v8891
  %v8893 = vpop.f32.mrf.mxu0
  %v8894 = vpop.f32.mrf.mxu0
  %v8895 = vadd.f32 0.0, %v8894
  %v8896 = vpop.f32.mrf.mxu0
  %8897 = vmatprep.mubr.bf16.mxu0 0
  %8898 = vmatmul.mubr.bf16.gmra.mxu0 %v8736
  %v8899 = vpop.f32.mrf.mxu0
  %v8900 = vadd.f32 0.0, %v8899
  %v8901 = vpop.f32.mrf.mxu0
  %v8902 = vpop.f32.mrf.mxu0
  %v8903 = vadd.f32 0.0, %v8902
  %v8904 = vpop.f32.mrf.mxu0
  %8905 = vmatprep.mubr.bf16.mxu0 0
  %8906 = vmatmul.mubr.bf16.gmra.mxu0 %v8739
  %v8907 = vpop.f32.mrf.mxu0
  %v8908 = vadd.f32 0.0, %v8907
  %v8909 = vpop.f32.mrf.mxu0
  %v8910 = vpop.f32.mrf.mxu0
  %v8911 = vadd.f32 0.0, %v8910
  %v8912 = vpop.f32.mrf.mxu0
  %8913 = vmatprep.mubr.bf16.mxu0 0
  %8914 = vmatmul.mubr.bf16.gmra.mxu0 %v8742
  %v8915 = vpop.f32.mrf.mxu0
  %v8916 = vpop.f32.mrf.mxu0
  %v8917 = vpop.f32.mrf.mxu0
  %v8918 = vpop.f32.mrf.mxu0
  %8919 = vmatprep.mubr.bf16.mxu0 0
  %8920 = vmatmul.mubr.bf16.gmra.mxu0 %v8745
  %v8921 = vpop.f32.mrf.mxu0
  %v8922 = vadd.f32 0.0, %v8921
  %v8923 = vpop.f32.mrf.mxu0
  %v8924 = vpop.f32.mrf.mxu0
  %v8925 = vadd.f32 0.0, %v8924
  %v8926 = vpop.f32.mrf.mxu0
  %8927 = vmatprep.mubr.bf16.mxu0 0
  %8928 = vmatmul.mubr.bf16.gmra.mxu0 %v8748
  %v8929 = vpop.f32.mrf.mxu0
  %v8930 = vadd.f32 0.0, %v8929
  %v8931 = vpop.f32.mrf.mxu0
  %v8932 = vpop.f32.mrf.mxu0
  %v8933 = vadd.f32 0.0, %v8932
  %v8934 = vpop.f32.mrf.mxu0
  %8935 = vmatprep.mubr.bf16.mxu0 0
  %8936 = vmatmul.mubr.bf16.gmra.mxu0 %v8751
  %v8937 = vpop.f32.mrf.mxu0
  %v8938 = vadd.f32 0.0, %v8937
  %v8939 = vpop.f32.mrf.mxu0
  %v8940 = vpop.f32.mrf.mxu0
  %v8941 = vadd.f32 0.0, %v8940
  %v8942 = vpop.f32.mrf.mxu0
  %8943 = vmatprep.mubr.bf16.mxu0 0
  %8944 = vmatmul.mubr.bf16.gmra.mxu0 %v8754
  %v8945 = vpop.f32.mrf.mxu0
  %v8946 = vadd.f32 0.0, %v8945
  %v8947 = vpop.f32.mrf.mxu0
  %v8948 = vpop.f32.mrf.mxu0
  %v8949 = vadd.f32 0.0, %v8948
  %v8950 = vpop.f32.mrf.mxu0
  %8951 = vmatprep.mubr.bf16.mxu0 0
  %8952 = vmatmul.mubr.bf16.gmra.mxu0 %v8757
  %v8953 = vpop.f32.mrf.mxu0
  %v8954 = vpop.f32.mrf.mxu0
  %v8955 = vpop.f32.mrf.mxu0
  %v8956 = vpop.f32.mrf.mxu0
  %8957 = vmatprep.mubr.bf16.mxu0 0
  %8958 = vmatmul.mubr.bf16.gmra.mxu0 %v8760
  %v8959 = vpop.f32.mrf.mxu0
  %v8960 = vadd.f32 0.0, %v8959
  %v8961 = vpop.f32.mrf.mxu0
  %v8962 = vpop.f32.mrf.mxu0
  %v8963 = vadd.f32 0.0, %v8962
  %v8964 = vpop.f32.mrf.mxu0
  %8965 = vmatprep.mubr.bf16.mxu0 0
  %8966 = vmatmul.mubr.bf16.gmra.mxu0 %v8763
  %v8967 = vpop.f32.mrf.mxu0
  %v8968 = vadd.f32 0.0, %v8967
  %v8969 = vpop.f32.mrf.mxu0
  %v8970 = vpop.f32.mrf.mxu0
  %v8971 = vadd.f32 0.0, %v8970
  %v8972 = vpop.f32.mrf.mxu0
  %8973 = vmatprep.mubr.bf16.mxu0 0
  %8974 = vmatmul.mubr.bf16.gmra.mxu0 %v8766
  %v8975 = vpop.f32.mrf.mxu0
  %v8976 = vadd.f32 0.0, %v8975
  %v8977 = vpop.f32.mrf.mxu0
  %v8978 = vpop.f32.mrf.mxu0
  %v8979 = vadd.f32 0.0, %v8978
  %v8980 = vpop.f32.mrf.mxu0
  %8981 = vmatprep.mubr.bf16.mxu0 0
  %8982 = vmatmul.mubr.bf16.gmra.mxu0 %v8769
  %v8983 = vpop.f32.mrf.mxu0
  %v8984 = vadd.f32 0.0, %v8983
  %v8985 = vpop.f32.mrf.mxu0
  %v8986 = vpop.f32.mrf.mxu0
  %v8987 = vadd.f32 0.0, %v8986
  %v8988 = vpop.f32.mrf.mxu0
  %8989 = vmatprep.mubr.bf16.mxu0 0
  %8990 = vmatmul.mubr.bf16.gmra.mxu0 %v8772
  %v8991 = vpop.f32.mrf.mxu0
  %v8992 = vpop.f32.mrf.mxu0
  %v8993 = vpop.f32.mrf.mxu0
  %v8994 = vpop.f32.mrf.mxu0
  %8995 = vmatprep.mubr.bf16.mxu0 0
  %8996 = vmatmul.mubr.bf16.gmra.mxu0 %v8775
  %v8997 = vpop.f32.mrf.mxu0
  %v8998 = vadd.f32 0.0, %v8997
  %v8999 = vpop.f32.mrf.mxu0
  %v9000 = vpop.f32.mrf.mxu0
  %v9001 = vadd.f32 0.0, %v9000
  %v9002 = vpop.f32.mrf.mxu0
  %9003 = vmatprep.mubr.bf16.mxu0 0
  %9004 = vmatmul.mubr.bf16.gmra.mxu0 %v8778
  %v9005 = vpop.f32.mrf.mxu0
  %v9006 = vadd.f32 0.0, %v9005
  %v9007 = vpop.f32.mrf.mxu0
  %v9008 = vpop.f32.mrf.mxu0
  %v9009 = vadd.f32 0.0, %v9008
  %v9010 = vpop.f32.mrf.mxu0
  %9011 = vmatprep.mubr.bf16.mxu0 0
  %9012 = vmatmul.mubr.bf16.gmra.mxu0 %v8781
  %v9013 = vpop.f32.mrf.mxu0
  %v9014 = vadd.f32 0.0, %v9013
  %v9015 = vpop.f32.mrf.mxu0
  %v9016 = vpop.f32.mrf.mxu0
  %v9017 = vadd.f32 0.0, %v9016
  %v9018 = vpop.f32.mrf.mxu0
  %9019 = vmatprep.mubr.bf16.mxu0 0
  %9020 = vmatmul.mubr.bf16.gmra.mxu0 %v8784
  %v9021 = vpop.f32.mrf.mxu0
  %v9022 = vadd.f32 0.0, %v9021
  %v9023 = vpop.f32.mrf.mxu0
  %v9024 = vpop.f32.mrf.mxu0
  %v9025 = vadd.f32 0.0, %v9024
  %v9026 = vpop.f32.mrf.mxu0
  %9027 = vmatprep.mubr.bf16.mxu0 0
  %9028 = vmatmul.mubr.bf16.gmra.mxu0 %v8787
  %v9029 = vpop.f32.mrf.mxu0
  %v9030 = vpop.f32.mrf.mxu0
  %v9031 = vpop.f32.mrf.mxu0
  %v9032 = vpop.f32.mrf.mxu0
  %9033 = vmatprep.mubr.bf16.mxu0 0
  %9034 = vmatmul.mubr.bf16.gmra.mxu0 %v8790
  %v9035 = vpop.f32.mrf.mxu0
  %v9036 = vadd.f32 0.0, %v9035
  %v9037 = vpop.f32.mrf.mxu0
  %v9038 = vpop.f32.mrf.mxu0
  %v9039 = vadd.f32 0.0, %v9038
  %v9040 = vpop.f32.mrf.mxu0
  %9041 = vmatprep.mubr.bf16.mxu0 0
  %9042 = vmatmul.mubr.bf16.gmra.mxu0 %v8793
  %v9043 = vpop.f32.mrf.mxu0
  %v9044 = vadd.f32 0.0, %v9043
  %v9045 = vpop.f32.mrf.mxu0
  %v9046 = vpop.f32.mrf.mxu0
  %v9047 = vadd.f32 0.0, %v9046
  %v9048 = vpop.f32.mrf.mxu0
  %9049 = vmatprep.mubr.bf16.mxu0 0
  %9050 = vmatmul.mubr.bf16.gmra.mxu0 %v8796
  %v9051 = vpop.f32.mrf.mxu0
  %v9052 = vadd.f32 0.0, %v9051
  %v9053 = vpop.f32.mrf.mxu0
  %v9054 = vpop.f32.mrf.mxu0
  %v9055 = vadd.f32 0.0, %v9054
  %v9056 = vpop.f32.mrf.mxu0
  %9057 = vmatprep.mubr.bf16.mxu0 0
  %9058 = vmatmul.mubr.bf16.gmra.mxu0 %v8799
  %v9059 = vpop.f32.mrf.mxu0
  %v9060 = vadd.f32 0.0, %v9059
  %v9061 = vpop.f32.mrf.mxu0
  %v9062 = vpop.f32.mrf.mxu0
  %v9063 = vadd.f32 0.0, %v9062
  %v9064 = vpop.f32.mrf.mxu0
  %9065 = vmatprep.mubr.bf16.mxu0 0
  %9066 = vmatmul.mubr.bf16.gmra.mxu0 %v8802
  %v9067 = vpop.f32.mrf.mxu0
  %v9068 = vpop.f32.mrf.mxu0
  %v9069 = vpop.f32.mrf.mxu0
  %v9070 = vpop.f32.mrf.mxu0
  %9071 = vmatprep.mubr.bf16.mxu0 0
  %9072 = vmatmul.mubr.bf16.gmra.mxu0 %v8805
  %v9073 = vpop.f32.mrf.mxu0
  %v9074 = vadd.f32 0.0, %v9073
  %v9075 = vpop.f32.mrf.mxu0
  %v9076 = vpop.f32.mrf.mxu0
  %v9077 = vadd.f32 0.0, %v9076
  %v9078 = vpop.f32.mrf.mxu0
  %9079 = vmatprep.mubr.bf16.mxu0 0
  %9080 = vmatmul.mubr.bf16.gmra.mxu0 %v8808
  %v9081 = vpop.f32.mrf.mxu0
  %v9082 = vadd.f32 0.0, %v9081
  %v9083 = vpop.f32.mrf.mxu0
  %v9084 = vpop.f32.mrf.mxu0
  %v9085 = vadd.f32 0.0, %v9084
  %v9086 = vpop.f32.mrf.mxu0
  %9087 = vmatprep.mubr.bf16.mxu0 0
  %9088 = vmatmul.mubr.bf16.gmra.mxu0 %v8811
  %v9089 = vpop.f32.mrf.mxu0
  %v9090 = vadd.f32 0.0, %v9089
  %v9091 = vpop.f32.mrf.mxu0
  %v9092 = vpop.f32.mrf.mxu0
  %v9093 = vadd.f32 0.0, %v9092
  %v9094 = vpop.f32.mrf.mxu0
  %9095 = vmatprep.mubr.bf16.mxu0 0
  %9096 = vmatmul.mubr.bf16.gmra.mxu0 %v8814
  %v9097 = vpop.f32.mrf.mxu0
  %v9098 = vadd.f32 0.0, %v9097
  %v9099 = vpop.f32.mrf.mxu0
  %v9100 = vpop.f32.mrf.mxu0
  %v9101 = vadd.f32 0.0, %v9100
  %v9102 = vpop.f32.mrf.mxu0
  %9103 = vmatprep.mubr.bf16.mxu0 0
  %9104 = vmatmul.mubr.bf16.gmra.mxu0 %v8817
  %v9105 = vpop.f32.mrf.mxu0
  %v9106 = vpop.f32.mrf.mxu0
  %v9107 = vpop.f32.mrf.mxu0
  %v9108 = vpop.f32.mrf.mxu0
  %9109 = vmatprep.mubr.bf16.mxu0 0
  %9110 = vmatmul.mubr.bf16.gmra.mxu0 %v8820
  %v9111 = vpop.f32.mrf.mxu0
  %v9112 = vadd.f32 0.0, %v9111
  %v9113 = vpop.f32.mrf.mxu0
  %v9114 = vpop.f32.mrf.mxu0
  %v9115 = vadd.f32 0.0, %v9114
  %v9116 = vpop.f32.mrf.mxu0
  %9117 = vmatprep.mubr.bf16.mxu0 0
  %9118 = vmatmul.mubr.bf16.gmra.mxu0 %v8823
  %v9119 = vpop.f32.mrf.mxu0
  %v9120 = vadd.f32 0.0, %v9119
  %v9121 = vpop.f32.mrf.mxu0
  %v9122 = vpop.f32.mrf.mxu0
  %v9123 = vadd.f32 0.0, %v9122
  %v9124 = vpop.f32.mrf.mxu0
  %9125 = vmatprep.mubr.bf16.mxu0 0
  %9126 = vmatmul.mubr.bf16.gmra.mxu0 %v8826
  %v9127 = vpop.f32.mrf.mxu0
  %v9128 = vadd.f32 0.0, %v9127
  %v9129 = vpop.f32.mrf.mxu0
  %v9130 = vpop.f32.mrf.mxu0
  %v9131 = vadd.f32 0.0, %v9130
  %v9132 = vpop.f32.mrf.mxu0
  %9133 = vmatprep.mubr.bf16.mxu0 0
  %9134 = vmatmul.mubr.bf16.gmra.mxu0 %v8829
  %v9135 = vpop.f32.mrf.mxu0
  %v9136 = vadd.f32 0.0, %v9135
  %v9137 = vpop.f32.mrf.mxu0
  %v9138 = vpop.f32.mrf.mxu0
  %v9139 = vadd.f32 0.0, %v9138
  %v9140 = vpop.f32.mrf.mxu0
  %9141 = vmatprep.mubr.bf16.mxu0 0
  %9142 = vmatmul.mubr.bf16.gmra.mxu0 %v8832
  %v9143 = vpop.f32.mrf.mxu0
  %v9144 = vpop.f32.mrf.mxu0
  %v9145 = vpop.f32.mrf.mxu0
  %v9146 = vpop.f32.mrf.mxu0
  %9147 = vmatprep.mubr.bf16.mxu0 0
  %9148 = vmatmul.mubr.bf16.gmra.mxu0 %v8835
  %v9149 = vpop.f32.mrf.mxu0
  %v9150 = vadd.f32 0.0, %v9149
  %v9151 = vpop.f32.mrf.mxu0
  %v9152 = vpop.f32.mrf.mxu0
  %v9153 = vadd.f32 0.0, %v9152
  %v9154 = vpop.f32.mrf.mxu0
  %9155 = vmatprep.mubr.bf16.mxu0 0
  %9156 = vmatmul.mubr.bf16.gmra.mxu0 %v8838
  %v9157 = vpop.f32.mrf.mxu0
  %v9158 = vadd.f32 0.0, %v9157
  %v9159 = vpop.f32.mrf.mxu0
  %v9160 = vpop.f32.mrf.mxu0
  %v9161 = vadd.f32 0.0, %v9160
  %v9162 = vpop.f32.mrf.mxu0
  %9163 = vmatprep.mubr.bf16.mxu0 0
  %9164 = vmatmul.mubr.bf16.gmra.mxu0 %v8841
  %v9165 = vpop.f32.mrf.mxu0
  %v9166 = vadd.f32 0.0, %v9165
  %v9167 = vpop.f32.mrf.mxu0
  %v9168 = vpop.f32.mrf.mxu0
  %v9169 = vadd.f32 0.0, %v9168
  %v9170 = vpop.f32.mrf.mxu0
  %9171 = vmatprep.mubr.bf16.mxu0 0
  %9172 = vmatmul.mubr.bf16.gmra.mxu0 %v8844
  %v9173 = vpop.f32.mrf.mxu0
  %v9174 = vadd.f32 0.0, %v9173
  %v9175 = vpop.f32.mrf.mxu0
  %v9176 = vpop.f32.mrf.mxu0
  %v9177 = vadd.f32 0.0, %v9176
  %v9178 = vpop.f32.mrf.mxu0
  %9179 = vmatprep.mubr.bf16.mxu0 0
  %9180 = vmatmul.mubr.bf16.gmra.mxu0 %v8847
  %v9181 = vpop.f32.mrf.mxu0
  %v9182 = vpop.f32.mrf.mxu0
  %v9183 = vpop.f32.mrf.mxu0
  %v9184 = vpop.f32.mrf.mxu0
  %9185 = vdwg.mxu0
  %v9186 = vadd.f32 %v8535, %v8884
  %v9187 = vadd.f32 %v8536, %v8887
  %v9188 = vadd.f32 %v8537, %v8892
  %v9189 = vadd.f32 %v8538, %v8895
  %v9190 = vadd.f32 %v8539, %v8900
  %v9191 = vadd.f32 %v8540, %v8903
  %v9192 = vadd.f32 %v8541, %v8908
  %v9193 = vadd.f32 %v8542, %v8911
  %v9194 = vadd.f32 %v8543, %v8922
  %v9195 = vadd.f32 %v8544, %v8925
  %v9196 = vadd.f32 %v8545, %v8930
  %v9197 = vadd.f32 %v8546, %v8933
  %v9198 = vadd.f32 %v8547, %v8938
  %v9199 = vadd.f32 %v8548, %v8941
  %v9200 = vadd.f32 %v8549, %v8946
  %v9201 = vadd.f32 %v8550, %v8949
  %v9202 = vadd.f32 %v8551, %v8960
  %v9203 = vadd.f32 %v8552, %v8963
  %v9204 = vadd.f32 %v8553, %v8968
  %v9205 = vadd.f32 %v8554, %v8971
  %v9206 = vadd.f32 %v8555, %v8976
  %v9207 = vadd.f32 %v8556, %v8979
  %v9208 = vadd.f32 %v8557, %v8984
  %v9209 = vadd.f32 %v8558, %v8987
  %v9210 = vadd.f32 %v8559, %v8998
  %v9211 = vadd.f32 %v8560, %v9001
  %v9212 = vadd.f32 %v8561, %v9006
  %v9213 = vadd.f32 %v8562, %v9009
  %v9214 = vadd.f32 %v8563, %v9014
  %v9215 = vadd.f32 %v8564, %v9017
  %v9216 = vadd.f32 %v8565, %v9022
  %v9217 = vadd.f32 %v8566, %v9025
  %v9218 = vadd.f32 %v8567, %v9036
  %v9219 = vadd.f32 %v8568, %v9039
  %v9220 = vadd.f32 %v8569, %v9044
  %v9221 = vadd.f32 %v8570, %v9047
  %v9222 = vadd.f32 %v8571, %v9052
  %v9223 = vadd.f32 %v8572, %v9055
  %v9224 = vadd.f32 %v8573, %v9060
  %v9225 = vadd.f32 %v8574, %v9063
  %v9226 = vadd.f32 %v8575, %v9074
  %v9227 = vadd.f32 %v8576, %v9077
  %v9228 = vadd.f32 %v8577, %v9082
  %v9229 = vadd.f32 %v8578, %v9085
  %v9230 = vadd.f32 %v8579, %v9090
  %v9231 = vadd.f32 %v8580, %v9093
  %v9232 = vadd.f32 %v8581, %v9098
  %v9233 = vadd.f32 %v8582, %v9101
  %v9234 = vadd.f32 %v8583, %v9112
  %v9235 = vadd.f32 %v8584, %v9115
  %v9236 = vadd.f32 %v8585, %v9120
  %v9237 = vadd.f32 %v8586, %v9123
  %v9238 = vadd.f32 %v8587, %v9128
  %v9239 = vadd.f32 %v8588, %v9131
  %v9240 = vadd.f32 %v8589, %v9136
  %v9241 = vadd.f32 %v8590, %v9139
  %v9242 = vadd.f32 %v8591, %v9150
  %v9243 = vadd.f32 %v8592, %v9153
  %v9244 = vadd.f32 %v8593, %v9158
  %v9245 = vadd.f32 %v8594, %v9161
  %v9246 = vadd.f32 %v8595, %v9166
  %v9247 = vadd.f32 %v8596, %v9169
  %v9248 = vadd.f32 %v8597, %v9174
  %v9249 = vadd.f32 %v8598, %v9177
  %v9250 = vld [vmem:[%s7] sm:$0x7]
  %v9251 = vlaneseq
  %v9252 = vshrl.u32 %v9251, 7
  %v9253 = vsub.s32 0, %v9252
  %v9254 = vrot.slane %v9250, %v9253
  %v9255 = vadd.f32 %v9186, %v9254
  %v9256 = vadd.f32 %v9187, %v9254
  %v9257 = vadd.f32 %v9188, %v9254
  %v9258 = vadd.f32 %v9189, %v9254
  %v9259 = vadd.f32 %v9190, %v9254
  %v9260 = vadd.f32 %v9191, %v9254
  %v9261 = vadd.f32 %v9192, %v9254
  %v9262 = vadd.f32 %v9193, %v9254
  %v9263 = vadd.f32 %v9194, %v9254
  %v9264 = vadd.f32 %v9195, %v9254
  %v9265 = vadd.f32 %v9196, %v9254
  %v9266 = vadd.f32 %v9197, %v9254
  %v9267 = vadd.f32 %v9198, %v9254
  %v9268 = vadd.f32 %v9199, %v9254
  %v9269 = vadd.f32 %v9200, %v9254
  %v9270 = vadd.f32 %v9201, %v9254
  %v9271 = vadd.f32 %v9202, %v9254
  %v9272 = vadd.f32 %v9203, %v9254
  %v9273 = vadd.f32 %v9204, %v9254
  %v9274 = vadd.f32 %v9205, %v9254
  %v9275 = vadd.f32 %v9206, %v9254
  %v9276 = vadd.f32 %v9207, %v9254
  %v9277 = vadd.f32 %v9208, %v9254
  %v9278 = vadd.f32 %v9209, %v9254
  %v9279 = vadd.f32 %v9210, %v9254
  %v9280 = vadd.f32 %v9211, %v9254
  %v9281 = vadd.f32 %v9212, %v9254
  %v9282 = vadd.f32 %v9213, %v9254
  %v9283 = vadd.f32 %v9214, %v9254
  %v9284 = vadd.f32 %v9215, %v9254
  %v9285 = vadd.f32 %v9216, %v9254
  %v9286 = vadd.f32 %v9217, %v9254
  %v9287 = vadd.f32 %v9218, %v9254
  %v9288 = vadd.f32 %v9219, %v9254
  %v9289 = vadd.f32 %v9220, %v9254
  %v9290 = vadd.f32 %v9221, %v9254
  %v9291 = vadd.f32 %v9222, %v9254
  %v9292 = vadd.f32 %v9223, %v9254
  %v9293 = vadd.f32 %v9224, %v9254
  %v9294 = vadd.f32 %v9225, %v9254
  %v9295 = vadd.f32 %v9226, %v9254
  %v9296 = vadd.f32 %v9227, %v9254
  %v9297 = vadd.f32 %v9228, %v9254
  %v9298 = vadd.f32 %v9229, %v9254
  %v9299 = vadd.f32 %v9230, %v9254
  %v9300 = vadd.f32 %v9231, %v9254
  %v9301 = vadd.f32 %v9232, %v9254
  %v9302 = vadd.f32 %v9233, %v9254
  %v9303 = vadd.f32 %v9234, %v9254
  %v9304 = vadd.f32 %v9235, %v9254
  %v9305 = vadd.f32 %v9236, %v9254
  %v9306 = vadd.f32 %v9237, %v9254
  %v9307 = vadd.f32 %v9238, %v9254
  %v9308 = vadd.f32 %v9239, %v9254
  %v9309 = vadd.f32 %v9240, %v9254
  %v9310 = vadd.f32 %v9241, %v9254
  %v9311 = vadd.f32 %v9242, %v9254
  %v9312 = vadd.f32 %v9243, %v9254
  %v9313 = vadd.f32 %v9244, %v9254
  %v9314 = vadd.f32 %v9245, %v9254
  %v9315 = vadd.f32 %v9246, %v9254
  %v9316 = vadd.f32 %v9247, %v9254
  %v9317 = vadd.f32 %v9248, %v9254
  %v9318 = vadd.f32 %v9249, %v9254
  %v9319 = vmax.f32 %v9255, %v9263
  %v9320 = vmax.f32 %v9256, %v9264
  %v9321 = vmax.f32 %v9257, %v9265
  %v9322 = vmax.f32 %v9258, %v9266
  %v9323 = vmax.f32 %v9259, %v9267
  %v9324 = vmax.f32 %v9260, %v9268
  %v9325 = vmax.f32 %v9261, %v9269
  %v9326 = vmax.f32 %v9262, %v9270
  %v9327 = vmax.f32 %v9271, %v9279
  %v9328 = vmax.f32 %v9272, %v9280
  %v9329 = vmax.f32 %v9273, %v9281
  %v9330 = vmax.f32 %v9274, %v9282
  %v9331 = vmax.f32 %v9275, %v9283
  %v9332 = vmax.f32 %v9276, %v9284
  %v9333 = vmax.f32 %v9277, %v9285
  %v9334 = vmax.f32 %v9278, %v9286
  %v9335 = vmax.f32 %v9287, %v9295
  %v9336 = vmax.f32 %v9288, %v9296
  %v9337 = vmax.f32 %v9289, %v9297
  %v9338 = vmax.f32 %v9290, %v9298
  %v9339 = vmax.f32 %v9291, %v9299
  %v9340 = vmax.f32 %v9292, %v9300
  %v9341 = vmax.f32 %v9293, %v9301
  %v9342 = vmax.f32 %v9294, %v9302
  %v9343 = vmax.f32 %v9303, %v9311
  %v9344 = vmax.f32 %v9304, %v9312
  %v9345 = vmax.f32 %v9305, %v9313
  %v9346 = vmax.f32 %v9306, %v9314
  %v9347 = vmax.f32 %v9307, %v9315
  %v9348 = vmax.f32 %v9308, %v9316
  %v9349 = vmax.f32 %v9309, %v9317
  %v9350 = vmax.f32 %v9310, %v9318
  %v9351 = vmax.f32 %v9319, %v9320
  %v9352 = vmax.f32 %v9321, %v9322
  %v9353 = vmax.f32 %v9323, %v9324
  %v9354 = vmax.f32 %v9325, %v9326
  %v9355 = vmax.f32 %v9327, %v9328
  %v9356 = vmax.f32 %v9329, %v9330
  %v9357 = vmax.f32 %v9331, %v9332
  %v9358 = vmax.f32 %v9333, %v9334
  %v9359 = vmax.f32 %v9335, %v9336
  %v9360 = vmax.f32 %v9337, %v9338
  %v9361 = vmax.f32 %v9339, %v9340
  %v9362 = vmax.f32 %v9341, %v9342
  %v9363 = vmax.f32 %v9343, %v9344
  %v9364 = vmax.f32 %v9345, %v9346
  %v9365 = vmax.f32 %v9347, %v9348
  %v9366 = vmax.f32 %v9349, %v9350
  %v9367 = vmax.f32 %v9351, 0.0
  %v9368 = vmax.f32 %v9352, 0.0
  %v9369 = vmax.f32 %v9353, 0.0
  %v9370 = vmax.f32 %v9354, 0.0
  %v9371 = vmax.f32 %v9355, 0.0
  %v9372 = vmax.f32 %v9356, 0.0
  %v9373 = vmax.f32 %v9357, 0.0
  %v9374 = vmax.f32 %v9358, 0.0
  %v9375 = vmax.f32 %v9359, 0.0
  %v9376 = vmax.f32 %v9360, 0.0
  %v9377 = vmax.f32 %v9361, 0.0
  %v9378 = vmax.f32 %v9362, 0.0
  %v9379 = vmax.f32 %v9363, 0.0
  %v9380 = vmax.f32 %v9364, 0.0
  %v9381 = vmax.f32 %v9365, 0.0
  %v9382 = vmax.f32 %v9366, 0.0
  %v9383 = vmul.f32 %v9367, %v40
  %v9384 = vmul.f32 %v9368, %v40
  %v9385 = vmul.f32 %v9369, %v40
  %v9386 = vmul.f32 %v9370, %v40
  %v9387 = vmul.f32 %v9371, %v40
  %v9388 = vmul.f32 %v9372, %v40
  %v9389 = vmul.f32 %v9373, %v40
  %v9390 = vmul.f32 %v9374, %v40
  %v9391 = vmul.f32 %v9375, %v40
  %v9392 = vmul.f32 %v9376, %v40
  %v9393 = vmul.f32 %v9377, %v40
  %v9394 = vmul.f32 %v9378, %v40
  %v9395 = vmul.f32 %v9379, %v40
  %v9396 = vmul.f32 %v9380, %v40
  %v9397 = vmul.f32 %v9381, %v40
  %v9398 = vmul.f32 %v9382, %v40
  %v9399 = vsel %vm1089, %v9383, 0.0
  %v9400 = vsel %vm1089, %v9384, 0.0
  %v9401 = vadd.f32 %v9399, %v9400
  %v9402 = vsel %vm1089, %v9385, 0.0
  %v9403 = vadd.f32 %v9401, %v9402
  %v9404 = vsel %vm1089, %v9386, 0.0
  %v9405 = vadd.f32 %v9403, %v9404
  %v9406 = vsel %vm1089, %v9387, 0.0
  %v9407 = vadd.f32 %v9405, %v9406
  %v9408 = vsel %vm1089, %v9388, 0.0
  %v9409 = vadd.f32 %v9407, %v9408
  %v9410 = vsel %vm1089, %v9389, 0.0
  %v9411 = vadd.f32 %v9409, %v9410
  %v9412 = vsel %vm1089, %v9390, 0.0
  %v9413 = vadd.f32 %v9411, %v9412
  %v9414 = vsel %vm1089, %v9391, 0.0
  %v9415 = vadd.f32 %v9413, %v9414
  %v9416 = vsel %vm1089, %v9392, 0.0
  %v9417 = vadd.f32 %v9415, %v9416
  %v9418 = vsel %vm1089, %v9393, 0.0
  %v9419 = vadd.f32 %v9417, %v9418
  %v9420 = vsel %vm1089, %v9394, 0.0
  %v9421 = vadd.f32 %v9419, %v9420
  %v9422 = vsel %vm1089, %v9395, 0.0
  %v9423 = vadd.f32 %v9421, %v9422
  %v9424 = vsel %vm1089, %v9396, 0.0
  %v9425 = vadd.f32 %v9423, %v9424
  %v9426 = vsel %vm1089, %v9397, 0.0
  %v9427 = vadd.f32 %v9425, %v9426
  %v9428 = vsel %vm1089, %v9398, 0.0
  %v9429 = vadd.f32 %v9427, %v9428
  %v9430 = vrot.slane %v9429, 4
  %v9431 = vadd.f32 %v9429, %v9430
  %v9432 = vrot.slane %v9431, 2
  %v9433 = vadd.f32 %v9431, %v9432
  %v9434 = vrot.slane %v9433, 1
  %v9435 = vadd.f32 %v9433, %v9434
  %v9436 = vmul.f32 %v9435, 0.03125
  %v9437 = vmul.f32 %v9383, %v9383
  %v9438 = vmul.f32 %v9384, %v9384
  %v9439 = vmul.f32 %v9385, %v9385
  %v9440 = vmul.f32 %v9386, %v9386
  %v9441 = vmul.f32 %v9387, %v9387
  %v9442 = vmul.f32 %v9388, %v9388
  %v9443 = vmul.f32 %v9389, %v9389
  %v9444 = vmul.f32 %v9390, %v9390
  %v9445 = vmul.f32 %v9391, %v9391
  %v9446 = vmul.f32 %v9392, %v9392
  %v9447 = vmul.f32 %v9393, %v9393
  %v9448 = vmul.f32 %v9394, %v9394
  %v9449 = vmul.f32 %v9395, %v9395
  %v9450 = vmul.f32 %v9396, %v9396
  %v9451 = vmul.f32 %v9397, %v9397
  %v9452 = vmul.f32 %v9398, %v9398
  %v9453 = vsel %vm1089, %v9437, 0.0
  %v9454 = vsel %vm1089, %v9438, 0.0
  %v9455 = vadd.f32 %v9453, %v9454
  %v9456 = vsel %vm1089, %v9439, 0.0
  %v9457 = vadd.f32 %v9455, %v9456
  %v9458 = vsel %vm1089, %v9440, 0.0
  %v9459 = vadd.f32 %v9457, %v9458
  %v9460 = vsel %vm1089, %v9441, 0.0
  %v9461 = vadd.f32 %v9459, %v9460
  %v9462 = vsel %vm1089, %v9442, 0.0
  %v9463 = vadd.f32 %v9461, %v9462
  %v9464 = vsel %vm1089, %v9443, 0.0
  %v9465 = vadd.f32 %v9463, %v9464
  %v9466 = vsel %vm1089, %v9444, 0.0
  %v9467 = vadd.f32 %v9465, %v9466
  %v9468 = vsel %vm1089, %v9445, 0.0
  %v9469 = vadd.f32 %v9467, %v9468
  %v9470 = vsel %vm1089, %v9446, 0.0
  %v9471 = vadd.f32 %v9469, %v9470
  %v9472 = vsel %vm1089, %v9447, 0.0
  %v9473 = vadd.f32 %v9471, %v9472
  %v9474 = vsel %vm1089, %v9448, 0.0
  %v9475 = vadd.f32 %v9473, %v9474
  %v9476 = vsel %vm1089, %v9449, 0.0
  %v9477 = vadd.f32 %v9475, %v9476
  %v9478 = vsel %vm1089, %v9450, 0.0
  %v9479 = vadd.f32 %v9477, %v9478
  %v9480 = vsel %vm1089, %v9451, 0.0
  %v9481 = vadd.f32 %v9479, %v9480
  %v9482 = vsel %vm1089, %v9452, 0.0
  %v9483 = vadd.f32 %v9481, %v9482
  %v9484 = vrot.slane %v9483, 4
  %v9485 = vadd.f32 %v9483, %v9484
  %v9486 = vrot.slane %v9485, 2
  %v9487 = vadd.f32 %v9485, %v9486
  %v9488 = vrot.slane %v9487, 1
  %v9489 = vadd.f32 %v9487, %v9488
  %v9490 = vmul.f32 %v9489, 0.03125
  %v9491 = vmul.f32 %v9436, %v9436
  %v9492 = vsub.f32 %v9490, %v9491
  %v9493 = vsub.f32 %v9367, %v9436
  %v9494 = vsub.f32 %v9368, %v9436
  %v9495 = vsub.f32 %v9369, %v9436
  %v9496 = vsub.f32 %v9370, %v9436
  %v9497 = vsub.f32 %v9371, %v9436
  %v9498 = vsub.f32 %v9372, %v9436
  %v9499 = vsub.f32 %v9373, %v9436
  %v9500 = vsub.f32 %v9374, %v9436
  %v9501 = vsub.f32 %v9375, %v9436
  %v9502 = vsub.f32 %v9376, %v9436
  %v9503 = vsub.f32 %v9377, %v9436
  %v9504 = vsub.f32 %v9378, %v9436
  %v9505 = vsub.f32 %v9379, %v9436
  %v9506 = vsub.f32 %v9380, %v9436
  %v9507 = vsub.f32 %v9381, %v9436
  %v9508 = vsub.f32 %v9382, %v9436
  %v9509 = vadd.f32 %v9492, 1e-05
  %v9510 = vrsqrt.pop %v9509
  %v9511 = vmul.f32 %v9493, %v9510
  %v9512 = vmul.f32 %v9494, %v9510
  %v9513 = vmul.f32 %v9495, %v9510
  %v9514 = vmul.f32 %v9496, %v9510
  %v9515 = vmul.f32 %v9497, %v9510
  %v9516 = vmul.f32 %v9498, %v9510
  %v9517 = vmul.f32 %v9499, %v9510
  %v9518 = vmul.f32 %v9500, %v9510
  %v9519 = vmul.f32 %v9501, %v9510
  %v9520 = vmul.f32 %v9502, %v9510
  %v9521 = vmul.f32 %v9503, %v9510
  %v9522 = vmul.f32 %v9504, %v9510
  %v9523 = vmul.f32 %v9505, %v9510
  %v9524 = vmul.f32 %v9506, %v9510
  %v9525 = vmul.f32 %v9507, %v9510
  %v9526 = vmul.f32 %v9508, %v9510
  %v9527 = vlaneseq
  %v9528 = vshrl.u32 %v9527, 7
  %v9529 = vsub.s32 1, %v9528
  %v9530 = vrot.slane %v9250, %v9529
  %v9531 = vmul.f32 %v9511, %v9530
  %v9532 = vmul.f32 %v9512, %v9530
  %v9533 = vmul.f32 %v9513, %v9530
  %v9534 = vmul.f32 %v9514, %v9530
  %v9535 = vmul.f32 %v9515, %v9530
  %v9536 = vmul.f32 %v9516, %v9530
  %v9537 = vmul.f32 %v9517, %v9530
  %v9538 = vmul.f32 %v9518, %v9530
  %v9539 = vmul.f32 %v9519, %v9530
  %v9540 = vmul.f32 %v9520, %v9530
  %v9541 = vmul.f32 %v9521, %v9530
  %v9542 = vmul.f32 %v9522, %v9530
  %v9543 = vmul.f32 %v9523, %v9530
  %v9544 = vmul.f32 %v9524, %v9530
  %v9545 = vmul.f32 %v9525, %v9530
  %v9546 = vmul.f32 %v9526, %v9530
  %v9547 = vlaneseq
  %v9548 = vshrl.u32 %v9547, 7
  %v9549 = vsub.s32 2, %v9548
  %v9550 = vrot.slane %v9250, %v9549
  %v9551 = vadd.f32 %v9531, %v9550
  %v9552 = vadd.f32 %v9532, %v9550
  %v9553 = vadd.f32 %v9533, %v9550
  %v9554 = vadd.f32 %v9534, %v9550
  %v9555 = vadd.f32 %v9535, %v9550
  %v9556 = vadd.f32 %v9536, %v9550
  %v9557 = vadd.f32 %v9537, %v9550
  %v9558 = vadd.f32 %v9538, %v9550
  %v9559 = vadd.f32 %v9539, %v9550
  %v9560 = vadd.f32 %v9540, %v9550
  %v9561 = vadd.f32 %v9541, %v9550
  %v9562 = vadd.f32 %v9542, %v9550
  %v9563 = vadd.f32 %v9543, %v9550
  %v9564 = vadd.f32 %v9544, %v9550
  %v9565 = vadd.f32 %v9545, %v9550
  %v9566 = vadd.f32 %v9546, %v9550
  %v9567 = vpack.c.bf16 %v9551, %v9551
  %v9568 = vpack.c.bf16 %v9552, %v9552
  %v9569 = vpack.c.bf16 %v9553, %v9553
  %v9570 = vpack.c.bf16 %v9554, %v9554
  %v9571 = vpack.c.bf16 %v9555, %v9555
  %v9572 = vpack.c.bf16 %v9556, %v9556
  %v9573 = vpack.c.bf16 %v9557, %v9557
  %v9574 = vpack.c.bf16 %v9558, %v9558
  %v9575 = vpack.c.bf16 %v9559, %v9559
  %v9576 = vpack.c.bf16 %v9560, %v9560
  %v9577 = vpack.c.bf16 %v9561, %v9561
  %v9578 = vpack.c.bf16 %v9562, %v9562
  %v9579 = vpack.c.bf16 %v9563, %v9563
  %v9580 = vpack.c.bf16 %v9564, %v9564
  %v9581 = vpack.c.bf16 %v9565, %v9565
  %v9582 = vpack.c.bf16 %v9566, %v9566
  %v9583 = vld [vmem:[%s8] sm:$0xf]
  %v9584 = vld [vmem:[%s8 + $0x4] sm:$0xf]
  %v9585 = vld [vmem:[%s8 + $0x8] sm:$0xf]
  %v9586 = vld [vmem:[%s8 + $0xc] sm:$0xf]
  %s9587 = scalar_lea.vmem %s8, 16
  %v9588 = vld [vmem:[%s9587] sm:$0xf]
  %v9589 = vld [vmem:[%s9587 + $0x4] sm:$0xf]
  %v9590 = vld [vmem:[%s9587 + $0x8] sm:$0xf]
  %v9591 = vld [vmem:[%s9587 + $0xc] sm:$0xf]
  %v9596 = vunpack.c.l.b16 %v9588
  %v9597 = vunpack.c.l.b16 %v9589
  %v9598 = vunpack.c.l.b16 %v9590
  %v9599 = vunpack.c.l.b16 %v9591
  %v9600 = vpack.c.b16 %v9597, %v9596
  %v9601 = vpack.c.b16 %v9599, %v9598
  %v9605 = vsel %vm1089, %v9568, 0
  %9607 = vmatprep.subr.bf16.mxu0 0
  %9608 = vmatpush1.bf16.msra.mxu0 0
  %9609 = vmatprep.subr.bf16.mxu0 0
  %9610 = vmatpush1.bf16.msra.mxu0 0
  %9611 = vmatprep.subr.bf16.mxu0 0
  %9612 = vmatpush1.bf16.msra.mxu0 0
  %9613 = vmatprep.subr.bf16.mxu0 0
  %9614 = vmatpush1.bf16.msra.mxu0 0
  %9615 = vmatprep.subr.bf16.mxu0 0
  %9616 = vmatpush1.bf16.msra.mxu0 0
  %9617 = vmatprep.subr.bf16.mxu0 0
  %9618 = vmatpush1.bf16.msra.mxu0 0
  %9619 = vmatprep.subr.bf16.mxu0 0
  %9620 = vmatpush1.bf16.msra.mxu0 %v9601
  %9621 = vmatprep.subr.bf16.mxu0 0
  %9622 = vmatpush1.bf16.msra.mxu0 %v9600
  %9623 = vmatprep.subr.bf16.mxu0 0
  %9624 = vmatpush2.bf16.msra.mxu0 0
  %9625 = vmatprep.subr.bf16.mxu0 0
  %9626 = vmatpush2.bf16.msra.mxu0 0
  %9627 = vmatprep.subr.bf16.mxu0 0
  %9628 = vmatpush2.bf16.msra.mxu0 0
  %9629 = vmatprep.subr.bf16.mxu0 0
  %9630 = vmatpush2.bf16.msra.mxu0 0
  %9631 = vmatprep.subr.bf16.mxu0 0
  %9632 = vmatpush2.bf16.msra.mxu0 0
  %9633 = vmatprep.subr.bf16.mxu0 0
  %9634 = vmatpush2.bf16.msra.mxu0 0
  %9635 = vmatprep.subr.bf16.mxu0 0
  %9636 = vmatpush2.bf16.msra.mxu0 0
  %9637 = vmatprep.subr.bf16.mxu0 0
  %9638 = vmatpush2.bf16.msra.mxu0 0
  %9639 = vmatprep.mubr.bf16.mxu0 0
  %9640 = vmatmul.mubr.bf16.gmra.mxu0 %v9605
  %v9641 = vpop.f32.mrf.mxu0
  %v9642 = vadd.f32 0.0, %v9641
  %v9643 = vpop.f32.mrf.mxu0
  %v9644 = vpop.f32.mrf.mxu0
  %v9645 = vpop.f32.mrf.mxu0
  %9646 = vdwg.mxu0
  %v9651 = vunpack.c.l.b16 %v9583
  %v9652 = vunpack.c.l.b16 %v9584
  %v9653 = vunpack.c.l.b16 %v9585
  %v9654 = vunpack.c.l.b16 %v9586
  %v9655 = vpack.c.b16 %v9652, %v9651
  %v9656 = vpack.c.b16 %v9654, %v9653
  %v9660 = vsel %vm1089, %v9567, 0
  %9662 = vmatprep.subr.bf16.mxu0 0
  %9663 = vmatpush1.bf16.msra.mxu0 0
  %9664 = vmatprep.subr.bf16.mxu0 0
  %9665 = vmatpush1.bf16.msra.mxu0 0
  %9666 = vmatprep.subr.bf16.mxu0 0
  %9667 = vmatpush1.bf16.msra.mxu0 0
  %9668 = vmatprep.subr.bf16.mxu0 0
  %9669 = vmatpush1.bf16.msra.mxu0 0
  %9670 = vmatprep.subr.bf16.mxu0 0
  %9671 = vmatpush1.bf16.msra.mxu0 0
  %9672 = vmatprep.subr.bf16.mxu0 0
  %9673 = vmatpush1.bf16.msra.mxu0 0
  %9674 = vmatprep.subr.bf16.mxu0 0
  %9675 = vmatpush1.bf16.msra.mxu0 %v9656
  %9676 = vmatprep.subr.bf16.mxu0 0
  %9677 = vmatpush1.bf16.msra.mxu0 %v9655
  %9678 = vmatprep.subr.bf16.mxu0 0
  %9679 = vmatpush2.bf16.msra.mxu0 0
  %9680 = vmatprep.subr.bf16.mxu0 0
  %9681 = vmatpush2.bf16.msra.mxu0 0
  %9682 = vmatprep.subr.bf16.mxu0 0
  %9683 = vmatpush2.bf16.msra.mxu0 0
  %9684 = vmatprep.subr.bf16.mxu0 0
  %9685 = vmatpush2.bf16.msra.mxu0 0
  %9686 = vmatprep.subr.bf16.mxu0 0
  %9687 = vmatpush2.bf16.msra.mxu0 0
  %9688 = vmatprep.subr.bf16.mxu0 0
  %9689 = vmatpush2.bf16.msra.mxu0 0
  %9690 = vmatprep.subr.bf16.mxu0 0
  %9691 = vmatpush2.bf16.msra.mxu0 0
  %9692 = vmatprep.subr.bf16.mxu0 0
  %9693 = vmatpush2.bf16.msra.mxu0 0
  %9694 = vmatprep.mubr.bf16.mxu0 0
  %9695 = vmatmul.mubr.bf16.gmra.mxu0 %v9660
  %v9696 = vpop.f32.mrf.mxu0
  %v9697 = vadd.f32 %v9642, %v9696
  %v9698 = vpop.f32.mrf.mxu0
  %v9699 = vpop.f32.mrf.mxu0
  %v9700 = vpop.f32.mrf.mxu0
  %9701 = vdwg.mxu0
  %s9702 = scalar_lea.vmem %s8, 32
  %v9703 = vld [vmem:[%s9702] sm:$0xf]
  %v9704 = vld [vmem:[%s9702 + $0x4] sm:$0xf]
  %v9705 = vld [vmem:[%s9702 + $0x8] sm:$0xf]
  %v9706 = vld [vmem:[%s9702 + $0xc] sm:$0xf]
  %v9711 = vunpack.c.l.b16 %v9703
  %v9712 = vunpack.c.l.b16 %v9704
  %v9713 = vunpack.c.l.b16 %v9705
  %v9714 = vunpack.c.l.b16 %v9706
  %v9715 = vpack.c.b16 %v9712, %v9711
  %v9716 = vpack.c.b16 %v9714, %v9713
  %v9720 = vsel %vm1089, %v9569, 0
  %9722 = vmatprep.subr.bf16.mxu0 0
  %9723 = vmatpush1.bf16.msra.mxu0 0
  %9724 = vmatprep.subr.bf16.mxu0 0
  %9725 = vmatpush1.bf16.msra.mxu0 0
  %9726 = vmatprep.subr.bf16.mxu0 0
  %9727 = vmatpush1.bf16.msra.mxu0 0
  %9728 = vmatprep.subr.bf16.mxu0 0
  %9729 = vmatpush1.bf16.msra.mxu0 0
  %9730 = vmatprep.subr.bf16.mxu0 0
  %9731 = vmatpush1.bf16.msra.mxu0 0
  %9732 = vmatprep.subr.bf16.mxu0 0
  %9733 = vmatpush1.bf16.msra.mxu0 0
  %9734 = vmatprep.subr.bf16.mxu0 0
  %9735 = vmatpush1.bf16.msra.mxu0 %v9716
  %9736 = vmatprep.subr.bf16.mxu0 0
  %9737 = vmatpush1.bf16.msra.mxu0 %v9715
  %9738 = vmatprep.subr.bf16.mxu0 0
  %9739 = vmatpush2.bf16.msra.mxu0 0
  %9740 = vmatprep.subr.bf16.mxu0 0
  %9741 = vmatpush2.bf16.msra.mxu0 0
  %9742 = vmatprep.subr.bf16.mxu0 0
  %9743 = vmatpush2.bf16.msra.mxu0 0
  %9744 = vmatprep.subr.bf16.mxu0 0
  %9745 = vmatpush2.bf16.msra.mxu0 0
  %9746 = vmatprep.subr.bf16.mxu0 0
  %9747 = vmatpush2.bf16.msra.mxu0 0
  %9748 = vmatprep.subr.bf16.mxu0 0
  %9749 = vmatpush2.bf16.msra.mxu0 0
  %9750 = vmatprep.subr.bf16.mxu0 0
  %9751 = vmatpush2.bf16.msra.mxu0 0
  %9752 = vmatprep.subr.bf16.mxu0 0
  %9753 = vmatpush2.bf16.msra.mxu0 0
  %9754 = vmatprep.mubr.bf16.mxu0 0
  %9755 = vmatmul.mubr.bf16.gmra.mxu0 %v9720
  %v9756 = vpop.f32.mrf.mxu0
  %v9757 = vadd.f32 0.0, %v9756
  %v9758 = vpop.f32.mrf.mxu0
  %v9759 = vpop.f32.mrf.mxu0
  %v9760 = vpop.f32.mrf.mxu0
  %9761 = vdwg.mxu0
  %v9762 = vadd.f32 %v9697, %v9757
  %s9763 = scalar_lea.vmem %s8, 48
  %v9764 = vld [vmem:[%s9763] sm:$0xf]
  %v9765 = vld [vmem:[%s9763 + $0x4] sm:$0xf]
  %v9766 = vld [vmem:[%s9763 + $0x8] sm:$0xf]
  %v9767 = vld [vmem:[%s9763 + $0xc] sm:$0xf]
  %v9772 = vunpack.c.l.b16 %v9764
  %v9773 = vunpack.c.l.b16 %v9765
  %v9774 = vunpack.c.l.b16 %v9766
  %v9775 = vunpack.c.l.b16 %v9767
  %v9776 = vpack.c.b16 %v9773, %v9772
  %v9777 = vpack.c.b16 %v9775, %v9774
  %v9781 = vsel %vm1089, %v9570, 0
  %9783 = vmatprep.subr.bf16.mxu0 0
  %9784 = vmatpush1.bf16.msra.mxu0 0
  %9785 = vmatprep.subr.bf16.mxu0 0
  %9786 = vmatpush1.bf16.msra.mxu0 0
  %9787 = vmatprep.subr.bf16.mxu0 0
  %9788 = vmatpush1.bf16.msra.mxu0 0
  %9789 = vmatprep.subr.bf16.mxu0 0
  %9790 = vmatpush1.bf16.msra.mxu0 0
  %9791 = vmatprep.subr.bf16.mxu0 0
  %9792 = vmatpush1.bf16.msra.mxu0 0
  %9793 = vmatprep.subr.bf16.mxu0 0
  %9794 = vmatpush1.bf16.msra.mxu0 0
  %9795 = vmatprep.subr.bf16.mxu0 0
  %9796 = vmatpush1.bf16.msra.mxu0 %v9777
  %9797 = vmatprep.subr.bf16.mxu0 0
  %9798 = vmatpush1.bf16.msra.mxu0 %v9776
  %9799 = vmatprep.subr.bf16.mxu0 0
  %9800 = vmatpush2.bf16.msra.mxu0 0
  %9801 = vmatprep.subr.bf16.mxu0 0
  %9802 = vmatpush2.bf16.msra.mxu0 0
  %9803 = vmatprep.subr.bf16.mxu0 0
  %9804 = vmatpush2.bf16.msra.mxu0 0
  %9805 = vmatprep.subr.bf16.mxu0 0
  %9806 = vmatpush2.bf16.msra.mxu0 0
  %9807 = vmatprep.subr.bf16.mxu0 0
  %9808 = vmatpush2.bf16.msra.mxu0 0
  %9809 = vmatprep.subr.bf16.mxu0 0
  %9810 = vmatpush2.bf16.msra.mxu0 0
  %9811 = vmatprep.subr.bf16.mxu0 0
  %9812 = vmatpush2.bf16.msra.mxu0 0
  %9813 = vmatprep.subr.bf16.mxu0 0
  %9814 = vmatpush2.bf16.msra.mxu0 0
  %9815 = vmatprep.mubr.bf16.mxu0 0
  %9816 = vmatmul.mubr.bf16.gmra.mxu0 %v9781
  %v9817 = vpop.f32.mrf.mxu0
  %v9818 = vadd.f32 0.0, %v9817
  %v9819 = vpop.f32.mrf.mxu0
  %v9820 = vpop.f32.mrf.mxu0
  %v9821 = vpop.f32.mrf.mxu0
  %9822 = vdwg.mxu0
  %v9823 = vadd.f32 %v9762, %v9818
  %s9824 = scalar_lea.vmem %s8, 64
  %v9825 = vld [vmem:[%s9824] sm:$0xf]
  %v9826 = vld [vmem:[%s9824 + $0x4] sm:$0xf]
  %v9827 = vld [vmem:[%s9824 + $0x8] sm:$0xf]
  %v9828 = vld [vmem:[%s9824 + $0xc] sm:$0xf]
  %v9833 = vunpack.c.l.b16 %v9825
  %v9834 = vunpack.c.l.b16 %v9826
  %v9835 = vunpack.c.l.b16 %v9827
  %v9836 = vunpack.c.l.b16 %v9828
  %v9837 = vpack.c.b16 %v9834, %v9833
  %v9838 = vpack.c.b16 %v9836, %v9835
  %v9842 = vsel %vm1089, %v9571, 0
  %9844 = vmatprep.subr.bf16.mxu0 0
  %9845 = vmatpush1.bf16.msra.mxu0 0
  %9846 = vmatprep.subr.bf16.mxu0 0
  %9847 = vmatpush1.bf16.msra.mxu0 0
  %9848 = vmatprep.subr.bf16.mxu0 0
  %9849 = vmatpush1.bf16.msra.mxu0 0
  %9850 = vmatprep.subr.bf16.mxu0 0
  %9851 = vmatpush1.bf16.msra.mxu0 0
  %9852 = vmatprep.subr.bf16.mxu0 0
  %9853 = vmatpush1.bf16.msra.mxu0 0
  %9854 = vmatprep.subr.bf16.mxu0 0
  %9855 = vmatpush1.bf16.msra.mxu0 0
  %9856 = vmatprep.subr.bf16.mxu0 0
  %9857 = vmatpush1.bf16.msra.mxu0 %v9838
  %9858 = vmatprep.subr.bf16.mxu0 0
  %9859 = vmatpush1.bf16.msra.mxu0 %v9837
  %9860 = vmatprep.subr.bf16.mxu0 0
  %9861 = vmatpush2.bf16.msra.mxu0 0
  %9862 = vmatprep.subr.bf16.mxu0 0
  %9863 = vmatpush2.bf16.msra.mxu0 0
  %9864 = vmatprep.subr.bf16.mxu0 0
  %9865 = vmatpush2.bf16.msra.mxu0 0
  %9866 = vmatprep.subr.bf16.mxu0 0
  %9867 = vmatpush2.bf16.msra.mxu0 0
  %9868 = vmatprep.subr.bf16.mxu0 0
  %9869 = vmatpush2.bf16.msra.mxu0 0
  %9870 = vmatprep.subr.bf16.mxu0 0
  %9871 = vmatpush2.bf16.msra.mxu0 0
  %9872 = vmatprep.subr.bf16.mxu0 0
  %9873 = vmatpush2.bf16.msra.mxu0 0
  %9874 = vmatprep.subr.bf16.mxu0 0
  %9875 = vmatpush2.bf16.msra.mxu0 0
  %9876 = vmatprep.mubr.bf16.mxu0 0
  %9877 = vmatmul.mubr.bf16.gmra.mxu0 %v9842
  %v9878 = vpop.f32.mrf.mxu0
  %v9879 = vadd.f32 0.0, %v9878
  %v9880 = vpop.f32.mrf.mxu0
  %v9881 = vpop.f32.mrf.mxu0
  %v9882 = vpop.f32.mrf.mxu0
  %9883 = vdwg.mxu0
  %v9884 = vadd.f32 %v9823, %v9879
  %s9885 = scalar_lea.vmem %s8, 80
  %v9886 = vld [vmem:[%s9885] sm:$0xf]
  %v9887 = vld [vmem:[%s9885 + $0x4] sm:$0xf]
  %v9888 = vld [vmem:[%s9885 + $0x8] sm:$0xf]
  %v9889 = vld [vmem:[%s9885 + $0xc] sm:$0xf]
  %v9894 = vunpack.c.l.b16 %v9886
  %v9895 = vunpack.c.l.b16 %v9887
  %v9896 = vunpack.c.l.b16 %v9888
  %v9897 = vunpack.c.l.b16 %v9889
  %v9898 = vpack.c.b16 %v9895, %v9894
  %v9899 = vpack.c.b16 %v9897, %v9896
  %v9903 = vsel %vm1089, %v9572, 0
  %9905 = vmatprep.subr.bf16.mxu0 0
  %9906 = vmatpush1.bf16.msra.mxu0 0
  %9907 = vmatprep.subr.bf16.mxu0 0
  %9908 = vmatpush1.bf16.msra.mxu0 0
  %9909 = vmatprep.subr.bf16.mxu0 0
  %9910 = vmatpush1.bf16.msra.mxu0 0
  %9911 = vmatprep.subr.bf16.mxu0 0
  %9912 = vmatpush1.bf16.msra.mxu0 0
  %9913 = vmatprep.subr.bf16.mxu0 0
  %9914 = vmatpush1.bf16.msra.mxu0 0
  %9915 = vmatprep.subr.bf16.mxu0 0
  %9916 = vmatpush1.bf16.msra.mxu0 0
  %9917 = vmatprep.subr.bf16.mxu0 0
  %9918 = vmatpush1.bf16.msra.mxu0 %v9899
  %9919 = vmatprep.subr.bf16.mxu0 0
  %9920 = vmatpush1.bf16.msra.mxu0 %v9898
  %9921 = vmatprep.subr.bf16.mxu0 0
  %9922 = vmatpush2.bf16.msra.mxu0 0
  %9923 = vmatprep.subr.bf16.mxu0 0
  %9924 = vmatpush2.bf16.msra.mxu0 0
  %9925 = vmatprep.subr.bf16.mxu0 0
  %9926 = vmatpush2.bf16.msra.mxu0 0
  %9927 = vmatprep.subr.bf16.mxu0 0
  %9928 = vmatpush2.bf16.msra.mxu0 0
  %9929 = vmatprep.subr.bf16.mxu0 0
  %9930 = vmatpush2.bf16.msra.mxu0 0
  %9931 = vmatprep.subr.bf16.mxu0 0
  %9932 = vmatpush2.bf16.msra.mxu0 0
  %9933 = vmatprep.subr.bf16.mxu0 0
  %9934 = vmatpush2.bf16.msra.mxu0 0
  %9935 = vmatprep.subr.bf16.mxu0 0
  %9936 = vmatpush2.bf16.msra.mxu0 0
  %9937 = vmatprep.mubr.bf16.mxu0 0
  %9938 = vmatmul.mubr.bf16.gmra.mxu0 %v9903
  %v9939 = vpop.f32.mrf.mxu0
  %v9940 = vadd.f32 0.0, %v9939
  %v9941 = vpop.f32.mrf.mxu0
  %v9942 = vpop.f32.mrf.mxu0
  %v9943 = vpop.f32.mrf.mxu0
  %9944 = vdwg.mxu0
  %v9945 = vadd.f32 %v9884, %v9940
  %s9946 = scalar_lea.vmem %s8, 96
  %v9947 = vld [vmem:[%s9946] sm:$0xf]
  %v9948 = vld [vmem:[%s9946 + $0x4] sm:$0xf]
  %v9949 = vld [vmem:[%s9946 + $0x8] sm:$0xf]
  %v9950 = vld [vmem:[%s9946 + $0xc] sm:$0xf]
  %v9955 = vunpack.c.l.b16 %v9947
  %v9956 = vunpack.c.l.b16 %v9948
  %v9957 = vunpack.c.l.b16 %v9949
  %v9958 = vunpack.c.l.b16 %v9950
  %v9959 = vpack.c.b16 %v9956, %v9955
  %v9960 = vpack.c.b16 %v9958, %v9957
  %v9964 = vsel %vm1089, %v9573, 0
  %9966 = vmatprep.subr.bf16.mxu0 0
  %9967 = vmatpush1.bf16.msra.mxu0 0
  %9968 = vmatprep.subr.bf16.mxu0 0
  %9969 = vmatpush1.bf16.msra.mxu0 0
  %9970 = vmatprep.subr.bf16.mxu0 0
  %9971 = vmatpush1.bf16.msra.mxu0 0
  %9972 = vmatprep.subr.bf16.mxu0 0
  %9973 = vmatpush1.bf16.msra.mxu0 0
  %9974 = vmatprep.subr.bf16.mxu0 0
  %9975 = vmatpush1.bf16.msra.mxu0 0
  %9976 = vmatprep.subr.bf16.mxu0 0
  %9977 = vmatpush1.bf16.msra.mxu0 0
  %9978 = vmatprep.subr.bf16.mxu0 0
  %9979 = vmatpush1.bf16.msra.mxu0 %v9960
  %9980 = vmatprep.subr.bf16.mxu0 0
  %9981 = vmatpush1.bf16.msra.mxu0 %v9959
  %9982 = vmatprep.subr.bf16.mxu0 0
  %9983 = vmatpush2.bf16.msra.mxu0 0
  %9984 = vmatprep.subr.bf16.mxu0 0
  %9985 = vmatpush2.bf16.msra.mxu0 0
  %9986 = vmatprep.subr.bf16.mxu0 0
  %9987 = vmatpush2.bf16.msra.mxu0 0
  %9988 = vmatprep.subr.bf16.mxu0 0
  %9989 = vmatpush2.bf16.msra.mxu0 0
  %9990 = vmatprep.subr.bf16.mxu0 0
  %9991 = vmatpush2.bf16.msra.mxu0 0
  %9992 = vmatprep.subr.bf16.mxu0 0
  %9993 = vmatpush2.bf16.msra.mxu0 0
  %9994 = vmatprep.subr.bf16.mxu0 0
  %9995 = vmatpush2.bf16.msra.mxu0 0
  %9996 = vmatprep.subr.bf16.mxu0 0
  %9997 = vmatpush2.bf16.msra.mxu0 0
  %9998 = vmatprep.mubr.bf16.mxu0 0
  %9999 = vmatmul.mubr.bf16.gmra.mxu0 %v9964
  %v10000 = vpop.f32.mrf.mxu0
  %v10001 = vadd.f32 0.0, %v10000
  %v10002 = vpop.f32.mrf.mxu0
  %v10003 = vpop.f32.mrf.mxu0
  %v10004 = vpop.f32.mrf.mxu0
  %10005 = vdwg.mxu0
  %v10006 = vadd.f32 %v9945, %v10001
  %s10007 = scalar_lea.vmem %s8, 112
  %v10008 = vld [vmem:[%s10007] sm:$0xf]
  %v10009 = vld [vmem:[%s10007 + $0x4] sm:$0xf]
  %v10010 = vld [vmem:[%s10007 + $0x8] sm:$0xf]
  %v10011 = vld [vmem:[%s10007 + $0xc] sm:$0xf]
  %v10016 = vunpack.c.l.b16 %v10008
  %v10017 = vunpack.c.l.b16 %v10009
  %v10018 = vunpack.c.l.b16 %v10010
  %v10019 = vunpack.c.l.b16 %v10011
  %v10020 = vpack.c.b16 %v10017, %v10016
  %v10021 = vpack.c.b16 %v10019, %v10018
  %v10025 = vsel %vm1089, %v9574, 0
  %10027 = vmatprep.subr.bf16.mxu0 0
  %10028 = vmatpush1.bf16.msra.mxu0 0
  %10029 = vmatprep.subr.bf16.mxu0 0
  %10030 = vmatpush1.bf16.msra.mxu0 0
  %10031 = vmatprep.subr.bf16.mxu0 0
  %10032 = vmatpush1.bf16.msra.mxu0 0
  %10033 = vmatprep.subr.bf16.mxu0 0
  %10034 = vmatpush1.bf16.msra.mxu0 0
  %10035 = vmatprep.subr.bf16.mxu0 0
  %10036 = vmatpush1.bf16.msra.mxu0 0
  %10037 = vmatprep.subr.bf16.mxu0 0
  %10038 = vmatpush1.bf16.msra.mxu0 0
  %10039 = vmatprep.subr.bf16.mxu0 0
  %10040 = vmatpush1.bf16.msra.mxu0 %v10021
  %10041 = vmatprep.subr.bf16.mxu0 0
  %10042 = vmatpush1.bf16.msra.mxu0 %v10020
  %10043 = vmatprep.subr.bf16.mxu0 0
  %10044 = vmatpush2.bf16.msra.mxu0 0
  %10045 = vmatprep.subr.bf16.mxu0 0
  %10046 = vmatpush2.bf16.msra.mxu0 0
  %10047 = vmatprep.subr.bf16.mxu0 0
  %10048 = vmatpush2.bf16.msra.mxu0 0
  %10049 = vmatprep.subr.bf16.mxu0 0
  %10050 = vmatpush2.bf16.msra.mxu0 0
  %10051 = vmatprep.subr.bf16.mxu0 0
  %10052 = vmatpush2.bf16.msra.mxu0 0
  %10053 = vmatprep.subr.bf16.mxu0 0
  %10054 = vmatpush2.bf16.msra.mxu0 0
  %10055 = vmatprep.subr.bf16.mxu0 0
  %10056 = vmatpush2.bf16.msra.mxu0 0
  %10057 = vmatprep.subr.bf16.mxu0 0
  %10058 = vmatpush2.bf16.msra.mxu0 0
  %10059 = vmatprep.mubr.bf16.mxu0 0
  %10060 = vmatmul.mubr.bf16.gmra.mxu0 %v10025
  %v10061 = vpop.f32.mrf.mxu0
  %v10062 = vadd.f32 0.0, %v10061
  %v10063 = vpop.f32.mrf.mxu0
  %v10064 = vpop.f32.mrf.mxu0
  %v10065 = vpop.f32.mrf.mxu0
  %10066 = vdwg.mxu0
  %v10067 = vadd.f32 %v10006, %v10062
  %s10068 = scalar_lea.vmem %s8, 128
  %v10069 = vld [vmem:[%s10068] sm:$0xf]
  %v10070 = vld [vmem:[%s10068 + $0x4] sm:$0xf]
  %v10071 = vld [vmem:[%s10068 + $0x8] sm:$0xf]
  %v10072 = vld [vmem:[%s10068 + $0xc] sm:$0xf]
  %v10077 = vunpack.c.l.b16 %v10069
  %v10078 = vunpack.c.l.b16 %v10070
  %v10079 = vunpack.c.l.b16 %v10071
  %v10080 = vunpack.c.l.b16 %v10072
  %v10081 = vpack.c.b16 %v10078, %v10077
  %v10082 = vpack.c.b16 %v10080, %v10079
  %v10086 = vsel %vm1089, %v9575, 0
  %10088 = vmatprep.subr.bf16.mxu0 0
  %10089 = vmatpush1.bf16.msra.mxu0 0
  %10090 = vmatprep.subr.bf16.mxu0 0
  %10091 = vmatpush1.bf16.msra.mxu0 0
  %10092 = vmatprep.subr.bf16.mxu0 0
  %10093 = vmatpush1.bf16.msra.mxu0 0
  %10094 = vmatprep.subr.bf16.mxu0 0
  %10095 = vmatpush1.bf16.msra.mxu0 0
  %10096 = vmatprep.subr.bf16.mxu0 0
  %10097 = vmatpush1.bf16.msra.mxu0 0
  %10098 = vmatprep.subr.bf16.mxu0 0
  %10099 = vmatpush1.bf16.msra.mxu0 0
  %10100 = vmatprep.subr.bf16.mxu0 0
  %10101 = vmatpush1.bf16.msra.mxu0 %v10082
  %10102 = vmatprep.subr.bf16.mxu0 0
  %10103 = vmatpush1.bf16.msra.mxu0 %v10081
  %10104 = vmatprep.subr.bf16.mxu0 0
  %10105 = vmatpush2.bf16.msra.mxu0 0
  %10106 = vmatprep.subr.bf16.mxu0 0
  %10107 = vmatpush2.bf16.msra.mxu0 0
  %10108 = vmatprep.subr.bf16.mxu0 0
  %10109 = vmatpush2.bf16.msra.mxu0 0
  %10110 = vmatprep.subr.bf16.mxu0 0
  %10111 = vmatpush2.bf16.msra.mxu0 0
  %10112 = vmatprep.subr.bf16.mxu0 0
  %10113 = vmatpush2.bf16.msra.mxu0 0
  %10114 = vmatprep.subr.bf16.mxu0 0
  %10115 = vmatpush2.bf16.msra.mxu0 0
  %10116 = vmatprep.subr.bf16.mxu0 0
  %10117 = vmatpush2.bf16.msra.mxu0 0
  %10118 = vmatprep.subr.bf16.mxu0 0
  %10119 = vmatpush2.bf16.msra.mxu0 0
  %10120 = vmatprep.mubr.bf16.mxu0 0
  %10121 = vmatmul.mubr.bf16.gmra.mxu0 %v10086
  %v10122 = vpop.f32.mrf.mxu0
  %v10123 = vadd.f32 0.0, %v10122
  %v10124 = vpop.f32.mrf.mxu0
  %v10125 = vpop.f32.mrf.mxu0
  %v10126 = vpop.f32.mrf.mxu0
  %10127 = vdwg.mxu0
  %v10128 = vadd.f32 %v10067, %v10123
  %s10129 = scalar_lea.vmem %s8, 144
  %v10130 = vld [vmem:[%s10129] sm:$0xf]
  %v10131 = vld [vmem:[%s10129 + $0x4] sm:$0xf]
  %v10132 = vld [vmem:[%s10129 + $0x8] sm:$0xf]
  %v10133 = vld [vmem:[%s10129 + $0xc] sm:$0xf]
  %v10138 = vunpack.c.l.b16 %v10130
  %v10139 = vunpack.c.l.b16 %v10131
  %v10140 = vunpack.c.l.b16 %v10132
  %v10141 = vunpack.c.l.b16 %v10133
  %v10142 = vpack.c.b16 %v10139, %v10138
  %v10143 = vpack.c.b16 %v10141, %v10140
  %v10147 = vsel %vm1089, %v9576, 0
  %10149 = vmatprep.subr.bf16.mxu0 0
  %10150 = vmatpush1.bf16.msra.mxu0 0
  %10151 = vmatprep.subr.bf16.mxu0 0
  %10152 = vmatpush1.bf16.msra.mxu0 0
  %10153 = vmatprep.subr.bf16.mxu0 0
  %10154 = vmatpush1.bf16.msra.mxu0 0
  %10155 = vmatprep.subr.bf16.mxu0 0
  %10156 = vmatpush1.bf16.msra.mxu0 0
  %10157 = vmatprep.subr.bf16.mxu0 0
  %10158 = vmatpush1.bf16.msra.mxu0 0
  %10159 = vmatprep.subr.bf16.mxu0 0
  %10160 = vmatpush1.bf16.msra.mxu0 0
  %10161 = vmatprep.subr.bf16.mxu0 0
  %10162 = vmatpush1.bf16.msra.mxu0 %v10143
  %10163 = vmatprep.subr.bf16.mxu0 0
  %10164 = vmatpush1.bf16.msra.mxu0 %v10142
  %10165 = vmatprep.subr.bf16.mxu0 0
  %10166 = vmatpush2.bf16.msra.mxu0 0
  %10167 = vmatprep.subr.bf16.mxu0 0
  %10168 = vmatpush2.bf16.msra.mxu0 0
  %10169 = vmatprep.subr.bf16.mxu0 0
  %10170 = vmatpush2.bf16.msra.mxu0 0
  %10171 = vmatprep.subr.bf16.mxu0 0
  %10172 = vmatpush2.bf16.msra.mxu0 0
  %10173 = vmatprep.subr.bf16.mxu0 0
  %10174 = vmatpush2.bf16.msra.mxu0 0
  %10175 = vmatprep.subr.bf16.mxu0 0
  %10176 = vmatpush2.bf16.msra.mxu0 0
  %10177 = vmatprep.subr.bf16.mxu0 0
  %10178 = vmatpush2.bf16.msra.mxu0 0
  %10179 = vmatprep.subr.bf16.mxu0 0
  %10180 = vmatpush2.bf16.msra.mxu0 0
  %10181 = vmatprep.mubr.bf16.mxu0 0
  %10182 = vmatmul.mubr.bf16.gmra.mxu0 %v10147
  %v10183 = vpop.f32.mrf.mxu0
  %v10184 = vadd.f32 0.0, %v10183
  %v10185 = vpop.f32.mrf.mxu0
  %v10186 = vpop.f32.mrf.mxu0
  %v10187 = vpop.f32.mrf.mxu0
  %10188 = vdwg.mxu0
  %v10189 = vadd.f32 %v10128, %v10184
  %s10190 = scalar_lea.vmem %s8, 160
  %v10191 = vld [vmem:[%s10190] sm:$0xf]
  %v10192 = vld [vmem:[%s10190 + $0x4] sm:$0xf]
  %v10193 = vld [vmem:[%s10190 + $0x8] sm:$0xf]
  %v10194 = vld [vmem:[%s10190 + $0xc] sm:$0xf]
  %v10199 = vunpack.c.l.b16 %v10191
  %v10200 = vunpack.c.l.b16 %v10192
  %v10201 = vunpack.c.l.b16 %v10193
  %v10202 = vunpack.c.l.b16 %v10194
  %v10203 = vpack.c.b16 %v10200, %v10199
  %v10204 = vpack.c.b16 %v10202, %v10201
  %v10208 = vsel %vm1089, %v9577, 0
  %10210 = vmatprep.subr.bf16.mxu0 0
  %10211 = vmatpush1.bf16.msra.mxu0 0
  %10212 = vmatprep.subr.bf16.mxu0 0
  %10213 = vmatpush1.bf16.msra.mxu0 0
  %10214 = vmatprep.subr.bf16.mxu0 0
  %10215 = vmatpush1.bf16.msra.mxu0 0
  %10216 = vmatprep.subr.bf16.mxu0 0
  %10217 = vmatpush1.bf16.msra.mxu0 0
  %10218 = vmatprep.subr.bf16.mxu0 0
  %10219 = vmatpush1.bf16.msra.mxu0 0
  %10220 = vmatprep.subr.bf16.mxu0 0
  %10221 = vmatpush1.bf16.msra.mxu0 0
  %10222 = vmatprep.subr.bf16.mxu0 0
  %10223 = vmatpush1.bf16.msra.mxu0 %v10204
  %10224 = vmatprep.subr.bf16.mxu0 0
  %10225 = vmatpush1.bf16.msra.mxu0 %v10203
  %10226 = vmatprep.subr.bf16.mxu0 0
  %10227 = vmatpush2.bf16.msra.mxu0 0
  %10228 = vmatprep.subr.bf16.mxu0 0
  %10229 = vmatpush2.bf16.msra.mxu0 0
  %10230 = vmatprep.subr.bf16.mxu0 0
  %10231 = vmatpush2.bf16.msra.mxu0 0
  %10232 = vmatprep.subr.bf16.mxu0 0
  %10233 = vmatpush2.bf16.msra.mxu0 0
  %10234 = vmatprep.subr.bf16.mxu0 0
  %10235 = vmatpush2.bf16.msra.mxu0 0
  %10236 = vmatprep.subr.bf16.mxu0 0
  %10237 = vmatpush2.bf16.msra.mxu0 0
  %10238 = vmatprep.subr.bf16.mxu0 0
  %10239 = vmatpush2.bf16.msra.mxu0 0
  %10240 = vmatprep.subr.bf16.mxu0 0
  %10241 = vmatpush2.bf16.msra.mxu0 0
  %10242 = vmatprep.mubr.bf16.mxu0 0
  %10243 = vmatmul.mubr.bf16.gmra.mxu0 %v10208
  %v10244 = vpop.f32.mrf.mxu0
  %v10245 = vadd.f32 0.0, %v10244
  %v10246 = vpop.f32.mrf.mxu0
  %v10247 = vpop.f32.mrf.mxu0
  %v10248 = vpop.f32.mrf.mxu0
  %10249 = vdwg.mxu0
  %v10250 = vadd.f32 %v10189, %v10245
  %s10251 = scalar_lea.vmem %s8, 176
  %v10252 = vld [vmem:[%s10251] sm:$0xf]
  %v10253 = vld [vmem:[%s10251 + $0x4] sm:$0xf]
  %v10254 = vld [vmem:[%s10251 + $0x8] sm:$0xf]
  %v10255 = vld [vmem:[%s10251 + $0xc] sm:$0xf]
  %v10260 = vunpack.c.l.b16 %v10252
  %v10261 = vunpack.c.l.b16 %v10253
  %v10262 = vunpack.c.l.b16 %v10254
  %v10263 = vunpack.c.l.b16 %v10255
  %v10264 = vpack.c.b16 %v10261, %v10260
  %v10265 = vpack.c.b16 %v10263, %v10262
  %v10269 = vsel %vm1089, %v9578, 0
  %10271 = vmatprep.subr.bf16.mxu0 0
  %10272 = vmatpush1.bf16.msra.mxu0 0
  %10273 = vmatprep.subr.bf16.mxu0 0
  %10274 = vmatpush1.bf16.msra.mxu0 0
  %10275 = vmatprep.subr.bf16.mxu0 0
  %10276 = vmatpush1.bf16.msra.mxu0 0
  %10277 = vmatprep.subr.bf16.mxu0 0
  %10278 = vmatpush1.bf16.msra.mxu0 0
  %10279 = vmatprep.subr.bf16.mxu0 0
  %10280 = vmatpush1.bf16.msra.mxu0 0
  %10281 = vmatprep.subr.bf16.mxu0 0
  %10282 = vmatpush1.bf16.msra.mxu0 0
  %10283 = vmatprep.subr.bf16.mxu0 0
  %10284 = vmatpush1.bf16.msra.mxu0 %v10265
  %10285 = vmatprep.subr.bf16.mxu0 0
  %10286 = vmatpush1.bf16.msra.mxu0 %v10264
  %10287 = vmatprep.subr.bf16.mxu0 0
  %10288 = vmatpush2.bf16.msra.mxu0 0
  %10289 = vmatprep.subr.bf16.mxu0 0
  %10290 = vmatpush2.bf16.msra.mxu0 0
  %10291 = vmatprep.subr.bf16.mxu0 0
  %10292 = vmatpush2.bf16.msra.mxu0 0
  %10293 = vmatprep.subr.bf16.mxu0 0
  %10294 = vmatpush2.bf16.msra.mxu0 0
  %10295 = vmatprep.subr.bf16.mxu0 0
  %10296 = vmatpush2.bf16.msra.mxu0 0
  %10297 = vmatprep.subr.bf16.mxu0 0
  %10298 = vmatpush2.bf16.msra.mxu0 0
  %10299 = vmatprep.subr.bf16.mxu0 0
  %10300 = vmatpush2.bf16.msra.mxu0 0
  %10301 = vmatprep.subr.bf16.mxu0 0
  %10302 = vmatpush2.bf16.msra.mxu0 0
  %10303 = vmatprep.mubr.bf16.mxu0 0
  %10304 = vmatmul.mubr.bf16.gmra.mxu0 %v10269
  %v10305 = vpop.f32.mrf.mxu0
  %v10306 = vadd.f32 0.0, %v10305
  %v10307 = vpop.f32.mrf.mxu0
  %v10308 = vpop.f32.mrf.mxu0
  %v10309 = vpop.f32.mrf.mxu0
  %10310 = vdwg.mxu0
  %v10311 = vadd.f32 %v10250, %v10306
  %s10312 = scalar_lea.vmem %s8, 192
  %v10313 = vld [vmem:[%s10312] sm:$0xf]
  %v10314 = vld [vmem:[%s10312 + $0x4] sm:$0xf]
  %v10315 = vld [vmem:[%s10312 + $0x8] sm:$0xf]
  %v10316 = vld [vmem:[%s10312 + $0xc] sm:$0xf]
  %v10321 = vunpack.c.l.b16 %v10313
  %v10322 = vunpack.c.l.b16 %v10314
  %v10323 = vunpack.c.l.b16 %v10315
  %v10324 = vunpack.c.l.b16 %v10316
  %v10325 = vpack.c.b16 %v10322, %v10321
  %v10326 = vpack.c.b16 %v10324, %v10323
  %v10330 = vsel %vm1089, %v9579, 0
  %10332 = vmatprep.subr.bf16.mxu0 0
  %10333 = vmatpush1.bf16.msra.mxu0 0
  %10334 = vmatprep.subr.bf16.mxu0 0
  %10335 = vmatpush1.bf16.msra.mxu0 0
  %10336 = vmatprep.subr.bf16.mxu0 0
  %10337 = vmatpush1.bf16.msra.mxu0 0
  %10338 = vmatprep.subr.bf16.mxu0 0
  %10339 = vmatpush1.bf16.msra.mxu0 0
  %10340 = vmatprep.subr.bf16.mxu0 0
  %10341 = vmatpush1.bf16.msra.mxu0 0
  %10342 = vmatprep.subr.bf16.mxu0 0
  %10343 = vmatpush1.bf16.msra.mxu0 0
  %10344 = vmatprep.subr.bf16.mxu0 0
  %10345 = vmatpush1.bf16.msra.mxu0 %v10326
  %10346 = vmatprep.subr.bf16.mxu0 0
  %10347 = vmatpush1.bf16.msra.mxu0 %v10325
  %10348 = vmatprep.subr.bf16.mxu0 0
  %10349 = vmatpush2.bf16.msra.mxu0 0
  %10350 = vmatprep.subr.bf16.mxu0 0
  %10351 = vmatpush2.bf16.msra.mxu0 0
  %10352 = vmatprep.subr.bf16.mxu0 0
  %10353 = vmatpush2.bf16.msra.mxu0 0
  %10354 = vmatprep.subr.bf16.mxu0 0
  %10355 = vmatpush2.bf16.msra.mxu0 0
  %10356 = vmatprep.subr.bf16.mxu0 0
  %10357 = vmatpush2.bf16.msra.mxu0 0
  %10358 = vmatprep.subr.bf16.mxu0 0
  %10359 = vmatpush2.bf16.msra.mxu0 0
  %10360 = vmatprep.subr.bf16.mxu0 0
  %10361 = vmatpush2.bf16.msra.mxu0 0
  %10362 = vmatprep.subr.bf16.mxu0 0
  %10363 = vmatpush2.bf16.msra.mxu0 0
  %10364 = vmatprep.mubr.bf16.mxu0 0
  %10365 = vmatmul.mubr.bf16.gmra.mxu0 %v10330
  %v10366 = vpop.f32.mrf.mxu0
  %v10367 = vadd.f32 0.0, %v10366
  %v10368 = vpop.f32.mrf.mxu0
  %v10369 = vpop.f32.mrf.mxu0
  %v10370 = vpop.f32.mrf.mxu0
  %10371 = vdwg.mxu0
  %v10372 = vadd.f32 %v10311, %v10367
  %s10373 = scalar_lea.vmem %s8, 208
  %v10374 = vld [vmem:[%s10373] sm:$0xf]
  %v10375 = vld [vmem:[%s10373 + $0x4] sm:$0xf]
  %v10376 = vld [vmem:[%s10373 + $0x8] sm:$0xf]
  %v10377 = vld [vmem:[%s10373 + $0xc] sm:$0xf]
  %v10382 = vunpack.c.l.b16 %v10374
  %v10383 = vunpack.c.l.b16 %v10375
  %v10384 = vunpack.c.l.b16 %v10376
  %v10385 = vunpack.c.l.b16 %v10377
  %v10386 = vpack.c.b16 %v10383, %v10382
  %v10387 = vpack.c.b16 %v10385, %v10384
  %v10391 = vsel %vm1089, %v9580, 0
  %10393 = vmatprep.subr.bf16.mxu0 0
  %10394 = vmatpush1.bf16.msra.mxu0 0
  %10395 = vmatprep.subr.bf16.mxu0 0
  %10396 = vmatpush1.bf16.msra.mxu0 0
  %10397 = vmatprep.subr.bf16.mxu0 0
  %10398 = vmatpush1.bf16.msra.mxu0 0
  %10399 = vmatprep.subr.bf16.mxu0 0
  %10400 = vmatpush1.bf16.msra.mxu0 0
  %10401 = vmatprep.subr.bf16.mxu0 0
  %10402 = vmatpush1.bf16.msra.mxu0 0
  %10403 = vmatprep.subr.bf16.mxu0 0
  %10404 = vmatpush1.bf16.msra.mxu0 0
  %10405 = vmatprep.subr.bf16.mxu0 0
  %10406 = vmatpush1.bf16.msra.mxu0 %v10387
  %10407 = vmatprep.subr.bf16.mxu0 0
  %10408 = vmatpush1.bf16.msra.mxu0 %v10386
  %10409 = vmatprep.subr.bf16.mxu0 0
  %10410 = vmatpush2.bf16.msra.mxu0 0
  %10411 = vmatprep.subr.bf16.mxu0 0
  %10412 = vmatpush2.bf16.msra.mxu0 0
  %10413 = vmatprep.subr.bf16.mxu0 0
  %10414 = vmatpush2.bf16.msra.mxu0 0
  %10415 = vmatprep.subr.bf16.mxu0 0
  %10416 = vmatpush2.bf16.msra.mxu0 0
  %10417 = vmatprep.subr.bf16.mxu0 0
  %10418 = vmatpush2.bf16.msra.mxu0 0
  %10419 = vmatprep.subr.bf16.mxu0 0
  %10420 = vmatpush2.bf16.msra.mxu0 0
  %10421 = vmatprep.subr.bf16.mxu0 0
  %10422 = vmatpush2.bf16.msra.mxu0 0
  %10423 = vmatprep.subr.bf16.mxu0 0
  %10424 = vmatpush2.bf16.msra.mxu0 0
  %10425 = vmatprep.mubr.bf16.mxu0 0
  %10426 = vmatmul.mubr.bf16.gmra.mxu0 %v10391
  %v10427 = vpop.f32.mrf.mxu0
  %v10428 = vadd.f32 0.0, %v10427
  %v10429 = vpop.f32.mrf.mxu0
  %v10430 = vpop.f32.mrf.mxu0
  %v10431 = vpop.f32.mrf.mxu0
  %10432 = vdwg.mxu0
  %v10433 = vadd.f32 %v10372, %v10428
  %s10434 = scalar_lea.vmem %s8, 224
  %v10435 = vld [vmem:[%s10434] sm:$0xf]
  %v10436 = vld [vmem:[%s10434 + $0x4] sm:$0xf]
  %v10437 = vld [vmem:[%s10434 + $0x8] sm:$0xf]
  %v10438 = vld [vmem:[%s10434 + $0xc] sm:$0xf]
  %v10443 = vunpack.c.l.b16 %v10435
  %v10444 = vunpack.c.l.b16 %v10436
  %v10445 = vunpack.c.l.b16 %v10437
  %v10446 = vunpack.c.l.b16 %v10438
  %v10447 = vpack.c.b16 %v10444, %v10443
  %v10448 = vpack.c.b16 %v10446, %v10445
  %v10452 = vsel %vm1089, %v9581, 0
  %10454 = vmatprep.subr.bf16.mxu0 0
  %10455 = vmatpush1.bf16.msra.mxu0 0
  %10456 = vmatprep.subr.bf16.mxu0 0
  %10457 = vmatpush1.bf16.msra.mxu0 0
  %10458 = vmatprep.subr.bf16.mxu0 0
  %10459 = vmatpush1.bf16.msra.mxu0 0
  %10460 = vmatprep.subr.bf16.mxu0 0
  %10461 = vmatpush1.bf16.msra.mxu0 0
  %10462 = vmatprep.subr.bf16.mxu0 0
  %10463 = vmatpush1.bf16.msra.mxu0 0
  %10464 = vmatprep.subr.bf16.mxu0 0
  %10465 = vmatpush1.bf16.msra.mxu0 0
  %10466 = vmatprep.subr.bf16.mxu0 0
  %10467 = vmatpush1.bf16.msra.mxu0 %v10448
  %10468 = vmatprep.subr.bf16.mxu0 0
  %10469 = vmatpush1.bf16.msra.mxu0 %v10447
  %10470 = vmatprep.subr.bf16.mxu0 0
  %10471 = vmatpush2.bf16.msra.mxu0 0
  %10472 = vmatprep.subr.bf16.mxu0 0
  %10473 = vmatpush2.bf16.msra.mxu0 0
  %10474 = vmatprep.subr.bf16.mxu0 0
  %10475 = vmatpush2.bf16.msra.mxu0 0
  %10476 = vmatprep.subr.bf16.mxu0 0
  %10477 = vmatpush2.bf16.msra.mxu0 0
  %10478 = vmatprep.subr.bf16.mxu0 0
  %10479 = vmatpush2.bf16.msra.mxu0 0
  %10480 = vmatprep.subr.bf16.mxu0 0
  %10481 = vmatpush2.bf16.msra.mxu0 0
  %10482 = vmatprep.subr.bf16.mxu0 0
  %10483 = vmatpush2.bf16.msra.mxu0 0
  %10484 = vmatprep.subr.bf16.mxu0 0
  %10485 = vmatpush2.bf16.msra.mxu0 0
  %10486 = vmatprep.mubr.bf16.mxu0 0
  %10487 = vmatmul.mubr.bf16.gmra.mxu0 %v10452
  %v10488 = vpop.f32.mrf.mxu0
  %v10489 = vadd.f32 0.0, %v10488
  %v10490 = vpop.f32.mrf.mxu0
  %v10491 = vpop.f32.mrf.mxu0
  %v10492 = vpop.f32.mrf.mxu0
  %10493 = vdwg.mxu0
  %v10494 = vadd.f32 %v10433, %v10489
  %s10495 = scalar_lea.vmem %s8, 240
  %v10496 = vld [vmem:[%s10495] sm:$0xf]
  %v10497 = vld [vmem:[%s10495 + $0x4] sm:$0xf]
  %v10498 = vld [vmem:[%s10495 + $0x8] sm:$0xf]
  %v10499 = vld [vmem:[%s10495 + $0xc] sm:$0xf]
  %v10504 = vunpack.c.l.b16 %v10496
  %v10505 = vunpack.c.l.b16 %v10497
  %v10506 = vunpack.c.l.b16 %v10498
  %v10507 = vunpack.c.l.b16 %v10499
  %v10508 = vpack.c.b16 %v10505, %v10504
  %v10509 = vpack.c.b16 %v10507, %v10506
  %v10513 = vsel %vm1089, %v9582, 0
  %10515 = vmatprep.subr.bf16.mxu0 0
  %10516 = vmatpush1.bf16.msra.mxu0 0
  %10517 = vmatprep.subr.bf16.mxu0 0
  %10518 = vmatpush1.bf16.msra.mxu0 0
  %10519 = vmatprep.subr.bf16.mxu0 0
  %10520 = vmatpush1.bf16.msra.mxu0 0
  %10521 = vmatprep.subr.bf16.mxu0 0
  %10522 = vmatpush1.bf16.msra.mxu0 0
  %10523 = vmatprep.subr.bf16.mxu0 0
  %10524 = vmatpush1.bf16.msra.mxu0 0
  %10525 = vmatprep.subr.bf16.mxu0 0
  %10526 = vmatpush1.bf16.msra.mxu0 0
  %10527 = vmatprep.subr.bf16.mxu0 0
  %10528 = vmatpush1.bf16.msra.mxu0 %v10509
  %10529 = vmatprep.subr.bf16.mxu0 0
  %10530 = vmatpush1.bf16.msra.mxu0 %v10508
  %10531 = vmatprep.subr.bf16.mxu0 0
  %10532 = vmatpush2.bf16.msra.mxu0 0
  %10533 = vmatprep.subr.bf16.mxu0 0
  %10534 = vmatpush2.bf16.msra.mxu0 0
  %10535 = vmatprep.subr.bf16.mxu0 0
  %10536 = vmatpush2.bf16.msra.mxu0 0
  %10537 = vmatprep.subr.bf16.mxu0 0
  %10538 = vmatpush2.bf16.msra.mxu0 0
  %10539 = vmatprep.subr.bf16.mxu0 0
  %10540 = vmatpush2.bf16.msra.mxu0 0
  %10541 = vmatprep.subr.bf16.mxu0 0
  %10542 = vmatpush2.bf16.msra.mxu0 0
  %10543 = vmatprep.subr.bf16.mxu0 0
  %10544 = vmatpush2.bf16.msra.mxu0 0
  %10545 = vmatprep.subr.bf16.mxu0 0
  %10546 = vmatpush2.bf16.msra.mxu0 0
  %10547 = vmatprep.mubr.bf16.mxu0 0
  %10548 = vmatmul.mubr.bf16.gmra.mxu0 %v10513
  %v10549 = vpop.f32.mrf.mxu0
  %v10550 = vadd.f32 0.0, %v10549
  %v10551 = vpop.f32.mrf.mxu0
  %v10552 = vpop.f32.mrf.mxu0
  %v10553 = vpop.f32.mrf.mxu0
  %10554 = vdwg.mxu0
  %v10555 = vadd.f32 %v10494, %v10550
  %v10556 = vld [vmem:[%s9] sm:$0x1]
  %v10558 = vlaneseq
  %v10559 = vshrl.u32 %v10558, 7
  %v10560 = vsub.s32 0, %v10559
  %v10561 = vrot.slane %v10556, %v10560
  %v10563 = vadd.f32 %v10555, %v10561
  %10565 = vrot.lane.b32.xlu0 %v10563, 32
  %v10566 = vpop.permute.xlu0 %10565
  %v10568 = vsel %vm1089, %v124, %v10566
  %vm10569 = vcmask 523264
  %10570 = vst.msk [vmem:[%s10] sm:$0xff] %vm10569, %v10568
  // Predicated region
  $region42: #{backbones_forward.1} parent=0 // pred_check
    _
  $region43: #{backbones_forward.1} parent=0 // pred_check_branch
    %10572 = sbr.rel (0) target = $region45
  $region44: #{backbones_forward.1} parent=0 // pred_region
    _
  $region45: #{backbones_forward.1} parent=0 // pred_fallthru
    _
  // Predicated region
  $region46: #{backbones_forward.1} parent=0 // pred_check
    _
  $region47: #{backbones_forward.1} parent=0 // pred_check_branch
    %10574 = sbr.rel (0) target = $region49
  $region48: #{backbones_forward.1} parent=0 // pred_region
    _
  $region49: #{backbones_forward.1} parent=0 // pred_fallthru
    _

</llo_original>
